<compile_context>
chip_gen: v7x
topology: tpu7x:2x2x1
jax: 0.10.0
libtpu: 0.0.40
codegen_flags: <defaults>
</compile_context>

<pallas_src>
import functools

import jax
import jax.numpy as jnp
import numpy as np
from jax.experimental import pallas as pl
from jax.experimental.pallas import tpu as pltpu

NUM_CLASSES = 2
LANE = 128


# ----------------------------------------------------------------------------
# Fused conv3x3("same") + bias + ReLU + maxpool2x2 (one batch block per step)
# ----------------------------------------------------------------------------
def _conv_relu_pool_kernel(x_ref, w_ref, b_ref, o_ref, *, B, H, W, Cin, Cout):
    Ho, Wo = H // 2, W // 2
    x = x_ref[...]                                     # (B, H+2, W+2, Cin) bf16
    # Build the 9-tap patch tensor ONCE in VMEM (tap-major, channel-minor) and
    # do a single wide-K MXU matmul: (B*H*W, 9*Cin) @ (9*Cin, Cout).
    taps = [x[:, ky:ky + H, kx:kx + W, :] for ky in range(3) for kx in range(3)]
    patches = jnp.concatenate(taps, axis=-1).reshape(B * H * W, 9 * Cin)
    acc = jnp.dot(patches, w_ref[...], preferred_element_type=jnp.float32)
    acc = jnp.maximum(acc + b_ref[...], 0.0)           # bias + ReLU in f32
    # 2x2 / stride-2 maxpool via row-major reshapes (no strided ref indexing):
    # pool adjacent W pairs, then adjacent H pairs.
    y = jnp.max(acc.reshape(B * H * Wo, 2, Cout), axis=1)        # (B*H*Wo, Cout)
    y = jnp.max(y.reshape(B, Ho, 2, Wo, Cout), axis=2)           # (B, Ho, Wo, Cout)
    o_ref[...] = y.astype(o_ref.dtype)


def _largest_divisor_at_most(n, cap):
    cap = max(1, min(n, cap))
    while n % cap:
        cap -= 1
    return cap


def conv3x3_relu_pool(x_nhwc, w_flat, b):
    """x:(N,H,W,Cin) bf16, w_flat:(9*Cin,Cout) bf16, b:(1,Cout) f32 -> (N,H/2,W/2,Cout) bf16."""
    N, H, W, Cin = x_nhwc.shape
    assert H % 2 == 0 and W % 2 == 0, "maxpool2x2 needs even spatial dims"
    Cout = w_flat.shape[-1]
    Ho, Wo = H // 2, W // 2
    # Per-image VMEM estimate: haloed input + patch matrix + f32 acc + output.
    per_img = ((H + 2) * (W + 2) * Cin * 2 + H * W * 9 * Cin * 2
               + H * W * Cout * 4 + Ho * Wo * Cout * 2)
    # 4 MiB/step budget keeps double-buffered blocks well inside even v7x's
    # 64 MiB physical / 32 MiB scoped VMEM.
    B_BLK = _largest_divisor_at_most(N, max(1, (4 << 20) // per_img))
    xp = jnp.pad(x_nhwc, ((0, 0), (1, 1), (1, 1), (0, 0)))      # 1-pixel halo only
    kernel = functools.partial(_conv_relu_pool_kernel, B=B_BLK, H=H, W=W,
                               Cin=Cin, Cout=Cout)
    return pl.pallas_call(
        kernel,
        out_shape=jax.ShapeDtypeStruct((N, Ho, Wo, Cout), jnp.bfloat16),
        grid=(N // B_BLK,),
        in_specs=[
            pl.BlockSpec((B_BLK, H + 2, W + 2, Cin), lambda n: (n, 0, 0, 0)),
            pl.BlockSpec((9 * Cin, Cout), lambda n: (0, 0)),
            pl.BlockSpec((1, Cout), lambda n: (0, 0)),
        ],
        out_specs=pl.BlockSpec((B_BLK, Ho, Wo, Cout), lambda n: (n, 0, 0, 0)),
        compiler_params=pltpu.CompilerParams(dimension_semantics=("parallel",)),
    )(xp, w_flat, b)


# ----------------------------------------------------------------------------
# Matmul + bias (+ReLU): bf16 operands on the MXU, f32 accumulation
# ----------------------------------------------------------------------------
def _matmul_bias_act_kernel(x_ref, w_ref, b_ref, o_ref, *, relu):
    # Whole reduction in one MXU pass: no accumulator scratch, no pl.when.
    y = jnp.dot(x_ref[...], w_ref[...], preferred_element_type=jnp.float32)
    y = y + b_ref[...]
    if relu:
        y = jnp.maximum(y, 0.0)
    o_ref[...] = y.astype(o_ref.dtype)


def _matmul_bias_act_ktiled_kernel(x_ref, w_ref, b_ref, o_ref, acc_ref, *, relu):
    k = pl.program_id(2)

    @pl.when(k == 0)
    def _():
        acc_ref[...] = jnp.zeros_like(acc_ref)

    acc_ref[...] += jnp.dot(x_ref[...], w_ref[...],
                            preferred_element_type=jnp.float32)

    @pl.when(k == pl.num_programs(2) - 1)
    def _():
        y = acc_ref[...] + b_ref[...]
        if relu:
            y = jnp.maximum(y, 0.0)
        o_ref[...] = y.astype(o_ref.dtype)


def _pick_tile(dim, unit, target):
    """Largest multiple of `unit` that divides `dim` and is <= target, else the full dim."""
    if dim % unit != 0 or dim <= target:
        return dim
    t = (target // unit) * unit
    while dim % t != 0:
        t -= unit
    return t


def matmul_bias_act(x, w, b, *, relu, out_dtype=jnp.float32):
    """y = act(x @ w + b).  MXU runs in bf16; accumulation/bias/ReLU in f32."""
    M, K = x.shape
    K2, N = w.shape
    assert K == K2, (K, K2)
    x = x.astype(jnp.bfloat16)
    w = w.astype(jnp.bfloat16)
    b2 = b.reshape(1, N).astype(jnp.float32)
    TM = _pick_tile(M, 8, 256)
    # TN <= 256: N >= 512 gives >= 2 parallel grid steps (feeds v7x's 2nd TC).
    TN = _pick_tile(N, LANE, 256)

    def _footprint(tk):   # double-buffered x/w/out blocks + f32 epilogue
        return 2 * (TM * tk * 2 + tk * TN * 2 + TM * TN * 2) + TM * TN * 4

    if _footprint(K) <= (6 << 20):   # comfortably under v5e's 16 MiB scoped default
        grid = (M // TM, N // TN)
        return pl.pallas_call(
            functools.partial(_matmul_bias_act_kernel, relu=relu),
            out_shape=jax.ShapeDtypeStruct((M, N), out_dtype),
            grid=grid,
            in_specs=[
                pl.BlockSpec((TM, K), lambda i, j: (i, 0)),
                pl.BlockSpec((K, TN), lambda i, j: (0, j)),
                pl.BlockSpec((1, TN), lambda i, j: (0, j)),
            ],
            out_specs=pl.BlockSpec((TM, TN), lambda i, j: (i, j)),
            compiler_params=pltpu.CompilerParams(
                dimension_semantics=("parallel", "parallel")),
        )(x, w, b2)

    # Fallback for large K: K-tiled reduction (last grid axis) with f32 scratch.
    TK = _pick_tile(K, LANE, 512)
    grid = (M // TM, N // TN, K // TK)
    return pl.pallas_call(
        functools.partial(_matmul_bias_act_ktiled_kernel, relu=relu),
        out_shape=jax.ShapeDtypeStruct((M, N), out_dtype),
        grid=grid,
        in_specs=[
            pl.BlockSpec((TM, TK), lambda i, j, k: (i, k)),
            pl.BlockSpec((TK, TN), lambda i, j, k: (k, j)),
            pl.BlockSpec((1, TN), lambda i, j, k: (0, j)),
        ],
        out_specs=pl.BlockSpec((TM, TN), lambda i, j, k: (i, j)),
        scratch_shapes=[pltpu.VMEM((TM, TN), jnp.float32)],
        compiler_params=pltpu.CompilerParams(
            dimension_semantics=("parallel", "parallel", "arbitrary")),
    )(x, w, b2)


# ----------------------------------------------------------------------------
# Parameter preparation (one-time re-layout + zero-padding; no per-forward cost)
# ----------------------------------------------------------------------------
def prepare_params(params, image_size):
    feat = image_size // 4

    def conv_taps_flat(w_oihw, cin_pad, cout_pad):
        # (Cout, Cin, 3, 3) -> (3, 3, Cin, Cout), zero-pad Cin/Cout, -> (9*Cin_pad, Cout_pad)
        cout, cin = w_oihw.shape[0], w_oihw.shape[1]
        w = jnp.transpose(w_oihw, (2, 3, 1, 0))
        w = jnp.pad(w, ((0, 0), (0, 0), (0, cin_pad - cin), (0, cout_pad - cout)))
        return w.reshape(9 * cin_pad, cout_pad)

    def pad_vec(v, n):
        return jnp.pad(v, (0, n - v.shape[0]))

    # conv1: Cout zero-padded 64 -> 128 (lane-dense output, full-depth conv2 K).
    conv1_w = conv_taps_flat(params["conv1_w"], 3, 128)             # (27, 128)
    conv1_b = pad_vec(params["conv1_b"], 128).reshape(1, 128)
    # conv2: Cin zero-padded 64 -> 128 to match conv1's padded output channels.
    conv2_w = conv_taps_flat(params["conv2_w"], 128, 128)           # (1152, 128)
    conv2_b = params["conv2_b"].reshape(1, 128)

    # fc1 rows are stored for torch's NCHW flatten (c, h, w); permute once to
    # the NHWC flatten order (h, w, c) used by the Pallas pipeline.
    fc1_w = params["fc1_w"].reshape(128, feat, feat, 512)
    fc1_w = jnp.transpose(fc1_w, (1, 2, 0, 3)).reshape(feat * feat * 128, 512)

    # fc2: N zero-padded 2 -> 128 (lane-dense output; real logits sliced later).
    fc2_w = jnp.pad(params["fc2_w"], ((0, 0), (0, 128 - NUM_CLASSES)))
    fc2_b = pad_vec(params["fc2_b"], 128)

    return {
        "conv1_w": conv1_w.astype(jnp.bfloat16),
        "conv1_b": conv1_b.astype(jnp.float32),
        "conv2_w": conv2_w.astype(jnp.bfloat16),
        "conv2_b": conv2_b.astype(jnp.float32),
        "fc1_w": fc1_w.astype(jnp.bfloat16),
        "fc1_b": params["fc1_b"].astype(jnp.float32),
        "fc2_w": fc2_w.astype(jnp.bfloat16),
        "fc2_b": fc2_b.astype(jnp.float32),
    }


# ----------------------------------------------------------------------------
# Full SimpleCNN forward
# ----------------------------------------------------------------------------
def simple_cnn_forward(prepared, x_nchw):
    # NCHW -> NHWC + bf16 cast; XLA fuses this with the halo pad inside the conv wrapper.
    x = jnp.transpose(x_nchw, (0, 2, 3, 1)).astype(jnp.bfloat16)
    x = conv3x3_relu_pool(x, prepared["conv1_w"], prepared["conv1_b"])   # (N, H/2, W/2, 128)
    x = conv3x3_relu_pool(x, prepared["conv2_w"], prepared["conv2_b"])   # (N, H/4, W/4, 128)
    n = x.shape[0]
    x = x.reshape(n, -1)               # NHWC flatten; fc1_w rows already permuted to match
    x = matmul_bias_act(x, prepared["fc1_w"], prepared["fc1_b"],
                        relu=True, out_dtype=jnp.bfloat16)
    x = matmul_bias_act(x, prepared["fc2_w"], prepared["fc2_b"],
                        relu=False, out_dtype=jnp.float32)
    return x[:, :NUM_CLASSES]          # drop fc2's zero-padded logit columns


# Pure-JAX f32 reference (sanity check only)
def reference_forward(params, x_nchw):
    dn = ("NCHW", "OIHW", "NCHW")
    hp = jax.lax.Precision.HIGHEST
    x = jax.lax.conv_general_dilated(x_nchw, params["conv1_w"], (1, 1), "SAME",
                                     dimension_numbers=dn, precision=hp)
    x = jax.nn.relu(x + params["conv1_b"][None, :, None, None])
    x = jax.lax.reduce_window(x, -jnp.inf, jax.lax.max, (1, 1, 2, 2), (1, 1, 2, 2), "VALID")
    x = jax.lax.conv_general_dilated(x, params["conv2_w"], (1, 1), "SAME",
                                     dimension_numbers=dn, precision=hp)
    x = jax.nn.relu(x + params["conv2_b"][None, :, None, None])
    x = jax.lax.reduce_window(x, -jnp.inf, jax.lax.max, (1, 1, 2, 2), (1, 1, 2, 2), "VALID")
    x = x.reshape(x.shape[0], -1)
    x = jax.nn.relu(jnp.dot(x, params["fc1_w"], precision=hp) + params["fc1_b"])
    x = jnp.dot(x, params["fc2_w"], precision=hp) + params["fc2_b"]
    return x


def init_params(key, image_size):
    feat = image_size // 4
    ks = jax.random.split(key, 8)
    s = 0.05
    return {
        "conv1_w": s * jax.random.normal(ks[0], (64, 3, 3, 3), jnp.float32),
        "conv1_b": s * jax.random.normal(ks[1], (64,), jnp.float32),
        "conv2_w": s * jax.random.normal(ks[2], (128, 64, 3, 3), jnp.float32),
        "conv2_b": s * jax.random.normal(ks[3], (128,), jnp.float32),
        "fc1_w": s * jax.random.normal(ks[4], (128 * feat * feat, 512), jnp.float32),
        "fc1_b": s * jax.random.normal(ks[5], (512,), jnp.float32),
        "fc2_w": s * jax.random.normal(ks[6], (512, 2), jnp.float32),
        "fc2_b": s * jax.random.normal(ks[7], (2,), jnp.float32),
    }


if __name__ == "__main__":
    image_size = 16
    batch = 2
    key = jax.random.PRNGKey(0)
    kp, kx = jax.random.split(key)
    params = init_params(kp, image_size)
    x = jax.random.normal(kx, (batch, 3, image_size, image_size), jnp.float32)  # NCHW like torch

    prepared = prepare_params(params, image_size)
    fwd = jax.jit(simple_cnn_forward)
    out = jax.block_until_ready(fwd(prepared, x))
    assert out.shape == (batch, NUM_CLASSES), out.shape

    ref = jax.block_until_ready(reference_forward(params, x))
    np.testing.assert_allclose(np.asarray(out), np.asarray(ref), rtol=2e-2, atol=2e-2)

    print("KERNEL_OK")
</pallas_src>

<mosaic_0001>
module attributes {stable_mosaic.version = 11 : i64} {
  func.func @_conv_relu_pool_kernel(%arg0: i32, %arg1: memref<2x18x18x3xbf16, #tpu.memory_space<vmem>>, %arg2: memref<27x128xbf16, #tpu.memory_space<vmem>>, %arg3: memref<1x128xf32, #tpu.memory_space<vmem>>, %arg4: memref<2x8x8x128xbf16, #tpu.memory_space<vmem>>) attributes {dimension_semantics = [#tpu.dimension_semantics<parallel>], iteration_bounds = array<i64: 1>, scalar_prefetch = 0 : i64, scratch_operands = 0 : i64, tpu.core_type = #tpu.core_type<tc>, window_params = [{transform_indices = @transform_0, window_bounds = array<i64: 2, 18, 18, 3>}, {pipeline_mode = #tpu.pipeline_mode<synchronous>, transform_indices = @transform_1, window_bounds = array<i64: 27, 128>}, {pipeline_mode = #tpu.pipeline_mode<synchronous>, transform_indices = @transform_2, window_bounds = array<i64: 1, 128>}, {transform_indices = @transform_3, window_bounds = array<i64: 2, 8, 8, 128>}]} {
    %c0 = arith.constant 0 : index
    %c0_0 = arith.constant 0 : index
    %c0_1 = arith.constant 0 : index
    %c0_2 = arith.constant 0 : index
    %0 = vector.load %arg1[%c0, %c0_0, %c0_1, %c0_2] : memref<2x18x18x3xbf16, #tpu.memory_space<vmem>>, vector<2x18x18x3xbf16>
    %1 = vector.extract_strided_slice %0 {offsets = [0, 0, 0, 0], sizes = [2, 16, 16, 3], strides = [1, 1, 1, 1]} : vector<2x18x18x3xbf16> to vector<2x16x16x3xbf16>
    %2 = vector.extract_strided_slice %0 {offsets = [0, 0, 1, 0], sizes = [2, 16, 16, 3], strides = [1, 1, 1, 1]} : vector<2x18x18x3xbf16> to vector<2x16x16x3xbf16>
    %3 = vector.extract_strided_slice %0 {offsets = [0, 0, 2, 0], sizes = [2, 16, 16, 3], strides = [1, 1, 1, 1]} : vector<2x18x18x3xbf16> to vector<2x16x16x3xbf16>
    %4 = vector.extract_strided_slice %0 {offsets = [0, 1, 0, 0], sizes = [2, 16, 16, 3], strides = [1, 1, 1, 1]} : vector<2x18x18x3xbf16> to vector<2x16x16x3xbf16>
    %5 = vector.extract_strided_slice %0 {offsets = [0, 1, 1, 0], sizes = [2, 16, 16, 3], strides = [1, 1, 1, 1]} : vector<2x18x18x3xbf16> to vector<2x16x16x3xbf16>
    %6 = vector.extract_strided_slice %0 {offsets = [0, 1, 2, 0], sizes = [2, 16, 16, 3], strides = [1, 1, 1, 1]} : vector<2x18x18x3xbf16> to vector<2x16x16x3xbf16>
    %7 = vector.extract_strided_slice %0 {offsets = [0, 2, 0, 0], sizes = [2, 16, 16, 3], strides = [1, 1, 1, 1]} : vector<2x18x18x3xbf16> to vector<2x16x16x3xbf16>
    %8 = vector.extract_strided_slice %0 {offsets = [0, 2, 1, 0], sizes = [2, 16, 16, 3], strides = [1, 1, 1, 1]} : vector<2x18x18x3xbf16> to vector<2x16x16x3xbf16>
    %9 = vector.extract_strided_slice %0 {offsets = [0, 2, 2, 0], sizes = [2, 16, 16, 3], strides = [1, 1, 1, 1]} : vector<2x18x18x3xbf16> to vector<2x16x16x3xbf16>
    %10 = tpu.concatenate %1, %2, %3, %4, %5, %6, %7, %8, %9 in 3 : vector<2x16x16x3xbf16>, vector<2x16x16x3xbf16>, vector<2x16x16x3xbf16>, vector<2x16x16x3xbf16>, vector<2x16x16x3xbf16>, vector<2x16x16x3xbf16>, vector<2x16x16x3xbf16>, vector<2x16x16x3xbf16>, vector<2x16x16x3xbf16> -> vector<2x16x16x27xbf16>
    %11 = vector.shape_cast %10 : vector<2x16x16x27xbf16> to vector<512x27xbf16>
    %c0_3 = arith.constant 0 : index
    %c0_4 = arith.constant 0 : index
    %12 = vector.load %arg2[%c0_3, %c0_4] : memref<27x128xbf16, #tpu.memory_space<vmem>>, vector<27x128xbf16>
    %cst = arith.constant dense<0.000000e+00> : vector<512x128xf32>
    %13 = tpu.matmul %11, %12, %cst {dimension_numbers = #tpu.dot_dimension_numbers<[1], [0], [0], [1], [0, 0, 1, 1], [], []>} : vector<512x27xbf16>, vector<27x128xbf16>, vector<512x128xf32> -> vector<512x128xf32>
    %c0_5 = arith.constant 0 : index
    %c0_6 = arith.constant 0 : index
    %14 = vector.load %arg3[%c0_5, %c0_6] : memref<1x128xf32, #tpu.memory_space<vmem>>, vector<1x128xf32>
    %15 = vector.broadcast %14 : vector<1x128xf32> to vector<512x128xf32>
    %16 = arith.addf %13, %15 : vector<512x128xf32>
    %cst_7 = arith.constant 0.000000e+00 : f32
    %17 = vector.broadcast %cst_7 : f32 to vector<512x128xf32>
    %18 = arith.maximumf %16, %17 : vector<512x128xf32>
    %19 = vector.shape_cast %18 : vector<512x128xf32> to vector<256x2x128xf32>
    %cst_8 = arith.constant dense<0xFF800000> : vector<256x128xf32>
    %20 = vector.multi_reduction <maximumf>, %19, %cst_8 [1] : vector<256x2x128xf32> to vector<256x128xf32>
    %21 = vector.shape_cast %20 : vector<256x128xf32> to vector<2x8x2x8x128xf32>
    %cst_9 = arith.constant dense<0xFF800000> : vector<2x8x8x128xf32>
    %22 = vector.multi_reduction <maximumf>, %21, %cst_9 [2] : vector<2x8x2x8x128xf32> to vector<2x8x8x128xf32>
    %23 = arith.truncf %22 : vector<2x8x8x128xf32> to vector<2x8x8x128xbf16>
    %c0_10 = arith.constant 0 : index
    %c0_11 = arith.constant 0 : index
    %c0_12 = arith.constant 0 : index
    %c0_13 = arith.constant 0 : index
    %24 = vector.load %arg4[%c0_10, %c0_11, %c0_12, %c0_13] : memref<2x8x8x128xbf16, #tpu.memory_space<vmem>>, vector<2x8x8x128xbf16>
    tpu.vector_store %arg4[%c0_10, %c0_11, %c0_12, %c0_13], %23 {strides = array<i32>} : memref<2x8x8x128xbf16, #tpu.memory_space<vmem>>, vector<2x8x8x128xbf16>,
    return
  }
  func.func @transform_0(%arg0: i32) -> (i32, i32, i32, i32) {
    %c0_i32 = arith.constant 0 : i32
    %c0_i32_0 = arith.constant 0 : i32
    %c0_i32_1 = arith.constant 0 : i32
    %c0_i32_2 = arith.constant 0 : i32
    return %arg0, %c0_i32, %c0_i32_0, %c0_i32_1 : i32, i32, i32, i32
  }
  func.func @transform_1(%arg0: i32) -> (i32, i32) {
    %c0_i32 = arith.constant 0 : i32
    %c0_i32_0 = arith.constant 0 : i32
    %c0_i32_1 = arith.constant 0 : i32
    return %c0_i32, %c0_i32_0 : i32, i32
  }
  func.func @transform_2(%arg0: i32) -> (i32, i32) {
    %c0_i32 = arith.constant 0 : i32
    %c0_i32_0 = arith.constant 0 : i32
    %c0_i32_1 = arith.constant 0 : i32
    return %c0_i32, %c0_i32_0 : i32, i32
  }
  func.func @transform_3(%arg0: i32) -> (i32, i32, i32, i32) {
    %c0_i32 = arith.constant 0 : i32
    %c0_i32_0 = arith.constant 0 : i32
    %c0_i32_1 = arith.constant 0 : i32
    %c0_i32_2 = arith.constant 0 : i32
    return %arg0, %c0_i32, %c0_i32_0, %c0_i32_1 : i32, i32, i32, i32
  }
}

module attributes {stable_mosaic.version = 11 : i64} {
  func.func @_conv_relu_pool_kernel(%arg0: i32, %arg1: memref<2x10x10x128xbf16, #tpu.memory_space<vmem>>, %arg2: memref<1152x128xbf16, #tpu.memory_space<vmem>>, %arg3: memref<1x128xf32, #tpu.memory_space<vmem>>, %arg4: memref<2x4x4x128xbf16, #tpu.memory_space<vmem>>) attributes {dimension_semantics = [#tpu.dimension_semantics<parallel>], iteration_bounds = array<i64: 1>, scalar_prefetch = 0 : i64, scratch_operands = 0 : i64, tpu.core_type = #tpu.core_type<tc>, window_params = [{transform_indices = @transform_0, window_bounds = array<i64: 2, 10, 10, 128>}, {pipeline_mode = #tpu.pipeline_mode<synchronous>, transform_indices = @transform_1, window_bounds = array<i64: 1152, 128>}, {pipeline_mode = #tpu.pipeline_mode<synchronous>, transform_indices = @transform_2, window_bounds = array<i64: 1, 128>}, {transform_indices = @transform_3, window_bounds = array<i64: 2, 4, 4, 128>}]} {
    %c0 = arith.constant 0 : index
    %c0_0 = arith.constant 0 : index
    %c0_1 = arith.constant 0 : index
    %c0_2 = arith.constant 0 : index
    %0 = vector.load %arg1[%c0, %c0_0, %c0_1, %c0_2] : memref<2x10x10x128xbf16, #tpu.memory_space<vmem>>, vector<2x10x10x128xbf16>
    %1 = vector.extract_strided_slice %0 {offsets = [0, 0, 0, 0], sizes = [2, 8, 8, 128], strides = [1, 1, 1, 1]} : vector<2x10x10x128xbf16> to vector<2x8x8x128xbf16>
    %2 = vector.extract_strided_slice %0 {offsets = [0, 0, 1, 0], sizes = [2, 8, 8, 128], strides = [1, 1, 1, 1]} : vector<2x10x10x128xbf16> to vector<2x8x8x128xbf16>
    %3 = vector.extract_strided_slice %0 {offsets = [0, 0, 2, 0], sizes = [2, 8, 8, 128], strides = [1, 1, 1, 1]} : vector<2x10x10x128xbf16> to vector<2x8x8x128xbf16>
    %4 = vector.extract_strided_slice %0 {offsets = [0, 1, 0, 0], sizes = [2, 8, 8, 128], strides = [1, 1, 1, 1]} : vector<2x10x10x128xbf16> to vector<2x8x8x128xbf16>
    %5 = vector.extract_strided_slice %0 {offsets = [0, 1, 1, 0], sizes = [2, 8, 8, 128], strides = [1, 1, 1, 1]} : vector<2x10x10x128xbf16> to vector<2x8x8x128xbf16>
    %6 = vector.extract_strided_slice %0 {offsets = [0, 1, 2, 0], sizes = [2, 8, 8, 128], strides = [1, 1, 1, 1]} : vector<2x10x10x128xbf16> to vector<2x8x8x128xbf16>
    %7 = vector.extract_strided_slice %0 {offsets = [0, 2, 0, 0], sizes = [2, 8, 8, 128], strides = [1, 1, 1, 1]} : vector<2x10x10x128xbf16> to vector<2x8x8x128xbf16>
    %8 = vector.extract_strided_slice %0 {offsets = [0, 2, 1, 0], sizes = [2, 8, 8, 128], strides = [1, 1, 1, 1]} : vector<2x10x10x128xbf16> to vector<2x8x8x128xbf16>
    %9 = vector.extract_strided_slice %0 {offsets = [0, 2, 2, 0], sizes = [2, 8, 8, 128], strides = [1, 1, 1, 1]} : vector<2x10x10x128xbf16> to vector<2x8x8x128xbf16>
    %10 = tpu.concatenate %1, %2, %3, %4, %5, %6, %7, %8, %9 in 3 : vector<2x8x8x128xbf16>, vector<2x8x8x128xbf16>, vector<2x8x8x128xbf16>, vector<2x8x8x128xbf16>, vector<2x8x8x128xbf16>, vector<2x8x8x128xbf16>, vector<2x8x8x128xbf16>, vector<2x8x8x128xbf16>, vector<2x8x8x128xbf16> -> vector<2x8x8x1152xbf16>
    %11 = vector.shape_cast %10 : vector<2x8x8x1152xbf16> to vector<128x1152xbf16>
    %c0_3 = arith.constant 0 : index
    %c0_4 = arith.constant 0 : index
    %12 = vector.load %arg2[%c0_3, %c0_4] : memref<1152x128xbf16, #tpu.memory_space<vmem>>, vector<1152x128xbf16>
    %cst = arith.constant dense<0.000000e+00> : vector<128x128xf32>
    %13 = tpu.matmul %11, %12, %cst {dimension_numbers = #tpu.dot_dimension_numbers<[1], [0], [0], [1], [0, 0, 1, 1], [], []>} : vector<128x1152xbf16>, vector<1152x128xbf16>, vector<128x128xf32> -> vector<128x128xf32>
    %c0_5 = arith.constant 0 : index
    %c0_6 = arith.constant 0 : index
    %14 = vector.load %arg3[%c0_5, %c0_6] : memref<1x128xf32, #tpu.memory_space<vmem>>, vector<1x128xf32>
    %15 = vector.broadcast %14 : vector<1x128xf32> to vector<128x128xf32>
    %16 = arith.addf %13, %15 : vector<128x128xf32>
    %cst_7 = arith.constant 0.000000e+00 : f32
    %17 = vector.broadcast %cst_7 : f32 to vector<128x128xf32>
    %18 = arith.maximumf %16, %17 : vector<128x128xf32>
    %19 = vector.shape_cast %18 : vector<128x128xf32> to vector<64x2x128xf32>
    %cst_8 = arith.constant dense<0xFF800000> : vector<64x128xf32>
    %20 = vector.multi_reduction <maximumf>, %19, %cst_8 [1] : vector<64x2x128xf32> to vector<64x128xf32>
    %21 = vector.shape_cast %20 : vector<64x128xf32> to vector<2x4x2x4x128xf32>
    %cst_9 = arith.constant dense<0xFF800000> : vector<2x4x4x128xf32>
    %22 = vector.multi_reduction <maximumf>, %21, %cst_9 [2] : vector<2x4x2x4x128xf32> to vector<2x4x4x128xf32>
    %23 = arith.truncf %22 : vector<2x4x4x128xf32> to vector<2x4x4x128xbf16>
    %c0_10 = arith.constant 0 : index
    %c0_11 = arith.constant 0 : index
    %c0_12 = arith.constant 0 : index
    %c0_13 = arith.constant 0 : index
    %24 = vector.load %arg4[%c0_10, %c0_11, %c0_12, %c0_13] : memref<2x4x4x128xbf16, #tpu.memory_space<vmem>>, vector<2x4x4x128xbf16>
    tpu.vector_store %arg4[%c0_10, %c0_11, %c0_12, %c0_13], %23 {strides = array<i32>} : memref<2x4x4x128xbf16, #tpu.memory_space<vmem>>, vector<2x4x4x128xbf16>,
    return
  }
  func.func @transform_0(%arg0: i32) -> (i32, i32, i32, i32) {
    %c0_i32 = arith.constant 0 : i32
    %c0_i32_0 = arith.constant 0 : i32
    %c0_i32_1 = arith.constant 0 : i32
    %c0_i32_2 = arith.constant 0 : i32
    return %arg0, %c0_i32, %c0_i32_0, %c0_i32_1 : i32, i32, i32, i32
  }
  func.func @transform_1(%arg0: i32) -> (i32, i32) {
    %c0_i32 = arith.constant 0 : i32
    %c0_i32_0 = arith.constant 0 : i32
    %c0_i32_1 = arith.constant 0 : i32
    return %c0_i32, %c0_i32_0 : i32, i32
  }
  func.func @transform_2(%arg0: i32) -> (i32, i32) {
    %c0_i32 = arith.constant 0 : i32
    %c0_i32_0 = arith.constant 0 : i32
    %c0_i32_1 = arith.constant 0 : i32
    return %c0_i32, %c0_i32_0 : i32, i32
  }
  func.func @transform_3(%arg0: i32) -> (i32, i32, i32, i32) {
    %c0_i32 = arith.constant 0 : i32
    %c0_i32_0 = arith.constant 0 : i32
    %c0_i32_1 = arith.constant 0 : i32
    %c0_i32_2 = arith.constant 0 : i32
    return %arg0, %c0_i32, %c0_i32_0, %c0_i32_1 : i32, i32, i32, i32
  }
}

module attributes {stable_mosaic.version = 11 : i64} {
  func.func @_matmul_bias_act_kernel(%arg0: i32, %arg1: i32, %arg2: memref<2x2048xbf16, #tpu.memory_space<vmem>>, %arg3: memref<2048x256xbf16, #tpu.memory_space<vmem>>, %arg4: memref<1x256xf32, #tpu.memory_space<vmem>>, %arg5: memref<2x256xbf16, #tpu.memory_space<vmem>>) attributes {dimension_semantics = [#tpu.dimension_semantics<parallel>, #tpu.dimension_semantics<parallel>], iteration_bounds = array<i64: 1, 2>, scalar_prefetch = 0 : i64, scratch_operands = 0 : i64, tpu.core_type = #tpu.core_type<tc>, window_params = [{transform_indices = @transform_0, window_bounds = array<i64: 2, 2048>}, {transform_indices = @transform_1, window_bounds = array<i64: 2048, 256>}, {transform_indices = @transform_2, window_bounds = array<i64: 1, 256>}, {transform_indices = @transform_3, window_bounds = array<i64: 2, 256>}]} {
    %c0 = arith.constant 0 : index
    %c0_0 = arith.constant 0 : index
    %0 = vector.load %arg2[%c0, %c0_0] : memref<2x2048xbf16, #tpu.memory_space<vmem>>, vector<2x2048xbf16>
    %c0_1 = arith.constant 0 : index
    %c0_2 = arith.constant 0 : index
    %1 = vector.load %arg3[%c0_1, %c0_2] : memref<2048x256xbf16, #tpu.memory_space<vmem>>, vector<2048x256xbf16>
    %cst = arith.constant dense<0.000000e+00> : vector<2x256xf32>
    %2 = tpu.matmul %0, %1, %cst {dimension_numbers = #tpu.dot_dimension_numbers<[1], [0], [0], [1], [0, 0, 1, 1], [], []>} : vector<2x2048xbf16>, vector<2048x256xbf16>, vector<2x256xf32> -> vector<2x256xf32>
    %c0_3 = arith.constant 0 : index
    %c0_4 = arith.constant 0 : index
    %3 = vector.load %arg4[%c0_3, %c0_4] : memref<1x256xf32, #tpu.memory_space<vmem>>, vector<1x256xf32>
    %4 = vector.broadcast %3 : vector<1x256xf32> to vector<2x256xf32>
    %5 = arith.addf %2, %4 : vector<2x256xf32>
    %cst_5 = arith.constant 0.000000e+00 : f32
    %6 = vector.broadcast %cst_5 : f32 to vector<2x256xf32>
    %7 = arith.maximumf %5, %6 : vector<2x256xf32>
    %8 = arith.truncf %7 : vector<2x256xf32> to vector<2x256xbf16>
    %c0_6 = arith.constant 0 : index
    %c0_7 = arith.constant 0 : index
    %9 = vector.load %arg5[%c0_6, %c0_7] : memref<2x256xbf16, #tpu.memory_space<vmem>>, vector<2x256xbf16>
    tpu.vector_store %arg5[%c0_6, %c0_7], %8 {strides = array<i32>} : memref<2x256xbf16, #tpu.memory_space<vmem>>, vector<2x256xbf16>,
    return
  }
  func.func @transform_0(%arg0: i32, %arg1: i32) -> (i32, i32) {
    %c0_i32 = arith.constant 0 : i32
    %c0_i32_0 = arith.constant 0 : i32
    return %arg0, %c0_i32 : i32, i32
  }
  func.func @transform_1(%arg0: i32, %arg1: i32) -> (i32, i32) {
    %c0_i32 = arith.constant 0 : i32
    %c0_i32_0 = arith.constant 0 : i32
    return %c0_i32, %arg1 : i32, i32
  }
  func.func @transform_2(%arg0: i32, %arg1: i32) -> (i32, i32) {
    %c0_i32 = arith.constant 0 : i32
    %c0_i32_0 = arith.constant 0 : i32
    return %c0_i32, %arg1 : i32, i32
  }
  func.func @transform_3(%arg0: i32, %arg1: i32) -> (i32, i32) {
    %c0_i32 = arith.constant 0 : i32
    return %arg0, %arg1 : i32, i32
  }
}

module attributes {stable_mosaic.version = 11 : i64} {
  func.func @_matmul_bias_act_kernel(%arg0: i32, %arg1: i32, %arg2: memref<2x512xbf16, #tpu.memory_space<vmem>>, %arg3: memref<512x128xbf16, #tpu.memory_space<vmem>>, %arg4: memref<1x128xf32, #tpu.memory_space<vmem>>, %arg5: memref<2x128xf32, #tpu.memory_space<vmem>>) attributes {dimension_semantics = [#tpu.dimension_semantics<parallel>, #tpu.dimension_semantics<parallel>], iteration_bounds = array<i64: 1, 1>, scalar_prefetch = 0 : i64, scratch_operands = 0 : i64, tpu.core_type = #tpu.core_type<tc>, window_params = [{transform_indices = @transform_0, window_bounds = array<i64: 2, 512>}, {transform_indices = @transform_1, window_bounds = array<i64: 512, 128>}, {transform_indices = @transform_2, window_bounds = array<i64: 1, 128>}, {transform_indices = @transform_3, window_bounds = array<i64: 2, 128>}]} {
    %c0 = arith.constant 0 : index
    %c0_0 = arith.constant 0 : index
    %0 = vector.load %arg2[%c0, %c0_0] : memref<2x512xbf16, #tpu.memory_space<vmem>>, vector<2x512xbf16>
    %c0_1 = arith.constant 0 : index
    %c0_2 = arith.constant 0 : index
    %1 = vector.load %arg3[%c0_1, %c0_2] : memref<512x128xbf16, #tpu.memory_space<vmem>>, vector<512x128xbf16>
    %cst = arith.constant dense<0.000000e+00> : vector<2x128xf32>
    %2 = tpu.matmul %0, %1, %cst {dimension_numbers = #tpu.dot_dimension_numbers<[1], [0], [0], [1], [0, 0, 1, 1], [], []>} : vector<2x512xbf16>, vector<512x128xbf16>, vector<2x128xf32> -> vector<2x128xf32>
    %c0_3 = arith.constant 0 : index
    %c0_4 = arith.constant 0 : index
    %3 = vector.load %arg4[%c0_3, %c0_4] : memref<1x128xf32, #tpu.memory_space<vmem>>, vector<1x128xf32>
    %4 = vector.broadcast %3 : vector<1x128xf32> to vector<2x128xf32>
    %5 = arith.addf %2, %4 : vector<2x128xf32>
    %c0_5 = arith.constant 0 : index
    %c0_6 = arith.constant 0 : index
    %6 = vector.load %arg5[%c0_5, %c0_6] : memref<2x128xf32, #tpu.memory_space<vmem>>, vector<2x128xf32>
    tpu.vector_store %arg5[%c0_5, %c0_6], %5 {strides = array<i32>} : memref<2x128xf32, #tpu.memory_space<vmem>>, vector<2x128xf32>,
    return
  }
  func.func @transform_0(%arg0: i32, %arg1: i32) -> (i32, i32) {
    %c0_i32 = arith.constant 0 : i32
    %c0_i32_0 = arith.constant 0 : i32
    return %arg0, %c0_i32 : i32, i32
  }
  func.func @transform_1(%arg0: i32, %arg1: i32) -> (i32, i32) {
    %c0_i32 = arith.constant 0 : i32
    %c0_i32_0 = arith.constant 0 : i32
    return %c0_i32, %arg1 : i32, i32
  }
  func.func @transform_2(%arg0: i32, %arg1: i32) -> (i32, i32) {
    %c0_i32 = arith.constant 0 : i32
    %c0_i32_0 = arith.constant 0 : i32
    return %c0_i32, %arg1 : i32, i32
  }
  func.func @transform_3(%arg0: i32, %arg1: i32) -> (i32, i32) {
    %c0_i32 = arith.constant 0 : i32
    return %arg0, %arg1 : i32, i32
  }
}

</mosaic_0001>

<llo_original>
// kernel: simple_cnn_forward.7
$region0: #{simple_cnn_forward.7}
  #allocation0 [shape = 'u32[]', space=smem, size = 0x4, offset = 0x4, fixed_abs, tag = 'smem constant byte address 0x4 - core index']
  #allocation1 [shape = 'u32[144,128]{1,0:T(1,128)}', space=vmem, size = 0x12000, scoped, tag = 'internal scratch']
  %s0 = inlined_call_operand.vmem [shape: bf16[2,512], index: 0, kind: input, shape index: {}]
  %s1 = inlined_call_operand.vmem [shape: bf16[512,128], index: 1, kind: input, shape index: {}]
  %s2 = inlined_call_operand.vmem [shape: f32[1,128], index: 2, kind: input, shape index: {}]
  %s3 = inlined_call_operand.hbm [shape: f32[2,128], index: 3, kind: output, shape index: {}]
  %s4 = sld [smem:[#allocation0]]
  $region22: #{simple_cnn_forward.7} parent=0
    _
  %s6 = ssub.s32 1, %s4
  %s7 = scalar_select 0, %s6, %s4
  $region1: #{simple_cnn_forward.7} parent=0
    #allocation2 [shape = 'u8[1024]{0}', space=vmem, size = 0x400, scoped, tag = 'output window, operand 0, single buffered']
    #allocation3 [shape = 's32[1]{0}', space=sflag, size = 0x4, scoped, tag = 'scoped memory for simple_cnn_forward.7']
    %8 = vsyncpa [#allocation3], 0
    // Predicated region
    $region2: #{simple_cnn_forward.7} parent=1 // pred_check
      _
    $region3: #{simple_cnn_forward.7} parent=1 // pred_check_branch
      %10 = sbr.rel (0) target = $region5
    $region4: #{simple_cnn_forward.7} parent=1 // pred_region
      _
    $region5: #{simple_cnn_forward.7} parent=1 // pred_fallthru
      _
    // Predicated region
    $region6: #{simple_cnn_forward.7} parent=1 // pred_check
      _
    $region7: #{simple_cnn_forward.7} parent=1 // pred_check_branch
      %12 = sbr.rel (0) target = $region9
    $region8: #{simple_cnn_forward.7} parent=1 // pred_region
      _
    $region9: #{simple_cnn_forward.7} parent=1 // pred_fallthru
      _
    // Predicated region
    $region10: #{simple_cnn_forward.7} parent=1 // pred_check
      _
    $region11: #{simple_cnn_forward.7} parent=1 // pred_check_branch
      %14 = sbr.rel (0) target = $region13
    $region12: #{simple_cnn_forward.7} parent=1 // pred_region
      _
    $region13: #{simple_cnn_forward.7} parent=1 // pred_fallthru
      _
    %v16 = vld [vmem:[%s0] sm:$0xf]
    %v17 = vld [vmem:[%s1] sm:$0xf]
    %v18 = vld [vmem:[%s1 + $0x4] sm:$0xf]
    %v19 = vld [vmem:[%s1 + $0x8] sm:$0xf]
    %v20 = vld [vmem:[%s1 + $0xc] sm:$0xf]
    %v21 = vld [vmem:[%s1 + $0x10] sm:$0xf]
    %v22 = vld [vmem:[%s1 + $0x14] sm:$0xf]
    %v23 = vld [vmem:[%s1 + $0x18] sm:$0xf]
    %v24 = vld [vmem:[%s1 + $0x1c] sm:$0xf]
    %v25 = vld [vmem:[%s1 + $0x20] sm:$0xf]
    %v26 = vld [vmem:[%s1 + $0x24] sm:$0xf]
    %v27 = vld [vmem:[%s1 + $0x28] sm:$0xf]
    %v28 = vld [vmem:[%s1 + $0x2c] sm:$0xf]
    %v29 = vld [vmem:[%s1 + $0x30] sm:$0xf]
    %v30 = vld [vmem:[%s1 + $0x34] sm:$0xf]
    %v31 = vld [vmem:[%s1 + $0x38] sm:$0xf]
    %v32 = vld [vmem:[%s1 + $0x3c] sm:$0xf]
    %v33 = vld [vmem:[%s1 + $0x40] sm:$0xf]
    %v34 = vld [vmem:[%s1 + $0x44] sm:$0xf]
    %v35 = vld [vmem:[%s1 + $0x48] sm:$0xf]
    %v36 = vld [vmem:[%s1 + $0x4c] sm:$0xf]
    %v37 = vld [vmem:[%s1 + $0x50] sm:$0xf]
    %v38 = vld [vmem:[%s1 + $0x54] sm:$0xf]
    %v39 = vld [vmem:[%s1 + $0x58] sm:$0xf]
    %v40 = vld [vmem:[%s1 + $0x5c] sm:$0xf]
    %v41 = vld [vmem:[%s1 + $0x60] sm:$0xf]
    %v42 = vld [vmem:[%s1 + $0x64] sm:$0xf]
    %v43 = vld [vmem:[%s1 + $0x68] sm:$0xf]
    %v44 = vld [vmem:[%s1 + $0x6c] sm:$0xf]
    %v45 = vld [vmem:[%s1 + $0x70] sm:$0xf]
    %v46 = vld [vmem:[%s1 + $0x74] sm:$0xf]
    %v47 = vld [vmem:[%s1 + $0x78] sm:$0xf]
    %v48 = vld [vmem:[%s1 + $0x7c] sm:$0xf]
    %v49 = vld [vmem:[%s1 + $0x80] sm:$0xf]
    %v50 = vld [vmem:[%s1 + $0x84] sm:$0xf]
    %v51 = vld [vmem:[%s1 + $0x88] sm:$0xf]
    %v52 = vld [vmem:[%s1 + $0x8c] sm:$0xf]
    %v53 = vld [vmem:[%s1 + $0x90] sm:$0xf]
    %v54 = vld [vmem:[%s1 + $0x94] sm:$0xf]
    %v55 = vld [vmem:[%s1 + $0x98] sm:$0xf]
    %v56 = vld [vmem:[%s1 + $0x9c] sm:$0xf]
    %v57 = vld [vmem:[%s1 + $0xa0] sm:$0xf]
    %v58 = vld [vmem:[%s1 + $0xa4] sm:$0xf]
    %v59 = vld [vmem:[%s1 + $0xa8] sm:$0xf]
    %v60 = vld [vmem:[%s1 + $0xac] sm:$0xf]
    %v61 = vld [vmem:[%s1 + $0xb0] sm:$0xf]
    %v62 = vld [vmem:[%s1 + $0xb4] sm:$0xf]
    %v63 = vld [vmem:[%s1 + $0xb8] sm:$0xf]
    %v64 = vld [vmem:[%s1 + $0xbc] sm:$0xf]
    %v65 = vld [vmem:[%s1 + $0xc0] sm:$0xf]
    %v66 = vld [vmem:[%s1 + $0xc4] sm:$0xf]
    %v67 = vld [vmem:[%s1 + $0xc8] sm:$0xf]
    %v68 = vld [vmem:[%s1 + $0xcc] sm:$0xf]
    %v69 = vld [vmem:[%s1 + $0xd0] sm:$0xf]
    %v70 = vld [vmem:[%s1 + $0xd4] sm:$0xf]
    %v71 = vld [vmem:[%s1 + $0xd8] sm:$0xf]
    %v72 = vld [vmem:[%s1 + $0xdc] sm:$0xf]
    %v73 = vld [vmem:[%s1 + $0xe0] sm:$0xf]
    %v74 = vld [vmem:[%s1 + $0xe4] sm:$0xf]
    %v75 = vld [vmem:[%s1 + $0xe8] sm:$0xf]
    %v76 = vld [vmem:[%s1 + $0xec] sm:$0xf]
    %v77 = vld [vmem:[%s1 + $0xf0] sm:$0xf]
    %v78 = vld [vmem:[%s1 + $0xf4] sm:$0xf]
    %v79 = vld [vmem:[%s1 + $0xf8] sm:$0xf]
    %v80 = vld [vmem:[%s1 + $0xfc] sm:$0xf]
    %v81 = vld [vmem:[%s2] sm:$0x1]
    %v83 = vlaneseq
    %v84 = vshrl.u32 %v83, 7
    %v85 = vsub.s32 0, %v84
    %v86 = vrot.slane %v81, %v85
    %v90 = vunpack.c.l.s4 1966171168
    %v91 = vunpack.c.0.s8 %v90
    %v92 = vlaneseq
    %v93 = vshrl.u32 %v92, 7
    %v94 = vsub.s32 %v91, %v93
    %v95 = vrot.slane %v16, %v94
    %v96 = vcombine.high %v95, %v95
    %v98 = vunpack.c.l.s4 1966171168
    %v99 = vunpack.c.0.s8 %v98
    %v100 = vlaneseq
    %v101 = vshrl.u32 %v100, 7
    %v102 = vsub.s32 %v99, %v101
    %v103 = vrot.slane %v95, %v102
    %v105 = vunpack.c.l.s4 1966171168
    %v106 = vunpack.c.0.s8 %v105
    %v107 = vlaneseq
    %v108 = vshrl.u32 %v107, 7
    %v109 = vsub.s32 %v106, %v108
    %v110 = vrot.slane %v96, %v109
    %v111 = vcombine.high %v103, %v103
    %v112 = vcombine.high %v110, %v110
    %v181 = vunpack.c.l.b16 %v17
    %v182 = vunpack.c.l.b16 %v18
    %v183 = vunpack.c.l.b16 %v19
    %v184 = vunpack.c.l.b16 %v20
    %v185 = vunpack.c.l.b16 %v21
    %v186 = vunpack.c.l.b16 %v22
    %v187 = vunpack.c.l.b16 %v23
    %v188 = vunpack.c.l.b16 %v24
    %v189 = vunpack.c.l.b16 %v25
    %v190 = vunpack.c.l.b16 %v26
    %v191 = vunpack.c.l.b16 %v27
    %v192 = vunpack.c.l.b16 %v28
    %v193 = vunpack.c.l.b16 %v29
    %v194 = vunpack.c.l.b16 %v30
    %v195 = vunpack.c.l.b16 %v31
    %v196 = vunpack.c.l.b16 %v32
    %v197 = vunpack.c.l.b16 %v33
    %v198 = vunpack.c.l.b16 %v34
    %v199 = vunpack.c.l.b16 %v35
    %v200 = vunpack.c.l.b16 %v36
    %v201 = vunpack.c.l.b16 %v37
    %v202 = vunpack.c.l.b16 %v38
    %v203 = vunpack.c.l.b16 %v39
    %v204 = vunpack.c.l.b16 %v40
    %v205 = vunpack.c.l.b16 %v41
    %v206 = vunpack.c.l.b16 %v42
    %v207 = vunpack.c.l.b16 %v43
    %v208 = vunpack.c.l.b16 %v44
    %v209 = vunpack.c.l.b16 %v45
    %v210 = vunpack.c.l.b16 %v46
    %v211 = vunpack.c.l.b16 %v47
    %v212 = vunpack.c.l.b16 %v48
    %v213 = vunpack.c.l.b16 %v49
    %v214 = vunpack.c.l.b16 %v50
    %v215 = vunpack.c.l.b16 %v51
    %v216 = vunpack.c.l.b16 %v52
    %v217 = vunpack.c.l.b16 %v53
    %v218 = vunpack.c.l.b16 %v54
    %v219 = vunpack.c.l.b16 %v55
    %v220 = vunpack.c.l.b16 %v56
    %v221 = vunpack.c.l.b16 %v57
    %v222 = vunpack.c.l.b16 %v58
    %v223 = vunpack.c.l.b16 %v59
    %v224 = vunpack.c.l.b16 %v60
    %v225 = vunpack.c.l.b16 %v61
    %v226 = vunpack.c.l.b16 %v62
    %v227 = vunpack.c.l.b16 %v63
    %v228 = vunpack.c.l.b16 %v64
    %v229 = vunpack.c.l.b16 %v65
    %v230 = vunpack.c.l.b16 %v66
    %v231 = vunpack.c.l.b16 %v67
    %v232 = vunpack.c.l.b16 %v68
    %v233 = vunpack.c.l.b16 %v69
    %v234 = vunpack.c.l.b16 %v70
    %v235 = vunpack.c.l.b16 %v71
    %v236 = vunpack.c.l.b16 %v72
    %v237 = vunpack.c.l.b16 %v73
    %v238 = vunpack.c.l.b16 %v74
    %v239 = vunpack.c.l.b16 %v75
    %v240 = vunpack.c.l.b16 %v76
    %v241 = vunpack.c.l.b16 %v77
    %v242 = vunpack.c.l.b16 %v78
    %v243 = vunpack.c.l.b16 %v79
    %v244 = vunpack.c.l.b16 %v80
    %v245 = vpack.c.b16 %v182, %v181
    %v246 = vpack.c.b16 %v184, %v183
    %v247 = vpack.c.b16 %v186, %v185
    %v248 = vpack.c.b16 %v188, %v187
    %v249 = vpack.c.b16 %v190, %v189
    %v250 = vpack.c.b16 %v192, %v191
    %v251 = vpack.c.b16 %v194, %v193
    %v252 = vpack.c.b16 %v196, %v195
    %v253 = vpack.c.b16 %v198, %v197
    %v254 = vpack.c.b16 %v200, %v199
    %v255 = vpack.c.b16 %v202, %v201
    %v256 = vpack.c.b16 %v204, %v203
    %v257 = vpack.c.b16 %v206, %v205
    %v258 = vpack.c.b16 %v208, %v207
    %v259 = vpack.c.b16 %v210, %v209
    %v260 = vpack.c.b16 %v212, %v211
    %v261 = vpack.c.b16 %v214, %v213
    %v262 = vpack.c.b16 %v216, %v215
    %v263 = vpack.c.b16 %v218, %v217
    %v264 = vpack.c.b16 %v220, %v219
    %v265 = vpack.c.b16 %v222, %v221
    %v266 = vpack.c.b16 %v224, %v223
    %v267 = vpack.c.b16 %v226, %v225
    %v268 = vpack.c.b16 %v228, %v227
    %v269 = vpack.c.b16 %v230, %v229
    %v270 = vpack.c.b16 %v232, %v231
    %v271 = vpack.c.b16 %v234, %v233
    %v272 = vpack.c.b16 %v236, %v235
    %v273 = vpack.c.b16 %v238, %v237
    %v274 = vpack.c.b16 %v240, %v239
    %v275 = vpack.c.b16 %v242, %v241
    %v276 = vpack.c.b16 %v244, %v243
    %309 = vmatprep.subr.bf16.mxu0 0
    %310 = vmatpush1.bf16.msra.mxu0 %v245
    %311 = vmatprep.subr.bf16.mxu0 0
    %312 = vmatpush1.bf16.msra.mxu0 %v246
    %313 = vmatprep.subr.bf16.mxu0 0
    %314 = vmatpush1.bf16.msra.mxu0 %v247
    %315 = vmatprep.subr.bf16.mxu0 0
    %316 = vmatpush1.bf16.msra.mxu0 %v248
    %317 = vmatprep.subr.bf16.mxu0 0
    %318 = vmatpush1.bf16.msra.mxu0 %v249
    %319 = vmatprep.subr.bf16.mxu0 0
    %320 = vmatpush1.bf16.msra.mxu0 %v250
    %321 = vmatprep.subr.bf16.mxu0 0
    %322 = vmatpush1.bf16.msra.mxu0 %v251
    %323 = vmatprep.subr.bf16.mxu0 0
    %324 = vmatpush1.bf16.msra.mxu0 %v252
    %325 = vmatprep.subr.bf16.mxu0 0
    %326 = vmatpush1.bf16.msra.mxu0 %v253
    %327 = vmatprep.subr.bf16.mxu0 0
    %328 = vmatpush1.bf16.msra.mxu0 %v254
    %329 = vmatprep.subr.bf16.mxu0 0
    %330 = vmatpush1.bf16.msra.mxu0 %v255
    %331 = vmatprep.subr.bf16.mxu0 0
    %332 = vmatpush1.bf16.msra.mxu0 %v256
    %333 = vmatprep.subr.bf16.mxu0 0
    %334 = vmatpush1.bf16.msra.mxu0 %v257
    %335 = vmatprep.subr.bf16.mxu0 0
    %336 = vmatpush1.bf16.msra.mxu0 %v258
    %337 = vmatprep.subr.bf16.mxu0 0
    %338 = vmatpush1.bf16.msra.mxu0 %v259
    %339 = vmatprep.subr.bf16.mxu0 0
    %340 = vmatpush1.bf16.msra.mxu0 %v260
    %341 = vmatprep.mubr.bf16.mxu0 %v110
    %342 = vmatmul.mubr.bf16.gmra.mrb[0].mxu0 %v103
    %v343 = vpop.f32.mrb[0].mxu0
    %v344 = vadd.f32 %v86, %v343
    %v345 = vpop.f32.mrb[0].mxu0
    %v346 = vpop.f32.mrb[0].mxu0
    %v347 = vpop.f32.mrb[0].mxu0
    %348 = vdwg.mxu0
    %349 = vmatprep.subr.bf16.mxu0 0
    %350 = vmatpush1.bf16.msra.mxu0 %v261
    %351 = vmatprep.subr.bf16.mxu0 0
    %352 = vmatpush1.bf16.msra.mxu0 %v262
    %353 = vmatprep.subr.bf16.mxu0 0
    %354 = vmatpush1.bf16.msra.mxu0 %v263
    %355 = vmatprep.subr.bf16.mxu0 0
    %356 = vmatpush1.bf16.msra.mxu0 %v264
    %357 = vmatprep.subr.bf16.mxu0 0
    %358 = vmatpush1.bf16.msra.mxu0 %v265
    %359 = vmatprep.subr.bf16.mxu0 0
    %360 = vmatpush1.bf16.msra.mxu0 %v266
    %361 = vmatprep.subr.bf16.mxu0 0
    %362 = vmatpush1.bf16.msra.mxu0 %v267
    %363 = vmatprep.subr.bf16.mxu0 0
    %364 = vmatpush1.bf16.msra.mxu0 %v268
    %365 = vmatprep.subr.bf16.mxu0 0
    %366 = vmatpush1.bf16.msra.mxu0 %v269
    %367 = vmatprep.subr.bf16.mxu0 0
    %368 = vmatpush1.bf16.msra.mxu0 %v270
    %369 = vmatprep.subr.bf16.mxu0 0
    %370 = vmatpush1.bf16.msra.mxu0 %v271
    %371 = vmatprep.subr.bf16.mxu0 0
    %372 = vmatpush1.bf16.msra.mxu0 %v272
    %373 = vmatprep.subr.bf16.mxu0 0
    %374 = vmatpush1.bf16.msra.mxu0 %v273
    %375 = vmatprep.subr.bf16.mxu0 0
    %376 = vmatpush1.bf16.msra.mxu0 %v274
    %377 = vmatprep.subr.bf16.mxu0 0
    %378 = vmatpush1.bf16.msra.mxu0 %v275
    %379 = vmatprep.subr.bf16.mxu0 0
    %380 = vmatpush1.bf16.msra.mxu0 %v276
    %381 = vmatprep.mubr.bf16.mxu0 %v112
    %382 = vmatmul.mubr.bf16.gmra.mrb[0].mxu0 %v111
    %v383 = vpop.f32.mrb[0].mxu0
    %v384 = vadd.f32 %v344, %v383
    %v385 = vpop.f32.mrb[0].mxu0
    %v386 = vpop.f32.mrb[0].mxu0
    %v387 = vpop.f32.mrb[0].mxu0
    %388 = vdwg.mxu0
    %389 = vst [vmem:[#allocation2] sm:$0x3] %v384
    // Predicated region
    $region14: #{simple_cnn_forward.7} parent=1 // pred_check
      _
    $region15: #{simple_cnn_forward.7} parent=1 // pred_check_branch
      %391 = sbr.rel (0) target = $region17
    $region16: #{simple_cnn_forward.7} parent=1 // pred_region
      %s393 = ssub.s32 32, 32
      %394 = vsyncadd [#allocation3], %s393
      %s396 = sshll.u32 [#allocation2], 4
      %s397 = int_to_ptr.vmem [resolvable:$true] %s396
      %399 = dma.vmem_to_hbm [thread:$0]  %s397, 32, %s3, [#allocation3]
    $region17: #{simple_cnn_forward.7} parent=1 // pred_fallthru
      _
    // Predicated region
    $region18: #{simple_cnn_forward.7} parent=1 // pred_check
      _
    $region19: #{simple_cnn_forward.7} parent=1 // pred_check_branch
      %401 = sbr.rel (0) target = $region21
    $region20: #{simple_cnn_forward.7} parent=1 // pred_region
      %402 = dma.done [#allocation3], 32
    $region21: #{simple_cnn_forward.7} parent=1 // pred_fallthru
      _
    %403 = vsyncpa [#allocation3], 1

// kernel: simple_cnn_forward.5
$region0: #{simple_cnn_forward.5}
  #allocation0 [shape = 'u32[]', space=smem, size = 0x4, offset = 0x4, fixed_abs, tag = 'smem constant byte address 0x4 - core index']
  #allocation1 [shape = 'u32[144,128]{1,0:T(1,128)}', space=vmem, size = 0x12000, scoped, tag = 'internal scratch']
  %s0 = inlined_call_operand.vmem [shape: bf16[2,10,10,128], index: 0, kind: input, shape index: {}]
  %s1 = inlined_call_operand.hbm [shape: bf16[1152,128], index: 1, kind: input, shape index: {}]
  %s2 = inlined_call_operand.hbm [shape: f32[1,128], index: 2, kind: input, shape index: {}]
  %s3 = inlined_call_operand.vmem [shape: bf16[2,4,4,128], index: 3, kind: output, shape index: {}]
  %s4 = sld [smem:[#allocation0]]
  $region30: #{simple_cnn_forward.5} parent=0
    _
  %s6 = ssub.s32 1, %s4
  %s7 = scalar_select 0, %s6, %s4
  $region1: #{simple_cnn_forward.5} parent=0
    #allocation2 [shape = 'u8[294912]{0}', space=vmem, size = 0x48000, scoped, tag = 'input window, operand 1, single buffered']
    #allocation3 [shape = 's32[1]{0}', space=sflag, size = 0x4, scoped, tag = 'scoped memory for simple_cnn_forward.5']
    #allocation4 [shape = 'u8[512]{0}', space=vmem, size = 0x400, scoped, tag = 'input window, operand 2, single buffered']
    #allocation5 [shape = 's32[1]{0}', space=sflag, size = 0x4, scoped, tag = 'scoped memory for simple_cnn_forward.5']
    %8 = vsyncpa [#allocation3], 0
    %9 = vsyncpa [#allocation5], 0
    // Predicated region
    $region2: #{simple_cnn_forward.5} parent=1 // pred_check
      _
    $region3: #{simple_cnn_forward.5} parent=1 // pred_check_branch
      %11 = sbr.rel (0) target = $region5
    $region4: #{simple_cnn_forward.5} parent=1 // pred_region
      _
    $region5: #{simple_cnn_forward.5} parent=1 // pred_fallthru
      _
    // Predicated region
    $region6: #{simple_cnn_forward.5} parent=1 // pred_check
      _
    $region7: #{simple_cnn_forward.5} parent=1 // pred_check_branch
      %13 = sbr.rel (0) target = $region9
    $region8: #{simple_cnn_forward.5} parent=1 // pred_region
      %s15 = ssub.s32 9216, 9216
      %16 = vsyncadd [#allocation3], %s15
      %s17 = sshll.u32 [#allocation2], 4
      %s18 = int_to_ptr.vmem [resolvable:$true] %s17
      %23 = dma.hbm_to_vmem [thread:$0]  %s1, 9216, %s18, [#allocation3], 64, 64, 4
    $region9: #{simple_cnn_forward.5} parent=1 // pred_fallthru
      _
    // Predicated region
    $region10: #{simple_cnn_forward.5} parent=1 // pred_check
      _
    $region11: #{simple_cnn_forward.5} parent=1 // pred_check_branch
      %25 = sbr.rel (0) target = $region13
    $region12: #{simple_cnn_forward.5} parent=1 // pred_region
      %s27 = ssub.s32 16, 16
      %28 = vsyncadd [#allocation5], %s27
      %s30 = sshll.u32 [#allocation4], 4
      %s31 = int_to_ptr.vmem [resolvable:$true] %s30
      %33 = dma.hbm_to_vmem [thread:$0]  %s2, 16, %s31, [#allocation5]
    $region13: #{simple_cnn_forward.5} parent=1 // pred_fallthru
      _
    // Predicated region
    $region14: #{simple_cnn_forward.5} parent=1 // pred_check
      _
    $region15: #{simple_cnn_forward.5} parent=1 // pred_check_branch
      %35 = sbr.rel (0) target = $region17
    $region16: #{simple_cnn_forward.5} parent=1 // pred_region
      %36 = dma.done [#allocation3], 9216
    $region17: #{simple_cnn_forward.5} parent=1 // pred_fallthru
      _
    // Predicated region
    $region18: #{simple_cnn_forward.5} parent=1 // pred_check
      _
    $region19: #{simple_cnn_forward.5} parent=1 // pred_check_branch
      %38 = sbr.rel (0) target = $region21
    $region20: #{simple_cnn_forward.5} parent=1 // pred_region
      %39 = dma.done [#allocation5], 16
    $region21: #{simple_cnn_forward.5} parent=1 // pred_fallthru
      _
    %v41 = vld [vmem:[%s0] sm:$0xf]
    %v42 = vld [vmem:[%s0 + $0x4] sm:$0x1]
    %v43 = vld [vmem:[%s0 + $0x8] sm:$0xf]
    %v44 = vld [vmem:[%s0 + $0xc] sm:$0x1]
    %v45 = vld [vmem:[%s0 + $0x10] sm:$0xf]
    %v46 = vld [vmem:[%s0 + $0x14] sm:$0x1]
    %v47 = vld [vmem:[%s0 + $0x18] sm:$0xf]
    %v48 = vld [vmem:[%s0 + $0x1c] sm:$0x1]
    %v49 = vld [vmem:[%s0 + $0x20] sm:$0xf]
    %v50 = vld [vmem:[%s0 + $0x24] sm:$0x1]
    %v51 = vld [vmem:[%s0 + $0x28] sm:$0xf]
    %v52 = vld [vmem:[%s0 + $0x2c] sm:$0x1]
    %v53 = vld [vmem:[%s0 + $0x30] sm:$0xf]
    %v54 = vld [vmem:[%s0 + $0x34] sm:$0x1]
    %v55 = vld [vmem:[%s0 + $0x38] sm:$0xf]
    %v56 = vld [vmem:[%s0 + $0x3c] sm:$0x1]
    %v57 = vld [vmem:[%s0 + $0x40] sm:$0xf]
    %v58 = vld [vmem:[%s0 + $0x44] sm:$0x1]
    %v59 = vld [vmem:[%s0 + $0x48] sm:$0xf]
    %v60 = vld [vmem:[%s0 + $0x4c] sm:$0x1]
    %v61 = vld [vmem:[%s0 + $0x50] sm:$0xf]
    %v62 = vld [vmem:[%s0 + $0x54] sm:$0x1]
    %v63 = vld [vmem:[%s0 + $0x58] sm:$0xf]
    %v64 = vld [vmem:[%s0 + $0x5c] sm:$0x1]
    %v65 = vld [vmem:[%s0 + $0x60] sm:$0xf]
    %v66 = vld [vmem:[%s0 + $0x64] sm:$0x1]
    %v67 = vld [vmem:[%s0 + $0x68] sm:$0xf]
    %v68 = vld [vmem:[%s0 + $0x6c] sm:$0x1]
    %v69 = vld [vmem:[%s0 + $0x70] sm:$0xf]
    %v70 = vld [vmem:[%s0 + $0x74] sm:$0x1]
    %v71 = vld [vmem:[%s0 + $0x78] sm:$0xf]
    %v72 = vld [vmem:[%s0 + $0x7c] sm:$0x1]
    %v73 = vld [vmem:[%s0 + $0x80] sm:$0xf]
    %v74 = vld [vmem:[%s0 + $0x84] sm:$0x1]
    %v75 = vld [vmem:[%s0 + $0x88] sm:$0xf]
    %v76 = vld [vmem:[%s0 + $0x8c] sm:$0x1]
    %v77 = vld [vmem:[%s0 + $0x90] sm:$0xf]
    %v78 = vld [vmem:[%s0 + $0x94] sm:$0x1]
    %v79 = vld [vmem:[%s0 + $0x98] sm:$0xf]
    %v80 = vld [vmem:[%s0 + $0x9c] sm:$0x1]
    %v113 = vunpack.c.l.b16 %v41
    %v114 = vunpack.c.l.b16 %v42
    %v115 = vunpack.c.l.b16 %v43
    %v116 = vunpack.c.l.b16 %v44
    %v117 = vunpack.c.l.b16 %v45
    %v118 = vunpack.c.l.b16 %v46
    %v119 = vunpack.c.l.b16 %v47
    %v120 = vunpack.c.l.b16 %v48
    %v121 = vunpack.c.l.b16 %v49
    %v122 = vunpack.c.l.b16 %v50
    %v123 = vunpack.c.l.b16 %v51
    %v124 = vunpack.c.l.b16 %v52
    %v125 = vunpack.c.l.b16 %v53
    %v126 = vunpack.c.l.b16 %v54
    %v127 = vunpack.c.l.b16 %v55
    %v128 = vunpack.c.l.b16 %v56
    %v129 = vunpack.c.l.b16 %v61
    %v130 = vunpack.c.l.b16 %v62
    %v131 = vunpack.c.l.b16 %v63
    %v132 = vunpack.c.l.b16 %v64
    %v133 = vunpack.c.l.b16 %v65
    %v134 = vunpack.c.l.b16 %v66
    %v135 = vunpack.c.l.b16 %v67
    %v136 = vunpack.c.l.b16 %v68
    %v137 = vunpack.c.l.b16 %v69
    %v138 = vunpack.c.l.b16 %v70
    %v139 = vunpack.c.l.b16 %v71
    %v140 = vunpack.c.l.b16 %v72
    %v141 = vunpack.c.l.b16 %v73
    %v142 = vunpack.c.l.b16 %v74
    %v143 = vunpack.c.l.b16 %v75
    %v144 = vunpack.c.l.b16 %v76
    %v145 = vpack.c.b16 %v114, %v113
    %v146 = vpack.c.b16 %v116, %v115
    %v147 = vpack.c.b16 %v118, %v117
    %v148 = vpack.c.b16 %v120, %v119
    %v149 = vpack.c.b16 %v122, %v121
    %v150 = vpack.c.b16 %v124, %v123
    %v151 = vpack.c.b16 %v126, %v125
    %v152 = vpack.c.b16 %v128, %v127
    %v153 = vpack.c.b16 %v130, %v129
    %v154 = vpack.c.b16 %v132, %v131
    %v155 = vpack.c.b16 %v134, %v133
    %v156 = vpack.c.b16 %v136, %v135
    %v157 = vpack.c.b16 %v138, %v137
    %v158 = vpack.c.b16 %v140, %v139
    %v159 = vpack.c.b16 %v142, %v141
    %v160 = vpack.c.b16 %v144, %v143
    %v162 = vshrl.u32 %v145, 16
    %v164 = vshll.u32 %v145, 16
    %v166 = vrot.slane %v164, 1
    %v167 = vor.u32 %v162, %v166
    %v169 = vshrl.u32 %v146, 16
    %v171 = vshll.u32 %v146, 16
    %v173 = vrot.slane %v171, 1
    %v174 = vor.u32 %v169, %v173
    %v176 = vshrl.u32 %v147, 16
    %v178 = vshll.u32 %v147, 16
    %v180 = vrot.slane %v178, 1
    %v181 = vor.u32 %v176, %v180
    %v183 = vshrl.u32 %v148, 16
    %v185 = vshll.u32 %v148, 16
    %v187 = vrot.slane %v185, 1
    %v188 = vor.u32 %v183, %v187
    %v190 = vshrl.u32 %v149, 16
    %v192 = vshll.u32 %v149, 16
    %v194 = vrot.slane %v192, 1
    %v195 = vor.u32 %v190, %v194
    %v197 = vshrl.u32 %v150, 16
    %v199 = vshll.u32 %v150, 16
    %v201 = vrot.slane %v199, 1
    %v202 = vor.u32 %v197, %v201
    %v204 = vshrl.u32 %v151, 16
    %v206 = vshll.u32 %v151, 16
    %v208 = vrot.slane %v206, 1
    %v209 = vor.u32 %v204, %v208
    %v211 = vshrl.u32 %v152, 16
    %v213 = vshll.u32 %v152, 16
    %v215 = vrot.slane %v213, 1
    %v216 = vor.u32 %v211, %v215
    %v218 = vshrl.u32 %v153, 16
    %v220 = vshll.u32 %v153, 16
    %v222 = vrot.slane %v220, 1
    %v223 = vor.u32 %v218, %v222
    %v225 = vshrl.u32 %v154, 16
    %v227 = vshll.u32 %v154, 16
    %v229 = vrot.slane %v227, 1
    %v230 = vor.u32 %v225, %v229
    %v232 = vshrl.u32 %v155, 16
    %v234 = vshll.u32 %v155, 16
    %v236 = vrot.slane %v234, 1
    %v237 = vor.u32 %v232, %v236
    %v239 = vshrl.u32 %v156, 16
    %v241 = vshll.u32 %v156, 16
    %v243 = vrot.slane %v241, 1
    %v244 = vor.u32 %v239, %v243
    %v246 = vshrl.u32 %v157, 16
    %v248 = vshll.u32 %v157, 16
    %v250 = vrot.slane %v248, 1
    %v251 = vor.u32 %v246, %v250
    %v253 = vshrl.u32 %v158, 16
    %v255 = vshll.u32 %v158, 16
    %v257 = vrot.slane %v255, 1
    %v258 = vor.u32 %v253, %v257
    %v260 = vshrl.u32 %v159, 16
    %v262 = vshll.u32 %v159, 16
    %v264 = vrot.slane %v262, 1
    %v265 = vor.u32 %v260, %v264
    %v267 = vshrl.u32 %v160, 16
    %v269 = vshll.u32 %v160, 16
    %v271 = vrot.slane %v269, 1
    %v272 = vor.u32 %v267, %v271
    %v273 = vrot.slane %v145, 1
    %v274 = vrot.slane %v146, 1
    %v275 = vrot.slane %v147, 1
    %v276 = vrot.slane %v148, 1
    %v277 = vrot.slane %v149, 1
    %v278 = vrot.slane %v150, 1
    %v279 = vrot.slane %v151, 1
    %v280 = vrot.slane %v152, 1
    %v281 = vrot.slane %v153, 1
    %v282 = vrot.slane %v154, 1
    %v283 = vrot.slane %v155, 1
    %v284 = vrot.slane %v156, 1
    %v285 = vrot.slane %v157, 1
    %v286 = vrot.slane %v158, 1
    %v287 = vrot.slane %v159, 1
    %v288 = vrot.slane %v160, 1
    %v293 = vunpack.c.l.b16 %v57
    %v294 = vunpack.c.l.b16 %v58
    %v295 = vunpack.c.l.b16 %v77
    %v296 = vunpack.c.l.b16 %v78
    %v297 = vpack.c.b16 %v294, %v293
    %v298 = vpack.c.b16 %v296, %v295
    %v300 = vshrl.u32 %v297, 16
    %v302 = vshll.u32 %v297, 16
    %v304 = vrot.slane %v302, 1
    %v305 = vor.u32 %v300, %v304
    %v307 = vshrl.u32 %v298, 16
    %v309 = vshll.u32 %v298, 16
    %v311 = vrot.slane %v309, 1
    %v312 = vor.u32 %v307, %v311
    %v313 = vrot.slane %v297, 1
    %v314 = vrot.slane %v298, 1
    %v319 = vunpack.c.l.b16 %v59
    %v320 = vunpack.c.l.b16 %v60
    %v321 = vunpack.c.l.b16 %v79
    %v322 = vunpack.c.l.b16 %v80
    %v323 = vpack.c.b16 %v320, %v319
    %v324 = vpack.c.b16 %v322, %v321
    %v326 = vshrl.u32 %v323, 16
    %v328 = vshll.u32 %v323, 16
    %v330 = vrot.slane %v328, 1
    %v331 = vor.u32 %v326, %v330
    %v333 = vshrl.u32 %v324, 16
    %v335 = vshll.u32 %v324, 16
    %v337 = vrot.slane %v335, 1
    %v338 = vor.u32 %v333, %v337
    %v339 = vrot.slane %v323, 1
    %v340 = vrot.slane %v324, 1
    %v341 = vunpack.c.l.b16 %v167
    %v342 = vunpack.c.l.b16 %v273
    %v343 = vunpack.c.l.b16 %v174
    %v344 = vunpack.c.l.b16 %v274
    %v345 = vunpack.c.l.b16 %v181
    %v346 = vunpack.c.l.b16 %v275
    %v347 = vunpack.c.l.b16 %v188
    %v348 = vunpack.c.l.b16 %v276
    %v349 = vunpack.c.l.b16 %v195
    %v350 = vunpack.c.l.b16 %v277
    %v351 = vunpack.c.l.b16 %v202
    %v352 = vunpack.c.l.b16 %v278
    %v353 = vunpack.c.l.b16 %v209
    %v354 = vunpack.c.l.b16 %v279
    %v355 = vunpack.c.l.b16 %v216
    %v356 = vunpack.c.l.b16 %v280
    %v357 = vunpack.c.l.b16 %v305
    %v358 = vunpack.c.l.b16 %v313
    %v359 = vunpack.c.l.b16 %v331
    %v360 = vunpack.c.l.b16 %v339
    %v361 = vunpack.c.l.b16 %v223
    %v362 = vunpack.c.l.b16 %v281
    %v363 = vunpack.c.l.b16 %v230
    %v364 = vunpack.c.l.b16 %v282
    %v365 = vunpack.c.l.b16 %v237
    %v366 = vunpack.c.l.b16 %v283
    %v367 = vunpack.c.l.b16 %v244
    %v368 = vunpack.c.l.b16 %v284
    %v369 = vunpack.c.l.b16 %v251
    %v370 = vunpack.c.l.b16 %v285
    %v371 = vunpack.c.l.b16 %v258
    %v372 = vunpack.c.l.b16 %v286
    %v373 = vunpack.c.l.b16 %v265
    %v374 = vunpack.c.l.b16 %v287
    %v375 = vunpack.c.l.b16 %v272
    %v376 = vunpack.c.l.b16 %v288
    %v377 = vunpack.c.l.b16 %v312
    %v378 = vunpack.c.l.b16 %v314
    %v379 = vunpack.c.l.b16 %v338
    %v380 = vunpack.c.l.b16 %v340
    %v381 = vld [vmem:[#allocation2] sm:$0xf]
    %v382 = vld [vmem:[#allocation2 + $0x4] sm:$0xf]
    %v383 = vld [vmem:[#allocation2 + $0x8] sm:$0xf]
    %v384 = vld [vmem:[#allocation2 + $0xc] sm:$0xf]
    %v385 = vld [vmem:[#allocation2 + $0x10] sm:$0xf]
    %v386 = vld [vmem:[#allocation2 + $0x14] sm:$0xf]
    %v387 = vld [vmem:[#allocation2 + $0x18] sm:$0xf]
    %v388 = vld [vmem:[#allocation2 + $0x1c] sm:$0xf]
    %v389 = vld [vmem:[#allocation2 + $0x20] sm:$0xf]
    %v390 = vld [vmem:[#allocation2 + $0x24] sm:$0xf]
    %v391 = vld [vmem:[#allocation2 + $0x28] sm:$0xf]
    %v392 = vld [vmem:[#allocation2 + $0x2c] sm:$0xf]
    %v393 = vld [vmem:[#allocation2 + $0x30] sm:$0xf]
    %v394 = vld [vmem:[#allocation2 + $0x34] sm:$0xf]
    %v395 = vld [vmem:[#allocation2 + $0x38] sm:$0xf]
    %v396 = vld [vmem:[#allocation2 + $0x3c] sm:$0xf]
    %v397 = vld [vmem:[#allocation2 + $0x40] sm:$0xf]
    %v398 = vld [vmem:[#allocation2 + $0x44] sm:$0xf]
    %v399 = vld [vmem:[#allocation2 + $0x48] sm:$0xf]
    %v400 = vld [vmem:[#allocation2 + $0x4c] sm:$0xf]
    %v401 = vld [vmem:[#allocation2 + $0x50] sm:$0xf]
    %v402 = vld [vmem:[#allocation2 + $0x54] sm:$0xf]
    %v403 = vld [vmem:[#allocation2 + $0x58] sm:$0xf]
    %v404 = vld [vmem:[#allocation2 + $0x5c] sm:$0xf]
    %v405 = vld [vmem:[#allocation2 + $0x60] sm:$0xf]
    %v406 = vld [vmem:[#allocation2 + $0x64] sm:$0xf]
    %v407 = vld [vmem:[#allocation2 + $0x68] sm:$0xf]
    %v408 = vld [vmem:[#allocation2 + $0x6c] sm:$0xf]
    %v409 = vld [vmem:[#allocation2 + $0x70] sm:$0xf]
    %v410 = vld [vmem:[#allocation2 + $0x74] sm:$0xf]
    %v411 = vld [vmem:[#allocation2 + $0x78] sm:$0xf]
    %v412 = vld [vmem:[#allocation2 + $0x7c] sm:$0xf]
    %v413 = vld [vmem:[#allocation2 + $0x80] sm:$0xf]
    %v414 = vld [vmem:[#allocation2 + $0x84] sm:$0xf]
    %v415 = vld [vmem:[#allocation2 + $0x88] sm:$0xf]
    %v416 = vld [vmem:[#allocation2 + $0x8c] sm:$0xf]
    %v417 = vld [vmem:[#allocation2 + $0x90] sm:$0xf]
    %v418 = vld [vmem:[#allocation2 + $0x94] sm:$0xf]
    %v419 = vld [vmem:[#allocation2 + $0x98] sm:$0xf]
    %v420 = vld [vmem:[#allocation2 + $0x9c] sm:$0xf]
    %v421 = vld [vmem:[#allocation2 + $0xa0] sm:$0xf]
    %v422 = vld [vmem:[#allocation2 + $0xa4] sm:$0xf]
    %v423 = vld [vmem:[#allocation2 + $0xa8] sm:$0xf]
    %v424 = vld [vmem:[#allocation2 + $0xac] sm:$0xf]
    %v425 = vld [vmem:[#allocation2 + $0xb0] sm:$0xf]
    %v426 = vld [vmem:[#allocation2 + $0xb4] sm:$0xf]
    %v427 = vld [vmem:[#allocation2 + $0xb8] sm:$0xf]
    %v428 = vld [vmem:[#allocation2 + $0xbc] sm:$0xf]
    %v429 = vld [vmem:[#allocation2 + $0xc0] sm:$0xf]
    %v430 = vld [vmem:[#allocation2 + $0xc4] sm:$0xf]
    %v431 = vld [vmem:[#allocation2 + $0xc8] sm:$0xf]
    %v432 = vld [vmem:[#allocation2 + $0xcc] sm:$0xf]
    %v433 = vld [vmem:[#allocation2 + $0xd0] sm:$0xf]
    %v434 = vld [vmem:[#allocation2 + $0xd4] sm:$0xf]
    %v435 = vld [vmem:[#allocation2 + $0xd8] sm:$0xf]
    %v436 = vld [vmem:[#allocation2 + $0xdc] sm:$0xf]
    %v437 = vld [vmem:[#allocation2 + $0xe0] sm:$0xf]
    %v438 = vld [vmem:[#allocation2 + $0xe4] sm:$0xf]
    %v439 = vld [vmem:[#allocation2 + $0xe8] sm:$0xf]
    %v440 = vld [vmem:[#allocation2 + $0xec] sm:$0xf]
    %v441 = vld [vmem:[#allocation2 + $0xf0] sm:$0xf]
    %v442 = vld [vmem:[#allocation2 + $0xf4] sm:$0xf]
    %v443 = vld [vmem:[#allocation2 + $0xf8] sm:$0xf]
    %v444 = vld [vmem:[#allocation2 + $0xfc] sm:$0xf]
    %v445 = vld [vmem:[#allocation2 + $0x100] sm:$0xf]
    %v446 = vld [vmem:[#allocation2 + $0x104] sm:$0xf]
    %v447 = vld [vmem:[#allocation2 + $0x108] sm:$0xf]
    %v448 = vld [vmem:[#allocation2 + $0x10c] sm:$0xf]
    %v449 = vld [vmem:[#allocation2 + $0x110] sm:$0xf]
    %v450 = vld [vmem:[#allocation2 + $0x114] sm:$0xf]
    %v451 = vld [vmem:[#allocation2 + $0x118] sm:$0xf]
    %v452 = vld [vmem:[#allocation2 + $0x11c] sm:$0xf]
    %v453 = vld [vmem:[#allocation2 + $0x120] sm:$0xf]
    %v454 = vld [vmem:[#allocation2 + $0x124] sm:$0xf]
    %v455 = vld [vmem:[#allocation2 + $0x128] sm:$0xf]
    %v456 = vld [vmem:[#allocation2 + $0x12c] sm:$0xf]
    %v457 = vld [vmem:[#allocation2 + $0x130] sm:$0xf]
    %v458 = vld [vmem:[#allocation2 + $0x134] sm:$0xf]
    %v459 = vld [vmem:[#allocation2 + $0x138] sm:$0xf]
    %v460 = vld [vmem:[#allocation2 + $0x13c] sm:$0xf]
    %v461 = vld [vmem:[#allocation2 + $0x140] sm:$0xf]
    %v462 = vld [vmem:[#allocation2 + $0x144] sm:$0xf]
    %v463 = vld [vmem:[#allocation2 + $0x148] sm:$0xf]
    %v464 = vld [vmem:[#allocation2 + $0x14c] sm:$0xf]
    %v465 = vld [vmem:[#allocation2 + $0x150] sm:$0xf]
    %v466 = vld [vmem:[#allocation2 + $0x154] sm:$0xf]
    %v467 = vld [vmem:[#allocation2 + $0x158] sm:$0xf]
    %v468 = vld [vmem:[#allocation2 + $0x15c] sm:$0xf]
    %v469 = vld [vmem:[#allocation2 + $0x160] sm:$0xf]
    %v470 = vld [vmem:[#allocation2 + $0x164] sm:$0xf]
    %v471 = vld [vmem:[#allocation2 + $0x168] sm:$0xf]
    %v472 = vld [vmem:[#allocation2 + $0x16c] sm:$0xf]
    %v473 = vld [vmem:[#allocation2 + $0x170] sm:$0xf]
    %v474 = vld [vmem:[#allocation2 + $0x174] sm:$0xf]
    %v475 = vld [vmem:[#allocation2 + $0x178] sm:$0xf]
    %v476 = vld [vmem:[#allocation2 + $0x17c] sm:$0xf]
    %v477 = vld [vmem:[#allocation2 + $0x180] sm:$0xf]
    %v478 = vld [vmem:[#allocation2 + $0x184] sm:$0xf]
    %v479 = vld [vmem:[#allocation2 + $0x188] sm:$0xf]
    %v480 = vld [vmem:[#allocation2 + $0x18c] sm:$0xf]
    %v481 = vld [vmem:[#allocation2 + $0x190] sm:$0xf]
    %v482 = vld [vmem:[#allocation2 + $0x194] sm:$0xf]
    %v483 = vld [vmem:[#allocation2 + $0x198] sm:$0xf]
    %v484 = vld [vmem:[#allocation2 + $0x19c] sm:$0xf]
    %v485 = vld [vmem:[#allocation2 + $0x1a0] sm:$0xf]
    %v486 = vld [vmem:[#allocation2 + $0x1a4] sm:$0xf]
    %v487 = vld [vmem:[#allocation2 + $0x1a8] sm:$0xf]
    %v488 = vld [vmem:[#allocation2 + $0x1ac] sm:$0xf]
    %v489 = vld [vmem:[#allocation2 + $0x1b0] sm:$0xf]
    %v490 = vld [vmem:[#allocation2 + $0x1b4] sm:$0xf]
    %v491 = vld [vmem:[#allocation2 + $0x1b8] sm:$0xf]
    %v492 = vld [vmem:[#allocation2 + $0x1bc] sm:$0xf]
    %v493 = vld [vmem:[#allocation2 + $0x1c0] sm:$0xf]
    %v494 = vld [vmem:[#allocation2 + $0x1c4] sm:$0xf]
    %v495 = vld [vmem:[#allocation2 + $0x1c8] sm:$0xf]
    %v496 = vld [vmem:[#allocation2 + $0x1cc] sm:$0xf]
    %v497 = vld [vmem:[#allocation2 + $0x1d0] sm:$0xf]
    %v498 = vld [vmem:[#allocation2 + $0x1d4] sm:$0xf]
    %v499 = vld [vmem:[#allocation2 + $0x1d8] sm:$0xf]
    %v500 = vld [vmem:[#allocation2 + $0x1dc] sm:$0xf]
    %v501 = vld [vmem:[#allocation2 + $0x1e0] sm:$0xf]
    %v502 = vld [vmem:[#allocation2 + $0x1e4] sm:$0xf]
    %v503 = vld [vmem:[#allocation2 + $0x1e8] sm:$0xf]
    %v504 = vld [vmem:[#allocation2 + $0x1ec] sm:$0xf]
    %v505 = vld [vmem:[#allocation2 + $0x1f0] sm:$0xf]
    %v506 = vld [vmem:[#allocation2 + $0x1f4] sm:$0xf]
    %v507 = vld [vmem:[#allocation2 + $0x1f8] sm:$0xf]
    %v508 = vld [vmem:[#allocation2 + $0x1fc] sm:$0xf]
    %v509 = vld [vmem:[#allocation2 + $0x200] sm:$0xf]
    %v510 = vld [vmem:[#allocation2 + $0x204] sm:$0xf]
    %v511 = vld [vmem:[#allocation2 + $0x208] sm:$0xf]
    %v512 = vld [vmem:[#allocation2 + $0x20c] sm:$0xf]
    %v513 = vld [vmem:[#allocation2 + $0x210] sm:$0xf]
    %v514 = vld [vmem:[#allocation2 + $0x214] sm:$0xf]
    %v515 = vld [vmem:[#allocation2 + $0x218] sm:$0xf]
    %v516 = vld [vmem:[#allocation2 + $0x21c] sm:$0xf]
    %v517 = vld [vmem:[#allocation2 + $0x220] sm:$0xf]
    %v518 = vld [vmem:[#allocation2 + $0x224] sm:$0xf]
    %v519 = vld [vmem:[#allocation2 + $0x228] sm:$0xf]
    %v520 = vld [vmem:[#allocation2 + $0x22c] sm:$0xf]
    %v521 = vld [vmem:[#allocation2 + $0x230] sm:$0xf]
    %v522 = vld [vmem:[#allocation2 + $0x234] sm:$0xf]
    %v523 = vld [vmem:[#allocation2 + $0x238] sm:$0xf]
    %v524 = vld [vmem:[#allocation2 + $0x23c] sm:$0xf]
    %v525 = vld [vmem:[#allocation4] sm:$0x1]
    %v527 = vlaneseq
    %v528 = vshrl.u32 %v527, 7
    %v529 = vsub.s32 0, %v528
    %v530 = vrot.slane %v525, %v529
    %v532 = vpack.c.b16 %v115, %v113
    %v533 = vpack.c.b16 %v343, %v341
    %v534 = vpack.c.b16 %v344, %v342
    %v535 = vpack.c.b16 %v117, %v115
    %v536 = vpack.c.b16 %v345, %v343
    %v537 = vpack.c.b16 %v346, %v344
    %v538 = vpack.c.b16 %v119, %v117
    %v539 = vpack.c.b16 %v347, %v345
    %v540 = vpack.c.b16 %v348, %v346
    %v541 = vpack.c.b16 %v121, %v119
    %v542 = vpack.c.b16 %v349, %v347
    %v543 = vpack.c.b16 %v350, %v348
    %v544 = vpack.c.b16 %v123, %v121
    %v545 = vpack.c.b16 %v351, %v349
    %v546 = vpack.c.b16 %v352, %v350
    %v547 = vpack.c.b16 %v125, %v123
    %v548 = vpack.c.b16 %v353, %v351
    %v549 = vpack.c.b16 %v354, %v352
    %v550 = vpack.c.b16 %v127, %v125
    %v551 = vpack.c.b16 %v355, %v353
    %v552 = vpack.c.b16 %v356, %v354
    %v553 = vpack.c.b16 %v293, %v127
    %v554 = vpack.c.b16 %v357, %v355
    %v555 = vpack.c.b16 %v358, %v356
    %v556 = vpack.c.b16 %v319, %v293
    %v557 = vpack.c.b16 %v359, %v357
    %v558 = vpack.c.b16 %v360, %v358
    %v559 = vpack.c.b16 %v131, %v129
    %v560 = vpack.c.b16 %v363, %v361
    %v561 = vpack.c.b16 %v364, %v362
    %v562 = vpack.c.b16 %v133, %v131
    %v563 = vpack.c.b16 %v365, %v363
    %v564 = vpack.c.b16 %v366, %v364
    %v565 = vpack.c.b16 %v135, %v133
    %v566 = vpack.c.b16 %v367, %v365
    %v567 = vpack.c.b16 %v368, %v366
    %v568 = vpack.c.b16 %v137, %v135
    %v569 = vpack.c.b16 %v369, %v367
    %v570 = vpack.c.b16 %v370, %v368
    %v571 = vpack.c.b16 %v139, %v137
    %v572 = vpack.c.b16 %v371, %v369
    %v573 = vpack.c.b16 %v372, %v370
    %v574 = vpack.c.b16 %v141, %v139
    %v575 = vpack.c.b16 %v373, %v371
    %v576 = vpack.c.b16 %v374, %v372
    %v577 = vpack.c.b16 %v143, %v141
    %v578 = vpack.c.b16 %v375, %v373
    %v579 = vpack.c.b16 %v376, %v374
    %v580 = vpack.c.b16 %v295, %v143
    %v581 = vpack.c.b16 %v377, %v375
    %v582 = vpack.c.b16 %v378, %v376
    %v583 = vpack.c.b16 %v321, %v295
    %v584 = vpack.c.b16 %v379, %v377
    %v585 = vpack.c.b16 %v380, %v378
    %v784 = vunpack.c.l.b16 %v381
    %v785 = vunpack.c.l.b16 %v382
    %v786 = vunpack.c.l.b16 %v383
    %v787 = vunpack.c.l.b16 %v384
    %v788 = vunpack.c.l.b16 %v385
    %v789 = vunpack.c.l.b16 %v386
    %v790 = vunpack.c.l.b16 %v387
    %v791 = vunpack.c.l.b16 %v388
    %v792 = vunpack.c.l.b16 %v389
    %v793 = vunpack.c.l.b16 %v390
    %v794 = vunpack.c.l.b16 %v391
    %v795 = vunpack.c.l.b16 %v392
    %v796 = vunpack.c.l.b16 %v393
    %v797 = vunpack.c.l.b16 %v394
    %v798 = vunpack.c.l.b16 %v395
    %v799 = vunpack.c.l.b16 %v396
    %v800 = vunpack.c.l.b16 %v397
    %v801 = vunpack.c.l.b16 %v398
    %v802 = vunpack.c.l.b16 %v399
    %v803 = vunpack.c.l.b16 %v400
    %v804 = vunpack.c.l.b16 %v401
    %v805 = vunpack.c.l.b16 %v402
    %v806 = vunpack.c.l.b16 %v403
    %v807 = vunpack.c.l.b16 %v404
    %v808 = vunpack.c.l.b16 %v405
    %v809 = vunpack.c.l.b16 %v406
    %v810 = vunpack.c.l.b16 %v407
    %v811 = vunpack.c.l.b16 %v408
    %v812 = vunpack.c.l.b16 %v409
    %v813 = vunpack.c.l.b16 %v410
    %v814 = vunpack.c.l.b16 %v411
    %v815 = vunpack.c.l.b16 %v412
    %v816 = vunpack.c.l.b16 %v413
    %v817 = vunpack.c.l.b16 %v414
    %v818 = vunpack.c.l.b16 %v415
    %v819 = vunpack.c.l.b16 %v416
    %v820 = vunpack.c.l.b16 %v417
    %v821 = vunpack.c.l.b16 %v418
    %v822 = vunpack.c.l.b16 %v419
    %v823 = vunpack.c.l.b16 %v420
    %v824 = vunpack.c.l.b16 %v421
    %v825 = vunpack.c.l.b16 %v422
    %v826 = vunpack.c.l.b16 %v423
    %v827 = vunpack.c.l.b16 %v424
    %v828 = vunpack.c.l.b16 %v425
    %v829 = vunpack.c.l.b16 %v426
    %v830 = vunpack.c.l.b16 %v427
    %v831 = vunpack.c.l.b16 %v428
    %v832 = vunpack.c.l.b16 %v429
    %v833 = vunpack.c.l.b16 %v430
    %v834 = vunpack.c.l.b16 %v431
    %v835 = vunpack.c.l.b16 %v432
    %v836 = vunpack.c.l.b16 %v433
    %v837 = vunpack.c.l.b16 %v434
    %v838 = vunpack.c.l.b16 %v435
    %v839 = vunpack.c.l.b16 %v436
    %v840 = vunpack.c.l.b16 %v437
    %v841 = vunpack.c.l.b16 %v438
    %v842 = vunpack.c.l.b16 %v439
    %v843 = vunpack.c.l.b16 %v440
    %v844 = vunpack.c.l.b16 %v441
    %v845 = vunpack.c.l.b16 %v442
    %v846 = vunpack.c.l.b16 %v443
    %v847 = vunpack.c.l.b16 %v444
    %v848 = vunpack.c.l.b16 %v445
    %v849 = vunpack.c.l.b16 %v446
    %v850 = vunpack.c.l.b16 %v447
    %v851 = vunpack.c.l.b16 %v448
    %v852 = vunpack.c.l.b16 %v449
    %v853 = vunpack.c.l.b16 %v450
    %v854 = vunpack.c.l.b16 %v451
    %v855 = vunpack.c.l.b16 %v452
    %v856 = vunpack.c.l.b16 %v453
    %v857 = vunpack.c.l.b16 %v454
    %v858 = vunpack.c.l.b16 %v455
    %v859 = vunpack.c.l.b16 %v456
    %v860 = vunpack.c.l.b16 %v457
    %v861 = vunpack.c.l.b16 %v458
    %v862 = vunpack.c.l.b16 %v459
    %v863 = vunpack.c.l.b16 %v460
    %v864 = vunpack.c.l.b16 %v461
    %v865 = vunpack.c.l.b16 %v462
    %v866 = vunpack.c.l.b16 %v463
    %v867 = vunpack.c.l.b16 %v464
    %v868 = vunpack.c.l.b16 %v465
    %v869 = vunpack.c.l.b16 %v466
    %v870 = vunpack.c.l.b16 %v467
    %v871 = vunpack.c.l.b16 %v468
    %v872 = vunpack.c.l.b16 %v469
    %v873 = vunpack.c.l.b16 %v470
    %v874 = vunpack.c.l.b16 %v471
    %v875 = vunpack.c.l.b16 %v472
    %v876 = vunpack.c.l.b16 %v473
    %v877 = vunpack.c.l.b16 %v474
    %v878 = vunpack.c.l.b16 %v475
    %v879 = vunpack.c.l.b16 %v476
    %v880 = vunpack.c.l.b16 %v477
    %v881 = vunpack.c.l.b16 %v478
    %v882 = vunpack.c.l.b16 %v479
    %v883 = vunpack.c.l.b16 %v480
    %v884 = vunpack.c.l.b16 %v481
    %v885 = vunpack.c.l.b16 %v482
    %v886 = vunpack.c.l.b16 %v483
    %v887 = vunpack.c.l.b16 %v484
    %v888 = vunpack.c.l.b16 %v485
    %v889 = vunpack.c.l.b16 %v486
    %v890 = vunpack.c.l.b16 %v487
    %v891 = vunpack.c.l.b16 %v488
    %v892 = vunpack.c.l.b16 %v489
    %v893 = vunpack.c.l.b16 %v490
    %v894 = vunpack.c.l.b16 %v491
    %v895 = vunpack.c.l.b16 %v492
    %v896 = vunpack.c.l.b16 %v493
    %v897 = vunpack.c.l.b16 %v494
    %v898 = vunpack.c.l.b16 %v495
    %v899 = vunpack.c.l.b16 %v496
    %v900 = vunpack.c.l.b16 %v497
    %v901 = vunpack.c.l.b16 %v498
    %v902 = vunpack.c.l.b16 %v499
    %v903 = vunpack.c.l.b16 %v500
    %v904 = vunpack.c.l.b16 %v501
    %v905 = vunpack.c.l.b16 %v502
    %v906 = vunpack.c.l.b16 %v503
    %v907 = vunpack.c.l.b16 %v504
    %v908 = vunpack.c.l.b16 %v505
    %v909 = vunpack.c.l.b16 %v506
    %v910 = vunpack.c.l.b16 %v507
    %v911 = vunpack.c.l.b16 %v508
    %v912 = vunpack.c.l.b16 %v509
    %v913 = vunpack.c.l.b16 %v510
    %v914 = vunpack.c.l.b16 %v511
    %v915 = vunpack.c.l.b16 %v512
    %v916 = vunpack.c.l.b16 %v513
    %v917 = vunpack.c.l.b16 %v514
    %v918 = vunpack.c.l.b16 %v515
    %v919 = vunpack.c.l.b16 %v516
    %v920 = vunpack.c.l.b16 %v517
    %v921 = vunpack.c.l.b16 %v518
    %v922 = vunpack.c.l.b16 %v519
    %v923 = vunpack.c.l.b16 %v520
    %v924 = vunpack.c.l.b16 %v521
    %v925 = vunpack.c.l.b16 %v522
    %v926 = vunpack.c.l.b16 %v523
    %v927 = vunpack.c.l.b16 %v524
    %v928 = vpack.c.b16 %v785, %v784
    %v929 = vpack.c.b16 %v787, %v786
    %v930 = vpack.c.b16 %v789, %v788
    %v931 = vpack.c.b16 %v791, %v790
    %v932 = vpack.c.b16 %v793, %v792
    %v933 = vpack.c.b16 %v795, %v794
    %v934 = vpack.c.b16 %v797, %v796
    %v935 = vpack.c.b16 %v799, %v798
    %v936 = vpack.c.b16 %v801, %v800
    %v937 = vpack.c.b16 %v803, %v802
    %v938 = vpack.c.b16 %v805, %v804
    %v939 = vpack.c.b16 %v807, %v806
    %v940 = vpack.c.b16 %v809, %v808
    %v941 = vpack.c.b16 %v811, %v810
    %v942 = vpack.c.b16 %v813, %v812
    %v943 = vpack.c.b16 %v815, %v814
    %v944 = vpack.c.b16 %v817, %v816
    %v945 = vpack.c.b16 %v819, %v818
    %v946 = vpack.c.b16 %v821, %v820
    %v947 = vpack.c.b16 %v823, %v822
    %v948 = vpack.c.b16 %v825, %v824
    %v949 = vpack.c.b16 %v827, %v826
    %v950 = vpack.c.b16 %v829, %v828
    %v951 = vpack.c.b16 %v831, %v830
    %v952 = vpack.c.b16 %v833, %v832
    %v953 = vpack.c.b16 %v835, %v834
    %v954 = vpack.c.b16 %v837, %v836
    %v955 = vpack.c.b16 %v839, %v838
    %v956 = vpack.c.b16 %v841, %v840
    %v957 = vpack.c.b16 %v843, %v842
    %v958 = vpack.c.b16 %v845, %v844
    %v959 = vpack.c.b16 %v847, %v846
    %v960 = vpack.c.b16 %v849, %v848
    %v961 = vpack.c.b16 %v851, %v850
    %v962 = vpack.c.b16 %v853, %v852
    %v963 = vpack.c.b16 %v855, %v854
    %v964 = vpack.c.b16 %v857, %v856
    %v965 = vpack.c.b16 %v859, %v858
    %v966 = vpack.c.b16 %v861, %v860
    %v967 = vpack.c.b16 %v863, %v862
    %v968 = vpack.c.b16 %v865, %v864
    %v969 = vpack.c.b16 %v867, %v866
    %v970 = vpack.c.b16 %v869, %v868
    %v971 = vpack.c.b16 %v871, %v870
    %v972 = vpack.c.b16 %v873, %v872
    %v973 = vpack.c.b16 %v875, %v874
    %v974 = vpack.c.b16 %v877, %v876
    %v975 = vpack.c.b16 %v879, %v878
    %v976 = vpack.c.b16 %v881, %v880
    %v977 = vpack.c.b16 %v883, %v882
    %v978 = vpack.c.b16 %v885, %v884
    %v979 = vpack.c.b16 %v887, %v886
    %v980 = vpack.c.b16 %v889, %v888
    %v981 = vpack.c.b16 %v891, %v890
    %v982 = vpack.c.b16 %v893, %v892
    %v983 = vpack.c.b16 %v895, %v894
    %v984 = vpack.c.b16 %v897, %v896
    %v985 = vpack.c.b16 %v899, %v898
    %v986 = vpack.c.b16 %v901, %v900
    %v987 = vpack.c.b16 %v903, %v902
    %v988 = vpack.c.b16 %v905, %v904
    %v989 = vpack.c.b16 %v907, %v906
    %v990 = vpack.c.b16 %v909, %v908
    %v991 = vpack.c.b16 %v911, %v910
    %v992 = vpack.c.b16 %v913, %v912
    %v993 = vpack.c.b16 %v915, %v914
    %v994 = vpack.c.b16 %v917, %v916
    %v995 = vpack.c.b16 %v919, %v918
    %v996 = vpack.c.b16 %v921, %v920
    %v997 = vpack.c.b16 %v923, %v922
    %v998 = vpack.c.b16 %v925, %v924
    %v999 = vpack.c.b16 %v927, %v926
    %1072 = vmatprep.subr.bf16.mxu0 0
    %1073 = vmatpush1.bf16.msra.mxu0 %v928
    %1074 = vmatprep.subr.bf16.mxu0 0
    %1075 = vmatpush1.bf16.msra.mxu0 %v929
    %1076 = vmatprep.subr.bf16.mxu0 0
    %1077 = vmatpush1.bf16.msra.mxu0 %v930
    %1078 = vmatprep.subr.bf16.mxu0 0
    %1079 = vmatpush1.bf16.msra.mxu0 %v931
    %1080 = vmatprep.subr.bf16.mxu0 0
    %1081 = vmatpush1.bf16.msra.mxu0 %v932
    %1082 = vmatprep.subr.bf16.mxu0 0
    %1083 = vmatpush1.bf16.msra.mxu0 %v933
    %1084 = vmatprep.subr.bf16.mxu0 0
    %1085 = vmatpush1.bf16.msra.mxu0 %v934
    %1086 = vmatprep.subr.bf16.mxu0 0
    %1087 = vmatpush1.bf16.msra.mxu0 %v935
    %1088 = vmatprep.subr.bf16.mxu0 0
    %1089 = vmatpush1.bf16.msra.mxu0 %v936
    %1090 = vmatprep.subr.bf16.mxu0 0
    %1091 = vmatpush1.bf16.msra.mxu0 %v937
    %1092 = vmatprep.subr.bf16.mxu0 0
    %1093 = vmatpush1.bf16.msra.mxu0 %v938
    %1094 = vmatprep.subr.bf16.mxu0 0
    %1095 = vmatpush1.bf16.msra.mxu0 %v939
    %1096 = vmatprep.subr.bf16.mxu0 0
    %1097 = vmatpush1.bf16.msra.mxu0 %v940
    %1098 = vmatprep.subr.bf16.mxu0 0
    %1099 = vmatpush1.bf16.msra.mxu0 %v941
    %1100 = vmatprep.subr.bf16.mxu0 0
    %1101 = vmatpush1.bf16.msra.mxu0 %v942
    %1102 = vmatprep.subr.bf16.mxu0 0
    %1103 = vmatpush1.bf16.msra.mxu0 %v943
    %1104 = vmatprep.mubr.bf16.mxu0 %v533
    %1105 = vmatmul.mubr.bf16.gmra.mrb[0].mxu0 %v532
    %v1106 = vpop.f32.mrb[0].mxu0
    %v1107 = vadd.f32 %v530, %v1106
    %v1108 = vpop.f32.mrb[0].mxu0
    %v1109 = vpop.f32.mrb[0].mxu0
    %v1110 = vadd.f32 %v530, %v1109
    %v1111 = vpop.f32.mrb[0].mxu0
    %1112 = vmatprep.mubr.bf16.mxu0 %v539
    %1113 = vmatmul.mubr.bf16.gmra.mrb[0].mxu0 %v538
    %v1114 = vpop.f32.mrb[0].mxu0
    %v1115 = vadd.f32 %v530, %v1114
    %v1116 = vpop.f32.mrb[0].mxu0
    %v1117 = vpop.f32.mrb[0].mxu0
    %v1118 = vadd.f32 %v530, %v1117
    %v1119 = vpop.f32.mrb[0].mxu0
    %1120 = vmatprep.mubr.bf16.mxu0 %v545
    %1121 = vmatmul.mubr.bf16.gmra.mrb[0].mxu0 %v544
    %v1122 = vpop.f32.mrb[0].mxu0
    %v1123 = vadd.f32 %v530, %v1122
    %v1124 = vpop.f32.mrb[0].mxu0
    %v1125 = vpop.f32.mrb[0].mxu0
    %v1126 = vadd.f32 %v530, %v1125
    %v1127 = vpop.f32.mrb[0].mxu0
    %1128 = vmatprep.mubr.bf16.mxu0 %v551
    %1129 = vmatmul.mubr.bf16.gmra.mrb[0].mxu0 %v550
    %v1130 = vpop.f32.mrb[0].mxu0
    %v1131 = vadd.f32 %v530, %v1130
    %v1132 = vpop.f32.mrb[0].mxu0
    %v1133 = vpop.f32.mrb[0].mxu0
    %v1134 = vadd.f32 %v530, %v1133
    %v1135 = vpop.f32.mrb[0].mxu0
    %1136 = vmatprep.mubr.bf16.mxu0 %v560
    %1137 = vmatmul.mubr.bf16.gmra.mrb[0].mxu0 %v559
    %v1138 = vpop.f32.mrb[0].mxu0
    %v1139 = vadd.f32 %v530, %v1138
    %v1140 = vpop.f32.mrb[0].mxu0
    %v1141 = vpop.f32.mrb[0].mxu0
    %v1142 = vadd.f32 %v530, %v1141
    %v1143 = vpop.f32.mrb[0].mxu0
    %1144 = vmatprep.mubr.bf16.mxu0 %v566
    %1145 = vmatmul.mubr.bf16.gmra.mrb[0].mxu0 %v565
    %v1146 = vpop.f32.mrb[0].mxu0
    %v1147 = vadd.f32 %v530, %v1146
    %v1148 = vpop.f32.mrb[0].mxu0
    %v1149 = vpop.f32.mrb[0].mxu0
    %v1150 = vadd.f32 %v530, %v1149
    %v1151 = vpop.f32.mrb[0].mxu0
    %1152 = vmatprep.mubr.bf16.mxu0 %v572
    %1153 = vmatmul.mubr.bf16.gmra.mrb[0].mxu0 %v571
    %v1154 = vpop.f32.mrb[0].mxu0
    %v1155 = vadd.f32 %v530, %v1154
    %v1156 = vpop.f32.mrb[0].mxu0
    %v1157 = vpop.f32.mrb[0].mxu0
    %v1158 = vadd.f32 %v530, %v1157
    %v1159 = vpop.f32.mrb[0].mxu0
    %1160 = vmatprep.mubr.bf16.mxu0 %v578
    %1161 = vmatmul.mubr.bf16.gmra.mrb[0].mxu0 %v577
    %v1162 = vpop.f32.mrb[0].mxu0
    %v1163 = vadd.f32 %v530, %v1162
    %v1164 = vpop.f32.mrb[0].mxu0
    %v1165 = vpop.f32.mrb[0].mxu0
    %v1166 = vadd.f32 %v530, %v1165
    %v1167 = vpop.f32.mrb[0].mxu0
    %1168 = vdwg.mxu0
    %1169 = vmatprep.subr.bf16.mxu0 0
    %1170 = vmatpush1.bf16.msra.mxu0 %v944
    %1171 = vmatprep.subr.bf16.mxu0 0
    %1172 = vmatpush1.bf16.msra.mxu0 %v945
    %1173 = vmatprep.subr.bf16.mxu0 0
    %1174 = vmatpush1.bf16.msra.mxu0 %v946
    %1175 = vmatprep.subr.bf16.mxu0 0
    %1176 = vmatpush1.bf16.msra.mxu0 %v947
    %1177 = vmatprep.subr.bf16.mxu0 0
    %1178 = vmatpush1.bf16.msra.mxu0 %v948
    %1179 = vmatprep.subr.bf16.mxu0 0
    %1180 = vmatpush1.bf16.msra.mxu0 %v949
    %1181 = vmatprep.subr.bf16.mxu0 0
    %1182 = vmatpush1.bf16.msra.mxu0 %v950
    %1183 = vmatprep.subr.bf16.mxu0 0
    %1184 = vmatpush1.bf16.msra.mxu0 %v951
    %1185 = vmatprep.subr.bf16.mxu0 0
    %1186 = vmatpush1.bf16.msra.mxu0 %v952
    %1187 = vmatprep.subr.bf16.mxu0 0
    %1188 = vmatpush1.bf16.msra.mxu0 %v953
    %1189 = vmatprep.subr.bf16.mxu0 0
    %1190 = vmatpush1.bf16.msra.mxu0 %v954
    %1191 = vmatprep.subr.bf16.mxu0 0
    %1192 = vmatpush1.bf16.msra.mxu0 %v955
    %1193 = vmatprep.subr.bf16.mxu0 0
    %1194 = vmatpush1.bf16.msra.mxu0 %v956
    %1195 = vmatprep.subr.bf16.mxu0 0
    %1196 = vmatpush1.bf16.msra.mxu0 %v957
    %1197 = vmatprep.subr.bf16.mxu0 0
    %1198 = vmatpush1.bf16.msra.mxu0 %v958
    %1199 = vmatprep.subr.bf16.mxu0 0
    %1200 = vmatpush1.bf16.msra.mxu0 %v959
    %1201 = vmatprep.mubr.bf16.mxu0 %v535
    %1202 = vmatmul.mubr.bf16.gmra.mrb[0].mxu0 %v534
    %v1203 = vpop.f32.mrb[0].mxu0
    %v1204 = vadd.f32 %v1107, %v1203
    %v1205 = vpop.f32.mrb[0].mxu0
    %v1206 = vpop.f32.mrb[0].mxu0
    %v1207 = vadd.f32 %v1110, %v1206
    %v1208 = vpop.f32.mrb[0].mxu0
    %1209 = vmatprep.mubr.bf16.mxu0 %v541
    %1210 = vmatmul.mubr.bf16.gmra.mrb[0].mxu0 %v540
    %v1211 = vpop.f32.mrb[0].mxu0
    %v1212 = vadd.f32 %v1115, %v1211
    %v1213 = vpop.f32.mrb[0].mxu0
    %v1214 = vpop.f32.mrb[0].mxu0
    %v1215 = vadd.f32 %v1118, %v1214
    %v1216 = vpop.f32.mrb[0].mxu0
    %1217 = vmatprep.mubr.bf16.mxu0 %v547
    %1218 = vmatmul.mubr.bf16.gmra.mrb[0].mxu0 %v546
    %v1219 = vpop.f32.mrb[0].mxu0
    %v1220 = vadd.f32 %v1123, %v1219
    %v1221 = vpop.f32.mrb[0].mxu0
    %v1222 = vpop.f32.mrb[0].mxu0
    %v1223 = vadd.f32 %v1126, %v1222
    %v1224 = vpop.f32.mrb[0].mxu0
    %1225 = vmatprep.mubr.bf16.mxu0 %v553
    %1226 = vmatmul.mubr.bf16.gmra.mrb[0].mxu0 %v552
    %v1227 = vpop.f32.mrb[0].mxu0
    %v1228 = vadd.f32 %v1131, %v1227
    %v1229 = vpop.f32.mrb[0].mxu0
    %v1230 = vpop.f32.mrb[0].mxu0
    %v1231 = vadd.f32 %v1134, %v1230
    %v1232 = vpop.f32.mrb[0].mxu0
    %1233 = vmatprep.mubr.bf16.mxu0 %v562
    %1234 = vmatmul.mubr.bf16.gmra.mrb[0].mxu0 %v561
    %v1235 = vpop.f32.mrb[0].mxu0
    %v1236 = vadd.f32 %v1139, %v1235
    %v1237 = vpop.f32.mrb[0].mxu0
    %v1238 = vpop.f32.mrb[0].mxu0
    %v1239 = vadd.f32 %v1142, %v1238
    %v1240 = vpop.f32.mrb[0].mxu0
    %1241 = vmatprep.mubr.bf16.mxu0 %v568
    %1242 = vmatmul.mubr.bf16.gmra.mrb[0].mxu0 %v567
    %v1243 = vpop.f32.mrb[0].mxu0
    %v1244 = vadd.f32 %v1147, %v1243
    %v1245 = vpop.f32.mrb[0].mxu0
    %v1246 = vpop.f32.mrb[0].mxu0
    %v1247 = vadd.f32 %v1150, %v1246
    %v1248 = vpop.f32.mrb[0].mxu0
    %1249 = vmatprep.mubr.bf16.mxu0 %v574
    %1250 = vmatmul.mubr.bf16.gmra.mrb[0].mxu0 %v573
    %v1251 = vpop.f32.mrb[0].mxu0
    %v1252 = vadd.f32 %v1155, %v1251
    %v1253 = vpop.f32.mrb[0].mxu0
    %v1254 = vpop.f32.mrb[0].mxu0
    %v1255 = vadd.f32 %v1158, %v1254
    %v1256 = vpop.f32.mrb[0].mxu0
    %1257 = vmatprep.mubr.bf16.mxu0 %v580
    %1258 = vmatmul.mubr.bf16.gmra.mrb[0].mxu0 %v579
    %v1259 = vpop.f32.mrb[0].mxu0
    %v1260 = vadd.f32 %v1163, %v1259
    %v1261 = vpop.f32.mrb[0].mxu0
    %v1262 = vpop.f32.mrb[0].mxu0
    %v1263 = vadd.f32 %v1166, %v1262
    %v1264 = vpop.f32.mrb[0].mxu0
    %1265 = vdwg.mxu0
    %1266 = vmatprep.subr.bf16.mxu0 0
    %1267 = vmatpush1.bf16.msra.mxu0 %v960
    %1268 = vmatprep.subr.bf16.mxu0 0
    %1269 = vmatpush1.bf16.msra.mxu0 %v961
    %1270 = vmatprep.subr.bf16.mxu0 0
    %1271 = vmatpush1.bf16.msra.mxu0 %v962
    %1272 = vmatprep.subr.bf16.mxu0 0
    %1273 = vmatpush1.bf16.msra.mxu0 %v963
    %1274 = vmatprep.subr.bf16.mxu0 0
    %1275 = vmatpush1.bf16.msra.mxu0 %v964
    %1276 = vmatprep.subr.bf16.mxu0 0
    %1277 = vmatpush1.bf16.msra.mxu0 %v965
    %1278 = vmatprep.subr.bf16.mxu0 0
    %1279 = vmatpush1.bf16.msra.mxu0 %v966
    %1280 = vmatprep.subr.bf16.mxu0 0
    %1281 = vmatpush1.bf16.msra.mxu0 %v967
    %1282 = vmatprep.subr.bf16.mxu0 0
    %1283 = vmatpush1.bf16.msra.mxu0 %v968
    %1284 = vmatprep.subr.bf16.mxu0 0
    %1285 = vmatpush1.bf16.msra.mxu0 %v969
    %1286 = vmatprep.subr.bf16.mxu0 0
    %1287 = vmatpush1.bf16.msra.mxu0 %v970
    %1288 = vmatprep.subr.bf16.mxu0 0
    %1289 = vmatpush1.bf16.msra.mxu0 %v971
    %1290 = vmatprep.subr.bf16.mxu0 0
    %1291 = vmatpush1.bf16.msra.mxu0 %v972
    %1292 = vmatprep.subr.bf16.mxu0 0
    %1293 = vmatpush1.bf16.msra.mxu0 %v973
    %1294 = vmatprep.subr.bf16.mxu0 0
    %1295 = vmatpush1.bf16.msra.mxu0 %v974
    %1296 = vmatprep.subr.bf16.mxu0 0
    %1297 = vmatpush1.bf16.msra.mxu0 %v975
    %1298 = vmatprep.mubr.bf16.mxu0 %v537
    %1299 = vmatmul.mubr.bf16.gmra.mrb[0].mxu0 %v536
    %v1300 = vpop.f32.mrb[0].mxu0
    %v1301 = vadd.f32 %v1204, %v1300
    %v1302 = vpop.f32.mrb[0].mxu0
    %v1303 = vpop.f32.mrb[0].mxu0
    %v1304 = vadd.f32 %v1207, %v1303
    %v1305 = vpop.f32.mrb[0].mxu0
    %1306 = vmatprep.mubr.bf16.mxu0 %v543
    %1307 = vmatmul.mubr.bf16.gmra.mrb[0].mxu0 %v542
    %v1308 = vpop.f32.mrb[0].mxu0
    %v1309 = vadd.f32 %v1212, %v1308
    %v1310 = vpop.f32.mrb[0].mxu0
    %v1311 = vpop.f32.mrb[0].mxu0
    %v1312 = vadd.f32 %v1215, %v1311
    %v1313 = vpop.f32.mrb[0].mxu0
    %1314 = vmatprep.mubr.bf16.mxu0 %v549
    %1315 = vmatmul.mubr.bf16.gmra.mrb[0].mxu0 %v548
    %v1316 = vpop.f32.mrb[0].mxu0
    %v1317 = vadd.f32 %v1220, %v1316
    %v1318 = vpop.f32.mrb[0].mxu0
    %v1319 = vpop.f32.mrb[0].mxu0
    %v1320 = vadd.f32 %v1223, %v1319
    %v1321 = vpop.f32.mrb[0].mxu0
    %1322 = vmatprep.mubr.bf16.mxu0 %v555
    %1323 = vmatmul.mubr.bf16.gmra.mrb[0].mxu0 %v554
    %v1324 = vpop.f32.mrb[0].mxu0
    %v1325 = vadd.f32 %v1228, %v1324
    %v1326 = vpop.f32.mrb[0].mxu0
    %v1327 = vpop.f32.mrb[0].mxu0
    %v1328 = vadd.f32 %v1231, %v1327
    %v1329 = vpop.f32.mrb[0].mxu0
    %1330 = vmatprep.mubr.bf16.mxu0 %v564
    %1331 = vmatmul.mubr.bf16.gmra.mrb[0].mxu0 %v563
    %v1332 = vpop.f32.mrb[0].mxu0
    %v1333 = vadd.f32 %v1236, %v1332
    %v1334 = vpop.f32.mrb[0].mxu0
    %v1335 = vpop.f32.mrb[0].mxu0
    %v1336 = vadd.f32 %v1239, %v1335
    %v1337 = vpop.f32.mrb[0].mxu0
    %1338 = vmatprep.mubr.bf16.mxu0 %v570
    %1339 = vmatmul.mubr.bf16.gmra.mrb[0].mxu0 %v569
    %v1340 = vpop.f32.mrb[0].mxu0
    %v1341 = vadd.f32 %v1244, %v1340
    %v1342 = vpop.f32.mrb[0].mxu0
    %v1343 = vpop.f32.mrb[0].mxu0
    %v1344 = vadd.f32 %v1247, %v1343
    %v1345 = vpop.f32.mrb[0].mxu0
    %1346 = vmatprep.mubr.bf16.mxu0 %v576
    %1347 = vmatmul.mubr.bf16.gmra.mrb[0].mxu0 %v575
    %v1348 = vpop.f32.mrb[0].mxu0
    %v1349 = vadd.f32 %v1252, %v1348
    %v1350 = vpop.f32.mrb[0].mxu0
    %v1351 = vpop.f32.mrb[0].mxu0
    %v1352 = vadd.f32 %v1255, %v1351
    %v1353 = vpop.f32.mrb[0].mxu0
    %1354 = vmatprep.mubr.bf16.mxu0 %v582
    %1355 = vmatmul.mubr.bf16.gmra.mrb[0].mxu0 %v581
    %v1356 = vpop.f32.mrb[0].mxu0
    %v1357 = vadd.f32 %v1260, %v1356
    %v1358 = vpop.f32.mrb[0].mxu0
    %v1359 = vpop.f32.mrb[0].mxu0
    %v1360 = vadd.f32 %v1263, %v1359
    %v1361 = vpop.f32.mrb[0].mxu0
    %1362 = vdwg.mxu0
    %1363 = vmatprep.subr.bf16.mxu0 0
    %1364 = vmatpush1.bf16.msra.mxu0 %v976
    %1365 = vmatprep.subr.bf16.mxu0 0
    %1366 = vmatpush1.bf16.msra.mxu0 %v977
    %1367 = vmatprep.subr.bf16.mxu0 0
    %1368 = vmatpush1.bf16.msra.mxu0 %v978
    %1369 = vmatprep.subr.bf16.mxu0 0
    %1370 = vmatpush1.bf16.msra.mxu0 %v979
    %1371 = vmatprep.subr.bf16.mxu0 0
    %1372 = vmatpush1.bf16.msra.mxu0 %v980
    %1373 = vmatprep.subr.bf16.mxu0 0
    %1374 = vmatpush1.bf16.msra.mxu0 %v981
    %1375 = vmatprep.subr.bf16.mxu0 0
    %1376 = vmatpush1.bf16.msra.mxu0 %v982
    %1377 = vmatprep.subr.bf16.mxu0 0
    %1378 = vmatpush1.bf16.msra.mxu0 %v983
    %1379 = vmatprep.subr.bf16.mxu0 0
    %1380 = vmatpush1.bf16.msra.mxu0 %v984
    %1381 = vmatprep.subr.bf16.mxu0 0
    %1382 = vmatpush1.bf16.msra.mxu0 %v985
    %1383 = vmatprep.subr.bf16.mxu0 0
    %1384 = vmatpush1.bf16.msra.mxu0 %v986
    %1385 = vmatprep.subr.bf16.mxu0 0
    %1386 = vmatpush1.bf16.msra.mxu0 %v987
    %1387 = vmatprep.subr.bf16.mxu0 0
    %1388 = vmatpush1.bf16.msra.mxu0 %v988
    %1389 = vmatprep.subr.bf16.mxu0 0
    %1390 = vmatpush1.bf16.msra.mxu0 %v989
    %1391 = vmatprep.subr.bf16.mxu0 0
    %1392 = vmatpush1.bf16.msra.mxu0 %v990
    %1393 = vmatprep.subr.bf16.mxu0 0
    %1394 = vmatpush1.bf16.msra.mxu0 %v991
    %1395 = vmatprep.mubr.bf16.mxu0 %v539
    %1396 = vmatmul.mubr.bf16.gmra.mrb[0].mxu0 %v538
    %v1397 = vpop.f32.mrb[0].mxu0
    %v1398 = vadd.f32 %v1301, %v1397
    %v1399 = vpop.f32.mrb[0].mxu0
    %v1400 = vpop.f32.mrb[0].mxu0
    %v1401 = vadd.f32 %v1304, %v1400
    %v1402 = vpop.f32.mrb[0].mxu0
    %1403 = vmatprep.mubr.bf16.mxu0 %v545
    %1404 = vmatmul.mubr.bf16.gmra.mrb[0].mxu0 %v544
    %v1405 = vpop.f32.mrb[0].mxu0
    %v1406 = vadd.f32 %v1309, %v1405
    %v1407 = vpop.f32.mrb[0].mxu0
    %v1408 = vpop.f32.mrb[0].mxu0
    %v1409 = vadd.f32 %v1312, %v1408
    %v1410 = vpop.f32.mrb[0].mxu0
    %1411 = vmatprep.mubr.bf16.mxu0 %v551
    %1412 = vmatmul.mubr.bf16.gmra.mrb[0].mxu0 %v550
    %v1413 = vpop.f32.mrb[0].mxu0
    %v1414 = vadd.f32 %v1317, %v1413
    %v1415 = vpop.f32.mrb[0].mxu0
    %v1416 = vpop.f32.mrb[0].mxu0
    %v1417 = vadd.f32 %v1320, %v1416
    %v1418 = vpop.f32.mrb[0].mxu0
    %1419 = vmatprep.mubr.bf16.mxu0 %v557
    %1420 = vmatmul.mubr.bf16.gmra.mrb[0].mxu0 %v556
    %v1421 = vpop.f32.mrb[0].mxu0
    %v1422 = vadd.f32 %v1325, %v1421
    %v1423 = vpop.f32.mrb[0].mxu0
    %v1424 = vpop.f32.mrb[0].mxu0
    %v1425 = vadd.f32 %v1328, %v1424
    %v1426 = vpop.f32.mrb[0].mxu0
    %1427 = vmatprep.mubr.bf16.mxu0 %v566
    %1428 = vmatmul.mubr.bf16.gmra.mrb[0].mxu0 %v565
    %v1429 = vpop.f32.mrb[0].mxu0
    %v1430 = vadd.f32 %v1333, %v1429
    %v1431 = vpop.f32.mrb[0].mxu0
    %v1432 = vpop.f32.mrb[0].mxu0
    %v1433 = vadd.f32 %v1336, %v1432
    %v1434 = vpop.f32.mrb[0].mxu0
    %1435 = vmatprep.mubr.bf16.mxu0 %v572
    %1436 = vmatmul.mubr.bf16.gmra.mrb[0].mxu0 %v571
    %v1437 = vpop.f32.mrb[0].mxu0
    %v1438 = vadd.f32 %v1341, %v1437
    %v1439 = vpop.f32.mrb[0].mxu0
    %v1440 = vpop.f32.mrb[0].mxu0
    %v1441 = vadd.f32 %v1344, %v1440
    %v1442 = vpop.f32.mrb[0].mxu0
    %1443 = vmatprep.mubr.bf16.mxu0 %v578
    %1444 = vmatmul.mubr.bf16.gmra.mrb[0].mxu0 %v577
    %v1445 = vpop.f32.mrb[0].mxu0
    %v1446 = vadd.f32 %v1349, %v1445
    %v1447 = vpop.f32.mrb[0].mxu0
    %v1448 = vpop.f32.mrb[0].mxu0
    %v1449 = vadd.f32 %v1352, %v1448
    %v1450 = vpop.f32.mrb[0].mxu0
    %1451 = vmatprep.mubr.bf16.mxu0 %v584
    %1452 = vmatmul.mubr.bf16.gmra.mrb[0].mxu0 %v583
    %v1453 = vpop.f32.mrb[0].mxu0
    %v1454 = vadd.f32 %v1357, %v1453
    %v1455 = vpop.f32.mrb[0].mxu0
    %v1456 = vpop.f32.mrb[0].mxu0
    %v1457 = vadd.f32 %v1360, %v1456
    %v1458 = vpop.f32.mrb[0].mxu0
    %1459 = vdwg.mxu0
    %1460 = vmatprep.subr.bf16.mxu0 0
    %1461 = vmatpush1.bf16.msra.mxu0 %v992
    %1462 = vmatprep.subr.bf16.mxu0 0
    %1463 = vmatpush1.bf16.msra.mxu0 %v993
    %1464 = vmatprep.subr.bf16.mxu0 0
    %1465 = vmatpush1.bf16.msra.mxu0 %v994
    %1466 = vmatprep.subr.bf16.mxu0 0
    %1467 = vmatpush1.bf16.msra.mxu0 %v995
    %1468 = vmatprep.subr.bf16.mxu0 0
    %1469 = vmatpush1.bf16.msra.mxu0 %v996
    %1470 = vmatprep.subr.bf16.mxu0 0
    %1471 = vmatpush1.bf16.msra.mxu0 %v997
    %1472 = vmatprep.subr.bf16.mxu0 0
    %1473 = vmatpush1.bf16.msra.mxu0 %v998
    %1474 = vmatprep.subr.bf16.mxu0 0
    %1475 = vmatpush1.bf16.msra.mxu0 %v999
    %1476 = vmatprep.subr.bf16.mxu0 0
    %1477 = vmatpush1.bf16.msra.mxu0 0
    %1478 = vmatprep.subr.bf16.mxu0 0
    %1479 = vmatpush1.bf16.msra.mxu0 0
    %1480 = vmatprep.subr.bf16.mxu0 0
    %1481 = vmatpush1.bf16.msra.mxu0 0
    %1482 = vmatprep.subr.bf16.mxu0 0
    %1483 = vmatpush1.bf16.msra.mxu0 0
    %1484 = vmatprep.subr.bf16.mxu0 0
    %1485 = vmatpush1.bf16.msra.mxu0 0
    %1486 = vmatprep.subr.bf16.mxu0 0
    %1487 = vmatpush1.bf16.msra.mxu0 0
    %1488 = vmatprep.subr.bf16.mxu0 0
    %1489 = vmatpush1.bf16.msra.mxu0 0
    %1490 = vmatprep.subr.bf16.mxu0 0
    %1491 = vmatpush1.bf16.msra.mxu0 0
    %1492 = vmatprep.mubr.bf16.mxu0 0
    %1493 = vmatmul.mubr.bf16.gmra.mrb[0].mxu0 %v540
    %v1494 = vpop.f32.mrb[0].mxu0
    %v1495 = vadd.f32 %v1398, %v1494
    %v1496 = vpop.f32.mrb[0].mxu0
    %v1497 = vpop.f32.mrb[0].mxu0
    %v1498 = vadd.f32 %v1401, %v1497
    %v1499 = vpop.f32.mrb[0].mxu0
    %1500 = vmatprep.mubr.bf16.mxu0 0
    %1501 = vmatmul.mubr.bf16.gmra.mrb[0].mxu0 %v546
    %v1502 = vpop.f32.mrb[0].mxu0
    %v1503 = vadd.f32 %v1406, %v1502
    %v1504 = vpop.f32.mrb[0].mxu0
    %v1505 = vpop.f32.mrb[0].mxu0
    %v1506 = vadd.f32 %v1409, %v1505
    %v1507 = vpop.f32.mrb[0].mxu0
    %1508 = vmatprep.mubr.bf16.mxu0 0
    %1509 = vmatmul.mubr.bf16.gmra.mrb[0].mxu0 %v552
    %v1510 = vpop.f32.mrb[0].mxu0
    %v1511 = vadd.f32 %v1414, %v1510
    %v1512 = vpop.f32.mrb[0].mxu0
    %v1513 = vpop.f32.mrb[0].mxu0
    %v1514 = vadd.f32 %v1417, %v1513
    %v1515 = vpop.f32.mrb[0].mxu0
    %1516 = vmatprep.mubr.bf16.mxu0 0
    %1517 = vmatmul.mubr.bf16.gmra.mrb[0].mxu0 %v558
    %v1518 = vpop.f32.mrb[0].mxu0
    %v1519 = vadd.f32 %v1422, %v1518
    %v1520 = vpop.f32.mrb[0].mxu0
    %v1521 = vpop.f32.mrb[0].mxu0
    %v1522 = vadd.f32 %v1425, %v1521
    %v1523 = vpop.f32.mrb[0].mxu0
    %1524 = vmatprep.mubr.bf16.mxu0 0
    %1525 = vmatmul.mubr.bf16.gmra.mrb[0].mxu0 %v567
    %v1526 = vpop.f32.mrb[0].mxu0
    %v1527 = vadd.f32 %v1430, %v1526
    %v1528 = vpop.f32.mrb[0].mxu0
    %v1529 = vpop.f32.mrb[0].mxu0
    %v1530 = vadd.f32 %v1433, %v1529
    %v1531 = vpop.f32.mrb[0].mxu0
    %1532 = vmatprep.mubr.bf16.mxu0 0
    %1533 = vmatmul.mubr.bf16.gmra.mrb[0].mxu0 %v573
    %v1534 = vpop.f32.mrb[0].mxu0
    %v1535 = vadd.f32 %v1438, %v1534
    %v1536 = vpop.f32.mrb[0].mxu0
    %v1537 = vpop.f32.mrb[0].mxu0
    %v1538 = vadd.f32 %v1441, %v1537
    %v1539 = vpop.f32.mrb[0].mxu0
    %1540 = vmatprep.mubr.bf16.mxu0 0
    %1541 = vmatmul.mubr.bf16.gmra.mrb[0].mxu0 %v579
    %v1542 = vpop.f32.mrb[0].mxu0
    %v1543 = vadd.f32 %v1446, %v1542
    %v1544 = vpop.f32.mrb[0].mxu0
    %v1545 = vpop.f32.mrb[0].mxu0
    %v1546 = vadd.f32 %v1449, %v1545
    %v1547 = vpop.f32.mrb[0].mxu0
    %1548 = vmatprep.mubr.bf16.mxu0 0
    %1549 = vmatmul.mubr.bf16.gmra.mrb[0].mxu0 %v585
    %v1550 = vpop.f32.mrb[0].mxu0
    %v1551 = vadd.f32 %v1454, %v1550
    %v1552 = vpop.f32.mrb[0].mxu0
    %v1553 = vpop.f32.mrb[0].mxu0
    %v1554 = vadd.f32 %v1457, %v1553
    %v1555 = vpop.f32.mrb[0].mxu0
    %1556 = vdwg.mxu0
    %v1557 = vmax.f32 %v1495, 0.0
    %v1558 = vmax.f32 %v1498, 0.0
    %v1559 = vmax.f32 %v1503, 0.0
    %v1560 = vmax.f32 %v1506, 0.0
    %v1561 = vmax.f32 %v1511, 0.0
    %v1562 = vmax.f32 %v1514, 0.0
    %v1563 = vmax.f32 %v1519, 0.0
    %v1564 = vmax.f32 %v1522, 0.0
    %v1565 = vmax.f32 %v1527, 0.0
    %v1566 = vmax.f32 %v1530, 0.0
    %v1567 = vmax.f32 %v1535, 0.0
    %v1568 = vmax.f32 %v1538, 0.0
    %v1569 = vmax.f32 %v1543, 0.0
    %v1570 = vmax.f32 %v1546, 0.0
    %v1571 = vmax.f32 %v1551, 0.0
    %v1572 = vmax.f32 %v1554, 0.0
    %v1589 = vcombine.high %v1557, %v1557
    %v1591 = vunpack.c.l.s4 1983009808
    %v1592 = vunpack.c.0.s8 %v1591
    %v1593 = vlaneseq
    %v1594 = vshrl.u32 %v1593, 7
    %v1595 = vsub.s32 %v1592, %v1594
    %v1596 = vrot.slane %v1557, %v1595
    %v1598 = vunpack.c.l.s4 1983009808
    %v1599 = vunpack.c.0.s8 %v1598
    %v1600 = vlaneseq
    %v1601 = vshrl.u32 %v1600, 7
    %v1602 = vsub.s32 %v1599, %v1601
    %v1603 = vrot.slane %v1589, %v1602
    %v1604 = vcombine.high %v1596, %v1596
    %v1605 = vcombine.high %v1603, %v1603
    %v1606 = vcombine.high %v1558, %v1558
    %v1608 = vunpack.c.l.s4 1983009808
    %v1609 = vunpack.c.0.s8 %v1608
    %v1610 = vlaneseq
    %v1611 = vshrl.u32 %v1610, 7
    %v1612 = vsub.s32 %v1609, %v1611
    %v1613 = vrot.slane %v1558, %v1612
    %v1615 = vunpack.c.l.s4 1983009808
    %v1616 = vunpack.c.0.s8 %v1615
    %v1617 = vlaneseq
    %v1618 = vshrl.u32 %v1617, 7
    %v1619 = vsub.s32 %v1616, %v1618
    %v1620 = vrot.slane %v1606, %v1619
    %v1621 = vcombine.high %v1613, %v1613
    %v1622 = vcombine.high %v1620, %v1620
    %v1623 = vcombine.high %v1559, %v1559
    %v1625 = vunpack.c.l.s4 1983009808
    %v1626 = vunpack.c.0.s8 %v1625
    %v1627 = vlaneseq
    %v1628 = vshrl.u32 %v1627, 7
    %v1629 = vsub.s32 %v1626, %v1628
    %v1630 = vrot.slane %v1559, %v1629
    %v1632 = vunpack.c.l.s4 1983009808
    %v1633 = vunpack.c.0.s8 %v1632
    %v1634 = vlaneseq
    %v1635 = vshrl.u32 %v1634, 7
    %v1636 = vsub.s32 %v1633, %v1635
    %v1637 = vrot.slane %v1623, %v1636
    %v1638 = vcombine.high %v1630, %v1630
    %v1639 = vcombine.high %v1637, %v1637
    %v1640 = vcombine.high %v1560, %v1560
    %v1642 = vunpack.c.l.s4 1983009808
    %v1643 = vunpack.c.0.s8 %v1642
    %v1644 = vlaneseq
    %v1645 = vshrl.u32 %v1644, 7
    %v1646 = vsub.s32 %v1643, %v1645
    %v1647 = vrot.slane %v1560, %v1646
    %v1649 = vunpack.c.l.s4 1983009808
    %v1650 = vunpack.c.0.s8 %v1649
    %v1651 = vlaneseq
    %v1652 = vshrl.u32 %v1651, 7
    %v1653 = vsub.s32 %v1650, %v1652
    %v1654 = vrot.slane %v1640, %v1653
    %v1655 = vcombine.high %v1647, %v1647
    %v1656 = vcombine.high %v1654, %v1654
    %v1657 = vcombine.high %v1561, %v1561
    %v1659 = vunpack.c.l.s4 1983009808
    %v1660 = vunpack.c.0.s8 %v1659
    %v1661 = vlaneseq
    %v1662 = vshrl.u32 %v1661, 7
    %v1663 = vsub.s32 %v1660, %v1662
    %v1664 = vrot.slane %v1561, %v1663
    %v1666 = vunpack.c.l.s4 1983009808
    %v1667 = vunpack.c.0.s8 %v1666
    %v1668 = vlaneseq
    %v1669 = vshrl.u32 %v1668, 7
    %v1670 = vsub.s32 %v1667, %v1669
    %v1671 = vrot.slane %v1657, %v1670
    %v1672 = vcombine.high %v1664, %v1664
    %v1673 = vcombine.high %v1671, %v1671
    %v1674 = vcombine.high %v1562, %v1562
    %v1676 = vunpack.c.l.s4 1983009808
    %v1677 = vunpack.c.0.s8 %v1676
    %v1678 = vlaneseq
    %v1679 = vshrl.u32 %v1678, 7
    %v1680 = vsub.s32 %v1677, %v1679
    %v1681 = vrot.slane %v1562, %v1680
    %v1683 = vunpack.c.l.s4 1983009808
    %v1684 = vunpack.c.0.s8 %v1683
    %v1685 = vlaneseq
    %v1686 = vshrl.u32 %v1685, 7
    %v1687 = vsub.s32 %v1684, %v1686
    %v1688 = vrot.slane %v1674, %v1687
    %v1689 = vcombine.high %v1681, %v1681
    %v1690 = vcombine.high %v1688, %v1688
    %v1691 = vcombine.high %v1563, %v1563
    %v1693 = vunpack.c.l.s4 1983009808
    %v1694 = vunpack.c.0.s8 %v1693
    %v1695 = vlaneseq
    %v1696 = vshrl.u32 %v1695, 7
    %v1697 = vsub.s32 %v1694, %v1696
    %v1698 = vrot.slane %v1563, %v1697
    %v1700 = vunpack.c.l.s4 1983009808
    %v1701 = vunpack.c.0.s8 %v1700
    %v1702 = vlaneseq
    %v1703 = vshrl.u32 %v1702, 7
    %v1704 = vsub.s32 %v1701, %v1703
    %v1705 = vrot.slane %v1691, %v1704
    %v1706 = vcombine.high %v1698, %v1698
    %v1707 = vcombine.high %v1705, %v1705
    %v1708 = vcombine.high %v1564, %v1564
    %v1710 = vunpack.c.l.s4 1983009808
    %v1711 = vunpack.c.0.s8 %v1710
    %v1712 = vlaneseq
    %v1713 = vshrl.u32 %v1712, 7
    %v1714 = vsub.s32 %v1711, %v1713
    %v1715 = vrot.slane %v1564, %v1714
    %v1717 = vunpack.c.l.s4 1983009808
    %v1718 = vunpack.c.0.s8 %v1717
    %v1719 = vlaneseq
    %v1720 = vshrl.u32 %v1719, 7
    %v1721 = vsub.s32 %v1718, %v1720
    %v1722 = vrot.slane %v1708, %v1721
    %v1723 = vcombine.high %v1715, %v1715
    %v1724 = vcombine.high %v1722, %v1722
    %v1725 = vcombine.high %v1565, %v1565
    %v1727 = vunpack.c.l.s4 1983009808
    %v1728 = vunpack.c.0.s8 %v1727
    %v1729 = vlaneseq
    %v1730 = vshrl.u32 %v1729, 7
    %v1731 = vsub.s32 %v1728, %v1730
    %v1732 = vrot.slane %v1565, %v1731
    %v1734 = vunpack.c.l.s4 1983009808
    %v1735 = vunpack.c.0.s8 %v1734
    %v1736 = vlaneseq
    %v1737 = vshrl.u32 %v1736, 7
    %v1738 = vsub.s32 %v1735, %v1737
    %v1739 = vrot.slane %v1725, %v1738
    %v1740 = vcombine.high %v1732, %v1732
    %v1741 = vcombine.high %v1739, %v1739
    %v1742 = vcombine.high %v1566, %v1566
    %v1744 = vunpack.c.l.s4 1983009808
    %v1745 = vunpack.c.0.s8 %v1744
    %v1746 = vlaneseq
    %v1747 = vshrl.u32 %v1746, 7
    %v1748 = vsub.s32 %v1745, %v1747
    %v1749 = vrot.slane %v1566, %v1748
    %v1751 = vunpack.c.l.s4 1983009808
    %v1752 = vunpack.c.0.s8 %v1751
    %v1753 = vlaneseq
    %v1754 = vshrl.u32 %v1753, 7
    %v1755 = vsub.s32 %v1752, %v1754
    %v1756 = vrot.slane %v1742, %v1755
    %v1757 = vcombine.high %v1749, %v1749
    %v1758 = vcombine.high %v1756, %v1756
    %v1759 = vcombine.high %v1567, %v1567
    %v1761 = vunpack.c.l.s4 1983009808
    %v1762 = vunpack.c.0.s8 %v1761
    %v1763 = vlaneseq
    %v1764 = vshrl.u32 %v1763, 7
    %v1765 = vsub.s32 %v1762, %v1764
    %v1766 = vrot.slane %v1567, %v1765
    %v1768 = vunpack.c.l.s4 1983009808
    %v1769 = vunpack.c.0.s8 %v1768
    %v1770 = vlaneseq
    %v1771 = vshrl.u32 %v1770, 7
    %v1772 = vsub.s32 %v1769, %v1771
    %v1773 = vrot.slane %v1759, %v1772
    %v1774 = vcombine.high %v1766, %v1766
    %v1775 = vcombine.high %v1773, %v1773
    %v1776 = vcombine.high %v1568, %v1568
    %v1778 = vunpack.c.l.s4 1983009808
    %v1779 = vunpack.c.0.s8 %v1778
    %v1780 = vlaneseq
    %v1781 = vshrl.u32 %v1780, 7
    %v1782 = vsub.s32 %v1779, %v1781
    %v1783 = vrot.slane %v1568, %v1782
    %v1785 = vunpack.c.l.s4 1983009808
    %v1786 = vunpack.c.0.s8 %v1785
    %v1787 = vlaneseq
    %v1788 = vshrl.u32 %v1787, 7
    %v1789 = vsub.s32 %v1786, %v1788
    %v1790 = vrot.slane %v1776, %v1789
    %v1791 = vcombine.high %v1783, %v1783
    %v1792 = vcombine.high %v1790, %v1790
    %v1793 = vcombine.high %v1569, %v1569
    %v1795 = vunpack.c.l.s4 1983009808
    %v1796 = vunpack.c.0.s8 %v1795
    %v1797 = vlaneseq
    %v1798 = vshrl.u32 %v1797, 7
    %v1799 = vsub.s32 %v1796, %v1798
    %v1800 = vrot.slane %v1569, %v1799
    %v1802 = vunpack.c.l.s4 1983009808
    %v1803 = vunpack.c.0.s8 %v1802
    %v1804 = vlaneseq
    %v1805 = vshrl.u32 %v1804, 7
    %v1806 = vsub.s32 %v1803, %v1805
    %v1807 = vrot.slane %v1793, %v1806
    %v1808 = vcombine.high %v1800, %v1800
    %v1809 = vcombine.high %v1807, %v1807
    %v1810 = vcombine.high %v1570, %v1570
    %v1812 = vunpack.c.l.s4 1983009808
    %v1813 = vunpack.c.0.s8 %v1812
    %v1814 = vlaneseq
    %v1815 = vshrl.u32 %v1814, 7
    %v1816 = vsub.s32 %v1813, %v1815
    %v1817 = vrot.slane %v1570, %v1816
    %v1819 = vunpack.c.l.s4 1983009808
    %v1820 = vunpack.c.0.s8 %v1819
    %v1821 = vlaneseq
    %v1822 = vshrl.u32 %v1821, 7
    %v1823 = vsub.s32 %v1820, %v1822
    %v1824 = vrot.slane %v1810, %v1823
    %v1825 = vcombine.high %v1817, %v1817
    %v1826 = vcombine.high %v1824, %v1824
    %v1827 = vcombine.high %v1571, %v1571
    %v1829 = vunpack.c.l.s4 1983009808
    %v1830 = vunpack.c.0.s8 %v1829
    %v1831 = vlaneseq
    %v1832 = vshrl.u32 %v1831, 7
    %v1833 = vsub.s32 %v1830, %v1832
    %v1834 = vrot.slane %v1571, %v1833
    %v1836 = vunpack.c.l.s4 1983009808
    %v1837 = vunpack.c.0.s8 %v1836
    %v1838 = vlaneseq
    %v1839 = vshrl.u32 %v1838, 7
    %v1840 = vsub.s32 %v1837, %v1839
    %v1841 = vrot.slane %v1827, %v1840
    %v1842 = vcombine.high %v1834, %v1834
    %v1843 = vcombine.high %v1841, %v1841
    %v1844 = vcombine.high %v1572, %v1572
    %v1846 = vunpack.c.l.s4 1983009808
    %v1847 = vunpack.c.0.s8 %v1846
    %v1848 = vlaneseq
    %v1849 = vshrl.u32 %v1848, 7
    %v1850 = vsub.s32 %v1847, %v1849
    %v1851 = vrot.slane %v1572, %v1850
    %v1853 = vunpack.c.l.s4 1983009808
    %v1854 = vunpack.c.0.s8 %v1853
    %v1855 = vlaneseq
    %v1856 = vshrl.u32 %v1855, 7
    %v1857 = vsub.s32 %v1854, %v1856
    %v1858 = vrot.slane %v1844, %v1857
    %v1859 = vcombine.high %v1851, %v1851
    %v1860 = vcombine.high %v1858, %v1858
    %vm1925 = vcmask 1041408
    %v1926 = vsel %vm1925, %v1596, -inf
    %v1927 = vrot.slane %v1926, 4
    %v1928 = vmax.f32 %v1926, %v1927
    %v1929 = vrot.slane %v1928, 2
    %v1930 = vmax.f32 %v1928, %v1929
    %v1931 = vrot.slane %v1930, 1
    %v1932 = vmax.f32 %v1930, %v1931
    %v1933 = vsel %vm1925, %v1604, -inf
    %v1934 = vrot.slane %v1933, 4
    %v1935 = vmax.f32 %v1933, %v1934
    %v1936 = vrot.slane %v1935, 2
    %v1937 = vmax.f32 %v1935, %v1936
    %v1938 = vrot.slane %v1937, 1
    %v1939 = vmax.f32 %v1937, %v1938
    %v1940 = vsel %vm1925, %v1603, -inf
    %v1941 = vrot.slane %v1940, 4
    %v1942 = vmax.f32 %v1940, %v1941
    %v1943 = vrot.slane %v1942, 2
    %v1944 = vmax.f32 %v1942, %v1943
    %v1945 = vrot.slane %v1944, 1
    %v1946 = vmax.f32 %v1944, %v1945
    %v1947 = vsel %vm1925, %v1605, -inf
    %v1948 = vrot.slane %v1947, 4
    %v1949 = vmax.f32 %v1947, %v1948
    %v1950 = vrot.slane %v1949, 2
    %v1951 = vmax.f32 %v1949, %v1950
    %v1952 = vrot.slane %v1951, 1
    %v1953 = vmax.f32 %v1951, %v1952
    %v1954 = vsel %vm1925, %v1613, -inf
    %v1955 = vrot.slane %v1954, 4
    %v1956 = vmax.f32 %v1954, %v1955
    %v1957 = vrot.slane %v1956, 2
    %v1958 = vmax.f32 %v1956, %v1957
    %v1959 = vrot.slane %v1958, 1
    %v1960 = vmax.f32 %v1958, %v1959
    %v1961 = vsel %vm1925, %v1621, -inf
    %v1962 = vrot.slane %v1961, 4
    %v1963 = vmax.f32 %v1961, %v1962
    %v1964 = vrot.slane %v1963, 2
    %v1965 = vmax.f32 %v1963, %v1964
    %v1966 = vrot.slane %v1965, 1
    %v1967 = vmax.f32 %v1965, %v1966
    %v1968 = vsel %vm1925, %v1620, -inf
    %v1969 = vrot.slane %v1968, 4
    %v1970 = vmax.f32 %v1968, %v1969
    %v1971 = vrot.slane %v1970, 2
    %v1972 = vmax.f32 %v1970, %v1971
    %v1973 = vrot.slane %v1972, 1
    %v1974 = vmax.f32 %v1972, %v1973
    %v1975 = vsel %vm1925, %v1622, -inf
    %v1976 = vrot.slane %v1975, 4
    %v1977 = vmax.f32 %v1975, %v1976
    %v1978 = vrot.slane %v1977, 2
    %v1979 = vmax.f32 %v1977, %v1978
    %v1980 = vrot.slane %v1979, 1
    %v1981 = vmax.f32 %v1979, %v1980
    %v1982 = vsel %vm1925, %v1630, -inf
    %v1983 = vrot.slane %v1982, 4
    %v1984 = vmax.f32 %v1982, %v1983
    %v1985 = vrot.slane %v1984, 2
    %v1986 = vmax.f32 %v1984, %v1985
    %v1987 = vrot.slane %v1986, 1
    %v1988 = vmax.f32 %v1986, %v1987
    %v1989 = vsel %vm1925, %v1638, -inf
    %v1990 = vrot.slane %v1989, 4
    %v1991 = vmax.f32 %v1989, %v1990
    %v1992 = vrot.slane %v1991, 2
    %v1993 = vmax.f32 %v1991, %v1992
    %v1994 = vrot.slane %v1993, 1
    %v1995 = vmax.f32 %v1993, %v1994
    %v1996 = vsel %vm1925, %v1637, -inf
    %v1997 = vrot.slane %v1996, 4
    %v1998 = vmax.f32 %v1996, %v1997
    %v1999 = vrot.slane %v1998, 2
    %v2000 = vmax.f32 %v1998, %v1999
    %v2001 = vrot.slane %v2000, 1
    %v2002 = vmax.f32 %v2000, %v2001
    %v2003 = vsel %vm1925, %v1639, -inf
    %v2004 = vrot.slane %v2003, 4
    %v2005 = vmax.f32 %v2003, %v2004
    %v2006 = vrot.slane %v2005, 2
    %v2007 = vmax.f32 %v2005, %v2006
    %v2008 = vrot.slane %v2007, 1
    %v2009 = vmax.f32 %v2007, %v2008
    %v2010 = vsel %vm1925, %v1647, -inf
    %v2011 = vrot.slane %v2010, 4
    %v2012 = vmax.f32 %v2010, %v2011
    %v2013 = vrot.slane %v2012, 2
    %v2014 = vmax.f32 %v2012, %v2013
    %v2015 = vrot.slane %v2014, 1
    %v2016 = vmax.f32 %v2014, %v2015
    %v2017 = vsel %vm1925, %v1655, -inf
    %v2018 = vrot.slane %v2017, 4
    %v2019 = vmax.f32 %v2017, %v2018
    %v2020 = vrot.slane %v2019, 2
    %v2021 = vmax.f32 %v2019, %v2020
    %v2022 = vrot.slane %v2021, 1
    %v2023 = vmax.f32 %v2021, %v2022
    %v2024 = vsel %vm1925, %v1654, -inf
    %v2025 = vrot.slane %v2024, 4
    %v2026 = vmax.f32 %v2024, %v2025
    %v2027 = vrot.slane %v2026, 2
    %v2028 = vmax.f32 %v2026, %v2027
    %v2029 = vrot.slane %v2028, 1
    %v2030 = vmax.f32 %v2028, %v2029
    %v2031 = vsel %vm1925, %v1656, -inf
    %v2032 = vrot.slane %v2031, 4
    %v2033 = vmax.f32 %v2031, %v2032
    %v2034 = vrot.slane %v2033, 2
    %v2035 = vmax.f32 %v2033, %v2034
    %v2036 = vrot.slane %v2035, 1
    %v2037 = vmax.f32 %v2035, %v2036
    %v2038 = vsel %vm1925, %v1664, -inf
    %v2039 = vrot.slane %v2038, 4
    %v2040 = vmax.f32 %v2038, %v2039
    %v2041 = vrot.slane %v2040, 2
    %v2042 = vmax.f32 %v2040, %v2041
    %v2043 = vrot.slane %v2042, 1
    %v2044 = vmax.f32 %v2042, %v2043
    %v2045 = vsel %vm1925, %v1672, -inf
    %v2046 = vrot.slane %v2045, 4
    %v2047 = vmax.f32 %v2045, %v2046
    %v2048 = vrot.slane %v2047, 2
    %v2049 = vmax.f32 %v2047, %v2048
    %v2050 = vrot.slane %v2049, 1
    %v2051 = vmax.f32 %v2049, %v2050
    %v2052 = vsel %vm1925, %v1671, -inf
    %v2053 = vrot.slane %v2052, 4
    %v2054 = vmax.f32 %v2052, %v2053
    %v2055 = vrot.slane %v2054, 2
    %v2056 = vmax.f32 %v2054, %v2055
    %v2057 = vrot.slane %v2056, 1
    %v2058 = vmax.f32 %v2056, %v2057
    %v2059 = vsel %vm1925, %v1673, -inf
    %v2060 = vrot.slane %v2059, 4
    %v2061 = vmax.f32 %v2059, %v2060
    %v2062 = vrot.slane %v2061, 2
    %v2063 = vmax.f32 %v2061, %v2062
    %v2064 = vrot.slane %v2063, 1
    %v2065 = vmax.f32 %v2063, %v2064
    %v2066 = vsel %vm1925, %v1681, -inf
    %v2067 = vrot.slane %v2066, 4
    %v2068 = vmax.f32 %v2066, %v2067
    %v2069 = vrot.slane %v2068, 2
    %v2070 = vmax.f32 %v2068, %v2069
    %v2071 = vrot.slane %v2070, 1
    %v2072 = vmax.f32 %v2070, %v2071
    %v2073 = vsel %vm1925, %v1689, -inf
    %v2074 = vrot.slane %v2073, 4
    %v2075 = vmax.f32 %v2073, %v2074
    %v2076 = vrot.slane %v2075, 2
    %v2077 = vmax.f32 %v2075, %v2076
    %v2078 = vrot.slane %v2077, 1
    %v2079 = vmax.f32 %v2077, %v2078
    %v2080 = vsel %vm1925, %v1688, -inf
    %v2081 = vrot.slane %v2080, 4
    %v2082 = vmax.f32 %v2080, %v2081
    %v2083 = vrot.slane %v2082, 2
    %v2084 = vmax.f32 %v2082, %v2083
    %v2085 = vrot.slane %v2084, 1
    %v2086 = vmax.f32 %v2084, %v2085
    %v2087 = vsel %vm1925, %v1690, -inf
    %v2088 = vrot.slane %v2087, 4
    %v2089 = vmax.f32 %v2087, %v2088
    %v2090 = vrot.slane %v2089, 2
    %v2091 = vmax.f32 %v2089, %v2090
    %v2092 = vrot.slane %v2091, 1
    %v2093 = vmax.f32 %v2091, %v2092
    %v2094 = vsel %vm1925, %v1698, -inf
    %v2095 = vrot.slane %v2094, 4
    %v2096 = vmax.f32 %v2094, %v2095
    %v2097 = vrot.slane %v2096, 2
    %v2098 = vmax.f32 %v2096, %v2097
    %v2099 = vrot.slane %v2098, 1
    %v2100 = vmax.f32 %v2098, %v2099
    %v2101 = vsel %vm1925, %v1706, -inf
    %v2102 = vrot.slane %v2101, 4
    %v2103 = vmax.f32 %v2101, %v2102
    %v2104 = vrot.slane %v2103, 2
    %v2105 = vmax.f32 %v2103, %v2104
    %v2106 = vrot.slane %v2105, 1
    %v2107 = vmax.f32 %v2105, %v2106
    %v2108 = vsel %vm1925, %v1705, -inf
    %v2109 = vrot.slane %v2108, 4
    %v2110 = vmax.f32 %v2108, %v2109
    %v2111 = vrot.slane %v2110, 2
    %v2112 = vmax.f32 %v2110, %v2111
    %v2113 = vrot.slane %v2112, 1
    %v2114 = vmax.f32 %v2112, %v2113
    %v2115 = vsel %vm1925, %v1707, -inf
    %v2116 = vrot.slane %v2115, 4
    %v2117 = vmax.f32 %v2115, %v2116
    %v2118 = vrot.slane %v2117, 2
    %v2119 = vmax.f32 %v2117, %v2118
    %v2120 = vrot.slane %v2119, 1
    %v2121 = vmax.f32 %v2119, %v2120
    %v2122 = vsel %vm1925, %v1715, -inf
    %v2123 = vrot.slane %v2122, 4
    %v2124 = vmax.f32 %v2122, %v2123
    %v2125 = vrot.slane %v2124, 2
    %v2126 = vmax.f32 %v2124, %v2125
    %v2127 = vrot.slane %v2126, 1
    %v2128 = vmax.f32 %v2126, %v2127
    %v2129 = vsel %vm1925, %v1723, -inf
    %v2130 = vrot.slane %v2129, 4
    %v2131 = vmax.f32 %v2129, %v2130
    %v2132 = vrot.slane %v2131, 2
    %v2133 = vmax.f32 %v2131, %v2132
    %v2134 = vrot.slane %v2133, 1
    %v2135 = vmax.f32 %v2133, %v2134
    %v2136 = vsel %vm1925, %v1722, -inf
    %v2137 = vrot.slane %v2136, 4
    %v2138 = vmax.f32 %v2136, %v2137
    %v2139 = vrot.slane %v2138, 2
    %v2140 = vmax.f32 %v2138, %v2139
    %v2141 = vrot.slane %v2140, 1
    %v2142 = vmax.f32 %v2140, %v2141
    %v2143 = vsel %vm1925, %v1724, -inf
    %v2144 = vrot.slane %v2143, 4
    %v2145 = vmax.f32 %v2143, %v2144
    %v2146 = vrot.slane %v2145, 2
    %v2147 = vmax.f32 %v2145, %v2146
    %v2148 = vrot.slane %v2147, 1
    %v2149 = vmax.f32 %v2147, %v2148
    %v2150 = vsel %vm1925, %v1732, -inf
    %v2151 = vrot.slane %v2150, 4
    %v2152 = vmax.f32 %v2150, %v2151
    %v2153 = vrot.slane %v2152, 2
    %v2154 = vmax.f32 %v2152, %v2153
    %v2155 = vrot.slane %v2154, 1
    %v2156 = vmax.f32 %v2154, %v2155
    %v2157 = vsel %vm1925, %v1740, -inf
    %v2158 = vrot.slane %v2157, 4
    %v2159 = vmax.f32 %v2157, %v2158
    %v2160 = vrot.slane %v2159, 2
    %v2161 = vmax.f32 %v2159, %v2160
    %v2162 = vrot.slane %v2161, 1
    %v2163 = vmax.f32 %v2161, %v2162
    %v2164 = vsel %vm1925, %v1739, -inf
    %v2165 = vrot.slane %v2164, 4
    %v2166 = vmax.f32 %v2164, %v2165
    %v2167 = vrot.slane %v2166, 2
    %v2168 = vmax.f32 %v2166, %v2167
    %v2169 = vrot.slane %v2168, 1
    %v2170 = vmax.f32 %v2168, %v2169
    %v2171 = vsel %vm1925, %v1741, -inf
    %v2172 = vrot.slane %v2171, 4
    %v2173 = vmax.f32 %v2171, %v2172
    %v2174 = vrot.slane %v2173, 2
    %v2175 = vmax.f32 %v2173, %v2174
    %v2176 = vrot.slane %v2175, 1
    %v2177 = vmax.f32 %v2175, %v2176
    %v2178 = vsel %vm1925, %v1749, -inf
    %v2179 = vrot.slane %v2178, 4
    %v2180 = vmax.f32 %v2178, %v2179
    %v2181 = vrot.slane %v2180, 2
    %v2182 = vmax.f32 %v2180, %v2181
    %v2183 = vrot.slane %v2182, 1
    %v2184 = vmax.f32 %v2182, %v2183
    %v2185 = vsel %vm1925, %v1757, -inf
    %v2186 = vrot.slane %v2185, 4
    %v2187 = vmax.f32 %v2185, %v2186
    %v2188 = vrot.slane %v2187, 2
    %v2189 = vmax.f32 %v2187, %v2188
    %v2190 = vrot.slane %v2189, 1
    %v2191 = vmax.f32 %v2189, %v2190
    %v2192 = vsel %vm1925, %v1756, -inf
    %v2193 = vrot.slane %v2192, 4
    %v2194 = vmax.f32 %v2192, %v2193
    %v2195 = vrot.slane %v2194, 2
    %v2196 = vmax.f32 %v2194, %v2195
    %v2197 = vrot.slane %v2196, 1
    %v2198 = vmax.f32 %v2196, %v2197
    %v2199 = vsel %vm1925, %v1758, -inf
    %v2200 = vrot.slane %v2199, 4
    %v2201 = vmax.f32 %v2199, %v2200
    %v2202 = vrot.slane %v2201, 2
    %v2203 = vmax.f32 %v2201, %v2202
    %v2204 = vrot.slane %v2203, 1
    %v2205 = vmax.f32 %v2203, %v2204
    %v2206 = vsel %vm1925, %v1766, -inf
    %v2207 = vrot.slane %v2206, 4
    %v2208 = vmax.f32 %v2206, %v2207
    %v2209 = vrot.slane %v2208, 2
    %v2210 = vmax.f32 %v2208, %v2209
    %v2211 = vrot.slane %v2210, 1
    %v2212 = vmax.f32 %v2210, %v2211
    %v2213 = vsel %vm1925, %v1774, -inf
    %v2214 = vrot.slane %v2213, 4
    %v2215 = vmax.f32 %v2213, %v2214
    %v2216 = vrot.slane %v2215, 2
    %v2217 = vmax.f32 %v2215, %v2216
    %v2218 = vrot.slane %v2217, 1
    %v2219 = vmax.f32 %v2217, %v2218
    %v2220 = vsel %vm1925, %v1773, -inf
    %v2221 = vrot.slane %v2220, 4
    %v2222 = vmax.f32 %v2220, %v2221
    %v2223 = vrot.slane %v2222, 2
    %v2224 = vmax.f32 %v2222, %v2223
    %v2225 = vrot.slane %v2224, 1
    %v2226 = vmax.f32 %v2224, %v2225
    %v2227 = vsel %vm1925, %v1775, -inf
    %v2228 = vrot.slane %v2227, 4
    %v2229 = vmax.f32 %v2227, %v2228
    %v2230 = vrot.slane %v2229, 2
    %v2231 = vmax.f32 %v2229, %v2230
    %v2232 = vrot.slane %v2231, 1
    %v2233 = vmax.f32 %v2231, %v2232
    %v2234 = vsel %vm1925, %v1783, -inf
    %v2235 = vrot.slane %v2234, 4
    %v2236 = vmax.f32 %v2234, %v2235
    %v2237 = vrot.slane %v2236, 2
    %v2238 = vmax.f32 %v2236, %v2237
    %v2239 = vrot.slane %v2238, 1
    %v2240 = vmax.f32 %v2238, %v2239
    %v2241 = vsel %vm1925, %v1791, -inf
    %v2242 = vrot.slane %v2241, 4
    %v2243 = vmax.f32 %v2241, %v2242
    %v2244 = vrot.slane %v2243, 2
    %v2245 = vmax.f32 %v2243, %v2244
    %v2246 = vrot.slane %v2245, 1
    %v2247 = vmax.f32 %v2245, %v2246
    %v2248 = vsel %vm1925, %v1790, -inf
    %v2249 = vrot.slane %v2248, 4
    %v2250 = vmax.f32 %v2248, %v2249
    %v2251 = vrot.slane %v2250, 2
    %v2252 = vmax.f32 %v2250, %v2251
    %v2253 = vrot.slane %v2252, 1
    %v2254 = vmax.f32 %v2252, %v2253
    %v2255 = vsel %vm1925, %v1792, -inf
    %v2256 = vrot.slane %v2255, 4
    %v2257 = vmax.f32 %v2255, %v2256
    %v2258 = vrot.slane %v2257, 2
    %v2259 = vmax.f32 %v2257, %v2258
    %v2260 = vrot.slane %v2259, 1
    %v2261 = vmax.f32 %v2259, %v2260
    %v2262 = vsel %vm1925, %v1800, -inf
    %v2263 = vrot.slane %v2262, 4
    %v2264 = vmax.f32 %v2262, %v2263
    %v2265 = vrot.slane %v2264, 2
    %v2266 = vmax.f32 %v2264, %v2265
    %v2267 = vrot.slane %v2266, 1
    %v2268 = vmax.f32 %v2266, %v2267
    %v2269 = vsel %vm1925, %v1808, -inf
    %v2270 = vrot.slane %v2269, 4
    %v2271 = vmax.f32 %v2269, %v2270
    %v2272 = vrot.slane %v2271, 2
    %v2273 = vmax.f32 %v2271, %v2272
    %v2274 = vrot.slane %v2273, 1
    %v2275 = vmax.f32 %v2273, %v2274
    %v2276 = vsel %vm1925, %v1807, -inf
    %v2277 = vrot.slane %v2276, 4
    %v2278 = vmax.f32 %v2276, %v2277
    %v2279 = vrot.slane %v2278, 2
    %v2280 = vmax.f32 %v2278, %v2279
    %v2281 = vrot.slane %v2280, 1
    %v2282 = vmax.f32 %v2280, %v2281
    %v2283 = vsel %vm1925, %v1809, -inf
    %v2284 = vrot.slane %v2283, 4
    %v2285 = vmax.f32 %v2283, %v2284
    %v2286 = vrot.slane %v2285, 2
    %v2287 = vmax.f32 %v2285, %v2286
    %v2288 = vrot.slane %v2287, 1
    %v2289 = vmax.f32 %v2287, %v2288
    %v2290 = vsel %vm1925, %v1817, -inf
    %v2291 = vrot.slane %v2290, 4
    %v2292 = vmax.f32 %v2290, %v2291
    %v2293 = vrot.slane %v2292, 2
    %v2294 = vmax.f32 %v2292, %v2293
    %v2295 = vrot.slane %v2294, 1
    %v2296 = vmax.f32 %v2294, %v2295
    %v2297 = vsel %vm1925, %v1825, -inf
    %v2298 = vrot.slane %v2297, 4
    %v2299 = vmax.f32 %v2297, %v2298
    %v2300 = vrot.slane %v2299, 2
    %v2301 = vmax.f32 %v2299, %v2300
    %v2302 = vrot.slane %v2301, 1
    %v2303 = vmax.f32 %v2301, %v2302
    %v2304 = vsel %vm1925, %v1824, -inf
    %v2305 = vrot.slane %v2304, 4
    %v2306 = vmax.f32 %v2304, %v2305
    %v2307 = vrot.slane %v2306, 2
    %v2308 = vmax.f32 %v2306, %v2307
    %v2309 = vrot.slane %v2308, 1
    %v2310 = vmax.f32 %v2308, %v2309
    %v2311 = vsel %vm1925, %v1826, -inf
    %v2312 = vrot.slane %v2311, 4
    %v2313 = vmax.f32 %v2311, %v2312
    %v2314 = vrot.slane %v2313, 2
    %v2315 = vmax.f32 %v2313, %v2314
    %v2316 = vrot.slane %v2315, 1
    %v2317 = vmax.f32 %v2315, %v2316
    %v2318 = vsel %vm1925, %v1834, -inf
    %v2319 = vrot.slane %v2318, 4
    %v2320 = vmax.f32 %v2318, %v2319
    %v2321 = vrot.slane %v2320, 2
    %v2322 = vmax.f32 %v2320, %v2321
    %v2323 = vrot.slane %v2322, 1
    %v2324 = vmax.f32 %v2322, %v2323
    %v2325 = vsel %vm1925, %v1842, -inf
    %v2326 = vrot.slane %v2325, 4
    %v2327 = vmax.f32 %v2325, %v2326
    %v2328 = vrot.slane %v2327, 2
    %v2329 = vmax.f32 %v2327, %v2328
    %v2330 = vrot.slane %v2329, 1
    %v2331 = vmax.f32 %v2329, %v2330
    %v2332 = vsel %vm1925, %v1841, -inf
    %v2333 = vrot.slane %v2332, 4
    %v2334 = vmax.f32 %v2332, %v2333
    %v2335 = vrot.slane %v2334, 2
    %v2336 = vmax.f32 %v2334, %v2335
    %v2337 = vrot.slane %v2336, 1
    %v2338 = vmax.f32 %v2336, %v2337
    %v2339 = vsel %vm1925, %v1843, -inf
    %v2340 = vrot.slane %v2339, 4
    %v2341 = vmax.f32 %v2339, %v2340
    %v2342 = vrot.slane %v2341, 2
    %v2343 = vmax.f32 %v2341, %v2342
    %v2344 = vrot.slane %v2343, 1
    %v2345 = vmax.f32 %v2343, %v2344
    %v2346 = vsel %vm1925, %v1851, -inf
    %v2347 = vrot.slane %v2346, 4
    %v2348 = vmax.f32 %v2346, %v2347
    %v2349 = vrot.slane %v2348, 2
    %v2350 = vmax.f32 %v2348, %v2349
    %v2351 = vrot.slane %v2350, 1
    %v2352 = vmax.f32 %v2350, %v2351
    %v2353 = vsel %vm1925, %v1859, -inf
    %v2354 = vrot.slane %v2353, 4
    %v2355 = vmax.f32 %v2353, %v2354
    %v2356 = vrot.slane %v2355, 2
    %v2357 = vmax.f32 %v2355, %v2356
    %v2358 = vrot.slane %v2357, 1
    %v2359 = vmax.f32 %v2357, %v2358
    %v2360 = vsel %vm1925, %v1858, -inf
    %v2361 = vrot.slane %v2360, 4
    %v2362 = vmax.f32 %v2360, %v2361
    %v2363 = vrot.slane %v2362, 2
    %v2364 = vmax.f32 %v2362, %v2363
    %v2365 = vrot.slane %v2364, 1
    %v2366 = vmax.f32 %v2364, %v2365
    %v2367 = vsel %vm1925, %v1860, -inf
    %v2368 = vrot.slane %v2367, 4
    %v2369 = vmax.f32 %v2367, %v2368
    %v2370 = vrot.slane %v2369, 2
    %v2371 = vmax.f32 %v2369, %v2370
    %v2372 = vrot.slane %v2371, 1
    %v2373 = vmax.f32 %v2371, %v2372
    %v2374 = vmax.f32 %v1932, %v1960
    %v2375 = vmax.f32 %v1939, %v1967
    %v2376 = vmax.f32 %v1946, %v1974
    %v2377 = vmax.f32 %v1953, %v1981
    %v2378 = vmax.f32 %v1988, %v2016
    %v2379 = vmax.f32 %v1995, %v2023
    %v2380 = vmax.f32 %v2002, %v2030
    %v2381 = vmax.f32 %v2009, %v2037
    %v2382 = vmax.f32 %v2044, %v2072
    %v2383 = vmax.f32 %v2051, %v2079
    %v2384 = vmax.f32 %v2058, %v2086
    %v2385 = vmax.f32 %v2065, %v2093
    %v2386 = vmax.f32 %v2100, %v2128
    %v2387 = vmax.f32 %v2107, %v2135
    %v2388 = vmax.f32 %v2114, %v2142
    %v2389 = vmax.f32 %v2121, %v2149
    %v2390 = vmax.f32 %v2156, %v2184
    %v2391 = vmax.f32 %v2163, %v2191
    %v2392 = vmax.f32 %v2170, %v2198
    %v2393 = vmax.f32 %v2177, %v2205
    %v2394 = vmax.f32 %v2212, %v2240
    %v2395 = vmax.f32 %v2219, %v2247
    %v2396 = vmax.f32 %v2226, %v2254
    %v2397 = vmax.f32 %v2233, %v2261
    %v2398 = vmax.f32 %v2268, %v2296
    %v2399 = vmax.f32 %v2275, %v2303
    %v2400 = vmax.f32 %v2282, %v2310
    %v2401 = vmax.f32 %v2289, %v2317
    %v2402 = vmax.f32 %v2324, %v2352
    %v2403 = vmax.f32 %v2331, %v2359
    %v2404 = vmax.f32 %v2338, %v2366
    %v2405 = vmax.f32 %v2345, %v2373
    %v2406 = vpack.c.bf16 %v2374, %v2374
    %v2407 = vpack.c.bf16 %v2375, %v2375
    %v2408 = vpack.c.bf16 %v2376, %v2376
    %v2409 = vpack.c.bf16 %v2377, %v2377
    %v2410 = vpack.c.bf16 %v2378, %v2378
    %v2411 = vpack.c.bf16 %v2379, %v2379
    %v2412 = vpack.c.bf16 %v2380, %v2380
    %v2413 = vpack.c.bf16 %v2381, %v2381
    %v2414 = vpack.c.bf16 %v2382, %v2382
    %v2415 = vpack.c.bf16 %v2383, %v2383
    %v2416 = vpack.c.bf16 %v2384, %v2384
    %v2417 = vpack.c.bf16 %v2385, %v2385
    %v2418 = vpack.c.bf16 %v2386, %v2386
    %v2419 = vpack.c.bf16 %v2387, %v2387
    %v2420 = vpack.c.bf16 %v2388, %v2388
    %v2421 = vpack.c.bf16 %v2389, %v2389
    %v2422 = vpack.c.bf16 %v2390, %v2390
    %v2423 = vpack.c.bf16 %v2391, %v2391
    %v2424 = vpack.c.bf16 %v2392, %v2392
    %v2425 = vpack.c.bf16 %v2393, %v2393
    %v2426 = vpack.c.bf16 %v2394, %v2394
    %v2427 = vpack.c.bf16 %v2395, %v2395
    %v2428 = vpack.c.bf16 %v2396, %v2396
    %v2429 = vpack.c.bf16 %v2397, %v2397
    %v2430 = vpack.c.bf16 %v2398, %v2398
    %v2431 = vpack.c.bf16 %v2399, %v2399
    %v2432 = vpack.c.bf16 %v2400, %v2400
    %v2433 = vpack.c.bf16 %v2401, %v2401
    %v2434 = vpack.c.bf16 %v2402, %v2402
    %v2435 = vpack.c.bf16 %v2403, %v2403
    %v2436 = vpack.c.bf16 %v2404, %v2404
    %v2437 = vpack.c.bf16 %v2405, %v2405
    %v2471 = vunpack.c.l.s4 1983009808
    %v2472 = vunpack.c.0.s8 %v2471
    %v2473 = vlaneseq
    %v2474 = vshrl.u32 %v2473, 7
    %v2475 = vsub.s32 %v2472, %v2474
    %v2476 = vrot.slane %v2406, %v2475
    %v2478 = vunpack.c.l.s4 1983009808
    %v2479 = vunpack.c.0.s8 %v2478
    %v2480 = vlaneseq
    %v2481 = vshrl.u32 %v2480, 7
    %v2482 = vsub.s32 %v2479, %v2481
    %v2483 = vrot.slane %v2407, %v2482
    %v2485 = vunpack.c.l.s4 1983009808
    %v2486 = vunpack.c.0.s8 %v2485
    %v2487 = vlaneseq
    %v2488 = vshrl.u32 %v2487, 7
    %v2489 = vsub.s32 %v2486, %v2488
    %v2490 = vrot.slane %v2408, %v2489
    %v2492 = vunpack.c.l.s4 1983009808
    %v2493 = vunpack.c.0.s8 %v2492
    %v2494 = vlaneseq
    %v2495 = vshrl.u32 %v2494, 7
    %v2496 = vsub.s32 %v2493, %v2495
    %v2497 = vrot.slane %v2409, %v2496
    %v2499 = vunpack.c.l.s4 1983009808
    %v2500 = vunpack.c.0.s8 %v2499
    %v2501 = vlaneseq
    %v2502 = vshrl.u32 %v2501, 7
    %v2503 = vsub.s32 %v2500, %v2502
    %v2504 = vrot.slane %v2410, %v2503
    %v2506 = vunpack.c.l.s4 1983009808
    %v2507 = vunpack.c.0.s8 %v2506
    %v2508 = vlaneseq
    %v2509 = vshrl.u32 %v2508, 7
    %v2510 = vsub.s32 %v2507, %v2509
    %v2511 = vrot.slane %v2411, %v2510
    %v2513 = vunpack.c.l.s4 1983009808
    %v2514 = vunpack.c.0.s8 %v2513
    %v2515 = vlaneseq
    %v2516 = vshrl.u32 %v2515, 7
    %v2517 = vsub.s32 %v2514, %v2516
    %v2518 = vrot.slane %v2412, %v2517
    %v2520 = vunpack.c.l.s4 1983009808
    %v2521 = vunpack.c.0.s8 %v2520
    %v2522 = vlaneseq
    %v2523 = vshrl.u32 %v2522, 7
    %v2524 = vsub.s32 %v2521, %v2523
    %v2525 = vrot.slane %v2413, %v2524
    %v2527 = vunpack.c.l.s4 1983009808
    %v2528 = vunpack.c.0.s8 %v2527
    %v2529 = vlaneseq
    %v2530 = vshrl.u32 %v2529, 7
    %v2531 = vsub.s32 %v2528, %v2530
    %v2532 = vrot.slane %v2414, %v2531
    %v2534 = vunpack.c.l.s4 1983009808
    %v2535 = vunpack.c.0.s8 %v2534
    %v2536 = vlaneseq
    %v2537 = vshrl.u32 %v2536, 7
    %v2538 = vsub.s32 %v2535, %v2537
    %v2539 = vrot.slane %v2415, %v2538
    %v2541 = vunpack.c.l.s4 1983009808
    %v2542 = vunpack.c.0.s8 %v2541
    %v2543 = vlaneseq
    %v2544 = vshrl.u32 %v2543, 7
    %v2545 = vsub.s32 %v2542, %v2544
    %v2546 = vrot.slane %v2416, %v2545
    %v2548 = vunpack.c.l.s4 1983009808
    %v2549 = vunpack.c.0.s8 %v2548
    %v2550 = vlaneseq
    %v2551 = vshrl.u32 %v2550, 7
    %v2552 = vsub.s32 %v2549, %v2551
    %v2553 = vrot.slane %v2417, %v2552
    %v2555 = vunpack.c.l.s4 1983009808
    %v2556 = vunpack.c.0.s8 %v2555
    %v2557 = vlaneseq
    %v2558 = vshrl.u32 %v2557, 7
    %v2559 = vsub.s32 %v2556, %v2558
    %v2560 = vrot.slane %v2418, %v2559
    %v2562 = vunpack.c.l.s4 1983009808
    %v2563 = vunpack.c.0.s8 %v2562
    %v2564 = vlaneseq
    %v2565 = vshrl.u32 %v2564, 7
    %v2566 = vsub.s32 %v2563, %v2565
    %v2567 = vrot.slane %v2419, %v2566
    %v2569 = vunpack.c.l.s4 1983009808
    %v2570 = vunpack.c.0.s8 %v2569
    %v2571 = vlaneseq
    %v2572 = vshrl.u32 %v2571, 7
    %v2573 = vsub.s32 %v2570, %v2572
    %v2574 = vrot.slane %v2420, %v2573
    %v2576 = vunpack.c.l.s4 1983009808
    %v2577 = vunpack.c.0.s8 %v2576
    %v2578 = vlaneseq
    %v2579 = vshrl.u32 %v2578, 7
    %v2580 = vsub.s32 %v2577, %v2579
    %v2581 = vrot.slane %v2421, %v2580
    %v2583 = vunpack.c.l.s4 1983009808
    %v2584 = vunpack.c.0.s8 %v2583
    %v2585 = vlaneseq
    %v2586 = vshrl.u32 %v2585, 7
    %v2587 = vsub.s32 %v2584, %v2586
    %v2588 = vrot.slane %v2422, %v2587
    %v2590 = vunpack.c.l.s4 1983009808
    %v2591 = vunpack.c.0.s8 %v2590
    %v2592 = vlaneseq
    %v2593 = vshrl.u32 %v2592, 7
    %v2594 = vsub.s32 %v2591, %v2593
    %v2595 = vrot.slane %v2423, %v2594
    %v2597 = vunpack.c.l.s4 1983009808
    %v2598 = vunpack.c.0.s8 %v2597
    %v2599 = vlaneseq
    %v2600 = vshrl.u32 %v2599, 7
    %v2601 = vsub.s32 %v2598, %v2600
    %v2602 = vrot.slane %v2424, %v2601
    %v2604 = vunpack.c.l.s4 1983009808
    %v2605 = vunpack.c.0.s8 %v2604
    %v2606 = vlaneseq
    %v2607 = vshrl.u32 %v2606, 7
    %v2608 = vsub.s32 %v2605, %v2607
    %v2609 = vrot.slane %v2425, %v2608
    %v2611 = vunpack.c.l.s4 1983009808
    %v2612 = vunpack.c.0.s8 %v2611
    %v2613 = vlaneseq
    %v2614 = vshrl.u32 %v2613, 7
    %v2615 = vsub.s32 %v2612, %v2614
    %v2616 = vrot.slane %v2426, %v2615
    %v2618 = vunpack.c.l.s4 1983009808
    %v2619 = vunpack.c.0.s8 %v2618
    %v2620 = vlaneseq
    %v2621 = vshrl.u32 %v2620, 7
    %v2622 = vsub.s32 %v2619, %v2621
    %v2623 = vrot.slane %v2427, %v2622
    %v2625 = vunpack.c.l.s4 1983009808
    %v2626 = vunpack.c.0.s8 %v2625
    %v2627 = vlaneseq
    %v2628 = vshrl.u32 %v2627, 7
    %v2629 = vsub.s32 %v2626, %v2628
    %v2630 = vrot.slane %v2428, %v2629
    %v2632 = vunpack.c.l.s4 1983009808
    %v2633 = vunpack.c.0.s8 %v2632
    %v2634 = vlaneseq
    %v2635 = vshrl.u32 %v2634, 7
    %v2636 = vsub.s32 %v2633, %v2635
    %v2637 = vrot.slane %v2429, %v2636
    %v2639 = vunpack.c.l.s4 1983009808
    %v2640 = vunpack.c.0.s8 %v2639
    %v2641 = vlaneseq
    %v2642 = vshrl.u32 %v2641, 7
    %v2643 = vsub.s32 %v2640, %v2642
    %v2644 = vrot.slane %v2430, %v2643
    %v2646 = vunpack.c.l.s4 1983009808
    %v2647 = vunpack.c.0.s8 %v2646
    %v2648 = vlaneseq
    %v2649 = vshrl.u32 %v2648, 7
    %v2650 = vsub.s32 %v2647, %v2649
    %v2651 = vrot.slane %v2431, %v2650
    %v2653 = vunpack.c.l.s4 1983009808
    %v2654 = vunpack.c.0.s8 %v2653
    %v2655 = vlaneseq
    %v2656 = vshrl.u32 %v2655, 7
    %v2657 = vsub.s32 %v2654, %v2656
    %v2658 = vrot.slane %v2432, %v2657
    %v2660 = vunpack.c.l.s4 1983009808
    %v2661 = vunpack.c.0.s8 %v2660
    %v2662 = vlaneseq
    %v2663 = vshrl.u32 %v2662, 7
    %v2664 = vsub.s32 %v2661, %v2663
    %v2665 = vrot.slane %v2433, %v2664
    %v2667 = vunpack.c.l.s4 1983009808
    %v2668 = vunpack.c.0.s8 %v2667
    %v2669 = vlaneseq
    %v2670 = vshrl.u32 %v2669, 7
    %v2671 = vsub.s32 %v2668, %v2670
    %v2672 = vrot.slane %v2434, %v2671
    %v2674 = vunpack.c.l.s4 1983009808
    %v2675 = vunpack.c.0.s8 %v2674
    %v2676 = vlaneseq
    %v2677 = vshrl.u32 %v2676, 7
    %v2678 = vsub.s32 %v2675, %v2677
    %v2679 = vrot.slane %v2435, %v2678
    %v2681 = vunpack.c.l.s4 1983009808
    %v2682 = vunpack.c.0.s8 %v2681
    %v2683 = vlaneseq
    %v2684 = vshrl.u32 %v2683, 7
    %v2685 = vsub.s32 %v2682, %v2684
    %v2686 = vrot.slane %v2436, %v2685
    %v2688 = vunpack.c.l.s4 1983009808
    %v2689 = vunpack.c.0.s8 %v2688
    %v2690 = vlaneseq
    %v2691 = vshrl.u32 %v2690, 7
    %v2692 = vsub.s32 %v2689, %v2691
    %v2693 = vrot.slane %v2437, %v2692
    %v2695 = vunpack.c.l.s4 1983009808
    %v2696 = vunpack.c.0.s8 %v2695
    %v2697 = vlaneseq
    %v2698 = vshrl.u32 %v2697, 7
    %v2699 = vsub.s32 %v2696, %v2698
    %v2700 = vrot.slane %v2476, %v2699
    %v2702 = vunpack.c.l.s4 1983009808
    %v2703 = vunpack.c.0.s8 %v2702
    %v2704 = vlaneseq
    %v2705 = vshrl.u32 %v2704, 7
    %v2706 = vsub.s32 %v2703, %v2705
    %v2707 = vrot.slane %v2483, %v2706
    %v2709 = vunpack.c.l.s4 1983009808
    %v2710 = vunpack.c.0.s8 %v2709
    %v2711 = vlaneseq
    %v2712 = vshrl.u32 %v2711, 7
    %v2713 = vsub.s32 %v2710, %v2712
    %v2714 = vrot.slane %v2490, %v2713
    %v2716 = vunpack.c.l.s4 1983009808
    %v2717 = vunpack.c.0.s8 %v2716
    %v2718 = vlaneseq
    %v2719 = vshrl.u32 %v2718, 7
    %v2720 = vsub.s32 %v2717, %v2719
    %v2721 = vrot.slane %v2497, %v2720
    %v2723 = vunpack.c.l.s4 1983009808
    %v2724 = vunpack.c.0.s8 %v2723
    %v2725 = vlaneseq
    %v2726 = vshrl.u32 %v2725, 7
    %v2727 = vsub.s32 %v2724, %v2726
    %v2728 = vrot.slane %v2504, %v2727
    %v2730 = vunpack.c.l.s4 1983009808
    %v2731 = vunpack.c.0.s8 %v2730
    %v2732 = vlaneseq
    %v2733 = vshrl.u32 %v2732, 7
    %v2734 = vsub.s32 %v2731, %v2733
    %v2735 = vrot.slane %v2511, %v2734
    %v2737 = vunpack.c.l.s4 1983009808
    %v2738 = vunpack.c.0.s8 %v2737
    %v2739 = vlaneseq
    %v2740 = vshrl.u32 %v2739, 7
    %v2741 = vsub.s32 %v2738, %v2740
    %v2742 = vrot.slane %v2518, %v2741
    %v2744 = vunpack.c.l.s4 1983009808
    %v2745 = vunpack.c.0.s8 %v2744
    %v2746 = vlaneseq
    %v2747 = vshrl.u32 %v2746, 7
    %v2748 = vsub.s32 %v2745, %v2747
    %v2749 = vrot.slane %v2525, %v2748
    %v2751 = vunpack.c.l.s4 1983009808
    %v2752 = vunpack.c.0.s8 %v2751
    %v2753 = vlaneseq
    %v2754 = vshrl.u32 %v2753, 7
    %v2755 = vsub.s32 %v2752, %v2754
    %v2756 = vrot.slane %v2532, %v2755
    %v2758 = vunpack.c.l.s4 1983009808
    %v2759 = vunpack.c.0.s8 %v2758
    %v2760 = vlaneseq
    %v2761 = vshrl.u32 %v2760, 7
    %v2762 = vsub.s32 %v2759, %v2761
    %v2763 = vrot.slane %v2539, %v2762
    %v2765 = vunpack.c.l.s4 1983009808
    %v2766 = vunpack.c.0.s8 %v2765
    %v2767 = vlaneseq
    %v2768 = vshrl.u32 %v2767, 7
    %v2769 = vsub.s32 %v2766, %v2768
    %v2770 = vrot.slane %v2546, %v2769
    %v2772 = vunpack.c.l.s4 1983009808
    %v2773 = vunpack.c.0.s8 %v2772
    %v2774 = vlaneseq
    %v2775 = vshrl.u32 %v2774, 7
    %v2776 = vsub.s32 %v2773, %v2775
    %v2777 = vrot.slane %v2553, %v2776
    %v2779 = vunpack.c.l.s4 1983009808
    %v2780 = vunpack.c.0.s8 %v2779
    %v2781 = vlaneseq
    %v2782 = vshrl.u32 %v2781, 7
    %v2783 = vsub.s32 %v2780, %v2782
    %v2784 = vrot.slane %v2560, %v2783
    %v2786 = vunpack.c.l.s4 1983009808
    %v2787 = vunpack.c.0.s8 %v2786
    %v2788 = vlaneseq
    %v2789 = vshrl.u32 %v2788, 7
    %v2790 = vsub.s32 %v2787, %v2789
    %v2791 = vrot.slane %v2567, %v2790
    %v2793 = vunpack.c.l.s4 1983009808
    %v2794 = vunpack.c.0.s8 %v2793
    %v2795 = vlaneseq
    %v2796 = vshrl.u32 %v2795, 7
    %v2797 = vsub.s32 %v2794, %v2796
    %v2798 = vrot.slane %v2574, %v2797
    %v2800 = vunpack.c.l.s4 1983009808
    %v2801 = vunpack.c.0.s8 %v2800
    %v2802 = vlaneseq
    %v2803 = vshrl.u32 %v2802, 7
    %v2804 = vsub.s32 %v2801, %v2803
    %v2805 = vrot.slane %v2581, %v2804
    %v2807 = vunpack.c.l.s4 1983009808
    %v2808 = vunpack.c.0.s8 %v2807
    %v2809 = vlaneseq
    %v2810 = vshrl.u32 %v2809, 7
    %v2811 = vsub.s32 %v2808, %v2810
    %v2812 = vrot.slane %v2588, %v2811
    %v2814 = vunpack.c.l.s4 1983009808
    %v2815 = vunpack.c.0.s8 %v2814
    %v2816 = vlaneseq
    %v2817 = vshrl.u32 %v2816, 7
    %v2818 = vsub.s32 %v2815, %v2817
    %v2819 = vrot.slane %v2595, %v2818
    %v2821 = vunpack.c.l.s4 1983009808
    %v2822 = vunpack.c.0.s8 %v2821
    %v2823 = vlaneseq
    %v2824 = vshrl.u32 %v2823, 7
    %v2825 = vsub.s32 %v2822, %v2824
    %v2826 = vrot.slane %v2602, %v2825
    %v2828 = vunpack.c.l.s4 1983009808
    %v2829 = vunpack.c.0.s8 %v2828
    %v2830 = vlaneseq
    %v2831 = vshrl.u32 %v2830, 7
    %v2832 = vsub.s32 %v2829, %v2831
    %v2833 = vrot.slane %v2609, %v2832
    %v2835 = vunpack.c.l.s4 1983009808
    %v2836 = vunpack.c.0.s8 %v2835
    %v2837 = vlaneseq
    %v2838 = vshrl.u32 %v2837, 7
    %v2839 = vsub.s32 %v2836, %v2838
    %v2840 = vrot.slane %v2616, %v2839
    %v2842 = vunpack.c.l.s4 1983009808
    %v2843 = vunpack.c.0.s8 %v2842
    %v2844 = vlaneseq
    %v2845 = vshrl.u32 %v2844, 7
    %v2846 = vsub.s32 %v2843, %v2845
    %v2847 = vrot.slane %v2623, %v2846
    %v2849 = vunpack.c.l.s4 1983009808
    %v2850 = vunpack.c.0.s8 %v2849
    %v2851 = vlaneseq
    %v2852 = vshrl.u32 %v2851, 7
    %v2853 = vsub.s32 %v2850, %v2852
    %v2854 = vrot.slane %v2630, %v2853
    %v2856 = vunpack.c.l.s4 1983009808
    %v2857 = vunpack.c.0.s8 %v2856
    %v2858 = vlaneseq
    %v2859 = vshrl.u32 %v2858, 7
    %v2860 = vsub.s32 %v2857, %v2859
    %v2861 = vrot.slane %v2637, %v2860
    %v2863 = vunpack.c.l.s4 1983009808
    %v2864 = vunpack.c.0.s8 %v2863
    %v2865 = vlaneseq
    %v2866 = vshrl.u32 %v2865, 7
    %v2867 = vsub.s32 %v2864, %v2866
    %v2868 = vrot.slane %v2644, %v2867
    %v2870 = vunpack.c.l.s4 1983009808
    %v2871 = vunpack.c.0.s8 %v2870
    %v2872 = vlaneseq
    %v2873 = vshrl.u32 %v2872, 7
    %v2874 = vsub.s32 %v2871, %v2873
    %v2875 = vrot.slane %v2651, %v2874
    %v2877 = vunpack.c.l.s4 1983009808
    %v2878 = vunpack.c.0.s8 %v2877
    %v2879 = vlaneseq
    %v2880 = vshrl.u32 %v2879, 7
    %v2881 = vsub.s32 %v2878, %v2880
    %v2882 = vrot.slane %v2658, %v2881
    %v2884 = vunpack.c.l.s4 1983009808
    %v2885 = vunpack.c.0.s8 %v2884
    %v2886 = vlaneseq
    %v2887 = vshrl.u32 %v2886, 7
    %v2888 = vsub.s32 %v2885, %v2887
    %v2889 = vrot.slane %v2665, %v2888
    %v2891 = vunpack.c.l.s4 1983009808
    %v2892 = vunpack.c.0.s8 %v2891
    %v2893 = vlaneseq
    %v2894 = vshrl.u32 %v2893, 7
    %v2895 = vsub.s32 %v2892, %v2894
    %v2896 = vrot.slane %v2672, %v2895
    %v2898 = vunpack.c.l.s4 1983009808
    %v2899 = vunpack.c.0.s8 %v2898
    %v2900 = vlaneseq
    %v2901 = vshrl.u32 %v2900, 7
    %v2902 = vsub.s32 %v2899, %v2901
    %v2903 = vrot.slane %v2679, %v2902
    %v2905 = vunpack.c.l.s4 1983009808
    %v2906 = vunpack.c.0.s8 %v2905
    %v2907 = vlaneseq
    %v2908 = vshrl.u32 %v2907, 7
    %v2909 = vsub.s32 %v2906, %v2908
    %v2910 = vrot.slane %v2686, %v2909
    %v2912 = vunpack.c.l.s4 1983009808
    %v2913 = vunpack.c.0.s8 %v2912
    %v2914 = vlaneseq
    %v2915 = vshrl.u32 %v2914, 7
    %v2916 = vsub.s32 %v2913, %v2915
    %v2917 = vrot.slane %v2693, %v2916
    %v2918 = vunpack.c.l.b16 %v2700
    %v2919 = vunpack.c.l.b16 %v2707
    %v2920 = vunpack.c.l.b16 %v2714
    %v2921 = vunpack.c.l.b16 %v2721
    %v2922 = vunpack.c.l.b16 %v2728
    %v2923 = vunpack.c.l.b16 %v2735
    %v2924 = vunpack.c.l.b16 %v2742
    %v2925 = vunpack.c.l.b16 %v2749
    %v2926 = vunpack.c.l.b16 %v2756
    %v2927 = vunpack.c.l.b16 %v2763
    %v2928 = vunpack.c.l.b16 %v2770
    %v2929 = vunpack.c.l.b16 %v2777
    %v2930 = vunpack.c.l.b16 %v2784
    %v2931 = vunpack.c.l.b16 %v2791
    %v2932 = vunpack.c.l.b16 %v2798
    %v2933 = vunpack.c.l.b16 %v2805
    %v2934 = vunpack.c.l.b16 %v2812
    %v2935 = vunpack.c.l.b16 %v2819
    %v2936 = vunpack.c.l.b16 %v2826
    %v2937 = vunpack.c.l.b16 %v2833
    %v2938 = vunpack.c.l.b16 %v2840
    %v2939 = vunpack.c.l.b16 %v2847
    %v2940 = vunpack.c.l.b16 %v2854
    %v2941 = vunpack.c.l.b16 %v2861
    %v2942 = vunpack.c.l.b16 %v2868
    %v2943 = vunpack.c.l.b16 %v2875
    %v2944 = vunpack.c.l.b16 %v2882
    %v2945 = vunpack.c.l.b16 %v2889
    %v2946 = vunpack.c.l.b16 %v2896
    %v2947 = vunpack.c.l.b16 %v2903
    %v2948 = vunpack.c.l.b16 %v2910
    %v2949 = vunpack.c.l.b16 %v2917
    %v2950 = vrot.slane %v2919, 7
    %vm2951 = vcmask 1041409
    %v2952 = vsel %vm2951, %v2950, %v2918
    %v2953 = vrot.slane %v2920, 6
    %vm2954 = vcmask 1042434
    %v2955 = vsel %vm2954, %v2953, %v2952
    %v2956 = vrot.slane %v2921, 5
    %vm2957 = vcmask 1043459
    %v2958 = vsel %vm2957, %v2956, %v2955
    %v2959 = vrot.slane %v2923, 7
    %v2960 = vsel %vm2951, %v2959, %v2922
    %v2961 = vrot.slane %v2924, 6
    %v2962 = vsel %vm2954, %v2961, %v2960
    %v2963 = vrot.slane %v2925, 5
    %v2964 = vsel %vm2957, %v2963, %v2962
    %v2965 = vrot.slane %v2927, 7
    %v2966 = vsel %vm2951, %v2965, %v2926
    %v2967 = vrot.slane %v2928, 6
    %v2968 = vsel %vm2954, %v2967, %v2966
    %v2969 = vrot.slane %v2929, 5
    %v2970 = vsel %vm2957, %v2969, %v2968
    %v2971 = vrot.slane %v2931, 7
    %v2972 = vsel %vm2951, %v2971, %v2930
    %v2973 = vrot.slane %v2932, 6
    %v2974 = vsel %vm2954, %v2973, %v2972
    %v2975 = vrot.slane %v2933, 5
    %v2976 = vsel %vm2957, %v2975, %v2974
    %v2977 = vrot.slane %v2935, 7
    %v2978 = vsel %vm2951, %v2977, %v2934
    %v2979 = vrot.slane %v2936, 6
    %v2980 = vsel %vm2954, %v2979, %v2978
    %v2981 = vrot.slane %v2937, 5
    %v2982 = vsel %vm2957, %v2981, %v2980
    %v2983 = vrot.slane %v2939, 7
    %v2984 = vsel %vm2951, %v2983, %v2938
    %v2985 = vrot.slane %v2940, 6
    %v2986 = vsel %vm2954, %v2985, %v2984
    %v2987 = vrot.slane %v2941, 5
    %v2988 = vsel %vm2957, %v2987, %v2986
    %v2989 = vrot.slane %v2943, 7
    %v2990 = vsel %vm2951, %v2989, %v2942
    %v2991 = vrot.slane %v2944, 6
    %v2992 = vsel %vm2954, %v2991, %v2990
    %v2993 = vrot.slane %v2945, 5
    %v2994 = vsel %vm2957, %v2993, %v2992
    %v2995 = vrot.slane %v2947, 7
    %v2996 = vsel %vm2951, %v2995, %v2946
    %v2997 = vrot.slane %v2948, 6
    %v2998 = vsel %vm2954, %v2997, %v2996
    %v2999 = vrot.slane %v2949, 5
    %v3000 = vsel %vm2957, %v2999, %v2998
    %v3001 = vpack.c.b16 %v2958, %v2958
    %v3002 = vpack.c.b16 %v2964, %v2964
    %v3003 = vpack.c.b16 %v2970, %v2970
    %v3004 = vpack.c.b16 %v2976, %v2976
    %v3005 = vpack.c.b16 %v2982, %v2982
    %v3006 = vpack.c.b16 %v2988, %v2988
    %v3007 = vpack.c.b16 %v2994, %v2994
    %v3008 = vpack.c.b16 %v3000, %v3000
    %v3010 = vunpack.c.l.s4 1983009808
    %v3011 = vunpack.c.0.s8 %v3010
    %v3012 = vlaneseq
    %v3013 = vshrl.u32 %v3012, 7
    %v3014 = vsub.s32 %v3011, %v3013
    %v3015 = vrot.slane %v3001, %v3014
    %v3017 = vunpack.c.l.s4 1983009808
    %v3018 = vunpack.c.0.s8 %v3017
    %v3019 = vlaneseq
    %v3020 = vshrl.u32 %v3019, 7
    %v3021 = vsub.s32 %v3018, %v3020
    %v3022 = vrot.slane %v3002, %v3021
    %v3024 = vunpack.c.l.s4 1983009808
    %v3025 = vunpack.c.0.s8 %v3024
    %v3026 = vlaneseq
    %v3027 = vshrl.u32 %v3026, 7
    %v3028 = vsub.s32 %v3025, %v3027
    %v3029 = vrot.slane %v3003, %v3028
    %v3031 = vunpack.c.l.s4 1983009808
    %v3032 = vunpack.c.0.s8 %v3031
    %v3033 = vlaneseq
    %v3034 = vshrl.u32 %v3033, 7
    %v3035 = vsub.s32 %v3032, %v3034
    %v3036 = vrot.slane %v3004, %v3035
    %v3038 = vunpack.c.l.s4 1983009808
    %v3039 = vunpack.c.0.s8 %v3038
    %v3040 = vlaneseq
    %v3041 = vshrl.u32 %v3040, 7
    %v3042 = vsub.s32 %v3039, %v3041
    %v3043 = vrot.slane %v3005, %v3042
    %v3045 = vunpack.c.l.s4 1983009808
    %v3046 = vunpack.c.0.s8 %v3045
    %v3047 = vlaneseq
    %v3048 = vshrl.u32 %v3047, 7
    %v3049 = vsub.s32 %v3046, %v3048
    %v3050 = vrot.slane %v3006, %v3049
    %v3052 = vunpack.c.l.s4 1983009808
    %v3053 = vunpack.c.0.s8 %v3052
    %v3054 = vlaneseq
    %v3055 = vshrl.u32 %v3054, 7
    %v3056 = vsub.s32 %v3053, %v3055
    %v3057 = vrot.slane %v3007, %v3056
    %v3059 = vunpack.c.l.s4 1983009808
    %v3060 = vunpack.c.0.s8 %v3059
    %v3061 = vlaneseq
    %v3062 = vshrl.u32 %v3061, 7
    %v3063 = vsub.s32 %v3060, %v3062
    %v3064 = vrot.slane %v3008, %v3063
    %3073 = vst [vmem:[%s3] sm:$0x3] %v3015
    %3074 = vst [vmem:[%s3 + $0x2] sm:$0x3] %v3022
    %3075 = vst [vmem:[%s3 + $0x4] sm:$0x3] %v3029
    %3076 = vst [vmem:[%s3 + $0x6] sm:$0x3] %v3036
    %3077 = vst [vmem:[%s3 + $0x8] sm:$0x3] %v3043
    %3078 = vst [vmem:[%s3 + $0xa] sm:$0x3] %v3050
    %3079 = vst [vmem:[%s3 + $0xc] sm:$0x3] %v3057
    %3080 = vst [vmem:[%s3 + $0xe] sm:$0x3] %v3064
    // Predicated region
    $region22: #{simple_cnn_forward.5} parent=1 // pred_check
      _
    $region23: #{simple_cnn_forward.5} parent=1 // pred_check_branch
      %3082 = sbr.rel (0) target = $region25
    $region24: #{simple_cnn_forward.5} parent=1 // pred_region
      _
    $region25: #{simple_cnn_forward.5} parent=1 // pred_fallthru
      _
    // Predicated region
    $region26: #{simple_cnn_forward.5} parent=1 // pred_check
      _
    $region27: #{simple_cnn_forward.5} parent=1 // pred_check_branch
      %3084 = sbr.rel (0) target = $region29
    $region28: #{simple_cnn_forward.5} parent=1 // pred_region
      _
    $region29: #{simple_cnn_forward.5} parent=1 // pred_fallthru
      _
    %3085 = vsyncpa [#allocation3], 1
    %3086 = vsyncpa [#allocation5], 1

// kernel: simple_cnn_forward.6
$region0: #{simple_cnn_forward.6}
  #allocation0 [shape = 'u32[]', space=smem, size = 0x4, offset = 0x4, fixed_abs, tag = 'smem constant byte address 0x4 - core index']
  #allocation1 [shape = 'u32[144,128]{1,0:T(1,128)}', space=vmem, size = 0x12000, scoped, tag = 'internal scratch']
  %s0 = inlined_call_operand.vmem [shape: bf16[2,2048], index: 0, kind: input, shape index: {}]
  %s1 = inlined_call_operand.hbm [shape: bf16[2048,512], index: 1, kind: input, shape index: {}]
  %s2 = inlined_call_operand.hbm [shape: f32[1,512], index: 2, kind: input, shape index: {}]
  %s3 = inlined_call_operand.vmem [shape: bf16[2,512], index: 3, kind: output, shape index: {}]
  %s4 = sld [smem:[#allocation0]]
  $region53: #{simple_cnn_forward.6} parent=0
    _
  %s6 = ssub.s32 1, %s4
  %s7 = scalar_select 0, %s6, %s4
  $region1: #{simple_cnn_forward.6} parent=0
    #allocation2 [shape = 'u8[2097152]{0}', space=vmem, size = 0x200000, scoped, tag = 'input window, operand 1']
    #allocation3 [shape = 's32[2]{0}', space=sflag, size = 0x8, scoped, tag = 'scoped memory for simple_cnn_forward.6']
    #allocation4 [shape = 'u8[2048]{0}', space=vmem, size = 0x800, scoped, tag = 'input window, operand 2']
    #allocation5 [shape = 's32[2]{0}', space=sflag, size = 0x8, scoped, tag = 'scoped memory for simple_cnn_forward.6']
    %8 = vsyncpa [#allocation3], 0
    %s9 = scalar_lea.sflag [#allocation3], 1
    %10 = vsyncpa %s9, 0
    %11 = vsyncpa [#allocation5], 0
    %s12 = scalar_lea.sflag [#allocation5], 1
    %13 = vsyncpa %s12, 0
    loop: start=0, step=1, limit=4
    $region2: #{simple_cnn_forward.6} parent=1 // loop_pre_header
      _
    $region3: #{simple_cnn_forward.6} parent=1 // loop_header
      %s15 = sphi 0, %s19
      %p16 = scmp.ge.s32.totalorder %s15, 4
      %s22 = sphi 0, %s34
      %s23 = sphi 0, %s30
      %s24 = sphi 0, %s22
      %s25 = sphi 0, %s23
      %s26 = sphi 0, %s24
      %s27 = sphi 0, %s25
      %s37 = sphi 0, %s39
      %s40 = sphi 0, %s37
      %s41 = sphi 0, %s40
      %s57 = sphi 0, %s41
      %s63 = sphi 0, %s65
      %s66 = sphi 0, %s63
      %s67 = sphi 0, %s66
      %s83 = sphi 0, %s67
      %s89 = sphi 0, %s91
      %s92 = sphi 0, %s89
      %s93 = sphi 0, %s92
      %s109 = sphi 0, %s93
      %s117 = sphi 0, %s119
      %s120 = sphi 0, %s117
      %s121 = sphi 0, %s120
      %s137 = sphi 0, %s121
    $region4: #{simple_cnn_forward.6} parent=1 // loop_header_branch
      %18 = sbr.rel (%p16) target = $region8
    $region5: #{simple_cnn_forward.6} parent=1 // loop_body
      %s20 = ssub.s32 %s15, 1
      %s21 = ssub.s32 %s15, 2
      %s28 = sadd.s32 1, %s23
      %p29 = scmp.ge.s32.totalorder %s28, 2
      %s30 = scalar_select %p29, 0, %s28
      %s31 = sadd.s32 1, %s22
      %s32 = scalar_select %p29, %s31, %s22
      %p33 = scmp.ge.s32.totalorder %s32, 1
      %s34 = scalar_select %p33, 0, %s32
      %s35 = ssub.s32 %s22, %s34
      %p36 = scmp.eq.s32.totalorder %s35, 0
      %s38 = sadd.s32 %s37, 1
      %s39 = scalar_select %p36, %s37, %s38
      %p42 = pneg %p36
      %p43 = scmp.eq.s32.totalorder %s15, 1
      %p44 = por %p42, %p43
      %p45 = scmp.ne.s32.totalorder %s37, %s40
      %p46 = scmp.eq.s32.totalorder %s15, 0
      %p47 = por %p45, %p46
      %p48 = scmp.ne.s32.totalorder %s37, %s40
      %p49 = scmp.eq.s32.totalorder %s20, 1
      %p50 = por %p48, %p49
      %p51 = scmp.ne.s32.totalorder %s40, %s41
      %p52 = scmp.eq.s32.totalorder %s20, 0
      %p53 = por %p51, %p52
      %p54 = scmp.ne.s32.totalorder %s40, %s41
      %p55 = scmp.eq.s32.totalorder %s21, 1
      %p56 = por %p54, %p55
      %p58 = scmp.ne.s32.totalorder %s41, %s57
      %p59 = scmp.eq.s32.totalorder %s21, 0
      %p60 = por %p58, %p59
      %s61 = ssub.s32 %s23, %s30
      %p62 = scmp.eq.s32.totalorder %s61, 0
      %s64 = sadd.s32 %s63, 1
      %s65 = scalar_select %p62, %s63, %s64
      %p68 = pneg %p62
      %p69 = scmp.eq.s32.totalorder %s15, 1
      %p70 = por %p68, %p69
      %p71 = scmp.ne.s32.totalorder %s63, %s66
      %p72 = scmp.eq.s32.totalorder %s15, 0
      %p73 = por %p71, %p72
      %p74 = scmp.ne.s32.totalorder %s63, %s66
      %p75 = scmp.eq.s32.totalorder %s20, 1
      %p76 = por %p74, %p75
      %p77 = scmp.ne.s32.totalorder %s66, %s67
      %p78 = scmp.eq.s32.totalorder %s20, 0
      %p79 = por %p77, %p78
      %p80 = scmp.ne.s32.totalorder %s66, %s67
      %p81 = scmp.eq.s32.totalorder %s21, 1
      %p82 = por %p80, %p81
      %p84 = scmp.ne.s32.totalorder %s67, %s83
      %p85 = scmp.eq.s32.totalorder %s21, 0
      %p86 = por %p84, %p85
      %s87 = ssub.s32 %s23, %s30
      %p88 = scmp.eq.s32.totalorder %s87, 0
      %s90 = sadd.s32 %s89, 1
      %s91 = scalar_select %p88, %s89, %s90
      %p94 = pneg %p88
      %p95 = scmp.eq.s32.totalorder %s15, 1
      %p96 = por %p94, %p95
      %p97 = scmp.ne.s32.totalorder %s89, %s92
      %p98 = scmp.eq.s32.totalorder %s15, 0
      %p99 = por %p97, %p98
      %p100 = scmp.ne.s32.totalorder %s89, %s92
      %p101 = scmp.eq.s32.totalorder %s20, 1
      %p102 = por %p100, %p101
      %p103 = scmp.ne.s32.totalorder %s92, %s93
      %p104 = scmp.eq.s32.totalorder %s20, 0
      %p105 = por %p103, %p104
      %p106 = scmp.ne.s32.totalorder %s92, %s93
      %p107 = scmp.eq.s32.totalorder %s21, 1
      %p108 = por %p106, %p107
      %p110 = scmp.ne.s32.totalorder %s93, %s109
      %p111 = scmp.eq.s32.totalorder %s21, 0
      %p112 = por %p110, %p111
      %s113 = ssub.s32 %s22, %s34
      %s114 = ssub.s32 %s23, %s30
      %s115 = sor.u32 %s113, %s114
      %p116 = scmp.eq.s32.totalorder %s115, 0
      %s118 = sadd.s32 %s117, 1
      %s119 = scalar_select %p116, %s117, %s118
      %p122 = pneg %p116
      %p123 = scmp.eq.s32.totalorder %s15, 1
      %p124 = por %p122, %p123
      %p125 = scmp.ne.s32.totalorder %s117, %s120
      %p126 = scmp.eq.s32.totalorder %s15, 0
      %p127 = por %p125, %p126
      %p128 = scmp.ne.s32.totalorder %s117, %s120
      %p129 = scmp.eq.s32.totalorder %s20, 1
      %p130 = por %p128, %p129
      %p131 = scmp.ne.s32.totalorder %s120, %s121
      %p132 = scmp.eq.s32.totalorder %s20, 0
      %p133 = por %p131, %p132
      %p134 = scmp.ne.s32.totalorder %s120, %s121
      %p135 = scmp.eq.s32.totalorder %s21, 1
      %p136 = por %p134, %p135
      %p138 = scmp.ne.s32.totalorder %s121, %s137
      %p139 = scmp.eq.s32.totalorder %s21, 0
      %p140 = por %p138, %p139
      %p141 = scmp.le.s32.totalorder 1, %s15
      %p142 = scmp.lt.s32.totalorder %s15, 3
      %p143 = pnand %p141, %p142
      %p144 = pneg %p143
      // Predicated region
      $region9: #{simple_cnn_forward.6} parent=5 // pred_check
        _
      $region10: #{simple_cnn_forward.6} parent=5 // pred_check_branch
        %146 = sbr.rel (%p143) target = $region12
      $region11: #{simple_cnn_forward.6} parent=5 // pred_region
        %s147 = ssub.s32 %s15, 1
        // Predicated region
        $region13: #{simple_cnn_forward.6} parent=11 // pred_check
          %p148 = pneg %p53
        $region14: #{simple_cnn_forward.6} parent=11 // pred_check_branch
          %150 = sbr.rel (%p148) target = $region16
        $region15: #{simple_cnn_forward.6} parent=11 // pred_region
          %p151 = scmp.lt.s32.totalorder %s24, 0
          %s152 = scalar_select %p151, %s24, 0
          %s153 = smul.addr %s152, 16
          %s154 = scalar_lea.vmem %s0, %s153
        $region16: #{simple_cnn_forward.6} parent=11 // pred_fallthru
          _
      $region12: #{simple_cnn_forward.6} parent=5 // pred_fallthru
        _
      %p155 = scmp.lt.s32.totalorder %s15, 2
      // Predicated region
      $region17: #{simple_cnn_forward.6} parent=5 // pred_check
        %p156 = pneg %p155
      $region18: #{simple_cnn_forward.6} parent=5 // pred_check_branch
        %158 = sbr.rel (%p156) target = $region20
      $region19: #{simple_cnn_forward.6} parent=5 // pred_region
        // Predicated region
        $region21: #{simple_cnn_forward.6} parent=19 // pred_check
          %p159 = pneg %p73
        $region22: #{simple_cnn_forward.6} parent=19 // pred_check_branch
          %161 = sbr.rel (%p159) target = $region24
        $region23: #{simple_cnn_forward.6} parent=19 // pred_region
          %s162 = sand.u32 %s63, 1
          %s163 = scalar_lea.sflag [#allocation3], %s162
          %s164 = sand.u32 %s63, 1
          %s165 = smul.addr %s164, 2048
          %s166 = scalar_lea.vmem [#allocation2], %s165
          %s167 = smul.u32 2, %s23
          %s169 = ssub.s32 32768, 32768
          %170 = vsyncadd %s163, %s169
          %s171 = smul.addr %s167, 64
          %s172 = scalar_lea.hbm %s1, %s171
          %s173 = sshll.u32 %s166, 4
          %s174 = int_to_ptr.vmem [resolvable:$true] %s173
          %179 = dma.hbm_to_vmem [thread:$0]  %s172, 32768, %s174, %s163, 256, 128, 8
        $region24: #{simple_cnn_forward.6} parent=19 // pred_fallthru
          _
        // Predicated region
        $region25: #{simple_cnn_forward.6} parent=19 // pred_check
          %p180 = pneg %p99
        $region26: #{simple_cnn_forward.6} parent=19 // pred_check_branch
          %182 = sbr.rel (%p180) target = $region28
        $region27: #{simple_cnn_forward.6} parent=19 // pred_region
          %s183 = sand.u32 %s89, 1
          %s184 = scalar_lea.sflag [#allocation5], %s183
          %s185 = sand.u32 %s89, 1
          %s186 = smul.addr %s185, 2
          %s187 = scalar_lea.vmem [#allocation4], %s186
          %s188 = smul.u32 2, %s23
          %s190 = ssub.s32 32, 32
          %191 = vsyncadd %s184, %s190
          %s192 = smul.addr %s188, 16
          %s193 = scalar_lea.hbm %s2, %s192
          %s195 = sshll.u32 %s187, 4
          %s196 = int_to_ptr.vmem [resolvable:$true] %s195
          %198 = dma.hbm_to_vmem [thread:$0]  %s193, 32, %s196, %s184
        $region28: #{simple_cnn_forward.6} parent=19 // pred_fallthru
          _
      $region20: #{simple_cnn_forward.6} parent=5 // pred_fallthru
        _
      %p199 = scmp.le.s32.totalorder 1, %s15
      %p200 = scmp.lt.s32.totalorder %s15, 3
      %p201 = pnand %p199, %p200
      %p202 = pneg %p201
      // Predicated region
      $region29: #{simple_cnn_forward.6} parent=5 // pred_check
        _
      $region30: #{simple_cnn_forward.6} parent=5 // pred_check_branch
        %204 = sbr.rel (%p201) target = $region32
      $region31: #{simple_cnn_forward.6} parent=5 // pred_region
        %s205 = ssub.s32 %s15, 1
        %s206 = sand.u32 %s66, 1
        %s207 = scalar_lea.sflag [#allocation3], %s206
        %s208 = sand.u32 %s66, 1
        %s209 = smul.addr %s208, 2048
        %s210 = scalar_lea.vmem [#allocation2], %s209
        // Predicated region
        $region33: #{simple_cnn_forward.6} parent=31 // pred_check
          %p211 = pneg %p79
        $region34: #{simple_cnn_forward.6} parent=31 // pred_check_branch
          %213 = sbr.rel (%p211) target = $region36
        $region35: #{simple_cnn_forward.6} parent=31 // pred_region
          %214 = dma.done %s207, 32768
        $region36: #{simple_cnn_forward.6} parent=31 // pred_fallthru
          _
        %s215 = sand.u32 %s92, 1
        %s216 = scalar_lea.sflag [#allocation5], %s215
        %s217 = sand.u32 %s92, 1
        %s218 = smul.addr %s217, 2
        %s219 = scalar_lea.vmem [#allocation4], %s218
        // Predicated region
        $region37: #{simple_cnn_forward.6} parent=31 // pred_check
          %p220 = pneg %p105
        $region38: #{simple_cnn_forward.6} parent=31 // pred_check_branch
          %222 = sbr.rel (%p220) target = $region40
        $region39: #{simple_cnn_forward.6} parent=31 // pred_region
          %223 = dma.done %s216, 32
        $region40: #{simple_cnn_forward.6} parent=31 // pred_fallthru
          _
        %p224 = scmp.lt.s32.totalorder %s24, 0
        %s225 = scalar_select %p224, %s24, 0
        %s226 = smul.addr %s225, 16
        %s227 = scalar_lea.vmem %s0, %s226
        %p228 = pneg %p53
        %p229 = pneg %p50
        %s230 = sand.u32 %s66, 1
        %s231 = scalar_lea.sflag [#allocation3], %s230
        %s232 = sand.u32 %s66, 1
        %s233 = smul.addr %s232, 2048
        %s234 = scalar_lea.vmem [#allocation2], %s233
        %p235 = pneg %p79
        %p236 = pneg %p76
        %s237 = sand.u32 %s92, 1
        %s238 = scalar_lea.sflag [#allocation5], %s237
        %s239 = sand.u32 %s92, 1
        %s240 = smul.addr %s239, 2
        %s241 = scalar_lea.vmem [#allocation4], %s240
        %p242 = pneg %p105
        %p243 = pneg %p102
        %p244 = pneg %p133
        %p245 = pneg %p130
        %s246 = smul.u32 2, %s25
        %p247 = scmp.lt.s32.totalorder %s24, 0
        %s248 = scalar_select %p247, %s24, 0
        %p249 = scmp.lt.s32.totalorder %s246, 3
        %s250 = scalar_select %p249, %s246, 3
        %s251 = smul.addr %s248, 4
        %s252 = sadd.s32 %s250, %s251
        %s253 = scalar_lea.vmem %s3, %s252
        %p254 = scmp.lt.s32.totalorder %s24, 0
        %s255 = scalar_select %p254, %s24, 0
        %s256 = smul.addr %s255, 16
        %s257 = scalar_lea.vmem %s0, %s256
        %s258 = smul.u32 2, %s25
        %s259 = smul.u32 2, %s25
        %s260 = smul.u32 2, %s25
        %p261 = scmp.lt.s32.totalorder %s24, 0
        %s262 = scalar_select %p261, %s24, 0
        %p263 = scmp.lt.s32.totalorder %s260, 3
        %s264 = scalar_select %p263, %s260, 3
        %s265 = smul.addr %s262, 4
        %s266 = sadd.s32 %s264, %s265
        %s267 = scalar_lea.vmem %s3, %s266
        %s268 = smul.u32 2, %s25
        %v269 = vld [vmem:[%s257] sm:$0xff]
        %v270 = vld [vmem:[%s257 + $0x8] sm:$0xff]
        %v271 = vld [vmem:[%s210] sm:$0xff]
        %v272 = vld [vmem:[%s210 + $0x8] sm:$0xff]
        %v273 = vld [vmem:[%s210 + $0x10] sm:$0xff]
        %v274 = vld [vmem:[%s210 + $0x18] sm:$0xff]
        %v275 = vld [vmem:[%s210 + $0x20] sm:$0xff]
        %v276 = vld [vmem:[%s210 + $0x28] sm:$0xff]
        %v277 = vld [vmem:[%s210 + $0x30] sm:$0xff]
        %v278 = vld [vmem:[%s210 + $0x38] sm:$0xff]
        %v279 = vld [vmem:[%s210 + $0x40] sm:$0xff]
        %v280 = vld [vmem:[%s210 + $0x48] sm:$0xff]
        %v281 = vld [vmem:[%s210 + $0x50] sm:$0xff]
        %v282 = vld [vmem:[%s210 + $0x58] sm:$0xff]
        %v283 = vld [vmem:[%s210 + $0x60] sm:$0xff]
        %v284 = vld [vmem:[%s210 + $0x68] sm:$0xff]
        %v285 = vld [vmem:[%s210 + $0x70] sm:$0xff]
        %v286 = vld [vmem:[%s210 + $0x78] sm:$0xff]
        %v287 = vld [vmem:[%s210 + $0x80] sm:$0xff]
        %v288 = vld [vmem:[%s210 + $0x88] sm:$0xff]
        %v289 = vld [vmem:[%s210 + $0x90] sm:$0xff]
        %v290 = vld [vmem:[%s210 + $0x98] sm:$0xff]
        %v291 = vld [vmem:[%s210 + $0xa0] sm:$0xff]
        %v292 = vld [vmem:[%s210 + $0xa8] sm:$0xff]
        %v293 = vld [vmem:[%s210 + $0xb0] sm:$0xff]
        %v294 = vld [vmem:[%s210 + $0xb8] sm:$0xff]
        %v295 = vld [vmem:[%s210 + $0xc0] sm:$0xff]
        %v296 = vld [vmem:[%s210 + $0xc8] sm:$0xff]
        %v297 = vld [vmem:[%s210 + $0xd0] sm:$0xff]
        %v298 = vld [vmem:[%s210 + $0xd8] sm:$0xff]
        %v299 = vld [vmem:[%s210 + $0xe0] sm:$0xff]
        %v300 = vld [vmem:[%s210 + $0xe8] sm:$0xff]
        %v301 = vld [vmem:[%s210 + $0xf0] sm:$0xff]
        %v302 = vld [vmem:[%s210 + $0xf8] sm:$0xff]
        %v303 = vld [vmem:[%s210 + $0x100] sm:$0xff]
        %v304 = vld [vmem:[%s210 + $0x108] sm:$0xff]
        %v305 = vld [vmem:[%s210 + $0x110] sm:$0xff]
        %v306 = vld [vmem:[%s210 + $0x118] sm:$0xff]
        %v307 = vld [vmem:[%s210 + $0x120] sm:$0xff]
        %v308 = vld [vmem:[%s210 + $0x128] sm:$0xff]
        %v309 = vld [vmem:[%s210 + $0x130] sm:$0xff]
        %v310 = vld [vmem:[%s210 + $0x138] sm:$0xff]
        %v311 = vld [vmem:[%s210 + $0x140] sm:$0xff]
        %v312 = vld [vmem:[%s210 + $0x148] sm:$0xff]
        %v313 = vld [vmem:[%s210 + $0x150] sm:$0xff]
        %v314 = vld [vmem:[%s210 + $0x158] sm:$0xff]
        %v315 = vld [vmem:[%s210 + $0x160] sm:$0xff]
        %v316 = vld [vmem:[%s210 + $0x168] sm:$0xff]
        %v317 = vld [vmem:[%s210 + $0x170] sm:$0xff]
        %v318 = vld [vmem:[%s210 + $0x178] sm:$0xff]
        %v319 = vld [vmem:[%s210 + $0x180] sm:$0xff]
        %v320 = vld [vmem:[%s210 + $0x188] sm:$0xff]
        %v321 = vld [vmem:[%s210 + $0x190] sm:$0xff]
        %v322 = vld [vmem:[%s210 + $0x198] sm:$0xff]
        %v323 = vld [vmem:[%s210 + $0x1a0] sm:$0xff]
        %v324 = vld [vmem:[%s210 + $0x1a8] sm:$0xff]
        %v325 = vld [vmem:[%s210 + $0x1b0] sm:$0xff]
        %v326 = vld [vmem:[%s210 + $0x1b8] sm:$0xff]
        %v327 = vld [vmem:[%s210 + $0x1c0] sm:$0xff]
        %v328 = vld [vmem:[%s210 + $0x1c8] sm:$0xff]
        %v329 = vld [vmem:[%s210 + $0x1d0] sm:$0xff]
        %v330 = vld [vmem:[%s210 + $0x1d8] sm:$0xff]
        %v331 = vld [vmem:[%s210 + $0x1e0] sm:$0xff]
        %v332 = vld [vmem:[%s210 + $0x1e8] sm:$0xff]
        %v333 = vld [vmem:[%s210 + $0x1f0] sm:$0xff]
        %v334 = vld [vmem:[%s210 + $0x1f8] sm:$0xff]
        %v335 = vld [vmem:[%s210 + $0x200] sm:$0xff]
        %v336 = vld [vmem:[%s210 + $0x208] sm:$0xff]
        %v337 = vld [vmem:[%s210 + $0x210] sm:$0xff]
        %v338 = vld [vmem:[%s210 + $0x218] sm:$0xff]
        %v339 = vld [vmem:[%s210 + $0x220] sm:$0xff]
        %v340 = vld [vmem:[%s210 + $0x228] sm:$0xff]
        %v341 = vld [vmem:[%s210 + $0x230] sm:$0xff]
        %v342 = vld [vmem:[%s210 + $0x238] sm:$0xff]
        %v343 = vld [vmem:[%s210 + $0x240] sm:$0xff]
        %v344 = vld [vmem:[%s210 + $0x248] sm:$0xff]
        %v345 = vld [vmem:[%s210 + $0x250] sm:$0xff]
        %v346 = vld [vmem:[%s210 + $0x258] sm:$0xff]
        %v347 = vld [vmem:[%s210 + $0x260] sm:$0xff]
        %v348 = vld [vmem:[%s210 + $0x268] sm:$0xff]
        %v349 = vld [vmem:[%s210 + $0x270] sm:$0xff]
        %v350 = vld [vmem:[%s210 + $0x278] sm:$0xff]
        %v351 = vld [vmem:[%s210 + $0x280] sm:$0xff]
        %v352 = vld [vmem:[%s210 + $0x288] sm:$0xff]
        %v353 = vld [vmem:[%s210 + $0x290] sm:$0xff]
        %v354 = vld [vmem:[%s210 + $0x298] sm:$0xff]
        %v355 = vld [vmem:[%s210 + $0x2a0] sm:$0xff]
        %v356 = vld [vmem:[%s210 + $0x2a8] sm:$0xff]
        %v357 = vld [vmem:[%s210 + $0x2b0] sm:$0xff]
        %v358 = vld [vmem:[%s210 + $0x2b8] sm:$0xff]
        %v359 = vld [vmem:[%s210 + $0x2c0] sm:$0xff]
        %v360 = vld [vmem:[%s210 + $0x2c8] sm:$0xff]
        %v361 = vld [vmem:[%s210 + $0x2d0] sm:$0xff]
        %v362 = vld [vmem:[%s210 + $0x2d8] sm:$0xff]
        %v363 = vld [vmem:[%s210 + $0x2e0] sm:$0xff]
        %v364 = vld [vmem:[%s210 + $0x2e8] sm:$0xff]
        %v365 = vld [vmem:[%s210 + $0x2f0] sm:$0xff]
        %v366 = vld [vmem:[%s210 + $0x2f8] sm:$0xff]
        %v367 = vld [vmem:[%s210 + $0x300] sm:$0xff]
        %v368 = vld [vmem:[%s210 + $0x308] sm:$0xff]
        %v369 = vld [vmem:[%s210 + $0x310] sm:$0xff]
        %v370 = vld [vmem:[%s210 + $0x318] sm:$0xff]
        %v371 = vld [vmem:[%s210 + $0x320] sm:$0xff]
        %v372 = vld [vmem:[%s210 + $0x328] sm:$0xff]
        %v373 = vld [vmem:[%s210 + $0x330] sm:$0xff]
        %v374 = vld [vmem:[%s210 + $0x338] sm:$0xff]
        %v375 = vld [vmem:[%s210 + $0x340] sm:$0xff]
        %v376 = vld [vmem:[%s210 + $0x348] sm:$0xff]
        %v377 = vld [vmem:[%s210 + $0x350] sm:$0xff]
        %v378 = vld [vmem:[%s210 + $0x358] sm:$0xff]
        %v379 = vld [vmem:[%s210 + $0x360] sm:$0xff]
        %v380 = vld [vmem:[%s210 + $0x368] sm:$0xff]
        %v381 = vld [vmem:[%s210 + $0x370] sm:$0xff]
        %v382 = vld [vmem:[%s210 + $0x378] sm:$0xff]
        %v383 = vld [vmem:[%s210 + $0x380] sm:$0xff]
        %v384 = vld [vmem:[%s210 + $0x388] sm:$0xff]
        %v385 = vld [vmem:[%s210 + $0x390] sm:$0xff]
        %v386 = vld [vmem:[%s210 + $0x398] sm:$0xff]
        %v387 = vld [vmem:[%s210 + $0x3a0] sm:$0xff]
        %v388 = vld [vmem:[%s210 + $0x3a8] sm:$0xff]
        %v389 = vld [vmem:[%s210 + $0x3b0] sm:$0xff]
        %v390 = vld [vmem:[%s210 + $0x3b8] sm:$0xff]
        %v391 = vld [vmem:[%s210 + $0x3c0] sm:$0xff]
        %v392 = vld [vmem:[%s210 + $0x3c8] sm:$0xff]
        %v393 = vld [vmem:[%s210 + $0x3d0] sm:$0xff]
        %v394 = vld [vmem:[%s210 + $0x3d8] sm:$0xff]
        %v395 = vld [vmem:[%s210 + $0x3e0] sm:$0xff]
        %v396 = vld [vmem:[%s210 + $0x3e8] sm:$0xff]
        %v397 = vld [vmem:[%s210 + $0x3f0] sm:$0xff]
        %v398 = vld [vmem:[%s210 + $0x3f8] sm:$0xff]
        %v399 = vld [vmem:[%s210 + $0x400] sm:$0xff]
        %v400 = vld [vmem:[%s210 + $0x408] sm:$0xff]
        %v401 = vld [vmem:[%s210 + $0x410] sm:$0xff]
        %v402 = vld [vmem:[%s210 + $0x418] sm:$0xff]
        %v403 = vld [vmem:[%s210 + $0x420] sm:$0xff]
        %v404 = vld [vmem:[%s210 + $0x428] sm:$0xff]
        %v405 = vld [vmem:[%s210 + $0x430] sm:$0xff]
        %v406 = vld [vmem:[%s210 + $0x438] sm:$0xff]
        %v407 = vld [vmem:[%s210 + $0x440] sm:$0xff]
        %v408 = vld [vmem:[%s210 + $0x448] sm:$0xff]
        %v409 = vld [vmem:[%s210 + $0x450] sm:$0xff]
        %v410 = vld [vmem:[%s210 + $0x458] sm:$0xff]
        %v411 = vld [vmem:[%s210 + $0x460] sm:$0xff]
        %v412 = vld [vmem:[%s210 + $0x468] sm:$0xff]
        %v413 = vld [vmem:[%s210 + $0x470] sm:$0xff]
        %v414 = vld [vmem:[%s210 + $0x478] sm:$0xff]
        %v415 = vld [vmem:[%s210 + $0x480] sm:$0xff]
        %v416 = vld [vmem:[%s210 + $0x488] sm:$0xff]
        %v417 = vld [vmem:[%s210 + $0x490] sm:$0xff]
        %v418 = vld [vmem:[%s210 + $0x498] sm:$0xff]
        %v419 = vld [vmem:[%s210 + $0x4a0] sm:$0xff]
        %v420 = vld [vmem:[%s210 + $0x4a8] sm:$0xff]
        %v421 = vld [vmem:[%s210 + $0x4b0] sm:$0xff]
        %v422 = vld [vmem:[%s210 + $0x4b8] sm:$0xff]
        %v423 = vld [vmem:[%s210 + $0x4c0] sm:$0xff]
        %v424 = vld [vmem:[%s210 + $0x4c8] sm:$0xff]
        %v425 = vld [vmem:[%s210 + $0x4d0] sm:$0xff]
        %v426 = vld [vmem:[%s210 + $0x4d8] sm:$0xff]
        %v427 = vld [vmem:[%s210 + $0x4e0] sm:$0xff]
        %v428 = vld [vmem:[%s210 + $0x4e8] sm:$0xff]
        %v429 = vld [vmem:[%s210 + $0x4f0] sm:$0xff]
        %v430 = vld [vmem:[%s210 + $0x4f8] sm:$0xff]
        %v431 = vld [vmem:[%s210 + $0x500] sm:$0xff]
        %v432 = vld [vmem:[%s210 + $0x508] sm:$0xff]
        %v433 = vld [vmem:[%s210 + $0x510] sm:$0xff]
        %v434 = vld [vmem:[%s210 + $0x518] sm:$0xff]
        %v435 = vld [vmem:[%s210 + $0x520] sm:$0xff]
        %v436 = vld [vmem:[%s210 + $0x528] sm:$0xff]
        %v437 = vld [vmem:[%s210 + $0x530] sm:$0xff]
        %v438 = vld [vmem:[%s210 + $0x538] sm:$0xff]
        %v439 = vld [vmem:[%s210 + $0x540] sm:$0xff]
        %v440 = vld [vmem:[%s210 + $0x548] sm:$0xff]
        %v441 = vld [vmem:[%s210 + $0x550] sm:$0xff]
        %v442 = vld [vmem:[%s210 + $0x558] sm:$0xff]
        %v443 = vld [vmem:[%s210 + $0x560] sm:$0xff]
        %v444 = vld [vmem:[%s210 + $0x568] sm:$0xff]
        %v445 = vld [vmem:[%s210 + $0x570] sm:$0xff]
        %v446 = vld [vmem:[%s210 + $0x578] sm:$0xff]
        %v447 = vld [vmem:[%s210 + $0x580] sm:$0xff]
        %v448 = vld [vmem:[%s210 + $0x588] sm:$0xff]
        %v449 = vld [vmem:[%s210 + $0x590] sm:$0xff]
        %v450 = vld [vmem:[%s210 + $0x598] sm:$0xff]
        %v451 = vld [vmem:[%s210 + $0x5a0] sm:$0xff]
        %v452 = vld [vmem:[%s210 + $0x5a8] sm:$0xff]
        %v453 = vld [vmem:[%s210 + $0x5b0] sm:$0xff]
        %v454 = vld [vmem:[%s210 + $0x5b8] sm:$0xff]
        %v455 = vld [vmem:[%s210 + $0x5c0] sm:$0xff]
        %v456 = vld [vmem:[%s210 + $0x5c8] sm:$0xff]
        %v457 = vld [vmem:[%s210 + $0x5d0] sm:$0xff]
        %v458 = vld [vmem:[%s210 + $0x5d8] sm:$0xff]
        %v459 = vld [vmem:[%s210 + $0x5e0] sm:$0xff]
        %v460 = vld [vmem:[%s210 + $0x5e8] sm:$0xff]
        %v461 = vld [vmem:[%s210 + $0x5f0] sm:$0xff]
        %v462 = vld [vmem:[%s210 + $0x5f8] sm:$0xff]
        %v463 = vld [vmem:[%s210 + $0x600] sm:$0xff]
        %v464 = vld [vmem:[%s210 + $0x608] sm:$0xff]
        %v465 = vld [vmem:[%s210 + $0x610] sm:$0xff]
        %v466 = vld [vmem:[%s210 + $0x618] sm:$0xff]
        %v467 = vld [vmem:[%s210 + $0x620] sm:$0xff]
        %v468 = vld [vmem:[%s210 + $0x628] sm:$0xff]
        %v469 = vld [vmem:[%s210 + $0x630] sm:$0xff]
        %v470 = vld [vmem:[%s210 + $0x638] sm:$0xff]
        %v471 = vld [vmem:[%s210 + $0x640] sm:$0xff]
        %v472 = vld [vmem:[%s210 + $0x648] sm:$0xff]
        %v473 = vld [vmem:[%s210 + $0x650] sm:$0xff]
        %v474 = vld [vmem:[%s210 + $0x658] sm:$0xff]
        %v475 = vld [vmem:[%s210 + $0x660] sm:$0xff]
        %v476 = vld [vmem:[%s210 + $0x668] sm:$0xff]
        %v477 = vld [vmem:[%s210 + $0x670] sm:$0xff]
        %v478 = vld [vmem:[%s210 + $0x678] sm:$0xff]
        %v479 = vld [vmem:[%s210 + $0x680] sm:$0xff]
        %v480 = vld [vmem:[%s210 + $0x688] sm:$0xff]
        %v481 = vld [vmem:[%s210 + $0x690] sm:$0xff]
        %v482 = vld [vmem:[%s210 + $0x698] sm:$0xff]
        %v483 = vld [vmem:[%s210 + $0x6a0] sm:$0xff]
        %v484 = vld [vmem:[%s210 + $0x6a8] sm:$0xff]
        %v485 = vld [vmem:[%s210 + $0x6b0] sm:$0xff]
        %v486 = vld [vmem:[%s210 + $0x6b8] sm:$0xff]
        %v487 = vld [vmem:[%s210 + $0x6c0] sm:$0xff]
        %v488 = vld [vmem:[%s210 + $0x6c8] sm:$0xff]
        %v489 = vld [vmem:[%s210 + $0x6d0] sm:$0xff]
        %v490 = vld [vmem:[%s210 + $0x6d8] sm:$0xff]
        %v491 = vld [vmem:[%s210 + $0x6e0] sm:$0xff]
        %v492 = vld [vmem:[%s210 + $0x6e8] sm:$0xff]
        %v493 = vld [vmem:[%s210 + $0x6f0] sm:$0xff]
        %v494 = vld [vmem:[%s210 + $0x6f8] sm:$0xff]
        %v495 = vld [vmem:[%s210 + $0x700] sm:$0xff]
        %v496 = vld [vmem:[%s210 + $0x708] sm:$0xff]
        %v497 = vld [vmem:[%s210 + $0x710] sm:$0xff]
        %v498 = vld [vmem:[%s210 + $0x718] sm:$0xff]
        %v499 = vld [vmem:[%s210 + $0x720] sm:$0xff]
        %v500 = vld [vmem:[%s210 + $0x728] sm:$0xff]
        %v501 = vld [vmem:[%s210 + $0x730] sm:$0xff]
        %v502 = vld [vmem:[%s210 + $0x738] sm:$0xff]
        %v503 = vld [vmem:[%s210 + $0x740] sm:$0xff]
        %v504 = vld [vmem:[%s210 + $0x748] sm:$0xff]
        %v505 = vld [vmem:[%s210 + $0x750] sm:$0xff]
        %v506 = vld [vmem:[%s210 + $0x758] sm:$0xff]
        %v507 = vld [vmem:[%s210 + $0x760] sm:$0xff]
        %v508 = vld [vmem:[%s210 + $0x768] sm:$0xff]
        %v509 = vld [vmem:[%s210 + $0x770] sm:$0xff]
        %v510 = vld [vmem:[%s210 + $0x778] sm:$0xff]
        %v511 = vld [vmem:[%s210 + $0x780] sm:$0xff]
        %v512 = vld [vmem:[%s210 + $0x788] sm:$0xff]
        %v513 = vld [vmem:[%s210 + $0x790] sm:$0xff]
        %v514 = vld [vmem:[%s210 + $0x798] sm:$0xff]
        %v515 = vld [vmem:[%s210 + $0x7a0] sm:$0xff]
        %v516 = vld [vmem:[%s210 + $0x7a8] sm:$0xff]
        %v517 = vld [vmem:[%s210 + $0x7b0] sm:$0xff]
        %v518 = vld [vmem:[%s210 + $0x7b8] sm:$0xff]
        %v519 = vld [vmem:[%s210 + $0x7c0] sm:$0xff]
        %v520 = vld [vmem:[%s210 + $0x7c8] sm:$0xff]
        %v521 = vld [vmem:[%s210 + $0x7d0] sm:$0xff]
        %v522 = vld [vmem:[%s210 + $0x7d8] sm:$0xff]
        %v523 = vld [vmem:[%s210 + $0x7e0] sm:$0xff]
        %v524 = vld [vmem:[%s210 + $0x7e8] sm:$0xff]
        %v525 = vld [vmem:[%s210 + $0x7f0] sm:$0xff]
        %v526 = vld [vmem:[%s210 + $0x7f8] sm:$0xff]
        %v527 = vld [vmem:[%s219] sm:$0x3]
        %v529 = vlaneseq
        %v530 = vshrl.u32 %v529, 7
        %v531 = vsub.s32 0, %v530
        %v532 = vrot.slane %v527, %v531
        %v533 = vlaneseq
        %v534 = vshrl.u32 %v533, 7
        %v535 = vsub.s32 1, %v534
        %v536 = vrot.slane %v527, %v535
        %v541 = vcombine.high %v269, %v269
        %v543 = vunpack.c.l.s4 1966171168
        %v544 = vunpack.c.0.s8 %v543
        %v545 = vlaneseq
        %v546 = vshrl.u32 %v545, 7
        %v547 = vsub.s32 %v544, %v546
        %v548 = vrot.slane %v269, %v547
        %v550 = vunpack.c.l.s4 1966171168
        %v551 = vunpack.c.0.s8 %v550
        %v552 = vlaneseq
        %v553 = vshrl.u32 %v552, 7
        %v554 = vsub.s32 %v551, %v553
        %v555 = vrot.slane %v541, %v554
        %v556 = vcombine.high %v548, %v548
        %v557 = vcombine.high %v555, %v555
        %v559 = vunpack.c.l.s4 1966171168
        %v560 = vunpack.c.0.s8 %v559
        %v561 = vlaneseq
        %v562 = vshrl.u32 %v561, 7
        %v563 = vsub.s32 %v560, %v562
        %v564 = vrot.slane %v548, %v563
        %v566 = vunpack.c.l.s4 1966171168
        %v567 = vunpack.c.0.s8 %v566
        %v568 = vlaneseq
        %v569 = vshrl.u32 %v568, 7
        %v570 = vsub.s32 %v567, %v569
        %v571 = vrot.slane %v555, %v570
        %v573 = vunpack.c.l.s4 1966171168
        %v574 = vunpack.c.0.s8 %v573
        %v575 = vlaneseq
        %v576 = vshrl.u32 %v575, 7
        %v577 = vsub.s32 %v574, %v576
        %v578 = vrot.slane %v556, %v577
        %v580 = vunpack.c.l.s4 1966171168
        %v581 = vunpack.c.0.s8 %v580
        %v582 = vlaneseq
        %v583 = vshrl.u32 %v582, 7
        %v584 = vsub.s32 %v581, %v583
        %v585 = vrot.slane %v557, %v584
        %v586 = vcombine.high %v564, %v564
        %v587 = vcombine.high %v571, %v571
        %v588 = vcombine.high %v578, %v578
        %v589 = vcombine.high %v585, %v585
        %v590 = vcombine.high %v270, %v270
        %v592 = vunpack.c.l.s4 1966171168
        %v593 = vunpack.c.0.s8 %v592
        %v594 = vlaneseq
        %v595 = vshrl.u32 %v594, 7
        %v596 = vsub.s32 %v593, %v595
        %v597 = vrot.slane %v270, %v596
        %v599 = vunpack.c.l.s4 1966171168
        %v600 = vunpack.c.0.s8 %v599
        %v601 = vlaneseq
        %v602 = vshrl.u32 %v601, 7
        %v603 = vsub.s32 %v600, %v602
        %v604 = vrot.slane %v590, %v603
        %v605 = vcombine.high %v597, %v597
        %v606 = vcombine.high %v604, %v604
        %v608 = vunpack.c.l.s4 1966171168
        %v609 = vunpack.c.0.s8 %v608
        %v610 = vlaneseq
        %v611 = vshrl.u32 %v610, 7
        %v612 = vsub.s32 %v609, %v611
        %v613 = vrot.slane %v597, %v612
        %v615 = vunpack.c.l.s4 1966171168
        %v616 = vunpack.c.0.s8 %v615
        %v617 = vlaneseq
        %v618 = vshrl.u32 %v617, 7
        %v619 = vsub.s32 %v616, %v618
        %v620 = vrot.slane %v604, %v619
        %v622 = vunpack.c.l.s4 1966171168
        %v623 = vunpack.c.0.s8 %v622
        %v624 = vlaneseq
        %v625 = vshrl.u32 %v624, 7
        %v626 = vsub.s32 %v623, %v625
        %v627 = vrot.slane %v605, %v626
        %v629 = vunpack.c.l.s4 1966171168
        %v630 = vunpack.c.0.s8 %v629
        %v631 = vlaneseq
        %v632 = vshrl.u32 %v631, 7
        %v633 = vsub.s32 %v630, %v632
        %v634 = vrot.slane %v606, %v633
        %v635 = vcombine.high %v613, %v613
        %v636 = vcombine.high %v620, %v620
        %v637 = vcombine.high %v627, %v627
        %v638 = vcombine.high %v634, %v634
        %v911 = vunpack.c.l.b16 %v271
        %v912 = vunpack.c.h.b16 %v271
        %v913 = vunpack.c.l.b16 %v272
        %v914 = vunpack.c.h.b16 %v272
        %v915 = vunpack.c.l.b16 %v273
        %v916 = vunpack.c.h.b16 %v273
        %v917 = vunpack.c.l.b16 %v274
        %v918 = vunpack.c.h.b16 %v274
        %v919 = vunpack.c.l.b16 %v275
        %v920 = vunpack.c.h.b16 %v275
        %v921 = vunpack.c.l.b16 %v276
        %v922 = vunpack.c.h.b16 %v276
        %v923 = vunpack.c.l.b16 %v277
        %v924 = vunpack.c.h.b16 %v277
        %v925 = vunpack.c.l.b16 %v278
        %v926 = vunpack.c.h.b16 %v278
        %v927 = vunpack.c.l.b16 %v279
        %v928 = vunpack.c.h.b16 %v279
        %v929 = vunpack.c.l.b16 %v280
        %v930 = vunpack.c.h.b16 %v280
        %v931 = vunpack.c.l.b16 %v281
        %v932 = vunpack.c.h.b16 %v281
        %v933 = vunpack.c.l.b16 %v282
        %v934 = vunpack.c.h.b16 %v282
        %v935 = vunpack.c.l.b16 %v283
        %v936 = vunpack.c.h.b16 %v283
        %v937 = vunpack.c.l.b16 %v284
        %v938 = vunpack.c.h.b16 %v284
        %v939 = vunpack.c.l.b16 %v285
        %v940 = vunpack.c.h.b16 %v285
        %v941 = vunpack.c.l.b16 %v286
        %v942 = vunpack.c.h.b16 %v286
        %v943 = vunpack.c.l.b16 %v287
        %v944 = vunpack.c.h.b16 %v287
        %v945 = vunpack.c.l.b16 %v288
        %v946 = vunpack.c.h.b16 %v288
        %v947 = vunpack.c.l.b16 %v289
        %v948 = vunpack.c.h.b16 %v289
        %v949 = vunpack.c.l.b16 %v290
        %v950 = vunpack.c.h.b16 %v290
        %v951 = vunpack.c.l.b16 %v291
        %v952 = vunpack.c.h.b16 %v291
        %v953 = vunpack.c.l.b16 %v292
        %v954 = vunpack.c.h.b16 %v292
        %v955 = vunpack.c.l.b16 %v293
        %v956 = vunpack.c.h.b16 %v293
        %v957 = vunpack.c.l.b16 %v294
        %v958 = vunpack.c.h.b16 %v294
        %v959 = vunpack.c.l.b16 %v295
        %v960 = vunpack.c.h.b16 %v295
        %v961 = vunpack.c.l.b16 %v296
        %v962 = vunpack.c.h.b16 %v296
        %v963 = vunpack.c.l.b16 %v297
        %v964 = vunpack.c.h.b16 %v297
        %v965 = vunpack.c.l.b16 %v298
        %v966 = vunpack.c.h.b16 %v298
        %v967 = vunpack.c.l.b16 %v299
        %v968 = vunpack.c.h.b16 %v299
        %v969 = vunpack.c.l.b16 %v300
        %v970 = vunpack.c.h.b16 %v300
        %v971 = vunpack.c.l.b16 %v301
        %v972 = vunpack.c.h.b16 %v301
        %v973 = vunpack.c.l.b16 %v302
        %v974 = vunpack.c.h.b16 %v302
        %v975 = vunpack.c.l.b16 %v303
        %v976 = vunpack.c.h.b16 %v303
        %v977 = vunpack.c.l.b16 %v304
        %v978 = vunpack.c.h.b16 %v304
        %v979 = vunpack.c.l.b16 %v305
        %v980 = vunpack.c.h.b16 %v305
        %v981 = vunpack.c.l.b16 %v306
        %v982 = vunpack.c.h.b16 %v306
        %v983 = vunpack.c.l.b16 %v307
        %v984 = vunpack.c.h.b16 %v307
        %v985 = vunpack.c.l.b16 %v308
        %v986 = vunpack.c.h.b16 %v308
        %v987 = vunpack.c.l.b16 %v309
        %v988 = vunpack.c.h.b16 %v309
        %v989 = vunpack.c.l.b16 %v310
        %v990 = vunpack.c.h.b16 %v310
        %v991 = vunpack.c.l.b16 %v311
        %v992 = vunpack.c.h.b16 %v311
        %v993 = vunpack.c.l.b16 %v312
        %v994 = vunpack.c.h.b16 %v312
        %v995 = vunpack.c.l.b16 %v313
        %v996 = vunpack.c.h.b16 %v313
        %v997 = vunpack.c.l.b16 %v314
        %v998 = vunpack.c.h.b16 %v314
        %v999 = vunpack.c.l.b16 %v315
        %v1000 = vunpack.c.h.b16 %v315
        %v1001 = vunpack.c.l.b16 %v316
        %v1002 = vunpack.c.h.b16 %v316
        %v1003 = vunpack.c.l.b16 %v317
        %v1004 = vunpack.c.h.b16 %v317
        %v1005 = vunpack.c.l.b16 %v318
        %v1006 = vunpack.c.h.b16 %v318
        %v1007 = vunpack.c.l.b16 %v319
        %v1008 = vunpack.c.h.b16 %v319
        %v1009 = vunpack.c.l.b16 %v320
        %v1010 = vunpack.c.h.b16 %v320
        %v1011 = vunpack.c.l.b16 %v321
        %v1012 = vunpack.c.h.b16 %v321
        %v1013 = vunpack.c.l.b16 %v322
        %v1014 = vunpack.c.h.b16 %v322
        %v1015 = vunpack.c.l.b16 %v323
        %v1016 = vunpack.c.h.b16 %v323
        %v1017 = vunpack.c.l.b16 %v324
        %v1018 = vunpack.c.h.b16 %v324
        %v1019 = vunpack.c.l.b16 %v325
        %v1020 = vunpack.c.h.b16 %v325
        %v1021 = vunpack.c.l.b16 %v326
        %v1022 = vunpack.c.h.b16 %v326
        %v1023 = vunpack.c.l.b16 %v327
        %v1024 = vunpack.c.h.b16 %v327
        %v1025 = vunpack.c.l.b16 %v328
        %v1026 = vunpack.c.h.b16 %v328
        %v1027 = vunpack.c.l.b16 %v329
        %v1028 = vunpack.c.h.b16 %v329
        %v1029 = vunpack.c.l.b16 %v330
        %v1030 = vunpack.c.h.b16 %v330
        %v1031 = vunpack.c.l.b16 %v331
        %v1032 = vunpack.c.h.b16 %v331
        %v1033 = vunpack.c.l.b16 %v332
        %v1034 = vunpack.c.h.b16 %v332
        %v1035 = vunpack.c.l.b16 %v333
        %v1036 = vunpack.c.h.b16 %v333
        %v1037 = vunpack.c.l.b16 %v334
        %v1038 = vunpack.c.h.b16 %v334
        %v1039 = vunpack.c.l.b16 %v335
        %v1040 = vunpack.c.h.b16 %v335
        %v1041 = vunpack.c.l.b16 %v336
        %v1042 = vunpack.c.h.b16 %v336
        %v1043 = vunpack.c.l.b16 %v337
        %v1044 = vunpack.c.h.b16 %v337
        %v1045 = vunpack.c.l.b16 %v338
        %v1046 = vunpack.c.h.b16 %v338
        %v1047 = vunpack.c.l.b16 %v339
        %v1048 = vunpack.c.h.b16 %v339
        %v1049 = vunpack.c.l.b16 %v340
        %v1050 = vunpack.c.h.b16 %v340
        %v1051 = vunpack.c.l.b16 %v341
        %v1052 = vunpack.c.h.b16 %v341
        %v1053 = vunpack.c.l.b16 %v342
        %v1054 = vunpack.c.h.b16 %v342
        %v1055 = vunpack.c.l.b16 %v343
        %v1056 = vunpack.c.h.b16 %v343
        %v1057 = vunpack.c.l.b16 %v344
        %v1058 = vunpack.c.h.b16 %v344
        %v1059 = vunpack.c.l.b16 %v345
        %v1060 = vunpack.c.h.b16 %v345
        %v1061 = vunpack.c.l.b16 %v346
        %v1062 = vunpack.c.h.b16 %v346
        %v1063 = vunpack.c.l.b16 %v347
        %v1064 = vunpack.c.h.b16 %v347
        %v1065 = vunpack.c.l.b16 %v348
        %v1066 = vunpack.c.h.b16 %v348
        %v1067 = vunpack.c.l.b16 %v349
        %v1068 = vunpack.c.h.b16 %v349
        %v1069 = vunpack.c.l.b16 %v350
        %v1070 = vunpack.c.h.b16 %v350
        %v1071 = vunpack.c.l.b16 %v351
        %v1072 = vunpack.c.h.b16 %v351
        %v1073 = vunpack.c.l.b16 %v352
        %v1074 = vunpack.c.h.b16 %v352
        %v1075 = vunpack.c.l.b16 %v353
        %v1076 = vunpack.c.h.b16 %v353
        %v1077 = vunpack.c.l.b16 %v354
        %v1078 = vunpack.c.h.b16 %v354
        %v1079 = vunpack.c.l.b16 %v355
        %v1080 = vunpack.c.h.b16 %v355
        %v1081 = vunpack.c.l.b16 %v356
        %v1082 = vunpack.c.h.b16 %v356
        %v1083 = vunpack.c.l.b16 %v357
        %v1084 = vunpack.c.h.b16 %v357
        %v1085 = vunpack.c.l.b16 %v358
        %v1086 = vunpack.c.h.b16 %v358
        %v1087 = vunpack.c.l.b16 %v359
        %v1088 = vunpack.c.h.b16 %v359
        %v1089 = vunpack.c.l.b16 %v360
        %v1090 = vunpack.c.h.b16 %v360
        %v1091 = vunpack.c.l.b16 %v361
        %v1092 = vunpack.c.h.b16 %v361
        %v1093 = vunpack.c.l.b16 %v362
        %v1094 = vunpack.c.h.b16 %v362
        %v1095 = vunpack.c.l.b16 %v363
        %v1096 = vunpack.c.h.b16 %v363
        %v1097 = vunpack.c.l.b16 %v364
        %v1098 = vunpack.c.h.b16 %v364
        %v1099 = vunpack.c.l.b16 %v365
        %v1100 = vunpack.c.h.b16 %v365
        %v1101 = vunpack.c.l.b16 %v366
        %v1102 = vunpack.c.h.b16 %v366
        %v1103 = vunpack.c.l.b16 %v367
        %v1104 = vunpack.c.h.b16 %v367
        %v1105 = vunpack.c.l.b16 %v368
        %v1106 = vunpack.c.h.b16 %v368
        %v1107 = vunpack.c.l.b16 %v369
        %v1108 = vunpack.c.h.b16 %v369
        %v1109 = vunpack.c.l.b16 %v370
        %v1110 = vunpack.c.h.b16 %v370
        %v1111 = vunpack.c.l.b16 %v371
        %v1112 = vunpack.c.h.b16 %v371
        %v1113 = vunpack.c.l.b16 %v372
        %v1114 = vunpack.c.h.b16 %v372
        %v1115 = vunpack.c.l.b16 %v373
        %v1116 = vunpack.c.h.b16 %v373
        %v1117 = vunpack.c.l.b16 %v374
        %v1118 = vunpack.c.h.b16 %v374
        %v1119 = vunpack.c.l.b16 %v375
        %v1120 = vunpack.c.h.b16 %v375
        %v1121 = vunpack.c.l.b16 %v376
        %v1122 = vunpack.c.h.b16 %v376
        %v1123 = vunpack.c.l.b16 %v377
        %v1124 = vunpack.c.h.b16 %v377
        %v1125 = vunpack.c.l.b16 %v378
        %v1126 = vunpack.c.h.b16 %v378
        %v1127 = vunpack.c.l.b16 %v379
        %v1128 = vunpack.c.h.b16 %v379
        %v1129 = vunpack.c.l.b16 %v380
        %v1130 = vunpack.c.h.b16 %v380
        %v1131 = vunpack.c.l.b16 %v381
        %v1132 = vunpack.c.h.b16 %v381
        %v1133 = vunpack.c.l.b16 %v382
        %v1134 = vunpack.c.h.b16 %v382
        %v1135 = vunpack.c.l.b16 %v383
        %v1136 = vunpack.c.h.b16 %v383
        %v1137 = vunpack.c.l.b16 %v384
        %v1138 = vunpack.c.h.b16 %v384
        %v1139 = vunpack.c.l.b16 %v385
        %v1140 = vunpack.c.h.b16 %v385
        %v1141 = vunpack.c.l.b16 %v386
        %v1142 = vunpack.c.h.b16 %v386
        %v1143 = vunpack.c.l.b16 %v387
        %v1144 = vunpack.c.h.b16 %v387
        %v1145 = vunpack.c.l.b16 %v388
        %v1146 = vunpack.c.h.b16 %v388
        %v1147 = vunpack.c.l.b16 %v389
        %v1148 = vunpack.c.h.b16 %v389
        %v1149 = vunpack.c.l.b16 %v390
        %v1150 = vunpack.c.h.b16 %v390
        %v1151 = vunpack.c.l.b16 %v391
        %v1152 = vunpack.c.h.b16 %v391
        %v1153 = vunpack.c.l.b16 %v392
        %v1154 = vunpack.c.h.b16 %v392
        %v1155 = vunpack.c.l.b16 %v393
        %v1156 = vunpack.c.h.b16 %v393
        %v1157 = vunpack.c.l.b16 %v394
        %v1158 = vunpack.c.h.b16 %v394
        %v1159 = vunpack.c.l.b16 %v395
        %v1160 = vunpack.c.h.b16 %v395
        %v1161 = vunpack.c.l.b16 %v396
        %v1162 = vunpack.c.h.b16 %v396
        %v1163 = vunpack.c.l.b16 %v397
        %v1164 = vunpack.c.h.b16 %v397
        %v1165 = vunpack.c.l.b16 %v398
        %v1166 = vunpack.c.h.b16 %v398
        %v1167 = vunpack.c.l.b16 %v399
        %v1168 = vunpack.c.h.b16 %v399
        %v1169 = vunpack.c.l.b16 %v400
        %v1170 = vunpack.c.h.b16 %v400
        %v1171 = vunpack.c.l.b16 %v401
        %v1172 = vunpack.c.h.b16 %v401
        %v1173 = vunpack.c.l.b16 %v402
        %v1174 = vunpack.c.h.b16 %v402
        %v1175 = vunpack.c.l.b16 %v403
        %v1176 = vunpack.c.h.b16 %v403
        %v1177 = vunpack.c.l.b16 %v404
        %v1178 = vunpack.c.h.b16 %v404
        %v1179 = vunpack.c.l.b16 %v405
        %v1180 = vunpack.c.h.b16 %v405
        %v1181 = vunpack.c.l.b16 %v406
        %v1182 = vunpack.c.h.b16 %v406
        %v1183 = vunpack.c.l.b16 %v407
        %v1184 = vunpack.c.h.b16 %v407
        %v1185 = vunpack.c.l.b16 %v408
        %v1186 = vunpack.c.h.b16 %v408
        %v1187 = vunpack.c.l.b16 %v409
        %v1188 = vunpack.c.h.b16 %v409
        %v1189 = vunpack.c.l.b16 %v410
        %v1190 = vunpack.c.h.b16 %v410
        %v1191 = vunpack.c.l.b16 %v411
        %v1192 = vunpack.c.h.b16 %v411
        %v1193 = vunpack.c.l.b16 %v412
        %v1194 = vunpack.c.h.b16 %v412
        %v1195 = vunpack.c.l.b16 %v413
        %v1196 = vunpack.c.h.b16 %v413
        %v1197 = vunpack.c.l.b16 %v414
        %v1198 = vunpack.c.h.b16 %v414
        %v1199 = vunpack.c.l.b16 %v415
        %v1200 = vunpack.c.h.b16 %v415
        %v1201 = vunpack.c.l.b16 %v416
        %v1202 = vunpack.c.h.b16 %v416
        %v1203 = vunpack.c.l.b16 %v417
        %v1204 = vunpack.c.h.b16 %v417
        %v1205 = vunpack.c.l.b16 %v418
        %v1206 = vunpack.c.h.b16 %v418
        %v1207 = vunpack.c.l.b16 %v419
        %v1208 = vunpack.c.h.b16 %v419
        %v1209 = vunpack.c.l.b16 %v420
        %v1210 = vunpack.c.h.b16 %v420
        %v1211 = vunpack.c.l.b16 %v421
        %v1212 = vunpack.c.h.b16 %v421
        %v1213 = vunpack.c.l.b16 %v422
        %v1214 = vunpack.c.h.b16 %v422
        %v1215 = vunpack.c.l.b16 %v423
        %v1216 = vunpack.c.h.b16 %v423
        %v1217 = vunpack.c.l.b16 %v424
        %v1218 = vunpack.c.h.b16 %v424
        %v1219 = vunpack.c.l.b16 %v425
        %v1220 = vunpack.c.h.b16 %v425
        %v1221 = vunpack.c.l.b16 %v426
        %v1222 = vunpack.c.h.b16 %v426
        %v1223 = vunpack.c.l.b16 %v427
        %v1224 = vunpack.c.h.b16 %v427
        %v1225 = vunpack.c.l.b16 %v428
        %v1226 = vunpack.c.h.b16 %v428
        %v1227 = vunpack.c.l.b16 %v429
        %v1228 = vunpack.c.h.b16 %v429
        %v1229 = vunpack.c.l.b16 %v430
        %v1230 = vunpack.c.h.b16 %v430
        %v1231 = vunpack.c.l.b16 %v431
        %v1232 = vunpack.c.h.b16 %v431
        %v1233 = vunpack.c.l.b16 %v432
        %v1234 = vunpack.c.h.b16 %v432
        %v1235 = vunpack.c.l.b16 %v433
        %v1236 = vunpack.c.h.b16 %v433
        %v1237 = vunpack.c.l.b16 %v434
        %v1238 = vunpack.c.h.b16 %v434
        %v1239 = vunpack.c.l.b16 %v435
        %v1240 = vunpack.c.h.b16 %v435
        %v1241 = vunpack.c.l.b16 %v436
        %v1242 = vunpack.c.h.b16 %v436
        %v1243 = vunpack.c.l.b16 %v437
        %v1244 = vunpack.c.h.b16 %v437
        %v1245 = vunpack.c.l.b16 %v438
        %v1246 = vunpack.c.h.b16 %v438
        %v1247 = vunpack.c.l.b16 %v439
        %v1248 = vunpack.c.h.b16 %v439
        %v1249 = vunpack.c.l.b16 %v440
        %v1250 = vunpack.c.h.b16 %v440
        %v1251 = vunpack.c.l.b16 %v441
        %v1252 = vunpack.c.h.b16 %v441
        %v1253 = vunpack.c.l.b16 %v442
        %v1254 = vunpack.c.h.b16 %v442
        %v1255 = vunpack.c.l.b16 %v443
        %v1256 = vunpack.c.h.b16 %v443
        %v1257 = vunpack.c.l.b16 %v444
        %v1258 = vunpack.c.h.b16 %v444
        %v1259 = vunpack.c.l.b16 %v445
        %v1260 = vunpack.c.h.b16 %v445
        %v1261 = vunpack.c.l.b16 %v446
        %v1262 = vunpack.c.h.b16 %v446
        %v1263 = vunpack.c.l.b16 %v447
        %v1264 = vunpack.c.h.b16 %v447
        %v1265 = vunpack.c.l.b16 %v448
        %v1266 = vunpack.c.h.b16 %v448
        %v1267 = vunpack.c.l.b16 %v449
        %v1268 = vunpack.c.h.b16 %v449
        %v1269 = vunpack.c.l.b16 %v450
        %v1270 = vunpack.c.h.b16 %v450
        %v1271 = vunpack.c.l.b16 %v451
        %v1272 = vunpack.c.h.b16 %v451
        %v1273 = vunpack.c.l.b16 %v452
        %v1274 = vunpack.c.h.b16 %v452
        %v1275 = vunpack.c.l.b16 %v453
        %v1276 = vunpack.c.h.b16 %v453
        %v1277 = vunpack.c.l.b16 %v454
        %v1278 = vunpack.c.h.b16 %v454
        %v1279 = vunpack.c.l.b16 %v455
        %v1280 = vunpack.c.h.b16 %v455
        %v1281 = vunpack.c.l.b16 %v456
        %v1282 = vunpack.c.h.b16 %v456
        %v1283 = vunpack.c.l.b16 %v457
        %v1284 = vunpack.c.h.b16 %v457
        %v1285 = vunpack.c.l.b16 %v458
        %v1286 = vunpack.c.h.b16 %v458
        %v1287 = vunpack.c.l.b16 %v459
        %v1288 = vunpack.c.h.b16 %v459
        %v1289 = vunpack.c.l.b16 %v460
        %v1290 = vunpack.c.h.b16 %v460
        %v1291 = vunpack.c.l.b16 %v461
        %v1292 = vunpack.c.h.b16 %v461
        %v1293 = vunpack.c.l.b16 %v462
        %v1294 = vunpack.c.h.b16 %v462
        %v1295 = vunpack.c.l.b16 %v463
        %v1296 = vunpack.c.h.b16 %v463
        %v1297 = vunpack.c.l.b16 %v464
        %v1298 = vunpack.c.h.b16 %v464
        %v1299 = vunpack.c.l.b16 %v465
        %v1300 = vunpack.c.h.b16 %v465
        %v1301 = vunpack.c.l.b16 %v466
        %v1302 = vunpack.c.h.b16 %v466
        %v1303 = vunpack.c.l.b16 %v467
        %v1304 = vunpack.c.h.b16 %v467
        %v1305 = vunpack.c.l.b16 %v468
        %v1306 = vunpack.c.h.b16 %v468
        %v1307 = vunpack.c.l.b16 %v469
        %v1308 = vunpack.c.h.b16 %v469
        %v1309 = vunpack.c.l.b16 %v470
        %v1310 = vunpack.c.h.b16 %v470
        %v1311 = vunpack.c.l.b16 %v471
        %v1312 = vunpack.c.h.b16 %v471
        %v1313 = vunpack.c.l.b16 %v472
        %v1314 = vunpack.c.h.b16 %v472
        %v1315 = vunpack.c.l.b16 %v473
        %v1316 = vunpack.c.h.b16 %v473
        %v1317 = vunpack.c.l.b16 %v474
        %v1318 = vunpack.c.h.b16 %v474
        %v1319 = vunpack.c.l.b16 %v475
        %v1320 = vunpack.c.h.b16 %v475
        %v1321 = vunpack.c.l.b16 %v476
        %v1322 = vunpack.c.h.b16 %v476
        %v1323 = vunpack.c.l.b16 %v477
        %v1324 = vunpack.c.h.b16 %v477
        %v1325 = vunpack.c.l.b16 %v478
        %v1326 = vunpack.c.h.b16 %v478
        %v1327 = vunpack.c.l.b16 %v479
        %v1328 = vunpack.c.h.b16 %v479
        %v1329 = vunpack.c.l.b16 %v480
        %v1330 = vunpack.c.h.b16 %v480
        %v1331 = vunpack.c.l.b16 %v481
        %v1332 = vunpack.c.h.b16 %v481
        %v1333 = vunpack.c.l.b16 %v482
        %v1334 = vunpack.c.h.b16 %v482
        %v1335 = vunpack.c.l.b16 %v483
        %v1336 = vunpack.c.h.b16 %v483
        %v1337 = vunpack.c.l.b16 %v484
        %v1338 = vunpack.c.h.b16 %v484
        %v1339 = vunpack.c.l.b16 %v485
        %v1340 = vunpack.c.h.b16 %v485
        %v1341 = vunpack.c.l.b16 %v486
        %v1342 = vunpack.c.h.b16 %v486
        %v1343 = vunpack.c.l.b16 %v487
        %v1344 = vunpack.c.h.b16 %v487
        %v1345 = vunpack.c.l.b16 %v488
        %v1346 = vunpack.c.h.b16 %v488
        %v1347 = vunpack.c.l.b16 %v489
        %v1348 = vunpack.c.h.b16 %v489
        %v1349 = vunpack.c.l.b16 %v490
        %v1350 = vunpack.c.h.b16 %v490
        %v1351 = vunpack.c.l.b16 %v491
        %v1352 = vunpack.c.h.b16 %v491
        %v1353 = vunpack.c.l.b16 %v492
        %v1354 = vunpack.c.h.b16 %v492
        %v1355 = vunpack.c.l.b16 %v493
        %v1356 = vunpack.c.h.b16 %v493
        %v1357 = vunpack.c.l.b16 %v494
        %v1358 = vunpack.c.h.b16 %v494
        %v1359 = vunpack.c.l.b16 %v495
        %v1360 = vunpack.c.h.b16 %v495
        %v1361 = vunpack.c.l.b16 %v496
        %v1362 = vunpack.c.h.b16 %v496
        %v1363 = vunpack.c.l.b16 %v497
        %v1364 = vunpack.c.h.b16 %v497
        %v1365 = vunpack.c.l.b16 %v498
        %v1366 = vunpack.c.h.b16 %v498
        %v1367 = vunpack.c.l.b16 %v499
        %v1368 = vunpack.c.h.b16 %v499
        %v1369 = vunpack.c.l.b16 %v500
        %v1370 = vunpack.c.h.b16 %v500
        %v1371 = vunpack.c.l.b16 %v501
        %v1372 = vunpack.c.h.b16 %v501
        %v1373 = vunpack.c.l.b16 %v502
        %v1374 = vunpack.c.h.b16 %v502
        %v1375 = vunpack.c.l.b16 %v503
        %v1376 = vunpack.c.h.b16 %v503
        %v1377 = vunpack.c.l.b16 %v504
        %v1378 = vunpack.c.h.b16 %v504
        %v1379 = vunpack.c.l.b16 %v505
        %v1380 = vunpack.c.h.b16 %v505
        %v1381 = vunpack.c.l.b16 %v506
        %v1382 = vunpack.c.h.b16 %v506
        %v1383 = vunpack.c.l.b16 %v507
        %v1384 = vunpack.c.h.b16 %v507
        %v1385 = vunpack.c.l.b16 %v508
        %v1386 = vunpack.c.h.b16 %v508
        %v1387 = vunpack.c.l.b16 %v509
        %v1388 = vunpack.c.h.b16 %v509
        %v1389 = vunpack.c.l.b16 %v510
        %v1390 = vunpack.c.h.b16 %v510
        %v1391 = vunpack.c.l.b16 %v511
        %v1392 = vunpack.c.h.b16 %v511
        %v1393 = vunpack.c.l.b16 %v512
        %v1394 = vunpack.c.h.b16 %v512
        %v1395 = vunpack.c.l.b16 %v513
        %v1396 = vunpack.c.h.b16 %v513
        %v1397 = vunpack.c.l.b16 %v514
        %v1398 = vunpack.c.h.b16 %v514
        %v1399 = vunpack.c.l.b16 %v515
        %v1400 = vunpack.c.h.b16 %v515
        %v1401 = vunpack.c.l.b16 %v516
        %v1402 = vunpack.c.h.b16 %v516
        %v1403 = vunpack.c.l.b16 %v517
        %v1404 = vunpack.c.h.b16 %v517
        %v1405 = vunpack.c.l.b16 %v518
        %v1406 = vunpack.c.h.b16 %v518
        %v1407 = vunpack.c.l.b16 %v519
        %v1408 = vunpack.c.h.b16 %v519
        %v1409 = vunpack.c.l.b16 %v520
        %v1410 = vunpack.c.h.b16 %v520
        %v1411 = vunpack.c.l.b16 %v521
        %v1412 = vunpack.c.h.b16 %v521
        %v1413 = vunpack.c.l.b16 %v522
        %v1414 = vunpack.c.h.b16 %v522
        %v1415 = vunpack.c.l.b16 %v523
        %v1416 = vunpack.c.h.b16 %v523
        %v1417 = vunpack.c.l.b16 %v524
        %v1418 = vunpack.c.h.b16 %v524
        %v1419 = vunpack.c.l.b16 %v525
        %v1420 = vunpack.c.h.b16 %v525
        %v1421 = vunpack.c.l.b16 %v526
        %v1422 = vunpack.c.h.b16 %v526
        %v1423 = vpack.c.b16 %v913, %v911
        %v1424 = vpack.c.b16 %v914, %v912
        %v1425 = vpack.c.b16 %v917, %v915
        %v1426 = vpack.c.b16 %v918, %v916
        %v1427 = vpack.c.b16 %v921, %v919
        %v1428 = vpack.c.b16 %v922, %v920
        %v1429 = vpack.c.b16 %v925, %v923
        %v1430 = vpack.c.b16 %v926, %v924
        %v1431 = vpack.c.b16 %v929, %v927
        %v1432 = vpack.c.b16 %v930, %v928
        %v1433 = vpack.c.b16 %v933, %v931
        %v1434 = vpack.c.b16 %v934, %v932
        %v1435 = vpack.c.b16 %v937, %v935
        %v1436 = vpack.c.b16 %v938, %v936
        %v1437 = vpack.c.b16 %v941, %v939
        %v1438 = vpack.c.b16 %v942, %v940
        %v1439 = vpack.c.b16 %v945, %v943
        %v1440 = vpack.c.b16 %v946, %v944
        %v1441 = vpack.c.b16 %v949, %v947
        %v1442 = vpack.c.b16 %v950, %v948
        %v1443 = vpack.c.b16 %v953, %v951
        %v1444 = vpack.c.b16 %v954, %v952
        %v1445 = vpack.c.b16 %v957, %v955
        %v1446 = vpack.c.b16 %v958, %v956
        %v1447 = vpack.c.b16 %v961, %v959
        %v1448 = vpack.c.b16 %v962, %v960
        %v1449 = vpack.c.b16 %v965, %v963
        %v1450 = vpack.c.b16 %v966, %v964
        %v1451 = vpack.c.b16 %v969, %v967
        %v1452 = vpack.c.b16 %v970, %v968
        %v1453 = vpack.c.b16 %v973, %v971
        %v1454 = vpack.c.b16 %v974, %v972
        %v1455 = vpack.c.b16 %v977, %v975
        %v1456 = vpack.c.b16 %v978, %v976
        %v1457 = vpack.c.b16 %v981, %v979
        %v1458 = vpack.c.b16 %v982, %v980
        %v1459 = vpack.c.b16 %v985, %v983
        %v1460 = vpack.c.b16 %v986, %v984
        %v1461 = vpack.c.b16 %v989, %v987
        %v1462 = vpack.c.b16 %v990, %v988
        %v1463 = vpack.c.b16 %v993, %v991
        %v1464 = vpack.c.b16 %v994, %v992
        %v1465 = vpack.c.b16 %v997, %v995
        %v1466 = vpack.c.b16 %v998, %v996
        %v1467 = vpack.c.b16 %v1001, %v999
        %v1468 = vpack.c.b16 %v1002, %v1000
        %v1469 = vpack.c.b16 %v1005, %v1003
        %v1470 = vpack.c.b16 %v1006, %v1004
        %v1471 = vpack.c.b16 %v1009, %v1007
        %v1472 = vpack.c.b16 %v1010, %v1008
        %v1473 = vpack.c.b16 %v1013, %v1011
        %v1474 = vpack.c.b16 %v1014, %v1012
        %v1475 = vpack.c.b16 %v1017, %v1015
        %v1476 = vpack.c.b16 %v1018, %v1016
        %v1477 = vpack.c.b16 %v1021, %v1019
        %v1478 = vpack.c.b16 %v1022, %v1020
        %v1479 = vpack.c.b16 %v1025, %v1023
        %v1480 = vpack.c.b16 %v1026, %v1024
        %v1481 = vpack.c.b16 %v1029, %v1027
        %v1482 = vpack.c.b16 %v1030, %v1028
        %v1483 = vpack.c.b16 %v1033, %v1031
        %v1484 = vpack.c.b16 %v1034, %v1032
        %v1485 = vpack.c.b16 %v1037, %v1035
        %v1486 = vpack.c.b16 %v1038, %v1036
        %v1487 = vpack.c.b16 %v1041, %v1039
        %v1488 = vpack.c.b16 %v1042, %v1040
        %v1489 = vpack.c.b16 %v1045, %v1043
        %v1490 = vpack.c.b16 %v1046, %v1044
        %v1491 = vpack.c.b16 %v1049, %v1047
        %v1492 = vpack.c.b16 %v1050, %v1048
        %v1493 = vpack.c.b16 %v1053, %v1051
        %v1494 = vpack.c.b16 %v1054, %v1052
        %v1495 = vpack.c.b16 %v1057, %v1055
        %v1496 = vpack.c.b16 %v1058, %v1056
        %v1497 = vpack.c.b16 %v1061, %v1059
        %v1498 = vpack.c.b16 %v1062, %v1060
        %v1499 = vpack.c.b16 %v1065, %v1063
        %v1500 = vpack.c.b16 %v1066, %v1064
        %v1501 = vpack.c.b16 %v1069, %v1067
        %v1502 = vpack.c.b16 %v1070, %v1068
        %v1503 = vpack.c.b16 %v1073, %v1071
        %v1504 = vpack.c.b16 %v1074, %v1072
        %v1505 = vpack.c.b16 %v1077, %v1075
        %v1506 = vpack.c.b16 %v1078, %v1076
        %v1507 = vpack.c.b16 %v1081, %v1079
        %v1508 = vpack.c.b16 %v1082, %v1080
        %v1509 = vpack.c.b16 %v1085, %v1083
        %v1510 = vpack.c.b16 %v1086, %v1084
        %v1511 = vpack.c.b16 %v1089, %v1087
        %v1512 = vpack.c.b16 %v1090, %v1088
        %v1513 = vpack.c.b16 %v1093, %v1091
        %v1514 = vpack.c.b16 %v1094, %v1092
        %v1515 = vpack.c.b16 %v1097, %v1095
        %v1516 = vpack.c.b16 %v1098, %v1096
        %v1517 = vpack.c.b16 %v1101, %v1099
        %v1518 = vpack.c.b16 %v1102, %v1100
        %v1519 = vpack.c.b16 %v1105, %v1103
        %v1520 = vpack.c.b16 %v1106, %v1104
        %v1521 = vpack.c.b16 %v1109, %v1107
        %v1522 = vpack.c.b16 %v1110, %v1108
        %v1523 = vpack.c.b16 %v1113, %v1111
        %v1524 = vpack.c.b16 %v1114, %v1112
        %v1525 = vpack.c.b16 %v1117, %v1115
        %v1526 = vpack.c.b16 %v1118, %v1116
        %v1527 = vpack.c.b16 %v1121, %v1119
        %v1528 = vpack.c.b16 %v1122, %v1120
        %v1529 = vpack.c.b16 %v1125, %v1123
        %v1530 = vpack.c.b16 %v1126, %v1124
        %v1531 = vpack.c.b16 %v1129, %v1127
        %v1532 = vpack.c.b16 %v1130, %v1128
        %v1533 = vpack.c.b16 %v1133, %v1131
        %v1534 = vpack.c.b16 %v1134, %v1132
        %v1535 = vpack.c.b16 %v1137, %v1135
        %v1536 = vpack.c.b16 %v1138, %v1136
        %v1537 = vpack.c.b16 %v1141, %v1139
        %v1538 = vpack.c.b16 %v1142, %v1140
        %v1539 = vpack.c.b16 %v1145, %v1143
        %v1540 = vpack.c.b16 %v1146, %v1144
        %v1541 = vpack.c.b16 %v1149, %v1147
        %v1542 = vpack.c.b16 %v1150, %v1148
        %v1543 = vpack.c.b16 %v1153, %v1151
        %v1544 = vpack.c.b16 %v1154, %v1152
        %v1545 = vpack.c.b16 %v1157, %v1155
        %v1546 = vpack.c.b16 %v1158, %v1156
        %v1547 = vpack.c.b16 %v1161, %v1159
        %v1548 = vpack.c.b16 %v1162, %v1160
        %v1549 = vpack.c.b16 %v1165, %v1163
        %v1550 = vpack.c.b16 %v1166, %v1164
        %v1551 = vpack.c.b16 %v1169, %v1167
        %v1552 = vpack.c.b16 %v1170, %v1168
        %v1553 = vpack.c.b16 %v1173, %v1171
        %v1554 = vpack.c.b16 %v1174, %v1172
        %v1555 = vpack.c.b16 %v1177, %v1175
        %v1556 = vpack.c.b16 %v1178, %v1176
        %v1557 = vpack.c.b16 %v1181, %v1179
        %v1558 = vpack.c.b16 %v1182, %v1180
        %v1559 = vpack.c.b16 %v1185, %v1183
        %v1560 = vpack.c.b16 %v1186, %v1184
        %v1561 = vpack.c.b16 %v1189, %v1187
        %v1562 = vpack.c.b16 %v1190, %v1188
        %v1563 = vpack.c.b16 %v1193, %v1191
        %v1564 = vpack.c.b16 %v1194, %v1192
        %v1565 = vpack.c.b16 %v1197, %v1195
        %v1566 = vpack.c.b16 %v1198, %v1196
        %v1567 = vpack.c.b16 %v1201, %v1199
        %v1568 = vpack.c.b16 %v1202, %v1200
        %v1569 = vpack.c.b16 %v1205, %v1203
        %v1570 = vpack.c.b16 %v1206, %v1204
        %v1571 = vpack.c.b16 %v1209, %v1207
        %v1572 = vpack.c.b16 %v1210, %v1208
        %v1573 = vpack.c.b16 %v1213, %v1211
        %v1574 = vpack.c.b16 %v1214, %v1212
        %v1575 = vpack.c.b16 %v1217, %v1215
        %v1576 = vpack.c.b16 %v1218, %v1216
        %v1577 = vpack.c.b16 %v1221, %v1219
        %v1578 = vpack.c.b16 %v1222, %v1220
        %v1579 = vpack.c.b16 %v1225, %v1223
        %v1580 = vpack.c.b16 %v1226, %v1224
        %v1581 = vpack.c.b16 %v1229, %v1227
        %v1582 = vpack.c.b16 %v1230, %v1228
        %v1583 = vpack.c.b16 %v1233, %v1231
        %v1584 = vpack.c.b16 %v1234, %v1232
        %v1585 = vpack.c.b16 %v1237, %v1235
        %v1586 = vpack.c.b16 %v1238, %v1236
        %v1587 = vpack.c.b16 %v1241, %v1239
        %v1588 = vpack.c.b16 %v1242, %v1240
        %v1589 = vpack.c.b16 %v1245, %v1243
        %v1590 = vpack.c.b16 %v1246, %v1244
        %v1591 = vpack.c.b16 %v1249, %v1247
        %v1592 = vpack.c.b16 %v1250, %v1248
        %v1593 = vpack.c.b16 %v1253, %v1251
        %v1594 = vpack.c.b16 %v1254, %v1252
        %v1595 = vpack.c.b16 %v1257, %v1255
        %v1596 = vpack.c.b16 %v1258, %v1256
        %v1597 = vpack.c.b16 %v1261, %v1259
        %v1598 = vpack.c.b16 %v1262, %v1260
        %v1599 = vpack.c.b16 %v1265, %v1263
        %v1600 = vpack.c.b16 %v1266, %v1264
        %v1601 = vpack.c.b16 %v1269, %v1267
        %v1602 = vpack.c.b16 %v1270, %v1268
        %v1603 = vpack.c.b16 %v1273, %v1271
        %v1604 = vpack.c.b16 %v1274, %v1272
        %v1605 = vpack.c.b16 %v1277, %v1275
        %v1606 = vpack.c.b16 %v1278, %v1276
        %v1607 = vpack.c.b16 %v1281, %v1279
        %v1608 = vpack.c.b16 %v1282, %v1280
        %v1609 = vpack.c.b16 %v1285, %v1283
        %v1610 = vpack.c.b16 %v1286, %v1284
        %v1611 = vpack.c.b16 %v1289, %v1287
        %v1612 = vpack.c.b16 %v1290, %v1288
        %v1613 = vpack.c.b16 %v1293, %v1291
        %v1614 = vpack.c.b16 %v1294, %v1292
        %v1615 = vpack.c.b16 %v1297, %v1295
        %v1616 = vpack.c.b16 %v1298, %v1296
        %v1617 = vpack.c.b16 %v1301, %v1299
        %v1618 = vpack.c.b16 %v1302, %v1300
        %v1619 = vpack.c.b16 %v1305, %v1303
        %v1620 = vpack.c.b16 %v1306, %v1304
        %v1621 = vpack.c.b16 %v1309, %v1307
        %v1622 = vpack.c.b16 %v1310, %v1308
        %v1623 = vpack.c.b16 %v1313, %v1311
        %v1624 = vpack.c.b16 %v1314, %v1312
        %v1625 = vpack.c.b16 %v1317, %v1315
        %v1626 = vpack.c.b16 %v1318, %v1316
        %v1627 = vpack.c.b16 %v1321, %v1319
        %v1628 = vpack.c.b16 %v1322, %v1320
        %v1629 = vpack.c.b16 %v1325, %v1323
        %v1630 = vpack.c.b16 %v1326, %v1324
        %v1631 = vpack.c.b16 %v1329, %v1327
        %v1632 = vpack.c.b16 %v1330, %v1328
        %v1633 = vpack.c.b16 %v1333, %v1331
        %v1634 = vpack.c.b16 %v1334, %v1332
        %v1635 = vpack.c.b16 %v1337, %v1335
        %v1636 = vpack.c.b16 %v1338, %v1336
        %v1637 = vpack.c.b16 %v1341, %v1339
        %v1638 = vpack.c.b16 %v1342, %v1340
        %v1639 = vpack.c.b16 %v1345, %v1343
        %v1640 = vpack.c.b16 %v1346, %v1344
        %v1641 = vpack.c.b16 %v1349, %v1347
        %v1642 = vpack.c.b16 %v1350, %v1348
        %v1643 = vpack.c.b16 %v1353, %v1351
        %v1644 = vpack.c.b16 %v1354, %v1352
        %v1645 = vpack.c.b16 %v1357, %v1355
        %v1646 = vpack.c.b16 %v1358, %v1356
        %v1647 = vpack.c.b16 %v1361, %v1359
        %v1648 = vpack.c.b16 %v1362, %v1360
        %v1649 = vpack.c.b16 %v1365, %v1363
        %v1650 = vpack.c.b16 %v1366, %v1364
        %v1651 = vpack.c.b16 %v1369, %v1367
        %v1652 = vpack.c.b16 %v1370, %v1368
        %v1653 = vpack.c.b16 %v1373, %v1371
        %v1654 = vpack.c.b16 %v1374, %v1372
        %v1655 = vpack.c.b16 %v1377, %v1375
        %v1656 = vpack.c.b16 %v1378, %v1376
        %v1657 = vpack.c.b16 %v1381, %v1379
        %v1658 = vpack.c.b16 %v1382, %v1380
        %v1659 = vpack.c.b16 %v1385, %v1383
        %v1660 = vpack.c.b16 %v1386, %v1384
        %v1661 = vpack.c.b16 %v1389, %v1387
        %v1662 = vpack.c.b16 %v1390, %v1388
        %v1663 = vpack.c.b16 %v1393, %v1391
        %v1664 = vpack.c.b16 %v1394, %v1392
        %v1665 = vpack.c.b16 %v1397, %v1395
        %v1666 = vpack.c.b16 %v1398, %v1396
        %v1667 = vpack.c.b16 %v1401, %v1399
        %v1668 = vpack.c.b16 %v1402, %v1400
        %v1669 = vpack.c.b16 %v1405, %v1403
        %v1670 = vpack.c.b16 %v1406, %v1404
        %v1671 = vpack.c.b16 %v1409, %v1407
        %v1672 = vpack.c.b16 %v1410, %v1408
        %v1673 = vpack.c.b16 %v1413, %v1411
        %v1674 = vpack.c.b16 %v1414, %v1412
        %v1675 = vpack.c.b16 %v1417, %v1415
        %v1676 = vpack.c.b16 %v1418, %v1416
        %v1677 = vpack.c.b16 %v1421, %v1419
        %v1678 = vpack.c.b16 %v1422, %v1420
        %1935 = vmatprep.subr.bf16.mxu0 %v1424
        %1936 = vmatpush1.bf16.msra.mxu0 %v1423
        %1937 = vmatprep.subr.bf16.mxu0 %v1426
        %1938 = vmatpush1.bf16.msra.mxu0 %v1425
        %1939 = vmatprep.subr.bf16.mxu0 %v1428
        %1940 = vmatpush1.bf16.msra.mxu0 %v1427
        %1941 = vmatprep.subr.bf16.mxu0 %v1430
        %1942 = vmatpush1.bf16.msra.mxu0 %v1429
        %1943 = vmatprep.subr.bf16.mxu0 %v1432
        %1944 = vmatpush1.bf16.msra.mxu0 %v1431
        %1945 = vmatprep.subr.bf16.mxu0 %v1434
        %1946 = vmatpush1.bf16.msra.mxu0 %v1433
        %1947 = vmatprep.subr.bf16.mxu0 %v1436
        %1948 = vmatpush1.bf16.msra.mxu0 %v1435
        %1949 = vmatprep.subr.bf16.mxu0 %v1438
        %1950 = vmatpush1.bf16.msra.mxu0 %v1437
        %1951 = vmatprep.subr.bf16.mxu0 %v1440
        %1952 = vmatpush1.bf16.msra.mxu0 %v1439
        %1953 = vmatprep.subr.bf16.mxu0 %v1442
        %1954 = vmatpush1.bf16.msra.mxu0 %v1441
        %1955 = vmatprep.subr.bf16.mxu0 %v1444
        %1956 = vmatpush1.bf16.msra.mxu0 %v1443
        %1957 = vmatprep.subr.bf16.mxu0 %v1446
        %1958 = vmatpush1.bf16.msra.mxu0 %v1445
        %1959 = vmatprep.subr.bf16.mxu0 %v1448
        %1960 = vmatpush1.bf16.msra.mxu0 %v1447
        %1961 = vmatprep.subr.bf16.mxu0 %v1450
        %1962 = vmatpush1.bf16.msra.mxu0 %v1449
        %1963 = vmatprep.subr.bf16.mxu0 %v1452
        %1964 = vmatpush1.bf16.msra.mxu0 %v1451
        %1965 = vmatprep.subr.bf16.mxu0 %v1454
        %1966 = vmatpush1.bf16.msra.mxu0 %v1453
        %1967 = vmatprep.mubr.bf16.mxu0 %v578
        %1968 = vmatmul.mubr.bf16.gmra.mrb[0].mxu0 %v564
        %v1969 = vpop.f32.mrb[0].mxu0
        %v1970 = vadd.f32 %v532, %v1969
        %v1971 = vpop.f32.mrb[0].mxu0
        %v1972 = vadd.f32 %v536, %v1971
        %v1973 = vpop.f32.mrb[0].mxu0
        %v1974 = vpop.f32.mrb[0].mxu0
        %1975 = vdwg.mxu0
        %1976 = vmatprep.subr.bf16.mxu0 %v1456
        %1977 = vmatpush1.bf16.msra.mxu0 %v1455
        %1978 = vmatprep.subr.bf16.mxu0 %v1458
        %1979 = vmatpush1.bf16.msra.mxu0 %v1457
        %1980 = vmatprep.subr.bf16.mxu0 %v1460
        %1981 = vmatpush1.bf16.msra.mxu0 %v1459
        %1982 = vmatprep.subr.bf16.mxu0 %v1462
        %1983 = vmatpush1.bf16.msra.mxu0 %v1461
        %1984 = vmatprep.subr.bf16.mxu0 %v1464
        %1985 = vmatpush1.bf16.msra.mxu0 %v1463
        %1986 = vmatprep.subr.bf16.mxu0 %v1466
        %1987 = vmatpush1.bf16.msra.mxu0 %v1465
        %1988 = vmatprep.subr.bf16.mxu0 %v1468
        %1989 = vmatpush1.bf16.msra.mxu0 %v1467
        %1990 = vmatprep.subr.bf16.mxu0 %v1470
        %1991 = vmatpush1.bf16.msra.mxu0 %v1469
        %1992 = vmatprep.subr.bf16.mxu0 %v1472
        %1993 = vmatpush1.bf16.msra.mxu0 %v1471
        %1994 = vmatprep.subr.bf16.mxu0 %v1474
        %1995 = vmatpush1.bf16.msra.mxu0 %v1473
        %1996 = vmatprep.subr.bf16.mxu0 %v1476
        %1997 = vmatpush1.bf16.msra.mxu0 %v1475
        %1998 = vmatprep.subr.bf16.mxu0 %v1478
        %1999 = vmatpush1.bf16.msra.mxu0 %v1477
        %2000 = vmatprep.subr.bf16.mxu0 %v1480
        %2001 = vmatpush1.bf16.msra.mxu0 %v1479
        %2002 = vmatprep.subr.bf16.mxu0 %v1482
        %2003 = vmatpush1.bf16.msra.mxu0 %v1481
        %2004 = vmatprep.subr.bf16.mxu0 %v1484
        %2005 = vmatpush1.bf16.msra.mxu0 %v1483
        %2006 = vmatprep.subr.bf16.mxu0 %v1486
        %2007 = vmatpush1.bf16.msra.mxu0 %v1485
        %2008 = vmatprep.mubr.bf16.mxu0 %v588
        %2009 = vmatmul.mubr.bf16.gmra.mrb[0].mxu0 %v586
        %v2010 = vpop.f32.mrb[0].mxu0
        %v2011 = vadd.f32 %v1970, %v2010
        %v2012 = vpop.f32.mrb[0].mxu0
        %v2013 = vadd.f32 %v1972, %v2012
        %v2014 = vpop.f32.mrb[0].mxu0
        %v2015 = vpop.f32.mrb[0].mxu0
        %2016 = vdwg.mxu0
        %2017 = vmatprep.subr.bf16.mxu0 %v1488
        %2018 = vmatpush1.bf16.msra.mxu0 %v1487
        %2019 = vmatprep.subr.bf16.mxu0 %v1490
        %2020 = vmatpush1.bf16.msra.mxu0 %v1489
        %2021 = vmatprep.subr.bf16.mxu0 %v1492
        %2022 = vmatpush1.bf16.msra.mxu0 %v1491
        %2023 = vmatprep.subr.bf16.mxu0 %v1494
        %2024 = vmatpush1.bf16.msra.mxu0 %v1493
        %2025 = vmatprep.subr.bf16.mxu0 %v1496
        %2026 = vmatpush1.bf16.msra.mxu0 %v1495
        %2027 = vmatprep.subr.bf16.mxu0 %v1498
        %2028 = vmatpush1.bf16.msra.mxu0 %v1497
        %2029 = vmatprep.subr.bf16.mxu0 %v1500
        %2030 = vmatpush1.bf16.msra.mxu0 %v1499
        %2031 = vmatprep.subr.bf16.mxu0 %v1502
        %2032 = vmatpush1.bf16.msra.mxu0 %v1501
        %2033 = vmatprep.subr.bf16.mxu0 %v1504
        %2034 = vmatpush1.bf16.msra.mxu0 %v1503
        %2035 = vmatprep.subr.bf16.mxu0 %v1506
        %2036 = vmatpush1.bf16.msra.mxu0 %v1505
        %2037 = vmatprep.subr.bf16.mxu0 %v1508
        %2038 = vmatpush1.bf16.msra.mxu0 %v1507
        %2039 = vmatprep.subr.bf16.mxu0 %v1510
        %2040 = vmatpush1.bf16.msra.mxu0 %v1509
        %2041 = vmatprep.subr.bf16.mxu0 %v1512
        %2042 = vmatpush1.bf16.msra.mxu0 %v1511
        %2043 = vmatprep.subr.bf16.mxu0 %v1514
        %2044 = vmatpush1.bf16.msra.mxu0 %v1513
        %2045 = vmatprep.subr.bf16.mxu0 %v1516
        %2046 = vmatpush1.bf16.msra.mxu0 %v1515
        %2047 = vmatprep.subr.bf16.mxu0 %v1518
        %2048 = vmatpush1.bf16.msra.mxu0 %v1517
        %2049 = vmatprep.mubr.bf16.mxu0 %v585
        %2050 = vmatmul.mubr.bf16.gmra.mrb[0].mxu0 %v571
        %v2051 = vpop.f32.mrb[0].mxu0
        %v2052 = vadd.f32 %v2011, %v2051
        %v2053 = vpop.f32.mrb[0].mxu0
        %v2054 = vadd.f32 %v2013, %v2053
        %v2055 = vpop.f32.mrb[0].mxu0
        %v2056 = vpop.f32.mrb[0].mxu0
        %2057 = vdwg.mxu0
        %2058 = vmatprep.subr.bf16.mxu0 %v1520
        %2059 = vmatpush1.bf16.msra.mxu0 %v1519
        %2060 = vmatprep.subr.bf16.mxu0 %v1522
        %2061 = vmatpush1.bf16.msra.mxu0 %v1521
        %2062 = vmatprep.subr.bf16.mxu0 %v1524
        %2063 = vmatpush1.bf16.msra.mxu0 %v1523
        %2064 = vmatprep.subr.bf16.mxu0 %v1526
        %2065 = vmatpush1.bf16.msra.mxu0 %v1525
        %2066 = vmatprep.subr.bf16.mxu0 %v1528
        %2067 = vmatpush1.bf16.msra.mxu0 %v1527
        %2068 = vmatprep.subr.bf16.mxu0 %v1530
        %2069 = vmatpush1.bf16.msra.mxu0 %v1529
        %2070 = vmatprep.subr.bf16.mxu0 %v1532
        %2071 = vmatpush1.bf16.msra.mxu0 %v1531
        %2072 = vmatprep.subr.bf16.mxu0 %v1534
        %2073 = vmatpush1.bf16.msra.mxu0 %v1533
        %2074 = vmatprep.subr.bf16.mxu0 %v1536
        %2075 = vmatpush1.bf16.msra.mxu0 %v1535
        %2076 = vmatprep.subr.bf16.mxu0 %v1538
        %2077 = vmatpush1.bf16.msra.mxu0 %v1537
        %2078 = vmatprep.subr.bf16.mxu0 %v1540
        %2079 = vmatpush1.bf16.msra.mxu0 %v1539
        %2080 = vmatprep.subr.bf16.mxu0 %v1542
        %2081 = vmatpush1.bf16.msra.mxu0 %v1541
        %2082 = vmatprep.subr.bf16.mxu0 %v1544
        %2083 = vmatpush1.bf16.msra.mxu0 %v1543
        %2084 = vmatprep.subr.bf16.mxu0 %v1546
        %2085 = vmatpush1.bf16.msra.mxu0 %v1545
        %2086 = vmatprep.subr.bf16.mxu0 %v1548
        %2087 = vmatpush1.bf16.msra.mxu0 %v1547
        %2088 = vmatprep.subr.bf16.mxu0 %v1550
        %2089 = vmatpush1.bf16.msra.mxu0 %v1549
        %2090 = vmatprep.mubr.bf16.mxu0 %v589
        %2091 = vmatmul.mubr.bf16.gmra.mrb[0].mxu0 %v587
        %v2092 = vpop.f32.mrb[0].mxu0
        %v2093 = vadd.f32 %v2052, %v2092
        %v2094 = vpop.f32.mrb[0].mxu0
        %v2095 = vadd.f32 %v2054, %v2094
        %v2096 = vpop.f32.mrb[0].mxu0
        %v2097 = vpop.f32.mrb[0].mxu0
        %2098 = vdwg.mxu0
        %2099 = vmatprep.subr.bf16.mxu0 %v1552
        %2100 = vmatpush1.bf16.msra.mxu0 %v1551
        %2101 = vmatprep.subr.bf16.mxu0 %v1554
        %2102 = vmatpush1.bf16.msra.mxu0 %v1553
        %2103 = vmatprep.subr.bf16.mxu0 %v1556
        %2104 = vmatpush1.bf16.msra.mxu0 %v1555
        %2105 = vmatprep.subr.bf16.mxu0 %v1558
        %2106 = vmatpush1.bf16.msra.mxu0 %v1557
        %2107 = vmatprep.subr.bf16.mxu0 %v1560
        %2108 = vmatpush1.bf16.msra.mxu0 %v1559
        %2109 = vmatprep.subr.bf16.mxu0 %v1562
        %2110 = vmatpush1.bf16.msra.mxu0 %v1561
        %2111 = vmatprep.subr.bf16.mxu0 %v1564
        %2112 = vmatpush1.bf16.msra.mxu0 %v1563
        %2113 = vmatprep.subr.bf16.mxu0 %v1566
        %2114 = vmatpush1.bf16.msra.mxu0 %v1565
        %2115 = vmatprep.subr.bf16.mxu0 %v1568
        %2116 = vmatpush1.bf16.msra.mxu0 %v1567
        %2117 = vmatprep.subr.bf16.mxu0 %v1570
        %2118 = vmatpush1.bf16.msra.mxu0 %v1569
        %2119 = vmatprep.subr.bf16.mxu0 %v1572
        %2120 = vmatpush1.bf16.msra.mxu0 %v1571
        %2121 = vmatprep.subr.bf16.mxu0 %v1574
        %2122 = vmatpush1.bf16.msra.mxu0 %v1573
        %2123 = vmatprep.subr.bf16.mxu0 %v1576
        %2124 = vmatpush1.bf16.msra.mxu0 %v1575
        %2125 = vmatprep.subr.bf16.mxu0 %v1578
        %2126 = vmatpush1.bf16.msra.mxu0 %v1577
        %2127 = vmatprep.subr.bf16.mxu0 %v1580
        %2128 = vmatpush1.bf16.msra.mxu0 %v1579
        %2129 = vmatprep.subr.bf16.mxu0 %v1582
        %2130 = vmatpush1.bf16.msra.mxu0 %v1581
        %2131 = vmatprep.mubr.bf16.mxu0 %v627
        %2132 = vmatmul.mubr.bf16.gmra.mrb[0].mxu0 %v613
        %v2133 = vpop.f32.mrb[0].mxu0
        %v2134 = vadd.f32 %v2093, %v2133
        %v2135 = vpop.f32.mrb[0].mxu0
        %v2136 = vadd.f32 %v2095, %v2135
        %v2137 = vpop.f32.mrb[0].mxu0
        %v2138 = vpop.f32.mrb[0].mxu0
        %2139 = vdwg.mxu0
        %2140 = vmatprep.subr.bf16.mxu0 %v1584
        %2141 = vmatpush1.bf16.msra.mxu0 %v1583
        %2142 = vmatprep.subr.bf16.mxu0 %v1586
        %2143 = vmatpush1.bf16.msra.mxu0 %v1585
        %2144 = vmatprep.subr.bf16.mxu0 %v1588
        %2145 = vmatpush1.bf16.msra.mxu0 %v1587
        %2146 = vmatprep.subr.bf16.mxu0 %v1590
        %2147 = vmatpush1.bf16.msra.mxu0 %v1589
        %2148 = vmatprep.subr.bf16.mxu0 %v1592
        %2149 = vmatpush1.bf16.msra.mxu0 %v1591
        %2150 = vmatprep.subr.bf16.mxu0 %v1594
        %2151 = vmatpush1.bf16.msra.mxu0 %v1593
        %2152 = vmatprep.subr.bf16.mxu0 %v1596
        %2153 = vmatpush1.bf16.msra.mxu0 %v1595
        %2154 = vmatprep.subr.bf16.mxu0 %v1598
        %2155 = vmatpush1.bf16.msra.mxu0 %v1597
        %2156 = vmatprep.subr.bf16.mxu0 %v1600
        %2157 = vmatpush1.bf16.msra.mxu0 %v1599
        %2158 = vmatprep.subr.bf16.mxu0 %v1602
        %2159 = vmatpush1.bf16.msra.mxu0 %v1601
        %2160 = vmatprep.subr.bf16.mxu0 %v1604
        %2161 = vmatpush1.bf16.msra.mxu0 %v1603
        %2162 = vmatprep.subr.bf16.mxu0 %v1606
        %2163 = vmatpush1.bf16.msra.mxu0 %v1605
        %2164 = vmatprep.subr.bf16.mxu0 %v1608
        %2165 = vmatpush1.bf16.msra.mxu0 %v1607
        %2166 = vmatprep.subr.bf16.mxu0 %v1610
        %2167 = vmatpush1.bf16.msra.mxu0 %v1609
        %2168 = vmatprep.subr.bf16.mxu0 %v1612
        %2169 = vmatpush1.bf16.msra.mxu0 %v1611
        %2170 = vmatprep.subr.bf16.mxu0 %v1614
        %2171 = vmatpush1.bf16.msra.mxu0 %v1613
        %2172 = vmatprep.mubr.bf16.mxu0 %v637
        %2173 = vmatmul.mubr.bf16.gmra.mrb[0].mxu0 %v635
        %v2174 = vpop.f32.mrb[0].mxu0
        %v2175 = vadd.f32 %v2134, %v2174
        %v2176 = vpop.f32.mrb[0].mxu0
        %v2177 = vadd.f32 %v2136, %v2176
        %v2178 = vpop.f32.mrb[0].mxu0
        %v2179 = vpop.f32.mrb[0].mxu0
        %2180 = vdwg.mxu0
        %2181 = vmatprep.subr.bf16.mxu0 %v1616
        %2182 = vmatpush1.bf16.msra.mxu0 %v1615
        %2183 = vmatprep.subr.bf16.mxu0 %v1618
        %2184 = vmatpush1.bf16.msra.mxu0 %v1617
        %2185 = vmatprep.subr.bf16.mxu0 %v1620
        %2186 = vmatpush1.bf16.msra.mxu0 %v1619
        %2187 = vmatprep.subr.bf16.mxu0 %v1622
        %2188 = vmatpush1.bf16.msra.mxu0 %v1621
        %2189 = vmatprep.subr.bf16.mxu0 %v1624
        %2190 = vmatpush1.bf16.msra.mxu0 %v1623
        %2191 = vmatprep.subr.bf16.mxu0 %v1626
        %2192 = vmatpush1.bf16.msra.mxu0 %v1625
        %2193 = vmatprep.subr.bf16.mxu0 %v1628
        %2194 = vmatpush1.bf16.msra.mxu0 %v1627
        %2195 = vmatprep.subr.bf16.mxu0 %v1630
        %2196 = vmatpush1.bf16.msra.mxu0 %v1629
        %2197 = vmatprep.subr.bf16.mxu0 %v1632
        %2198 = vmatpush1.bf16.msra.mxu0 %v1631
        %2199 = vmatprep.subr.bf16.mxu0 %v1634
        %2200 = vmatpush1.bf16.msra.mxu0 %v1633
        %2201 = vmatprep.subr.bf16.mxu0 %v1636
        %2202 = vmatpush1.bf16.msra.mxu0 %v1635
        %2203 = vmatprep.subr.bf16.mxu0 %v1638
        %2204 = vmatpush1.bf16.msra.mxu0 %v1637
        %2205 = vmatprep.subr.bf16.mxu0 %v1640
        %2206 = vmatpush1.bf16.msra.mxu0 %v1639
        %2207 = vmatprep.subr.bf16.mxu0 %v1642
        %2208 = vmatpush1.bf16.msra.mxu0 %v1641
        %2209 = vmatprep.subr.bf16.mxu0 %v1644
        %2210 = vmatpush1.bf16.msra.mxu0 %v1643
        %2211 = vmatprep.subr.bf16.mxu0 %v1646
        %2212 = vmatpush1.bf16.msra.mxu0 %v1645
        %2213 = vmatprep.mubr.bf16.mxu0 %v634
        %2214 = vmatmul.mubr.bf16.gmra.mrb[0].mxu0 %v620
        %v2215 = vpop.f32.mrb[0].mxu0
        %v2216 = vadd.f32 %v2175, %v2215
        %v2217 = vpop.f32.mrb[0].mxu0
        %v2218 = vadd.f32 %v2177, %v2217
        %v2219 = vpop.f32.mrb[0].mxu0
        %v2220 = vpop.f32.mrb[0].mxu0
        %2221 = vdwg.mxu0
        %2222 = vmatprep.subr.bf16.mxu0 %v1648
        %2223 = vmatpush1.bf16.msra.mxu0 %v1647
        %2224 = vmatprep.subr.bf16.mxu0 %v1650
        %2225 = vmatpush1.bf16.msra.mxu0 %v1649
        %2226 = vmatprep.subr.bf16.mxu0 %v1652
        %2227 = vmatpush1.bf16.msra.mxu0 %v1651
        %2228 = vmatprep.subr.bf16.mxu0 %v1654
        %2229 = vmatpush1.bf16.msra.mxu0 %v1653
        %2230 = vmatprep.subr.bf16.mxu0 %v1656
        %2231 = vmatpush1.bf16.msra.mxu0 %v1655
        %2232 = vmatprep.subr.bf16.mxu0 %v1658
        %2233 = vmatpush1.bf16.msra.mxu0 %v1657
        %2234 = vmatprep.subr.bf16.mxu0 %v1660
        %2235 = vmatpush1.bf16.msra.mxu0 %v1659
        %2236 = vmatprep.subr.bf16.mxu0 %v1662
        %2237 = vmatpush1.bf16.msra.mxu0 %v1661
        %2238 = vmatprep.subr.bf16.mxu0 %v1664
        %2239 = vmatpush1.bf16.msra.mxu0 %v1663
        %2240 = vmatprep.subr.bf16.mxu0 %v1666
        %2241 = vmatpush1.bf16.msra.mxu0 %v1665
        %2242 = vmatprep.subr.bf16.mxu0 %v1668
        %2243 = vmatpush1.bf16.msra.mxu0 %v1667
        %2244 = vmatprep.subr.bf16.mxu0 %v1670
        %2245 = vmatpush1.bf16.msra.mxu0 %v1669
        %2246 = vmatprep.subr.bf16.mxu0 %v1672
        %2247 = vmatpush1.bf16.msra.mxu0 %v1671
        %2248 = vmatprep.subr.bf16.mxu0 %v1674
        %2249 = vmatpush1.bf16.msra.mxu0 %v1673
        %2250 = vmatprep.subr.bf16.mxu0 %v1676
        %2251 = vmatpush1.bf16.msra.mxu0 %v1675
        %2252 = vmatprep.subr.bf16.mxu0 %v1678
        %2253 = vmatpush1.bf16.msra.mxu0 %v1677
        %2254 = vmatprep.mubr.bf16.mxu0 %v638
        %2255 = vmatmul.mubr.bf16.gmra.mrb[0].mxu0 %v636
        %v2256 = vpop.f32.mrb[0].mxu0
        %v2257 = vadd.f32 %v2216, %v2256
        %v2258 = vpop.f32.mrb[0].mxu0
        %v2259 = vadd.f32 %v2218, %v2258
        %v2260 = vpop.f32.mrb[0].mxu0
        %v2261 = vpop.f32.mrb[0].mxu0
        %2262 = vdwg.mxu0
        %v2263 = vmax.f32 %v2257, 0.0
        %v2264 = vmax.f32 %v2259, 0.0
        %v2265 = vpack.c.bf16 %v2263, %v2263
        %v2266 = vpack.c.bf16 %v2264, %v2264
        %v2269 = vcombine.low %v2265, %v2266
        %v2271 = vunpack.c.l.s4 1966171168
        %v2272 = vunpack.c.0.s8 %v2271
        %v2273 = vlaneseq
        %v2274 = vshrl.u32 %v2273, 7
        %v2275 = vsub.s32 %v2272, %v2274
        %v2276 = vrot.slane %v2269, %v2275
        %v2278 = vunpack.c.l.s4 1966171168
        %v2279 = vunpack.c.0.s8 %v2278
        %v2280 = vlaneseq
        %v2281 = vshrl.u32 %v2280, 7
        %v2282 = vsub.s32 %v2279, %v2281
        %v2283 = vrot.slane %v2276, %v2282
        %2285 = vst [vmem:[%s267] sm:$0x3] %v2283
        %s2286 = smul.u32 2, %s25
        %p2287 = scmp.lt.s32.totalorder %s24, 0
        %s2288 = scalar_select %p2287, %s24, 0
        %p2289 = scmp.lt.s32.totalorder %s2286, 3
        %s2290 = scalar_select %p2289, %s2286, 3
        %s2291 = smul.addr %s2288, 4
        %s2292 = sadd.s32 %s2290, %s2291
        %s2293 = scalar_lea.vmem %s3, %s2292
        // Predicated region
        $region41: #{simple_cnn_forward.6} parent=31 // pred_check
          %p2294 = pneg %p130
        $region42: #{simple_cnn_forward.6} parent=31 // pred_check_branch
          %2296 = sbr.rel (%p2294) target = $region44
        $region43: #{simple_cnn_forward.6} parent=31 // pred_region
          %s2297 = smul.u32 2, %s25
        $region44: #{simple_cnn_forward.6} parent=31 // pred_fallthru
          _
      $region32: #{simple_cnn_forward.6} parent=5 // pred_fallthru
        _
      %p2298 = scmp.le.s32.totalorder 2, %s15
      // Predicated region
      $region45: #{simple_cnn_forward.6} parent=5 // pred_check
        %p2299 = pneg %p2298
      $region46: #{simple_cnn_forward.6} parent=5 // pred_check_branch
        %2301 = sbr.rel (%p2299) target = $region48
      $region47: #{simple_cnn_forward.6} parent=5 // pred_region
        %s2302 = ssub.s32 %s15, 2
        // Predicated region
        $region49: #{simple_cnn_forward.6} parent=47 // pred_check
          %p2303 = pneg %p136
        $region50: #{simple_cnn_forward.6} parent=47 // pred_check_branch
          %2305 = sbr.rel (%p2303) target = $region52
        $region51: #{simple_cnn_forward.6} parent=47 // pred_region
          %s2306 = smul.u32 2, %s27
          %p2307 = scmp.lt.s32.totalorder %s26, 0
          %s2308 = scalar_select %p2307, %s26, 0
          %p2309 = scmp.lt.s32.totalorder %s2306, 3
          %s2310 = scalar_select %p2309, %s2306, 3
          %s2311 = smul.addr %s2308, 4
          %s2312 = sadd.s32 %s2310, %s2311
          %s2313 = scalar_lea.vmem %s3, %s2312
        $region52: #{simple_cnn_forward.6} parent=47 // pred_fallthru
          _
      $region48: #{simple_cnn_forward.6} parent=5 // pred_fallthru
        _
    $region6: #{simple_cnn_forward.6} parent=1 // loop_footer
      %s19 = sadd.s32 1, %s15
    $region7: #{simple_cnn_forward.6} parent=1 // loop_footer_branch
      %14 = sbr.rel target = $region3
    $region8: #{simple_cnn_forward.6} parent=1 // loop_exit
      _
    %2314 = vsyncpa [#allocation3], 1
    %s2315 = scalar_lea.sflag [#allocation3], 1
    %2316 = vsyncpa %s2315, 1
    %2317 = vsyncpa [#allocation5], 1
    %s2318 = scalar_lea.sflag [#allocation5], 1
    %2319 = vsyncpa %s2318, 1

// kernel: simple_cnn_forward.4
$region0: #{simple_cnn_forward.4}
  #allocation0 [shape = 'u32[]', space=smem, size = 0x4, offset = 0x4, fixed_abs, tag = 'smem constant byte address 0x4 - core index']
  #allocation1 [shape = 'u32[144,128]{1,0:T(1,128)}', space=vmem, size = 0x12000, scoped, tag = 'internal scratch']
  %s0 = inlined_call_operand.vmem [shape: bf16[2,18,18,3], index: 0, kind: input, shape index: {}]
  %s1 = inlined_call_operand.hbm [shape: bf16[27,128], index: 1, kind: input, shape index: {}]
  %s2 = inlined_call_operand.hbm [shape: f32[1,128], index: 2, kind: input, shape index: {}]
  %s3 = inlined_call_operand.vmem [shape: bf16[2,8,8,128], index: 3, kind: output, shape index: {}]
  %s4 = sld [smem:[#allocation0]]
  $region30: #{simple_cnn_forward.4} parent=0
    _
  %s6 = ssub.s32 1, %s4
  %s7 = scalar_select 0, %s6, %s4
  $region1: #{simple_cnn_forward.4} parent=0
    #allocation2 [shape = 'u8[8192]{0}', space=vmem, size = 0x2000, scoped, tag = 'input window, operand 1, single buffered']
    #allocation3 [shape = 's32[1]{0}', space=sflag, size = 0x4, scoped, tag = 'scoped memory for simple_cnn_forward.4']
    #allocation4 [shape = 'u8[512]{0}', space=vmem, size = 0x400, scoped, tag = 'input window, operand 2, single buffered']
    #allocation5 [shape = 's32[1]{0}', space=sflag, size = 0x4, scoped, tag = 'scoped memory for simple_cnn_forward.4']
    %8 = vsyncpa [#allocation3], 0
    %9 = vsyncpa [#allocation5], 0
    // Predicated region
    $region2: #{simple_cnn_forward.4} parent=1 // pred_check
      _
    $region3: #{simple_cnn_forward.4} parent=1 // pred_check_branch
      %11 = sbr.rel (0) target = $region5
    $region4: #{simple_cnn_forward.4} parent=1 // pred_region
      _
    $region5: #{simple_cnn_forward.4} parent=1 // pred_fallthru
      _
    // Predicated region
    $region6: #{simple_cnn_forward.4} parent=1 // pred_check
      _
    $region7: #{simple_cnn_forward.4} parent=1 // pred_check_branch
      %13 = sbr.rel (0) target = $region9
    $region8: #{simple_cnn_forward.4} parent=1 // pred_region
      %s15 = ssub.s32 256, 256
      %16 = vsyncadd [#allocation3], %s15
      %s17 = sshll.u32 [#allocation2], 4
      %s18 = int_to_ptr.vmem [resolvable:$true] %s17
      %23 = dma.hbm_to_vmem [thread:$0]  %s1, 256, %s18, [#allocation3], 64, 64, 4
    $region9: #{simple_cnn_forward.4} parent=1 // pred_fallthru
      _
    // Predicated region
    $region10: #{simple_cnn_forward.4} parent=1 // pred_check
      _
    $region11: #{simple_cnn_forward.4} parent=1 // pred_check_branch
      %25 = sbr.rel (0) target = $region13
    $region12: #{simple_cnn_forward.4} parent=1 // pred_region
      %s27 = ssub.s32 16, 16
      %28 = vsyncadd [#allocation5], %s27
      %s30 = sshll.u32 [#allocation4], 4
      %s31 = int_to_ptr.vmem [resolvable:$true] %s30
      %33 = dma.hbm_to_vmem [thread:$0]  %s2, 16, %s31, [#allocation5]
    $region13: #{simple_cnn_forward.4} parent=1 // pred_fallthru
      _
    // Predicated region
    $region14: #{simple_cnn_forward.4} parent=1 // pred_check
      _
    $region15: #{simple_cnn_forward.4} parent=1 // pred_check_branch
      %35 = sbr.rel (0) target = $region17
    $region16: #{simple_cnn_forward.4} parent=1 // pred_region
      %36 = dma.done [#allocation3], 256
    $region17: #{simple_cnn_forward.4} parent=1 // pred_fallthru
      _
    // Predicated region
    $region18: #{simple_cnn_forward.4} parent=1 // pred_check
      _
    $region19: #{simple_cnn_forward.4} parent=1 // pred_check_branch
      %38 = sbr.rel (0) target = $region21
    $region20: #{simple_cnn_forward.4} parent=1 // pred_region
      %39 = dma.done [#allocation5], 16
    $region21: #{simple_cnn_forward.4} parent=1 // pred_fallthru
      _
    %v41 = vld [vmem:[%s0] sm:$0xf]
    %v42 = vld [vmem:[%s0 + $0x4] sm:$0xf]
    %v43 = vld [vmem:[%s0 + $0x8] sm:$0x1]
    %v44 = vld [vmem:[%s0 + $0xc] sm:$0xf]
    %v45 = vld [vmem:[%s0 + $0x10] sm:$0xf]
    %v46 = vld [vmem:[%s0 + $0x14] sm:$0x1]
    %v47 = vld [vmem:[%s0 + $0x18] sm:$0xf]
    %v48 = vld [vmem:[%s0 + $0x1c] sm:$0xf]
    %v49 = vld [vmem:[%s0 + $0x20] sm:$0x1]
    %v50 = vld [vmem:[%s0 + $0x24] sm:$0xf]
    %v51 = vld [vmem:[%s0 + $0x28] sm:$0xf]
    %v52 = vld [vmem:[%s0 + $0x2c] sm:$0x1]
    %v53 = vld [vmem:[%s0 + $0x30] sm:$0xf]
    %v54 = vld [vmem:[%s0 + $0x34] sm:$0xf]
    %v55 = vld [vmem:[%s0 + $0x38] sm:$0x1]
    %v56 = vld [vmem:[%s0 + $0x3c] sm:$0xf]
    %v57 = vld [vmem:[%s0 + $0x40] sm:$0xf]
    %v58 = vld [vmem:[%s0 + $0x44] sm:$0x1]
    %v59 = vld [vmem:[%s0 + $0x48] sm:$0xf]
    %v60 = vld [vmem:[%s0 + $0x4c] sm:$0xf]
    %v61 = vld [vmem:[%s0 + $0x50] sm:$0x1]
    %v62 = vld [vmem:[%s0 + $0x54] sm:$0xf]
    %v63 = vld [vmem:[%s0 + $0x58] sm:$0xf]
    %v64 = vld [vmem:[%s0 + $0x5c] sm:$0x1]
    %v65 = vld [vmem:[%s0 + $0x60] sm:$0xf]
    %v66 = vld [vmem:[%s0 + $0x64] sm:$0xf]
    %v67 = vld [vmem:[%s0 + $0x68] sm:$0x1]
    %v68 = vld [vmem:[%s0 + $0x6c] sm:$0xf]
    %v69 = vld [vmem:[%s0 + $0x70] sm:$0xf]
    %v70 = vld [vmem:[%s0 + $0x74] sm:$0x1]
    %v71 = vld [vmem:[%s0 + $0x78] sm:$0xf]
    %v72 = vld [vmem:[%s0 + $0x7c] sm:$0xf]
    %v73 = vld [vmem:[%s0 + $0x80] sm:$0x1]
    %v74 = vld [vmem:[%s0 + $0x84] sm:$0xf]
    %v75 = vld [vmem:[%s0 + $0x88] sm:$0xf]
    %v76 = vld [vmem:[%s0 + $0x8c] sm:$0x1]
    %v77 = vld [vmem:[%s0 + $0x90] sm:$0xf]
    %v78 = vld [vmem:[%s0 + $0x94] sm:$0xf]
    %v79 = vld [vmem:[%s0 + $0x98] sm:$0x1]
    %v80 = vld [vmem:[%s0 + $0x9c] sm:$0xf]
    %v81 = vld [vmem:[%s0 + $0xa0] sm:$0xf]
    %v82 = vld [vmem:[%s0 + $0xa4] sm:$0x1]
    %v83 = vld [vmem:[%s0 + $0xa8] sm:$0xf]
    %v84 = vld [vmem:[%s0 + $0xac] sm:$0xf]
    %v85 = vld [vmem:[%s0 + $0xb0] sm:$0x1]
    %v86 = vld [vmem:[%s0 + $0xb4] sm:$0xf]
    %v87 = vld [vmem:[%s0 + $0xb8] sm:$0xf]
    %v88 = vld [vmem:[%s0 + $0xbc] sm:$0x1]
    %v89 = vld [vmem:[%s0 + $0xc0] sm:$0xf]
    %v90 = vld [vmem:[%s0 + $0xc4] sm:$0xf]
    %v91 = vld [vmem:[%s0 + $0xc8] sm:$0x1]
    %v92 = vld [vmem:[%s0 + $0xcc] sm:$0xf]
    %v93 = vld [vmem:[%s0 + $0xd0] sm:$0xf]
    %v94 = vld [vmem:[%s0 + $0xd4] sm:$0x1]
    %v95 = vld [vmem:[%s0 + $0xd8] sm:$0xf]
    %v96 = vld [vmem:[%s0 + $0xdc] sm:$0xf]
    %v97 = vld [vmem:[%s0 + $0xe0] sm:$0x1]
    %v98 = vld [vmem:[%s0 + $0xe4] sm:$0xf]
    %v99 = vld [vmem:[%s0 + $0xe8] sm:$0xf]
    %v100 = vld [vmem:[%s0 + $0xec] sm:$0x1]
    %v101 = vld [vmem:[%s0 + $0xf0] sm:$0xf]
    %v102 = vld [vmem:[%s0 + $0xf4] sm:$0xf]
    %v103 = vld [vmem:[%s0 + $0xf8] sm:$0x1]
    %v104 = vld [vmem:[%s0 + $0xfc] sm:$0xf]
    %v105 = vld [vmem:[%s0 + $0x100] sm:$0xf]
    %v106 = vld [vmem:[%s0 + $0x104] sm:$0x1]
    %v107 = vld [vmem:[%s0 + $0x108] sm:$0xf]
    %v108 = vld [vmem:[%s0 + $0x10c] sm:$0xf]
    %v109 = vld [vmem:[%s0 + $0x110] sm:$0x1]
    %v110 = vld [vmem:[%s0 + $0x114] sm:$0xf]
    %v111 = vld [vmem:[%s0 + $0x118] sm:$0xf]
    %v112 = vld [vmem:[%s0 + $0x11c] sm:$0x1]
    %v113 = vld [vmem:[%s0 + $0x120] sm:$0xf]
    %v114 = vld [vmem:[%s0 + $0x124] sm:$0xf]
    %v115 = vld [vmem:[%s0 + $0x128] sm:$0x1]
    %v116 = vld [vmem:[%s0 + $0x12c] sm:$0xf]
    %v117 = vld [vmem:[%s0 + $0x130] sm:$0xf]
    %v118 = vld [vmem:[%s0 + $0x134] sm:$0x1]
    %v119 = vld [vmem:[%s0 + $0x138] sm:$0xf]
    %v120 = vld [vmem:[%s0 + $0x13c] sm:$0xf]
    %v121 = vld [vmem:[%s0 + $0x140] sm:$0x1]
    %v122 = vld [vmem:[%s0 + $0x144] sm:$0xf]
    %v123 = vld [vmem:[%s0 + $0x148] sm:$0xf]
    %v124 = vld [vmem:[%s0 + $0x14c] sm:$0x1]
    %v125 = vld [vmem:[%s0 + $0x150] sm:$0xf]
    %v126 = vld [vmem:[%s0 + $0x154] sm:$0xf]
    %v127 = vld [vmem:[%s0 + $0x158] sm:$0x1]
    %v128 = vld [vmem:[%s0 + $0x15c] sm:$0xf]
    %v129 = vld [vmem:[%s0 + $0x160] sm:$0xf]
    %v130 = vld [vmem:[%s0 + $0x164] sm:$0x1]
    %v131 = vld [vmem:[%s0 + $0x168] sm:$0xf]
    %v132 = vld [vmem:[%s0 + $0x16c] sm:$0xf]
    %v133 = vld [vmem:[%s0 + $0x170] sm:$0x1]
    %v134 = vld [vmem:[%s0 + $0x174] sm:$0xf]
    %v135 = vld [vmem:[%s0 + $0x178] sm:$0xf]
    %v136 = vld [vmem:[%s0 + $0x17c] sm:$0x1]
    %v137 = vld [vmem:[%s0 + $0x180] sm:$0xf]
    %v138 = vld [vmem:[%s0 + $0x184] sm:$0xf]
    %v139 = vld [vmem:[%s0 + $0x188] sm:$0x1]
    %v140 = vld [vmem:[%s0 + $0x18c] sm:$0xf]
    %v141 = vld [vmem:[%s0 + $0x190] sm:$0xf]
    %v142 = vld [vmem:[%s0 + $0x194] sm:$0x1]
    %v143 = vld [vmem:[%s0 + $0x198] sm:$0xf]
    %v144 = vld [vmem:[%s0 + $0x19c] sm:$0xf]
    %v145 = vld [vmem:[%s0 + $0x1a0] sm:$0x1]
    %v146 = vld [vmem:[%s0 + $0x1a4] sm:$0xf]
    %v147 = vld [vmem:[%s0 + $0x1a8] sm:$0xf]
    %v148 = vld [vmem:[%s0 + $0x1ac] sm:$0x1]
    %v213 = vunpack.c.l.b16 %v41
    %v214 = vunpack.c.l.b16 %v42
    %v215 = vunpack.c.l.b16 %v44
    %v216 = vunpack.c.l.b16 %v45
    %v217 = vunpack.c.l.b16 %v47
    %v218 = vunpack.c.l.b16 %v48
    %v219 = vunpack.c.l.b16 %v50
    %v220 = vunpack.c.l.b16 %v51
    %v221 = vunpack.c.l.b16 %v53
    %v222 = vunpack.c.l.b16 %v54
    %v223 = vunpack.c.l.b16 %v56
    %v224 = vunpack.c.l.b16 %v57
    %v225 = vunpack.c.l.b16 %v59
    %v226 = vunpack.c.l.b16 %v60
    %v227 = vunpack.c.l.b16 %v62
    %v228 = vunpack.c.l.b16 %v63
    %v229 = vunpack.c.l.b16 %v65
    %v230 = vunpack.c.l.b16 %v66
    %v231 = vunpack.c.l.b16 %v68
    %v232 = vunpack.c.l.b16 %v69
    %v233 = vunpack.c.l.b16 %v71
    %v234 = vunpack.c.l.b16 %v72
    %v235 = vunpack.c.l.b16 %v74
    %v236 = vunpack.c.l.b16 %v75
    %v237 = vunpack.c.l.b16 %v77
    %v238 = vunpack.c.l.b16 %v78
    %v239 = vunpack.c.l.b16 %v80
    %v240 = vunpack.c.l.b16 %v81
    %v241 = vunpack.c.l.b16 %v83
    %v242 = vunpack.c.l.b16 %v84
    %v243 = vunpack.c.l.b16 %v86
    %v244 = vunpack.c.l.b16 %v87
    %v245 = vunpack.c.l.b16 %v95
    %v246 = vunpack.c.l.b16 %v96
    %v247 = vunpack.c.l.b16 %v98
    %v248 = vunpack.c.l.b16 %v99
    %v249 = vunpack.c.l.b16 %v101
    %v250 = vunpack.c.l.b16 %v102
    %v251 = vunpack.c.l.b16 %v104
    %v252 = vunpack.c.l.b16 %v105
    %v253 = vunpack.c.l.b16 %v107
    %v254 = vunpack.c.l.b16 %v108
    %v255 = vunpack.c.l.b16 %v110
    %v256 = vunpack.c.l.b16 %v111
    %v257 = vunpack.c.l.b16 %v113
    %v258 = vunpack.c.l.b16 %v114
    %v259 = vunpack.c.l.b16 %v116
    %v260 = vunpack.c.l.b16 %v117
    %v261 = vunpack.c.l.b16 %v119
    %v262 = vunpack.c.l.b16 %v120
    %v263 = vunpack.c.l.b16 %v122
    %v264 = vunpack.c.l.b16 %v123
    %v265 = vunpack.c.l.b16 %v125
    %v266 = vunpack.c.l.b16 %v126
    %v267 = vunpack.c.l.b16 %v128
    %v268 = vunpack.c.l.b16 %v129
    %v269 = vunpack.c.l.b16 %v131
    %v270 = vunpack.c.l.b16 %v132
    %v271 = vunpack.c.l.b16 %v134
    %v272 = vunpack.c.l.b16 %v135
    %v273 = vunpack.c.l.b16 %v137
    %v274 = vunpack.c.l.b16 %v138
    %v275 = vunpack.c.l.b16 %v140
    %v276 = vunpack.c.l.b16 %v141
    %v277 = vpack.c.b16 %v214, %v213
    %v278 = vpack.c.b16 %v216, %v215
    %v279 = vpack.c.b16 %v218, %v217
    %v280 = vpack.c.b16 %v220, %v219
    %v281 = vpack.c.b16 %v222, %v221
    %v282 = vpack.c.b16 %v224, %v223
    %v283 = vpack.c.b16 %v226, %v225
    %v284 = vpack.c.b16 %v228, %v227
    %v285 = vpack.c.b16 %v230, %v229
    %v286 = vpack.c.b16 %v232, %v231
    %v287 = vpack.c.b16 %v234, %v233
    %v288 = vpack.c.b16 %v236, %v235
    %v289 = vpack.c.b16 %v238, %v237
    %v290 = vpack.c.b16 %v240, %v239
    %v291 = vpack.c.b16 %v242, %v241
    %v292 = vpack.c.b16 %v244, %v243
    %v293 = vpack.c.b16 %v246, %v245
    %v294 = vpack.c.b16 %v248, %v247
    %v295 = vpack.c.b16 %v250, %v249
    %v296 = vpack.c.b16 %v252, %v251
    %v297 = vpack.c.b16 %v254, %v253
    %v298 = vpack.c.b16 %v256, %v255
    %v299 = vpack.c.b16 %v258, %v257
    %v300 = vpack.c.b16 %v260, %v259
    %v301 = vpack.c.b16 %v262, %v261
    %v302 = vpack.c.b16 %v264, %v263
    %v303 = vpack.c.b16 %v266, %v265
    %v304 = vpack.c.b16 %v268, %v267
    %v305 = vpack.c.b16 %v270, %v269
    %v306 = vpack.c.b16 %v272, %v271
    %v307 = vpack.c.b16 %v274, %v273
    %v308 = vpack.c.b16 %v276, %v275
    %v341 = vunpack.c.l.b16 %v43
    %v342 = vunpack.c.l.b16 %v46
    %v343 = vunpack.c.l.b16 %v49
    %v344 = vunpack.c.l.b16 %v52
    %v345 = vunpack.c.l.b16 %v55
    %v346 = vunpack.c.l.b16 %v58
    %v347 = vunpack.c.l.b16 %v61
    %v348 = vunpack.c.l.b16 %v64
    %v349 = vunpack.c.l.b16 %v67
    %v350 = vunpack.c.l.b16 %v70
    %v351 = vunpack.c.l.b16 %v73
    %v352 = vunpack.c.l.b16 %v76
    %v353 = vunpack.c.l.b16 %v79
    %v354 = vunpack.c.l.b16 %v82
    %v355 = vunpack.c.l.b16 %v85
    %v356 = vunpack.c.l.b16 %v88
    %v357 = vunpack.c.l.b16 %v97
    %v358 = vunpack.c.l.b16 %v100
    %v359 = vunpack.c.l.b16 %v103
    %v360 = vunpack.c.l.b16 %v106
    %v361 = vunpack.c.l.b16 %v109
    %v362 = vunpack.c.l.b16 %v112
    %v363 = vunpack.c.l.b16 %v115
    %v364 = vunpack.c.l.b16 %v118
    %v365 = vunpack.c.l.b16 %v121
    %v366 = vunpack.c.l.b16 %v124
    %v367 = vunpack.c.l.b16 %v127
    %v368 = vunpack.c.l.b16 %v130
    %v369 = vunpack.c.l.b16 %v133
    %v370 = vunpack.c.l.b16 %v136
    %v371 = vunpack.c.l.b16 %v139
    %v372 = vunpack.c.l.b16 %v142
    %v373 = vpack.c.b16 %v341, %v341
    %v374 = vpack.c.b16 %v342, %v342
    %v375 = vpack.c.b16 %v343, %v343
    %v376 = vpack.c.b16 %v344, %v344
    %v377 = vpack.c.b16 %v345, %v345
    %v378 = vpack.c.b16 %v346, %v346
    %v379 = vpack.c.b16 %v347, %v347
    %v380 = vpack.c.b16 %v348, %v348
    %v381 = vpack.c.b16 %v349, %v349
    %v382 = vpack.c.b16 %v350, %v350
    %v383 = vpack.c.b16 %v351, %v351
    %v384 = vpack.c.b16 %v352, %v352
    %v385 = vpack.c.b16 %v353, %v353
    %v386 = vpack.c.b16 %v354, %v354
    %v387 = vpack.c.b16 %v355, %v355
    %v388 = vpack.c.b16 %v356, %v356
    %v389 = vpack.c.b16 %v357, %v357
    %v390 = vpack.c.b16 %v358, %v358
    %v391 = vpack.c.b16 %v359, %v359
    %v392 = vpack.c.b16 %v360, %v360
    %v393 = vpack.c.b16 %v361, %v361
    %v394 = vpack.c.b16 %v362, %v362
    %v395 = vpack.c.b16 %v363, %v363
    %v396 = vpack.c.b16 %v364, %v364
    %v397 = vpack.c.b16 %v365, %v365
    %v398 = vpack.c.b16 %v366, %v366
    %v399 = vpack.c.b16 %v367, %v367
    %v400 = vpack.c.b16 %v368, %v368
    %v401 = vpack.c.b16 %v369, %v369
    %v402 = vpack.c.b16 %v370, %v370
    %v403 = vpack.c.b16 %v371, %v371
    %v404 = vpack.c.b16 %v372, %v372
    %vm405 = vsmask.f32 7424
    %v407 = vshrl.u32 %v277, 16
    %v409 = vshll.u32 %v277, 16
    %v411 = vrot.slane %v409, 1
    %v412 = vor.u32 %v407, %v411
    %v414 = vshll.u32 %v373, 16
    %v416 = vrot.slane %v414, 1
    %v417 = vsel %vm405, %v412, %v416
    %v419 = vshrl.u32 %v278, 16
    %v421 = vshll.u32 %v278, 16
    %v423 = vrot.slane %v421, 1
    %v424 = vor.u32 %v419, %v423
    %v426 = vshll.u32 %v374, 16
    %v428 = vrot.slane %v426, 1
    %v429 = vsel %vm405, %v424, %v428
    %v431 = vshrl.u32 %v279, 16
    %v433 = vshll.u32 %v279, 16
    %v435 = vrot.slane %v433, 1
    %v436 = vor.u32 %v431, %v435
    %v438 = vshll.u32 %v375, 16
    %v440 = vrot.slane %v438, 1
    %v441 = vsel %vm405, %v436, %v440
    %v443 = vshrl.u32 %v280, 16
    %v445 = vshll.u32 %v280, 16
    %v447 = vrot.slane %v445, 1
    %v448 = vor.u32 %v443, %v447
    %v450 = vshll.u32 %v376, 16
    %v452 = vrot.slane %v450, 1
    %v453 = vsel %vm405, %v448, %v452
    %v455 = vshrl.u32 %v281, 16
    %v457 = vshll.u32 %v281, 16
    %v459 = vrot.slane %v457, 1
    %v460 = vor.u32 %v455, %v459
    %v462 = vshll.u32 %v377, 16
    %v464 = vrot.slane %v462, 1
    %v465 = vsel %vm405, %v460, %v464
    %v467 = vshrl.u32 %v282, 16
    %v469 = vshll.u32 %v282, 16
    %v471 = vrot.slane %v469, 1
    %v472 = vor.u32 %v467, %v471
    %v474 = vshll.u32 %v378, 16
    %v476 = vrot.slane %v474, 1
    %v477 = vsel %vm405, %v472, %v476
    %v479 = vshrl.u32 %v283, 16
    %v481 = vshll.u32 %v283, 16
    %v483 = vrot.slane %v481, 1
    %v484 = vor.u32 %v479, %v483
    %v486 = vshll.u32 %v379, 16
    %v488 = vrot.slane %v486, 1
    %v489 = vsel %vm405, %v484, %v488
    %v491 = vshrl.u32 %v284, 16
    %v493 = vshll.u32 %v284, 16
    %v495 = vrot.slane %v493, 1
    %v496 = vor.u32 %v491, %v495
    %v498 = vshll.u32 %v380, 16
    %v500 = vrot.slane %v498, 1
    %v501 = vsel %vm405, %v496, %v500
    %v503 = vshrl.u32 %v285, 16
    %v505 = vshll.u32 %v285, 16
    %v507 = vrot.slane %v505, 1
    %v508 = vor.u32 %v503, %v507
    %v510 = vshll.u32 %v381, 16
    %v512 = vrot.slane %v510, 1
    %v513 = vsel %vm405, %v508, %v512
    %v515 = vshrl.u32 %v286, 16
    %v517 = vshll.u32 %v286, 16
    %v519 = vrot.slane %v517, 1
    %v520 = vor.u32 %v515, %v519
    %v522 = vshll.u32 %v382, 16
    %v524 = vrot.slane %v522, 1
    %v525 = vsel %vm405, %v520, %v524
    %v527 = vshrl.u32 %v287, 16
    %v529 = vshll.u32 %v287, 16
    %v531 = vrot.slane %v529, 1
    %v532 = vor.u32 %v527, %v531
    %v534 = vshll.u32 %v383, 16
    %v536 = vrot.slane %v534, 1
    %v537 = vsel %vm405, %v532, %v536
    %v539 = vshrl.u32 %v288, 16
    %v541 = vshll.u32 %v288, 16
    %v543 = vrot.slane %v541, 1
    %v544 = vor.u32 %v539, %v543
    %v546 = vshll.u32 %v384, 16
    %v548 = vrot.slane %v546, 1
    %v549 = vsel %vm405, %v544, %v548
    %v551 = vshrl.u32 %v289, 16
    %v553 = vshll.u32 %v289, 16
    %v555 = vrot.slane %v553, 1
    %v556 = vor.u32 %v551, %v555
    %v558 = vshll.u32 %v385, 16
    %v560 = vrot.slane %v558, 1
    %v561 = vsel %vm405, %v556, %v560
    %v563 = vshrl.u32 %v290, 16
    %v565 = vshll.u32 %v290, 16
    %v567 = vrot.slane %v565, 1
    %v568 = vor.u32 %v563, %v567
    %v570 = vshll.u32 %v386, 16
    %v572 = vrot.slane %v570, 1
    %v573 = vsel %vm405, %v568, %v572
    %v575 = vshrl.u32 %v291, 16
    %v577 = vshll.u32 %v291, 16
    %v579 = vrot.slane %v577, 1
    %v580 = vor.u32 %v575, %v579
    %v582 = vshll.u32 %v387, 16
    %v584 = vrot.slane %v582, 1
    %v585 = vsel %vm405, %v580, %v584
    %v587 = vshrl.u32 %v292, 16
    %v589 = vshll.u32 %v292, 16
    %v591 = vrot.slane %v589, 1
    %v592 = vor.u32 %v587, %v591
    %v594 = vshll.u32 %v388, 16
    %v596 = vrot.slane %v594, 1
    %v597 = vsel %vm405, %v592, %v596
    %v599 = vshrl.u32 %v293, 16
    %v601 = vshll.u32 %v293, 16
    %v603 = vrot.slane %v601, 1
    %v604 = vor.u32 %v599, %v603
    %v606 = vshll.u32 %v389, 16
    %v608 = vrot.slane %v606, 1
    %v609 = vsel %vm405, %v604, %v608
    %v611 = vshrl.u32 %v294, 16
    %v613 = vshll.u32 %v294, 16
    %v615 = vrot.slane %v613, 1
    %v616 = vor.u32 %v611, %v615
    %v618 = vshll.u32 %v390, 16
    %v620 = vrot.slane %v618, 1
    %v621 = vsel %vm405, %v616, %v620
    %v623 = vshrl.u32 %v295, 16
    %v625 = vshll.u32 %v295, 16
    %v627 = vrot.slane %v625, 1
    %v628 = vor.u32 %v623, %v627
    %v630 = vshll.u32 %v391, 16
    %v632 = vrot.slane %v630, 1
    %v633 = vsel %vm405, %v628, %v632
    %v635 = vshrl.u32 %v296, 16
    %v637 = vshll.u32 %v296, 16
    %v639 = vrot.slane %v637, 1
    %v640 = vor.u32 %v635, %v639
    %v642 = vshll.u32 %v392, 16
    %v644 = vrot.slane %v642, 1
    %v645 = vsel %vm405, %v640, %v644
    %v647 = vshrl.u32 %v297, 16
    %v649 = vshll.u32 %v297, 16
    %v651 = vrot.slane %v649, 1
    %v652 = vor.u32 %v647, %v651
    %v654 = vshll.u32 %v393, 16
    %v656 = vrot.slane %v654, 1
    %v657 = vsel %vm405, %v652, %v656
    %v659 = vshrl.u32 %v298, 16
    %v661 = vshll.u32 %v298, 16
    %v663 = vrot.slane %v661, 1
    %v664 = vor.u32 %v659, %v663
    %v666 = vshll.u32 %v394, 16
    %v668 = vrot.slane %v666, 1
    %v669 = vsel %vm405, %v664, %v668
    %v671 = vshrl.u32 %v299, 16
    %v673 = vshll.u32 %v299, 16
    %v675 = vrot.slane %v673, 1
    %v676 = vor.u32 %v671, %v675
    %v678 = vshll.u32 %v395, 16
    %v680 = vrot.slane %v678, 1
    %v681 = vsel %vm405, %v676, %v680
    %v683 = vshrl.u32 %v300, 16
    %v685 = vshll.u32 %v300, 16
    %v687 = vrot.slane %v685, 1
    %v688 = vor.u32 %v683, %v687
    %v690 = vshll.u32 %v396, 16
    %v692 = vrot.slane %v690, 1
    %v693 = vsel %vm405, %v688, %v692
    %v695 = vshrl.u32 %v301, 16
    %v697 = vshll.u32 %v301, 16
    %v699 = vrot.slane %v697, 1
    %v700 = vor.u32 %v695, %v699
    %v702 = vshll.u32 %v397, 16
    %v704 = vrot.slane %v702, 1
    %v705 = vsel %vm405, %v700, %v704
    %v707 = vshrl.u32 %v302, 16
    %v709 = vshll.u32 %v302, 16
    %v711 = vrot.slane %v709, 1
    %v712 = vor.u32 %v707, %v711
    %v714 = vshll.u32 %v398, 16
    %v716 = vrot.slane %v714, 1
    %v717 = vsel %vm405, %v712, %v716
    %v719 = vshrl.u32 %v303, 16
    %v721 = vshll.u32 %v303, 16
    %v723 = vrot.slane %v721, 1
    %v724 = vor.u32 %v719, %v723
    %v726 = vshll.u32 %v399, 16
    %v728 = vrot.slane %v726, 1
    %v729 = vsel %vm405, %v724, %v728
    %v731 = vshrl.u32 %v304, 16
    %v733 = vshll.u32 %v304, 16
    %v735 = vrot.slane %v733, 1
    %v736 = vor.u32 %v731, %v735
    %v738 = vshll.u32 %v400, 16
    %v740 = vrot.slane %v738, 1
    %v741 = vsel %vm405, %v736, %v740
    %v743 = vshrl.u32 %v305, 16
    %v745 = vshll.u32 %v305, 16
    %v747 = vrot.slane %v745, 1
    %v748 = vor.u32 %v743, %v747
    %v750 = vshll.u32 %v401, 16
    %v752 = vrot.slane %v750, 1
    %v753 = vsel %vm405, %v748, %v752
    %v755 = vshrl.u32 %v306, 16
    %v757 = vshll.u32 %v306, 16
    %v759 = vrot.slane %v757, 1
    %v760 = vor.u32 %v755, %v759
    %v762 = vshll.u32 %v402, 16
    %v764 = vrot.slane %v762, 1
    %v765 = vsel %vm405, %v760, %v764
    %v767 = vshrl.u32 %v307, 16
    %v769 = vshll.u32 %v307, 16
    %v771 = vrot.slane %v769, 1
    %v772 = vor.u32 %v767, %v771
    %v774 = vshll.u32 %v403, 16
    %v776 = vrot.slane %v774, 1
    %v777 = vsel %vm405, %v772, %v776
    %v779 = vshrl.u32 %v308, 16
    %v781 = vshll.u32 %v308, 16
    %v783 = vrot.slane %v781, 1
    %v784 = vor.u32 %v779, %v783
    %v786 = vshll.u32 %v404, 16
    %v788 = vrot.slane %v786, 1
    %v789 = vsel %vm405, %v784, %v788
    %790 = vrot.lane.b32.xlu0 %v417, 3
    %v791 = vpop.permute.xlu0 %790
    %792 = vrot.lane.b32.xlu0 %v429, 3
    %v793 = vpop.permute.xlu0 %792
    %794 = vrot.lane.b32.xlu0 %v441, 3
    %v795 = vpop.permute.xlu0 %794
    %796 = vrot.lane.b32.xlu0 %v453, 3
    %v797 = vpop.permute.xlu0 %796
    %798 = vrot.lane.b32.xlu0 %v465, 3
    %v799 = vpop.permute.xlu0 %798
    %800 = vrot.lane.b32.xlu0 %v477, 3
    %v801 = vpop.permute.xlu0 %800
    %802 = vrot.lane.b32.xlu0 %v489, 3
    %v803 = vpop.permute.xlu0 %802
    %804 = vrot.lane.b32.xlu0 %v501, 3
    %v805 = vpop.permute.xlu0 %804
    %806 = vrot.lane.b32.xlu0 %v513, 3
    %v807 = vpop.permute.xlu0 %806
    %808 = vrot.lane.b32.xlu0 %v525, 3
    %v809 = vpop.permute.xlu0 %808
    %810 = vrot.lane.b32.xlu0 %v537, 3
    %v811 = vpop.permute.xlu0 %810
    %812 = vrot.lane.b32.xlu0 %v549, 3
    %v813 = vpop.permute.xlu0 %812
    %814 = vrot.lane.b32.xlu0 %v561, 3
    %v815 = vpop.permute.xlu0 %814
    %816 = vrot.lane.b32.xlu0 %v573, 3
    %v817 = vpop.permute.xlu0 %816
    %818 = vrot.lane.b32.xlu0 %v585, 3
    %v819 = vpop.permute.xlu0 %818
    %820 = vrot.lane.b32.xlu0 %v597, 3
    %v821 = vpop.permute.xlu0 %820
    %822 = vrot.lane.b32.xlu0 %v609, 3
    %v823 = vpop.permute.xlu0 %822
    %824 = vrot.lane.b32.xlu0 %v621, 3
    %v825 = vpop.permute.xlu0 %824
    %826 = vrot.lane.b32.xlu0 %v633, 3
    %v827 = vpop.permute.xlu0 %826
    %828 = vrot.lane.b32.xlu0 %v645, 3
    %v829 = vpop.permute.xlu0 %828
    %830 = vrot.lane.b32.xlu0 %v657, 3
    %v831 = vpop.permute.xlu0 %830
    %832 = vrot.lane.b32.xlu0 %v669, 3
    %v833 = vpop.permute.xlu0 %832
    %834 = vrot.lane.b32.xlu0 %v681, 3
    %v835 = vpop.permute.xlu0 %834
    %836 = vrot.lane.b32.xlu0 %v693, 3
    %v837 = vpop.permute.xlu0 %836
    %838 = vrot.lane.b32.xlu0 %v705, 3
    %v839 = vpop.permute.xlu0 %838
    %840 = vrot.lane.b32.xlu0 %v717, 3
    %v841 = vpop.permute.xlu0 %840
    %842 = vrot.lane.b32.xlu0 %v729, 3
    %v843 = vpop.permute.xlu0 %842
    %844 = vrot.lane.b32.xlu0 %v741, 3
    %v845 = vpop.permute.xlu0 %844
    %846 = vrot.lane.b32.xlu0 %v753, 3
    %v847 = vpop.permute.xlu0 %846
    %848 = vrot.lane.b32.xlu0 %v765, 3
    %v849 = vpop.permute.xlu0 %848
    %850 = vrot.lane.b32.xlu0 %v777, 3
    %v851 = vpop.permute.xlu0 %850
    %852 = vrot.lane.b32.xlu0 %v789, 3
    %v853 = vpop.permute.xlu0 %852
    %vm854 = vcmask 1046528
    %v855 = vrot.slane %v277, 1
    %v856 = vrot.slane %v373, 1
    %v857 = vsel %vm854, %v855, %v856
    %v858 = vrot.slane %v278, 1
    %v859 = vrot.slane %v374, 1
    %v860 = vsel %vm854, %v858, %v859
    %v861 = vrot.slane %v279, 1
    %v862 = vrot.slane %v375, 1
    %v863 = vsel %vm854, %v861, %v862
    %v864 = vrot.slane %v280, 1
    %v865 = vrot.slane %v376, 1
    %v866 = vsel %vm854, %v864, %v865
    %v867 = vrot.slane %v281, 1
    %v868 = vrot.slane %v377, 1
    %v869 = vsel %vm854, %v867, %v868
    %v870 = vrot.slane %v282, 1
    %v871 = vrot.slane %v378, 1
    %v872 = vsel %vm854, %v870, %v871
    %v873 = vrot.slane %v283, 1
    %v874 = vrot.slane %v379, 1
    %v875 = vsel %vm854, %v873, %v874
    %v876 = vrot.slane %v284, 1
    %v877 = vrot.slane %v380, 1
    %v878 = vsel %vm854, %v876, %v877
    %v879 = vrot.slane %v285, 1
    %v880 = vrot.slane %v381, 1
    %v881 = vsel %vm854, %v879, %v880
    %v882 = vrot.slane %v286, 1
    %v883 = vrot.slane %v382, 1
    %v884 = vsel %vm854, %v882, %v883
    %v885 = vrot.slane %v287, 1
    %v886 = vrot.slane %v383, 1
    %v887 = vsel %vm854, %v885, %v886
    %v888 = vrot.slane %v288, 1
    %v889 = vrot.slane %v384, 1
    %v890 = vsel %vm854, %v888, %v889
    %v891 = vrot.slane %v289, 1
    %v892 = vrot.slane %v385, 1
    %v893 = vsel %vm854, %v891, %v892
    %v894 = vrot.slane %v290, 1
    %v895 = vrot.slane %v386, 1
    %v896 = vsel %vm854, %v894, %v895
    %v897 = vrot.slane %v291, 1
    %v898 = vrot.slane %v387, 1
    %v899 = vsel %vm854, %v897, %v898
    %v900 = vrot.slane %v292, 1
    %v901 = vrot.slane %v388, 1
    %v902 = vsel %vm854, %v900, %v901
    %v903 = vrot.slane %v293, 1
    %v904 = vrot.slane %v389, 1
    %v905 = vsel %vm854, %v903, %v904
    %v906 = vrot.slane %v294, 1
    %v907 = vrot.slane %v390, 1
    %v908 = vsel %vm854, %v906, %v907
    %v909 = vrot.slane %v295, 1
    %v910 = vrot.slane %v391, 1
    %v911 = vsel %vm854, %v909, %v910
    %v912 = vrot.slane %v296, 1
    %v913 = vrot.slane %v392, 1
    %v914 = vsel %vm854, %v912, %v913
    %v915 = vrot.slane %v297, 1
    %v916 = vrot.slane %v393, 1
    %v917 = vsel %vm854, %v915, %v916
    %v918 = vrot.slane %v298, 1
    %v919 = vrot.slane %v394, 1
    %v920 = vsel %vm854, %v918, %v919
    %v921 = vrot.slane %v299, 1
    %v922 = vrot.slane %v395, 1
    %v923 = vsel %vm854, %v921, %v922
    %v924 = vrot.slane %v300, 1
    %v925 = vrot.slane %v396, 1
    %v926 = vsel %vm854, %v924, %v925
    %v927 = vrot.slane %v301, 1
    %v928 = vrot.slane %v397, 1
    %v929 = vsel %vm854, %v927, %v928
    %v930 = vrot.slane %v302, 1
    %v931 = vrot.slane %v398, 1
    %v932 = vsel %vm854, %v930, %v931
    %v933 = vrot.slane %v303, 1
    %v934 = vrot.slane %v399, 1
    %v935 = vsel %vm854, %v933, %v934
    %v936 = vrot.slane %v304, 1
    %v937 = vrot.slane %v400, 1
    %v938 = vsel %vm854, %v936, %v937
    %v939 = vrot.slane %v305, 1
    %v940 = vrot.slane %v401, 1
    %v941 = vsel %vm854, %v939, %v940
    %v942 = vrot.slane %v306, 1
    %v943 = vrot.slane %v402, 1
    %v944 = vsel %vm854, %v942, %v943
    %v945 = vrot.slane %v307, 1
    %v946 = vrot.slane %v403, 1
    %v947 = vsel %vm854, %v945, %v946
    %v948 = vrot.slane %v308, 1
    %v949 = vrot.slane %v404, 1
    %v950 = vsel %vm854, %v948, %v949
    %951 = vrot.lane.b32.xlu0 %v857, 6
    %v952 = vpop.permute.xlu0 %951
    %953 = vrot.lane.b32.xlu0 %v860, 6
    %v954 = vpop.permute.xlu0 %953
    %955 = vrot.lane.b32.xlu0 %v863, 6
    %v956 = vpop.permute.xlu0 %955
    %957 = vrot.lane.b32.xlu0 %v866, 6
    %v958 = vpop.permute.xlu0 %957
    %959 = vrot.lane.b32.xlu0 %v869, 6
    %v960 = vpop.permute.xlu0 %959
    %961 = vrot.lane.b32.xlu0 %v872, 6
    %v962 = vpop.permute.xlu0 %961
    %963 = vrot.lane.b32.xlu0 %v875, 6
    %v964 = vpop.permute.xlu0 %963
    %965 = vrot.lane.b32.xlu0 %v878, 6
    %v966 = vpop.permute.xlu0 %965
    %967 = vrot.lane.b32.xlu0 %v881, 6
    %v968 = vpop.permute.xlu0 %967
    %969 = vrot.lane.b32.xlu0 %v884, 6
    %v970 = vpop.permute.xlu0 %969
    %971 = vrot.lane.b32.xlu0 %v887, 6
    %v972 = vpop.permute.xlu0 %971
    %973 = vrot.lane.b32.xlu0 %v890, 6
    %v974 = vpop.permute.xlu0 %973
    %975 = vrot.lane.b32.xlu0 %v893, 6
    %v976 = vpop.permute.xlu0 %975
    %977 = vrot.lane.b32.xlu0 %v896, 6
    %v978 = vpop.permute.xlu0 %977
    %979 = vrot.lane.b32.xlu0 %v899, 6
    %v980 = vpop.permute.xlu0 %979
    %981 = vrot.lane.b32.xlu0 %v902, 6
    %v982 = vpop.permute.xlu0 %981
    %983 = vrot.lane.b32.xlu0 %v905, 6
    %v984 = vpop.permute.xlu0 %983
    %985 = vrot.lane.b32.xlu0 %v908, 6
    %v986 = vpop.permute.xlu0 %985
    %987 = vrot.lane.b32.xlu0 %v911, 6
    %v988 = vpop.permute.xlu0 %987
    %989 = vrot.lane.b32.xlu0 %v914, 6
    %v990 = vpop.permute.xlu0 %989
    %991 = vrot.lane.b32.xlu0 %v917, 6
    %v992 = vpop.permute.xlu0 %991
    %993 = vrot.lane.b32.xlu0 %v920, 6
    %v994 = vpop.permute.xlu0 %993
    %995 = vrot.lane.b32.xlu0 %v923, 6
    %v996 = vpop.permute.xlu0 %995
    %997 = vrot.lane.b32.xlu0 %v926, 6
    %v998 = vpop.permute.xlu0 %997
    %999 = vrot.lane.b32.xlu0 %v929, 6
    %v1000 = vpop.permute.xlu0 %999
    %1001 = vrot.lane.b32.xlu0 %v932, 6
    %v1002 = vpop.permute.xlu0 %1001
    %1003 = vrot.lane.b32.xlu0 %v935, 6
    %v1004 = vpop.permute.xlu0 %1003
    %1005 = vrot.lane.b32.xlu0 %v938, 6
    %v1006 = vpop.permute.xlu0 %1005
    %1007 = vrot.lane.b32.xlu0 %v941, 6
    %v1008 = vpop.permute.xlu0 %1007
    %1009 = vrot.lane.b32.xlu0 %v944, 6
    %v1010 = vpop.permute.xlu0 %1009
    %1011 = vrot.lane.b32.xlu0 %v947, 6
    %v1012 = vpop.permute.xlu0 %1011
    %1013 = vrot.lane.b32.xlu0 %v950, 6
    %v1014 = vpop.permute.xlu0 %1013
    %v1019 = vunpack.c.l.b16 %v89
    %v1020 = vunpack.c.l.b16 %v90
    %v1021 = vunpack.c.l.b16 %v143
    %v1022 = vunpack.c.l.b16 %v144
    %v1023 = vpack.c.b16 %v1020, %v1019
    %v1024 = vpack.c.b16 %v1022, %v1021
    %1025 = vrot.lane.b32.xlu0 %v278, 9
    %v1026 = vpop.permute.xlu0 %1025
    %1027 = vrot.lane.b32.xlu0 %v279, 9
    %v1028 = vpop.permute.xlu0 %1027
    %1029 = vrot.lane.b32.xlu0 %v280, 9
    %v1030 = vpop.permute.xlu0 %1029
    %1031 = vrot.lane.b32.xlu0 %v281, 9
    %v1032 = vpop.permute.xlu0 %1031
    %1033 = vrot.lane.b32.xlu0 %v282, 9
    %v1034 = vpop.permute.xlu0 %1033
    %1035 = vrot.lane.b32.xlu0 %v283, 9
    %v1036 = vpop.permute.xlu0 %1035
    %1037 = vrot.lane.b32.xlu0 %v284, 9
    %v1038 = vpop.permute.xlu0 %1037
    %1039 = vrot.lane.b32.xlu0 %v285, 9
    %v1040 = vpop.permute.xlu0 %1039
    %1041 = vrot.lane.b32.xlu0 %v286, 9
    %v1042 = vpop.permute.xlu0 %1041
    %1043 = vrot.lane.b32.xlu0 %v287, 9
    %v1044 = vpop.permute.xlu0 %1043
    %1045 = vrot.lane.b32.xlu0 %v288, 9
    %v1046 = vpop.permute.xlu0 %1045
    %1047 = vrot.lane.b32.xlu0 %v289, 9
    %v1048 = vpop.permute.xlu0 %1047
    %1049 = vrot.lane.b32.xlu0 %v290, 9
    %v1050 = vpop.permute.xlu0 %1049
    %1051 = vrot.lane.b32.xlu0 %v291, 9
    %v1052 = vpop.permute.xlu0 %1051
    %1053 = vrot.lane.b32.xlu0 %v292, 9
    %v1054 = vpop.permute.xlu0 %1053
    %1055 = vrot.lane.b32.xlu0 %v1023, 9
    %v1056 = vpop.permute.xlu0 %1055
    %1057 = vrot.lane.b32.xlu0 %v294, 9
    %v1058 = vpop.permute.xlu0 %1057
    %1059 = vrot.lane.b32.xlu0 %v295, 9
    %v1060 = vpop.permute.xlu0 %1059
    %1061 = vrot.lane.b32.xlu0 %v296, 9
    %v1062 = vpop.permute.xlu0 %1061
    %1063 = vrot.lane.b32.xlu0 %v297, 9
    %v1064 = vpop.permute.xlu0 %1063
    %1065 = vrot.lane.b32.xlu0 %v298, 9
    %v1066 = vpop.permute.xlu0 %1065
    %1067 = vrot.lane.b32.xlu0 %v299, 9
    %v1068 = vpop.permute.xlu0 %1067
    %1069 = vrot.lane.b32.xlu0 %v300, 9
    %v1070 = vpop.permute.xlu0 %1069
    %1071 = vrot.lane.b32.xlu0 %v301, 9
    %v1072 = vpop.permute.xlu0 %1071
    %1073 = vrot.lane.b32.xlu0 %v302, 9
    %v1074 = vpop.permute.xlu0 %1073
    %1075 = vrot.lane.b32.xlu0 %v303, 9
    %v1076 = vpop.permute.xlu0 %1075
    %1077 = vrot.lane.b32.xlu0 %v304, 9
    %v1078 = vpop.permute.xlu0 %1077
    %1079 = vrot.lane.b32.xlu0 %v305, 9
    %v1080 = vpop.permute.xlu0 %1079
    %1081 = vrot.lane.b32.xlu0 %v306, 9
    %v1082 = vpop.permute.xlu0 %1081
    %1083 = vrot.lane.b32.xlu0 %v307, 9
    %v1084 = vpop.permute.xlu0 %1083
    %1085 = vrot.lane.b32.xlu0 %v308, 9
    %v1086 = vpop.permute.xlu0 %1085
    %1087 = vrot.lane.b32.xlu0 %v1024, 9
    %v1088 = vpop.permute.xlu0 %1087
    %v1091 = vunpack.c.l.b16 %v91
    %v1092 = vunpack.c.l.b16 %v145
    %v1093 = vpack.c.b16 %v1091, %v1091
    %v1094 = vpack.c.b16 %v1092, %v1092
    %v1096 = vshrl.u32 %v1023, 16
    %v1098 = vshll.u32 %v1023, 16
    %v1100 = vrot.slane %v1098, 1
    %v1101 = vor.u32 %v1096, %v1100
    %v1103 = vshll.u32 %v1093, 16
    %v1105 = vrot.slane %v1103, 1
    %v1106 = vsel %vm405, %v1101, %v1105
    %v1108 = vshrl.u32 %v1024, 16
    %v1110 = vshll.u32 %v1024, 16
    %v1112 = vrot.slane %v1110, 1
    %v1113 = vor.u32 %v1108, %v1112
    %v1115 = vshll.u32 %v1094, 16
    %v1117 = vrot.slane %v1115, 1
    %v1118 = vsel %vm405, %v1113, %v1117
    %1119 = vrot.lane.b32.xlu0 %v429, 12
    %v1120 = vpop.permute.xlu0 %1119
    %1121 = vrot.lane.b32.xlu0 %v441, 12
    %v1122 = vpop.permute.xlu0 %1121
    %1123 = vrot.lane.b32.xlu0 %v453, 12
    %v1124 = vpop.permute.xlu0 %1123
    %1125 = vrot.lane.b32.xlu0 %v465, 12
    %v1126 = vpop.permute.xlu0 %1125
    %1127 = vrot.lane.b32.xlu0 %v477, 12
    %v1128 = vpop.permute.xlu0 %1127
    %1129 = vrot.lane.b32.xlu0 %v489, 12
    %v1130 = vpop.permute.xlu0 %1129
    %1131 = vrot.lane.b32.xlu0 %v501, 12
    %v1132 = vpop.permute.xlu0 %1131
    %1133 = vrot.lane.b32.xlu0 %v513, 12
    %v1134 = vpop.permute.xlu0 %1133
    %1135 = vrot.lane.b32.xlu0 %v525, 12
    %v1136 = vpop.permute.xlu0 %1135
    %1137 = vrot.lane.b32.xlu0 %v537, 12
    %v1138 = vpop.permute.xlu0 %1137
    %1139 = vrot.lane.b32.xlu0 %v549, 12
    %v1140 = vpop.permute.xlu0 %1139
    %1141 = vrot.lane.b32.xlu0 %v561, 12
    %v1142 = vpop.permute.xlu0 %1141
    %1143 = vrot.lane.b32.xlu0 %v573, 12
    %v1144 = vpop.permute.xlu0 %1143
    %1145 = vrot.lane.b32.xlu0 %v585, 12
    %v1146 = vpop.permute.xlu0 %1145
    %1147 = vrot.lane.b32.xlu0 %v597, 12
    %v1148 = vpop.permute.xlu0 %1147
    %1149 = vrot.lane.b32.xlu0 %v1106, 12
    %v1150 = vpop.permute.xlu0 %1149
    %1151 = vrot.lane.b32.xlu0 %v621, 12
    %v1152 = vpop.permute.xlu0 %1151
    %1153 = vrot.lane.b32.xlu0 %v633, 12
    %v1154 = vpop.permute.xlu0 %1153
    %1155 = vrot.lane.b32.xlu0 %v645, 12
    %v1156 = vpop.permute.xlu0 %1155
    %1157 = vrot.lane.b32.xlu0 %v657, 12
    %v1158 = vpop.permute.xlu0 %1157
    %1159 = vrot.lane.b32.xlu0 %v669, 12
    %v1160 = vpop.permute.xlu0 %1159
    %1161 = vrot.lane.b32.xlu0 %v681, 12
    %v1162 = vpop.permute.xlu0 %1161
    %1163 = vrot.lane.b32.xlu0 %v693, 12
    %v1164 = vpop.permute.xlu0 %1163
    %1165 = vrot.lane.b32.xlu0 %v705, 12
    %v1166 = vpop.permute.xlu0 %1165
    %1167 = vrot.lane.b32.xlu0 %v717, 12
    %v1168 = vpop.permute.xlu0 %1167
    %1169 = vrot.lane.b32.xlu0 %v729, 12
    %v1170 = vpop.permute.xlu0 %1169
    %1171 = vrot.lane.b32.xlu0 %v741, 12
    %v1172 = vpop.permute.xlu0 %1171
    %1173 = vrot.lane.b32.xlu0 %v753, 12
    %v1174 = vpop.permute.xlu0 %1173
    %1175 = vrot.lane.b32.xlu0 %v765, 12
    %v1176 = vpop.permute.xlu0 %1175
    %1177 = vrot.lane.b32.xlu0 %v777, 12
    %v1178 = vpop.permute.xlu0 %1177
    %1179 = vrot.lane.b32.xlu0 %v789, 12
    %v1180 = vpop.permute.xlu0 %1179
    %1181 = vrot.lane.b32.xlu0 %v1118, 12
    %v1182 = vpop.permute.xlu0 %1181
    %v1183 = vrot.slane %v1023, 1
    %v1184 = vrot.slane %v1093, 1
    %v1185 = vsel %vm854, %v1183, %v1184
    %v1186 = vrot.slane %v1024, 1
    %v1187 = vrot.slane %v1094, 1
    %v1188 = vsel %vm854, %v1186, %v1187
    %1189 = vrot.lane.b32.xlu0 %v860, 15
    %v1190 = vpop.permute.xlu0 %1189
    %1191 = vrot.lane.b32.xlu0 %v863, 15
    %v1192 = vpop.permute.xlu0 %1191
    %1193 = vrot.lane.b32.xlu0 %v866, 15
    %v1194 = vpop.permute.xlu0 %1193
    %1195 = vrot.lane.b32.xlu0 %v869, 15
    %v1196 = vpop.permute.xlu0 %1195
    %1197 = vrot.lane.b32.xlu0 %v872, 15
    %v1198 = vpop.permute.xlu0 %1197
    %1199 = vrot.lane.b32.xlu0 %v875, 15
    %v1200 = vpop.permute.xlu0 %1199
    %1201 = vrot.lane.b32.xlu0 %v878, 15
    %v1202 = vpop.permute.xlu0 %1201
    %1203 = vrot.lane.b32.xlu0 %v881, 15
    %v1204 = vpop.permute.xlu0 %1203
    %1205 = vrot.lane.b32.xlu0 %v884, 15
    %v1206 = vpop.permute.xlu0 %1205
    %1207 = vrot.lane.b32.xlu0 %v887, 15
    %v1208 = vpop.permute.xlu0 %1207
    %1209 = vrot.lane.b32.xlu0 %v890, 15
    %v1210 = vpop.permute.xlu0 %1209
    %1211 = vrot.lane.b32.xlu0 %v893, 15
    %v1212 = vpop.permute.xlu0 %1211
    %1213 = vrot.lane.b32.xlu0 %v896, 15
    %v1214 = vpop.permute.xlu0 %1213
    %1215 = vrot.lane.b32.xlu0 %v899, 15
    %v1216 = vpop.permute.xlu0 %1215
    %1217 = vrot.lane.b32.xlu0 %v902, 15
    %v1218 = vpop.permute.xlu0 %1217
    %1219 = vrot.lane.b32.xlu0 %v1185, 15
    %v1220 = vpop.permute.xlu0 %1219
    %1221 = vrot.lane.b32.xlu0 %v908, 15
    %v1222 = vpop.permute.xlu0 %1221
    %1223 = vrot.lane.b32.xlu0 %v911, 15
    %v1224 = vpop.permute.xlu0 %1223
    %1225 = vrot.lane.b32.xlu0 %v914, 15
    %v1226 = vpop.permute.xlu0 %1225
    %1227 = vrot.lane.b32.xlu0 %v917, 15
    %v1228 = vpop.permute.xlu0 %1227
    %1229 = vrot.lane.b32.xlu0 %v920, 15
    %v1230 = vpop.permute.xlu0 %1229
    %1231 = vrot.lane.b32.xlu0 %v923, 15
    %v1232 = vpop.permute.xlu0 %1231
    %1233 = vrot.lane.b32.xlu0 %v926, 15
    %v1234 = vpop.permute.xlu0 %1233
    %1235 = vrot.lane.b32.xlu0 %v929, 15
    %v1236 = vpop.permute.xlu0 %1235
    %1237 = vrot.lane.b32.xlu0 %v932, 15
    %v1238 = vpop.permute.xlu0 %1237
    %1239 = vrot.lane.b32.xlu0 %v935, 15
    %v1240 = vpop.permute.xlu0 %1239
    %1241 = vrot.lane.b32.xlu0 %v938, 15
    %v1242 = vpop.permute.xlu0 %1241
    %1243 = vrot.lane.b32.xlu0 %v941, 15
    %v1244 = vpop.permute.xlu0 %1243
    %1245 = vrot.lane.b32.xlu0 %v944, 15
    %v1246 = vpop.permute.xlu0 %1245
    %1247 = vrot.lane.b32.xlu0 %v947, 15
    %v1248 = vpop.permute.xlu0 %1247
    %1249 = vrot.lane.b32.xlu0 %v950, 15
    %v1250 = vpop.permute.xlu0 %1249
    %1251 = vrot.lane.b32.xlu0 %v1188, 15
    %v1252 = vpop.permute.xlu0 %1251
    %v1257 = vunpack.c.l.b16 %v92
    %v1258 = vunpack.c.l.b16 %v93
    %v1259 = vunpack.c.l.b16 %v146
    %v1260 = vunpack.c.l.b16 %v147
    %v1261 = vpack.c.b16 %v1258, %v1257
    %v1262 = vpack.c.b16 %v1260, %v1259
    %1263 = vrot.lane.b32.xlu0 %v279, 18
    %v1264 = vpop.permute.xlu0 %1263
    %1265 = vrot.lane.b32.xlu0 %v280, 18
    %v1266 = vpop.permute.xlu0 %1265
    %1267 = vrot.lane.b32.xlu0 %v281, 18
    %v1268 = vpop.permute.xlu0 %1267
    %1269 = vrot.lane.b32.xlu0 %v282, 18
    %v1270 = vpop.permute.xlu0 %1269
    %1271 = vrot.lane.b32.xlu0 %v283, 18
    %v1272 = vpop.permute.xlu0 %1271
    %1273 = vrot.lane.b32.xlu0 %v284, 18
    %v1274 = vpop.permute.xlu0 %1273
    %1275 = vrot.lane.b32.xlu0 %v285, 18
    %v1276 = vpop.permute.xlu0 %1275
    %1277 = vrot.lane.b32.xlu0 %v286, 18
    %v1278 = vpop.permute.xlu0 %1277
    %1279 = vrot.lane.b32.xlu0 %v287, 18
    %v1280 = vpop.permute.xlu0 %1279
    %1281 = vrot.lane.b32.xlu0 %v288, 18
    %v1282 = vpop.permute.xlu0 %1281
    %1283 = vrot.lane.b32.xlu0 %v289, 18
    %v1284 = vpop.permute.xlu0 %1283
    %1285 = vrot.lane.b32.xlu0 %v290, 18
    %v1286 = vpop.permute.xlu0 %1285
    %1287 = vrot.lane.b32.xlu0 %v291, 18
    %v1288 = vpop.permute.xlu0 %1287
    %1289 = vrot.lane.b32.xlu0 %v292, 18
    %v1290 = vpop.permute.xlu0 %1289
    %1291 = vrot.lane.b32.xlu0 %v1023, 18
    %v1292 = vpop.permute.xlu0 %1291
    %1293 = vrot.lane.b32.xlu0 %v1261, 18
    %v1294 = vpop.permute.xlu0 %1293
    %1295 = vrot.lane.b32.xlu0 %v295, 18
    %v1296 = vpop.permute.xlu0 %1295
    %1297 = vrot.lane.b32.xlu0 %v296, 18
    %v1298 = vpop.permute.xlu0 %1297
    %1299 = vrot.lane.b32.xlu0 %v297, 18
    %v1300 = vpop.permute.xlu0 %1299
    %1301 = vrot.lane.b32.xlu0 %v298, 18
    %v1302 = vpop.permute.xlu0 %1301
    %1303 = vrot.lane.b32.xlu0 %v299, 18
    %v1304 = vpop.permute.xlu0 %1303
    %1305 = vrot.lane.b32.xlu0 %v300, 18
    %v1306 = vpop.permute.xlu0 %1305
    %1307 = vrot.lane.b32.xlu0 %v301, 18
    %v1308 = vpop.permute.xlu0 %1307
    %1309 = vrot.lane.b32.xlu0 %v302, 18
    %v1310 = vpop.permute.xlu0 %1309
    %1311 = vrot.lane.b32.xlu0 %v303, 18
    %v1312 = vpop.permute.xlu0 %1311
    %1313 = vrot.lane.b32.xlu0 %v304, 18
    %v1314 = vpop.permute.xlu0 %1313
    %1315 = vrot.lane.b32.xlu0 %v305, 18
    %v1316 = vpop.permute.xlu0 %1315
    %1317 = vrot.lane.b32.xlu0 %v306, 18
    %v1318 = vpop.permute.xlu0 %1317
    %1319 = vrot.lane.b32.xlu0 %v307, 18
    %v1320 = vpop.permute.xlu0 %1319
    %1321 = vrot.lane.b32.xlu0 %v308, 18
    %v1322 = vpop.permute.xlu0 %1321
    %1323 = vrot.lane.b32.xlu0 %v1024, 18
    %v1324 = vpop.permute.xlu0 %1323
    %1325 = vrot.lane.b32.xlu0 %v1262, 18
    %v1326 = vpop.permute.xlu0 %1325
    %v1329 = vunpack.c.l.b16 %v94
    %v1330 = vunpack.c.l.b16 %v148
    %v1331 = vpack.c.b16 %v1329, %v1329
    %v1332 = vpack.c.b16 %v1330, %v1330
    %v1334 = vshrl.u32 %v1261, 16
    %v1336 = vshll.u32 %v1261, 16
    %v1338 = vrot.slane %v1336, 1
    %v1339 = vor.u32 %v1334, %v1338
    %v1341 = vshll.u32 %v1331, 16
    %v1343 = vrot.slane %v1341, 1
    %v1344 = vsel %vm405, %v1339, %v1343
    %v1346 = vshrl.u32 %v1262, 16
    %v1348 = vshll.u32 %v1262, 16
    %v1350 = vrot.slane %v1348, 1
    %v1351 = vor.u32 %v1346, %v1350
    %v1353 = vshll.u32 %v1332, 16
    %v1355 = vrot.slane %v1353, 1
    %v1356 = vsel %vm405, %v1351, %v1355
    %1357 = vrot.lane.b32.xlu0 %v441, 21
    %v1358 = vpop.permute.xlu0 %1357
    %1359 = vrot.lane.b32.xlu0 %v453, 21
    %v1360 = vpop.permute.xlu0 %1359
    %1361 = vrot.lane.b32.xlu0 %v465, 21
    %v1362 = vpop.permute.xlu0 %1361
    %1363 = vrot.lane.b32.xlu0 %v477, 21
    %v1364 = vpop.permute.xlu0 %1363
    %1365 = vrot.lane.b32.xlu0 %v489, 21
    %v1366 = vpop.permute.xlu0 %1365
    %1367 = vrot.lane.b32.xlu0 %v501, 21
    %v1368 = vpop.permute.xlu0 %1367
    %1369 = vrot.lane.b32.xlu0 %v513, 21
    %v1370 = vpop.permute.xlu0 %1369
    %1371 = vrot.lane.b32.xlu0 %v525, 21
    %v1372 = vpop.permute.xlu0 %1371
    %1373 = vrot.lane.b32.xlu0 %v537, 21
    %v1374 = vpop.permute.xlu0 %1373
    %1375 = vrot.lane.b32.xlu0 %v549, 21
    %v1376 = vpop.permute.xlu0 %1375
    %1377 = vrot.lane.b32.xlu0 %v561, 21
    %v1378 = vpop.permute.xlu0 %1377
    %1379 = vrot.lane.b32.xlu0 %v573, 21
    %v1380 = vpop.permute.xlu0 %1379
    %1381 = vrot.lane.b32.xlu0 %v585, 21
    %v1382 = vpop.permute.xlu0 %1381
    %1383 = vrot.lane.b32.xlu0 %v597, 21
    %v1384 = vpop.permute.xlu0 %1383
    %1385 = vrot.lane.b32.xlu0 %v1106, 21
    %v1386 = vpop.permute.xlu0 %1385
    %1387 = vrot.lane.b32.xlu0 %v1344, 21
    %v1388 = vpop.permute.xlu0 %1387
    %1389 = vrot.lane.b32.xlu0 %v633, 21
    %v1390 = vpop.permute.xlu0 %1389
    %1391 = vrot.lane.b32.xlu0 %v645, 21
    %v1392 = vpop.permute.xlu0 %1391
    %1393 = vrot.lane.b32.xlu0 %v657, 21
    %v1394 = vpop.permute.xlu0 %1393
    %1395 = vrot.lane.b32.xlu0 %v669, 21
    %v1396 = vpop.permute.xlu0 %1395
    %1397 = vrot.lane.b32.xlu0 %v681, 21
    %v1398 = vpop.permute.xlu0 %1397
    %1399 = vrot.lane.b32.xlu0 %v693, 21
    %v1400 = vpop.permute.xlu0 %1399
    %1401 = vrot.lane.b32.xlu0 %v705, 21
    %v1402 = vpop.permute.xlu0 %1401
    %1403 = vrot.lane.b32.xlu0 %v717, 21
    %v1404 = vpop.permute.xlu0 %1403
    %1405 = vrot.lane.b32.xlu0 %v729, 21
    %v1406 = vpop.permute.xlu0 %1405
    %1407 = vrot.lane.b32.xlu0 %v741, 21
    %v1408 = vpop.permute.xlu0 %1407
    %1409 = vrot.lane.b32.xlu0 %v753, 21
    %v1410 = vpop.permute.xlu0 %1409
    %1411 = vrot.lane.b32.xlu0 %v765, 21
    %v1412 = vpop.permute.xlu0 %1411
    %1413 = vrot.lane.b32.xlu0 %v777, 21
    %v1414 = vpop.permute.xlu0 %1413
    %1415 = vrot.lane.b32.xlu0 %v789, 21
    %v1416 = vpop.permute.xlu0 %1415
    %1417 = vrot.lane.b32.xlu0 %v1118, 21
    %v1418 = vpop.permute.xlu0 %1417
    %1419 = vrot.lane.b32.xlu0 %v1356, 21
    %v1420 = vpop.permute.xlu0 %1419
    %v1421 = vrot.slane %v1261, 1
    %v1422 = vrot.slane %v1331, 1
    %v1423 = vsel %vm854, %v1421, %v1422
    %v1424 = vrot.slane %v1262, 1
    %v1425 = vrot.slane %v1332, 1
    %v1426 = vsel %vm854, %v1424, %v1425
    %1427 = vrot.lane.b32.xlu0 %v863, 24
    %v1428 = vpop.permute.xlu0 %1427
    %1429 = vrot.lane.b32.xlu0 %v866, 24
    %v1430 = vpop.permute.xlu0 %1429
    %1431 = vrot.lane.b32.xlu0 %v869, 24
    %v1432 = vpop.permute.xlu0 %1431
    %1433 = vrot.lane.b32.xlu0 %v872, 24
    %v1434 = vpop.permute.xlu0 %1433
    %1435 = vrot.lane.b32.xlu0 %v875, 24
    %v1436 = vpop.permute.xlu0 %1435
    %1437 = vrot.lane.b32.xlu0 %v878, 24
    %v1438 = vpop.permute.xlu0 %1437
    %1439 = vrot.lane.b32.xlu0 %v881, 24
    %v1440 = vpop.permute.xlu0 %1439
    %1441 = vrot.lane.b32.xlu0 %v884, 24
    %v1442 = vpop.permute.xlu0 %1441
    %1443 = vrot.lane.b32.xlu0 %v887, 24
    %v1444 = vpop.permute.xlu0 %1443
    %1445 = vrot.lane.b32.xlu0 %v890, 24
    %v1446 = vpop.permute.xlu0 %1445
    %1447 = vrot.lane.b32.xlu0 %v893, 24
    %v1448 = vpop.permute.xlu0 %1447
    %1449 = vrot.lane.b32.xlu0 %v896, 24
    %v1450 = vpop.permute.xlu0 %1449
    %1451 = vrot.lane.b32.xlu0 %v899, 24
    %v1452 = vpop.permute.xlu0 %1451
    %1453 = vrot.lane.b32.xlu0 %v902, 24
    %v1454 = vpop.permute.xlu0 %1453
    %1455 = vrot.lane.b32.xlu0 %v1185, 24
    %v1456 = vpop.permute.xlu0 %1455
    %1457 = vrot.lane.b32.xlu0 %v1423, 24
    %v1458 = vpop.permute.xlu0 %1457
    %1459 = vrot.lane.b32.xlu0 %v911, 24
    %v1460 = vpop.permute.xlu0 %1459
    %1461 = vrot.lane.b32.xlu0 %v914, 24
    %v1462 = vpop.permute.xlu0 %1461
    %1463 = vrot.lane.b32.xlu0 %v917, 24
    %v1464 = vpop.permute.xlu0 %1463
    %1465 = vrot.lane.b32.xlu0 %v920, 24
    %v1466 = vpop.permute.xlu0 %1465
    %1467 = vrot.lane.b32.xlu0 %v923, 24
    %v1468 = vpop.permute.xlu0 %1467
    %1469 = vrot.lane.b32.xlu0 %v926, 24
    %v1470 = vpop.permute.xlu0 %1469
    %1471 = vrot.lane.b32.xlu0 %v929, 24
    %v1472 = vpop.permute.xlu0 %1471
    %1473 = vrot.lane.b32.xlu0 %v932, 24
    %v1474 = vpop.permute.xlu0 %1473
    %1475 = vrot.lane.b32.xlu0 %v935, 24
    %v1476 = vpop.permute.xlu0 %1475
    %1477 = vrot.lane.b32.xlu0 %v938, 24
    %v1478 = vpop.permute.xlu0 %1477
    %1479 = vrot.lane.b32.xlu0 %v941, 24
    %v1480 = vpop.permute.xlu0 %1479
    %1481 = vrot.lane.b32.xlu0 %v944, 24
    %v1482 = vpop.permute.xlu0 %1481
    %1483 = vrot.lane.b32.xlu0 %v947, 24
    %v1484 = vpop.permute.xlu0 %1483
    %1485 = vrot.lane.b32.xlu0 %v950, 24
    %v1486 = vpop.permute.xlu0 %1485
    %1487 = vrot.lane.b32.xlu0 %v1188, 24
    %v1488 = vpop.permute.xlu0 %1487
    %1489 = vrot.lane.b32.xlu0 %v1426, 24
    %v1490 = vpop.permute.xlu0 %1489
    %vm1491 = vcmask 23552
    %v1493 = vsel %vm1491, %v277, %v791
    %v1495 = vsel %vm1491, %v278, %v793
    %v1497 = vsel %vm1491, %v279, %v795
    %v1499 = vsel %vm1491, %v280, %v797
    %v1501 = vsel %vm1491, %v281, %v799
    %v1503 = vsel %vm1491, %v282, %v801
    %v1505 = vsel %vm1491, %v283, %v803
    %v1507 = vsel %vm1491, %v284, %v805
    %v1509 = vsel %vm1491, %v285, %v807
    %v1511 = vsel %vm1491, %v286, %v809
    %v1513 = vsel %vm1491, %v287, %v811
    %v1515 = vsel %vm1491, %v288, %v813
    %v1517 = vsel %vm1491, %v289, %v815
    %v1519 = vsel %vm1491, %v290, %v817
    %v1521 = vsel %vm1491, %v291, %v819
    %v1523 = vsel %vm1491, %v292, %v821
    %v1525 = vsel %vm1491, %v293, %v823
    %v1527 = vsel %vm1491, %v294, %v825
    %v1529 = vsel %vm1491, %v295, %v827
    %v1531 = vsel %vm1491, %v296, %v829
    %v1533 = vsel %vm1491, %v297, %v831
    %v1535 = vsel %vm1491, %v298, %v833
    %v1537 = vsel %vm1491, %v299, %v835
    %v1539 = vsel %vm1491, %v300, %v837
    %v1541 = vsel %vm1491, %v301, %v839
    %v1543 = vsel %vm1491, %v302, %v841
    %v1545 = vsel %vm1491, %v303, %v843
    %v1547 = vsel %vm1491, %v304, %v845
    %v1549 = vsel %vm1491, %v305, %v847
    %v1551 = vsel %vm1491, %v306, %v849
    %v1553 = vsel %vm1491, %v307, %v851
    %v1555 = vsel %vm1491, %v308, %v853
    %vm1556 = vcmask 48128
    %v1558 = vsel %vm1556, %v1493, %v952
    %v1560 = vsel %vm1556, %v1495, %v954
    %v1562 = vsel %vm1556, %v1497, %v956
    %v1564 = vsel %vm1556, %v1499, %v958
    %v1566 = vsel %vm1556, %v1501, %v960
    %v1568 = vsel %vm1556, %v1503, %v962
    %v1570 = vsel %vm1556, %v1505, %v964
    %v1572 = vsel %vm1556, %v1507, %v966
    %v1574 = vsel %vm1556, %v1509, %v968
    %v1576 = vsel %vm1556, %v1511, %v970
    %v1578 = vsel %vm1556, %v1513, %v972
    %v1580 = vsel %vm1556, %v1515, %v974
    %v1582 = vsel %vm1556, %v1517, %v976
    %v1584 = vsel %vm1556, %v1519, %v978
    %v1586 = vsel %vm1556, %v1521, %v980
    %v1588 = vsel %vm1556, %v1523, %v982
    %v1590 = vsel %vm1556, %v1525, %v984
    %v1592 = vsel %vm1556, %v1527, %v986
    %v1594 = vsel %vm1556, %v1529, %v988
    %v1596 = vsel %vm1556, %v1531, %v990
    %v1598 = vsel %vm1556, %v1533, %v992
    %v1600 = vsel %vm1556, %v1535, %v994
    %v1602 = vsel %vm1556, %v1537, %v996
    %v1604 = vsel %vm1556, %v1539, %v998
    %v1606 = vsel %vm1556, %v1541, %v1000
    %v1608 = vsel %vm1556, %v1543, %v1002
    %v1610 = vsel %vm1556, %v1545, %v1004
    %v1612 = vsel %vm1556, %v1547, %v1006
    %v1614 = vsel %vm1556, %v1549, %v1008
    %v1616 = vsel %vm1556, %v1551, %v1010
    %v1618 = vsel %vm1556, %v1553, %v1012
    %v1620 = vsel %vm1556, %v1555, %v1014
    %vm1621 = vcmask 72704
    %v1623 = vsel %vm1621, %v1558, %v1026
    %v1625 = vsel %vm1621, %v1560, %v1028
    %v1627 = vsel %vm1621, %v1562, %v1030
    %v1629 = vsel %vm1621, %v1564, %v1032
    %v1631 = vsel %vm1621, %v1566, %v1034
    %v1633 = vsel %vm1621, %v1568, %v1036
    %v1635 = vsel %vm1621, %v1570, %v1038
    %v1637 = vsel %vm1621, %v1572, %v1040
    %v1639 = vsel %vm1621, %v1574, %v1042
    %v1641 = vsel %vm1621, %v1576, %v1044
    %v1643 = vsel %vm1621, %v1578, %v1046
    %v1645 = vsel %vm1621, %v1580, %v1048
    %v1647 = vsel %vm1621, %v1582, %v1050
    %v1649 = vsel %vm1621, %v1584, %v1052
    %v1651 = vsel %vm1621, %v1586, %v1054
    %v1653 = vsel %vm1621, %v1588, %v1056
    %v1655 = vsel %vm1621, %v1590, %v1058
    %v1657 = vsel %vm1621, %v1592, %v1060
    %v1659 = vsel %vm1621, %v1594, %v1062
    %v1661 = vsel %vm1621, %v1596, %v1064
    %v1663 = vsel %vm1621, %v1598, %v1066
    %v1665 = vsel %vm1621, %v1600, %v1068
    %v1667 = vsel %vm1621, %v1602, %v1070
    %v1669 = vsel %vm1621, %v1604, %v1072
    %v1671 = vsel %vm1621, %v1606, %v1074
    %v1673 = vsel %vm1621, %v1608, %v1076
    %v1675 = vsel %vm1621, %v1610, %v1078
    %v1677 = vsel %vm1621, %v1612, %v1080
    %v1679 = vsel %vm1621, %v1614, %v1082
    %v1681 = vsel %vm1621, %v1616, %v1084
    %v1683 = vsel %vm1621, %v1618, %v1086
    %v1685 = vsel %vm1621, %v1620, %v1088
    %vm1686 = vcmask 97280
    %v1688 = vsel %vm1686, %v1623, %v1120
    %v1690 = vsel %vm1686, %v1625, %v1122
    %v1692 = vsel %vm1686, %v1627, %v1124
    %v1694 = vsel %vm1686, %v1629, %v1126
    %v1696 = vsel %vm1686, %v1631, %v1128
    %v1698 = vsel %vm1686, %v1633, %v1130
    %v1700 = vsel %vm1686, %v1635, %v1132
    %v1702 = vsel %vm1686, %v1637, %v1134
    %v1704 = vsel %vm1686, %v1639, %v1136
    %v1706 = vsel %vm1686, %v1641, %v1138
    %v1708 = vsel %vm1686, %v1643, %v1140
    %v1710 = vsel %vm1686, %v1645, %v1142
    %v1712 = vsel %vm1686, %v1647, %v1144
    %v1714 = vsel %vm1686, %v1649, %v1146
    %v1716 = vsel %vm1686, %v1651, %v1148
    %v1718 = vsel %vm1686, %v1653, %v1150
    %v1720 = vsel %vm1686, %v1655, %v1152
    %v1722 = vsel %vm1686, %v1657, %v1154
    %v1724 = vsel %vm1686, %v1659, %v1156
    %v1726 = vsel %vm1686, %v1661, %v1158
    %v1728 = vsel %vm1686, %v1663, %v1160
    %v1730 = vsel %vm1686, %v1665, %v1162
    %v1732 = vsel %vm1686, %v1667, %v1164
    %v1734 = vsel %vm1686, %v1669, %v1166
    %v1736 = vsel %vm1686, %v1671, %v1168
    %v1738 = vsel %vm1686, %v1673, %v1170
    %v1740 = vsel %vm1686, %v1675, %v1172
    %v1742 = vsel %vm1686, %v1677, %v1174
    %v1744 = vsel %vm1686, %v1679, %v1176
    %v1746 = vsel %vm1686, %v1681, %v1178
    %v1748 = vsel %vm1686, %v1683, %v1180
    %v1750 = vsel %vm1686, %v1685, %v1182
    %vm1751 = vcmask 121856
    %v1753 = vsel %vm1751, %v1688, %v1190
    %v1755 = vsel %vm1751, %v1690, %v1192
    %v1757 = vsel %vm1751, %v1692, %v1194
    %v1759 = vsel %vm1751, %v1694, %v1196
    %v1761 = vsel %vm1751, %v1696, %v1198
    %v1763 = vsel %vm1751, %v1698, %v1200
    %v1765 = vsel %vm1751, %v1700, %v1202
    %v1767 = vsel %vm1751, %v1702, %v1204
    %v1769 = vsel %vm1751, %v1704, %v1206
    %v1771 = vsel %vm1751, %v1706, %v1208
    %v1773 = vsel %vm1751, %v1708, %v1210
    %v1775 = vsel %vm1751, %v1710, %v1212
    %v1777 = vsel %vm1751, %v1712, %v1214
    %v1779 = vsel %vm1751, %v1714, %v1216
    %v1781 = vsel %vm1751, %v1716, %v1218
    %v1783 = vsel %vm1751, %v1718, %v1220
    %v1785 = vsel %vm1751, %v1720, %v1222
    %v1787 = vsel %vm1751, %v1722, %v1224
    %v1789 = vsel %vm1751, %v1724, %v1226
    %v1791 = vsel %vm1751, %v1726, %v1228
    %v1793 = vsel %vm1751, %v1728, %v1230
    %v1795 = vsel %vm1751, %v1730, %v1232
    %v1797 = vsel %vm1751, %v1732, %v1234
    %v1799 = vsel %vm1751, %v1734, %v1236
    %v1801 = vsel %vm1751, %v1736, %v1238
    %v1803 = vsel %vm1751, %v1738, %v1240
    %v1805 = vsel %vm1751, %v1740, %v1242
    %v1807 = vsel %vm1751, %v1742, %v1244
    %v1809 = vsel %vm1751, %v1744, %v1246
    %v1811 = vsel %vm1751, %v1746, %v1248
    %v1813 = vsel %vm1751, %v1748, %v1250
    %v1815 = vsel %vm1751, %v1750, %v1252
    %vm1816 = vcmask 146432
    %v1818 = vsel %vm1816, %v1753, %v1264
    %v1820 = vsel %vm1816, %v1755, %v1266
    %v1822 = vsel %vm1816, %v1757, %v1268
    %v1824 = vsel %vm1816, %v1759, %v1270
    %v1826 = vsel %vm1816, %v1761, %v1272
    %v1828 = vsel %vm1816, %v1763, %v1274
    %v1830 = vsel %vm1816, %v1765, %v1276
    %v1832 = vsel %vm1816, %v1767, %v1278
    %v1834 = vsel %vm1816, %v1769, %v1280
    %v1836 = vsel %vm1816, %v1771, %v1282
    %v1838 = vsel %vm1816, %v1773, %v1284
    %v1840 = vsel %vm1816, %v1775, %v1286
    %v1842 = vsel %vm1816, %v1777, %v1288
    %v1844 = vsel %vm1816, %v1779, %v1290
    %v1846 = vsel %vm1816, %v1781, %v1292
    %v1848 = vsel %vm1816, %v1783, %v1294
    %v1850 = vsel %vm1816, %v1785, %v1296
    %v1852 = vsel %vm1816, %v1787, %v1298
    %v1854 = vsel %vm1816, %v1789, %v1300
    %v1856 = vsel %vm1816, %v1791, %v1302
    %v1858 = vsel %vm1816, %v1793, %v1304
    %v1860 = vsel %vm1816, %v1795, %v1306
    %v1862 = vsel %vm1816, %v1797, %v1308
    %v1864 = vsel %vm1816, %v1799, %v1310
    %v1866 = vsel %vm1816, %v1801, %v1312
    %v1868 = vsel %vm1816, %v1803, %v1314
    %v1870 = vsel %vm1816, %v1805, %v1316
    %v1872 = vsel %vm1816, %v1807, %v1318
    %v1874 = vsel %vm1816, %v1809, %v1320
    %v1876 = vsel %vm1816, %v1811, %v1322
    %v1878 = vsel %vm1816, %v1813, %v1324
    %v1880 = vsel %vm1816, %v1815, %v1326
    %vm1881 = vcmask 171008
    %v1883 = vsel %vm1881, %v1818, %v1358
    %v1885 = vsel %vm1881, %v1820, %v1360
    %v1887 = vsel %vm1881, %v1822, %v1362
    %v1889 = vsel %vm1881, %v1824, %v1364
    %v1891 = vsel %vm1881, %v1826, %v1366
    %v1893 = vsel %vm1881, %v1828, %v1368
    %v1895 = vsel %vm1881, %v1830, %v1370
    %v1897 = vsel %vm1881, %v1832, %v1372
    %v1899 = vsel %vm1881, %v1834, %v1374
    %v1901 = vsel %vm1881, %v1836, %v1376
    %v1903 = vsel %vm1881, %v1838, %v1378
    %v1905 = vsel %vm1881, %v1840, %v1380
    %v1907 = vsel %vm1881, %v1842, %v1382
    %v1909 = vsel %vm1881, %v1844, %v1384
    %v1911 = vsel %vm1881, %v1846, %v1386
    %v1913 = vsel %vm1881, %v1848, %v1388
    %v1915 = vsel %vm1881, %v1850, %v1390
    %v1917 = vsel %vm1881, %v1852, %v1392
    %v1919 = vsel %vm1881, %v1854, %v1394
    %v1921 = vsel %vm1881, %v1856, %v1396
    %v1923 = vsel %vm1881, %v1858, %v1398
    %v1925 = vsel %vm1881, %v1860, %v1400
    %v1927 = vsel %vm1881, %v1862, %v1402
    %v1929 = vsel %vm1881, %v1864, %v1404
    %v1931 = vsel %vm1881, %v1866, %v1406
    %v1933 = vsel %vm1881, %v1868, %v1408
    %v1935 = vsel %vm1881, %v1870, %v1410
    %v1937 = vsel %vm1881, %v1872, %v1412
    %v1939 = vsel %vm1881, %v1874, %v1414
    %v1941 = vsel %vm1881, %v1876, %v1416
    %v1943 = vsel %vm1881, %v1878, %v1418
    %v1945 = vsel %vm1881, %v1880, %v1420
    %vm1946 = vcmask 195584
    %v1948 = vsel %vm1946, %v1883, %v1428
    %v1950 = vsel %vm1946, %v1885, %v1430
    %v1952 = vsel %vm1946, %v1887, %v1432
    %v1954 = vsel %vm1946, %v1889, %v1434
    %v1956 = vsel %vm1946, %v1891, %v1436
    %v1958 = vsel %vm1946, %v1893, %v1438
    %v1960 = vsel %vm1946, %v1895, %v1440
    %v1962 = vsel %vm1946, %v1897, %v1442
    %v1964 = vsel %vm1946, %v1899, %v1444
    %v1966 = vsel %vm1946, %v1901, %v1446
    %v1968 = vsel %vm1946, %v1903, %v1448
    %v1970 = vsel %vm1946, %v1905, %v1450
    %v1972 = vsel %vm1946, %v1907, %v1452
    %v1974 = vsel %vm1946, %v1909, %v1454
    %v1976 = vsel %vm1946, %v1911, %v1456
    %v1978 = vsel %vm1946, %v1913, %v1458
    %v1980 = vsel %vm1946, %v1915, %v1460
    %v1982 = vsel %vm1946, %v1917, %v1462
    %v1984 = vsel %vm1946, %v1919, %v1464
    %v1986 = vsel %vm1946, %v1921, %v1466
    %v1988 = vsel %vm1946, %v1923, %v1468
    %v1990 = vsel %vm1946, %v1925, %v1470
    %v1992 = vsel %vm1946, %v1927, %v1472
    %v1994 = vsel %vm1946, %v1929, %v1474
    %v1996 = vsel %vm1946, %v1931, %v1476
    %v1998 = vsel %vm1946, %v1933, %v1478
    %v2000 = vsel %vm1946, %v1935, %v1480
    %v2002 = vsel %vm1946, %v1937, %v1482
    %v2004 = vsel %vm1946, %v1939, %v1484
    %v2006 = vsel %vm1946, %v1941, %v1486
    %v2008 = vsel %vm1946, %v1943, %v1488
    %v2010 = vsel %vm1946, %v1945, %v1490
    %v2011 = vld [vmem:[#allocation2] sm:$0xf]
    %v2012 = vld [vmem:[#allocation2 + $0x4] sm:$0xf]
    %v2013 = vld [vmem:[#allocation2 + $0x8] sm:$0xf]
    %v2014 = vld [vmem:[#allocation2 + $0xc] sm:$0x3]
    %v2015 = vld [vmem:[#allocation4] sm:$0x1]
    %v2017 = vlaneseq
    %v2018 = vshrl.u32 %v2017, 7
    %v2019 = vsub.s32 0, %v2018
    %v2020 = vrot.slane %v2015, %v2019
    %v2026 = vunpack.c.l.b16 %v2011
    %v2027 = vunpack.c.l.b16 %v2012
    %v2028 = vunpack.c.l.b16 %v2013
    %v2029 = vunpack.c.l.b16 %v2014
    %v2030 = vpack.c.b16 %v2027, %v2026
    %v2031 = vpack.c.b16 %v2029, %v2028
    %vm2033 = vcmask 220160
    %v2034 = vsel %vm2033, %v1948, 0
    %v2036 = vsel %vm2033, %v1950, 0
    %v2038 = vsel %vm2033, %v1952, 0
    %v2040 = vsel %vm2033, %v1954, 0
    %v2042 = vsel %vm2033, %v1956, 0
    %v2044 = vsel %vm2033, %v1958, 0
    %v2046 = vsel %vm2033, %v1960, 0
    %v2048 = vsel %vm2033, %v1962, 0
    %v2050 = vsel %vm2033, %v1964, 0
    %v2052 = vsel %vm2033, %v1966, 0
    %v2054 = vsel %vm2033, %v1968, 0
    %v2056 = vsel %vm2033, %v1970, 0
    %v2058 = vsel %vm2033, %v1972, 0
    %v2060 = vsel %vm2033, %v1974, 0
    %v2062 = vsel %vm2033, %v1976, 0
    %v2064 = vsel %vm2033, %v1978, 0
    %v2066 = vsel %vm2033, %v1980, 0
    %v2068 = vsel %vm2033, %v1982, 0
    %v2070 = vsel %vm2033, %v1984, 0
    %v2072 = vsel %vm2033, %v1986, 0
    %v2074 = vsel %vm2033, %v1988, 0
    %v2076 = vsel %vm2033, %v1990, 0
    %v2078 = vsel %vm2033, %v1992, 0
    %v2080 = vsel %vm2033, %v1994, 0
    %v2082 = vsel %vm2033, %v1996, 0
    %v2084 = vsel %vm2033, %v1998, 0
    %v2086 = vsel %vm2033, %v2000, 0
    %v2088 = vsel %vm2033, %v2002, 0
    %v2090 = vsel %vm2033, %v2004, 0
    %v2092 = vsel %vm2033, %v2006, 0
    %v2094 = vsel %vm2033, %v2008, 0
    %v2096 = vsel %vm2033, %v2010, 0
    %vm2098 = vcmask 1044480
    %vm2099 = vcmask 1045504
    %v2100 = vsel %vm2098, 4294967295, 65535
    %v2101 = vsel %vm2099, %v2100, 0
    %v2103 = vand.u32 %v2031, %v2101
    %2105 = vmatprep.subr.bf16.mxu0 0
    %2106 = vmatpush1.bf16.msra.mxu0 %v2030
    %2107 = vmatprep.subr.bf16.mxu0 0
    %2108 = vmatpush1.bf16.msra.mxu0 %v2103
    %2109 = vmatprep.subr.bf16.mxu0 0
    %2110 = vmatpush1.bf16.msra.mxu0 0
    %2111 = vmatprep.subr.bf16.mxu0 0
    %2112 = vmatpush1.bf16.msra.mxu0 0
    %2113 = vmatprep.subr.bf16.mxu0 0
    %2114 = vmatpush1.bf16.msra.mxu0 0
    %2115 = vmatprep.subr.bf16.mxu0 0
    %2116 = vmatpush1.bf16.msra.mxu0 0
    %2117 = vmatprep.subr.bf16.mxu0 0
    %2118 = vmatpush1.bf16.msra.mxu0 0
    %2119 = vmatprep.subr.bf16.mxu0 0
    %2120 = vmatpush1.bf16.msra.mxu0 0
    %2121 = vmatprep.subr.bf16.mxu0 0
    %2122 = vmatpush1.bf16.msra.mxu0 0
    %2123 = vmatprep.subr.bf16.mxu0 0
    %2124 = vmatpush1.bf16.msra.mxu0 0
    %2125 = vmatprep.subr.bf16.mxu0 0
    %2126 = vmatpush1.bf16.msra.mxu0 0
    %2127 = vmatprep.subr.bf16.mxu0 0
    %2128 = vmatpush1.bf16.msra.mxu0 0
    %2129 = vmatprep.subr.bf16.mxu0 0
    %2130 = vmatpush1.bf16.msra.mxu0 0
    %2131 = vmatprep.subr.bf16.mxu0 0
    %2132 = vmatpush1.bf16.msra.mxu0 0
    %2133 = vmatprep.subr.bf16.mxu0 0
    %2134 = vmatpush1.bf16.msra.mxu0 0
    %2135 = vmatprep.subr.bf16.mxu0 0
    %2136 = vmatpush1.bf16.msra.mxu0 0
    %2137 = vmatprep.mubr.bf16.mxu0 0
    %2138 = vmatmul.mubr.bf16.gmra.mrb[0].mxu0 %v2034
    %v2139 = vpop.f32.mrb[0].mxu0
    %v2140 = vadd.f32 %v2020, %v2139
    %v2141 = vpop.f32.mrb[0].mxu0
    %v2142 = vpop.f32.mrb[0].mxu0
    %v2143 = vadd.f32 %v2020, %v2142
    %v2144 = vpop.f32.mrb[0].mxu0
    %2145 = vmatprep.mubr.bf16.mxu0 0
    %2146 = vmatmul.mubr.bf16.gmra.mrb[0].mxu0 %v2036
    %v2147 = vpop.f32.mrb[0].mxu0
    %v2148 = vadd.f32 %v2020, %v2147
    %v2149 = vpop.f32.mrb[0].mxu0
    %v2150 = vpop.f32.mrb[0].mxu0
    %v2151 = vadd.f32 %v2020, %v2150
    %v2152 = vpop.f32.mrb[0].mxu0
    %2153 = vmatprep.mubr.bf16.mxu0 0
    %2154 = vmatmul.mubr.bf16.gmra.mrb[0].mxu0 %v2038
    %v2155 = vpop.f32.mrb[0].mxu0
    %v2156 = vadd.f32 %v2020, %v2155
    %v2157 = vpop.f32.mrb[0].mxu0
    %v2158 = vpop.f32.mrb[0].mxu0
    %v2159 = vadd.f32 %v2020, %v2158
    %v2160 = vpop.f32.mrb[0].mxu0
    %2161 = vmatprep.mubr.bf16.mxu0 0
    %2162 = vmatmul.mubr.bf16.gmra.mrb[0].mxu0 %v2040
    %v2163 = vpop.f32.mrb[0].mxu0
    %v2164 = vadd.f32 %v2020, %v2163
    %v2165 = vpop.f32.mrb[0].mxu0
    %v2166 = vpop.f32.mrb[0].mxu0
    %v2167 = vadd.f32 %v2020, %v2166
    %v2168 = vpop.f32.mrb[0].mxu0
    %2169 = vmatprep.mubr.bf16.mxu0 0
    %2170 = vmatmul.mubr.bf16.gmra.mrb[0].mxu0 %v2042
    %v2171 = vpop.f32.mrb[0].mxu0
    %v2172 = vadd.f32 %v2020, %v2171
    %v2173 = vpop.f32.mrb[0].mxu0
    %v2174 = vpop.f32.mrb[0].mxu0
    %v2175 = vadd.f32 %v2020, %v2174
    %v2176 = vpop.f32.mrb[0].mxu0
    %2177 = vmatprep.mubr.bf16.mxu0 0
    %2178 = vmatmul.mubr.bf16.gmra.mrb[0].mxu0 %v2044
    %v2179 = vpop.f32.mrb[0].mxu0
    %v2180 = vadd.f32 %v2020, %v2179
    %v2181 = vpop.f32.mrb[0].mxu0
    %v2182 = vpop.f32.mrb[0].mxu0
    %v2183 = vadd.f32 %v2020, %v2182
    %v2184 = vpop.f32.mrb[0].mxu0
    %2185 = vmatprep.mubr.bf16.mxu0 0
    %2186 = vmatmul.mubr.bf16.gmra.mrb[0].mxu0 %v2046
    %v2187 = vpop.f32.mrb[0].mxu0
    %v2188 = vadd.f32 %v2020, %v2187
    %v2189 = vpop.f32.mrb[0].mxu0
    %v2190 = vpop.f32.mrb[0].mxu0
    %v2191 = vadd.f32 %v2020, %v2190
    %v2192 = vpop.f32.mrb[0].mxu0
    %2193 = vmatprep.mubr.bf16.mxu0 0
    %2194 = vmatmul.mubr.bf16.gmra.mrb[0].mxu0 %v2048
    %v2195 = vpop.f32.mrb[0].mxu0
    %v2196 = vadd.f32 %v2020, %v2195
    %v2197 = vpop.f32.mrb[0].mxu0
    %v2198 = vpop.f32.mrb[0].mxu0
    %v2199 = vadd.f32 %v2020, %v2198
    %v2200 = vpop.f32.mrb[0].mxu0
    %2201 = vmatprep.mubr.bf16.mxu0 0
    %2202 = vmatmul.mubr.bf16.gmra.mrb[0].mxu0 %v2050
    %v2203 = vpop.f32.mrb[0].mxu0
    %v2204 = vadd.f32 %v2020, %v2203
    %v2205 = vpop.f32.mrb[0].mxu0
    %v2206 = vpop.f32.mrb[0].mxu0
    %v2207 = vadd.f32 %v2020, %v2206
    %v2208 = vpop.f32.mrb[0].mxu0
    %2209 = vmatprep.mubr.bf16.mxu0 0
    %2210 = vmatmul.mubr.bf16.gmra.mrb[0].mxu0 %v2052
    %v2211 = vpop.f32.mrb[0].mxu0
    %v2212 = vadd.f32 %v2020, %v2211
    %v2213 = vpop.f32.mrb[0].mxu0
    %v2214 = vpop.f32.mrb[0].mxu0
    %v2215 = vadd.f32 %v2020, %v2214
    %v2216 = vpop.f32.mrb[0].mxu0
    %2217 = vmatprep.mubr.bf16.mxu0 0
    %2218 = vmatmul.mubr.bf16.gmra.mrb[0].mxu0 %v2054
    %v2219 = vpop.f32.mrb[0].mxu0
    %v2220 = vadd.f32 %v2020, %v2219
    %v2221 = vpop.f32.mrb[0].mxu0
    %v2222 = vpop.f32.mrb[0].mxu0
    %v2223 = vadd.f32 %v2020, %v2222
    %v2224 = vpop.f32.mrb[0].mxu0
    %2225 = vmatprep.mubr.bf16.mxu0 0
    %2226 = vmatmul.mubr.bf16.gmra.mrb[0].mxu0 %v2056
    %v2227 = vpop.f32.mrb[0].mxu0
    %v2228 = vadd.f32 %v2020, %v2227
    %v2229 = vpop.f32.mrb[0].mxu0
    %v2230 = vpop.f32.mrb[0].mxu0
    %v2231 = vadd.f32 %v2020, %v2230
    %v2232 = vpop.f32.mrb[0].mxu0
    %2233 = vmatprep.mubr.bf16.mxu0 0
    %2234 = vmatmul.mubr.bf16.gmra.mrb[0].mxu0 %v2058
    %v2235 = vpop.f32.mrb[0].mxu0
    %v2236 = vadd.f32 %v2020, %v2235
    %v2237 = vpop.f32.mrb[0].mxu0
    %v2238 = vpop.f32.mrb[0].mxu0
    %v2239 = vadd.f32 %v2020, %v2238
    %v2240 = vpop.f32.mrb[0].mxu0
    %2241 = vmatprep.mubr.bf16.mxu0 0
    %2242 = vmatmul.mubr.bf16.gmra.mrb[0].mxu0 %v2060
    %v2243 = vpop.f32.mrb[0].mxu0
    %v2244 = vadd.f32 %v2020, %v2243
    %v2245 = vpop.f32.mrb[0].mxu0
    %v2246 = vpop.f32.mrb[0].mxu0
    %v2247 = vadd.f32 %v2020, %v2246
    %v2248 = vpop.f32.mrb[0].mxu0
    %2249 = vmatprep.mubr.bf16.mxu0 0
    %2250 = vmatmul.mubr.bf16.gmra.mrb[0].mxu0 %v2062
    %v2251 = vpop.f32.mrb[0].mxu0
    %v2252 = vadd.f32 %v2020, %v2251
    %v2253 = vpop.f32.mrb[0].mxu0
    %v2254 = vpop.f32.mrb[0].mxu0
    %v2255 = vadd.f32 %v2020, %v2254
    %v2256 = vpop.f32.mrb[0].mxu0
    %2257 = vmatprep.mubr.bf16.mxu0 0
    %2258 = vmatmul.mubr.bf16.gmra.mrb[0].mxu0 %v2064
    %v2259 = vpop.f32.mrb[0].mxu0
    %v2260 = vadd.f32 %v2020, %v2259
    %v2261 = vpop.f32.mrb[0].mxu0
    %v2262 = vpop.f32.mrb[0].mxu0
    %v2263 = vadd.f32 %v2020, %v2262
    %v2264 = vpop.f32.mrb[0].mxu0
    %2265 = vmatprep.mubr.bf16.mxu0 0
    %2266 = vmatmul.mubr.bf16.gmra.mrb[0].mxu0 %v2066
    %v2267 = vpop.f32.mrb[0].mxu0
    %v2268 = vadd.f32 %v2020, %v2267
    %v2269 = vpop.f32.mrb[0].mxu0
    %v2270 = vpop.f32.mrb[0].mxu0
    %v2271 = vadd.f32 %v2020, %v2270
    %v2272 = vpop.f32.mrb[0].mxu0
    %2273 = vmatprep.mubr.bf16.mxu0 0
    %2274 = vmatmul.mubr.bf16.gmra.mrb[0].mxu0 %v2068
    %v2275 = vpop.f32.mrb[0].mxu0
    %v2276 = vadd.f32 %v2020, %v2275
    %v2277 = vpop.f32.mrb[0].mxu0
    %v2278 = vpop.f32.mrb[0].mxu0
    %v2279 = vadd.f32 %v2020, %v2278
    %v2280 = vpop.f32.mrb[0].mxu0
    %2281 = vmatprep.mubr.bf16.mxu0 0
    %2282 = vmatmul.mubr.bf16.gmra.mrb[0].mxu0 %v2070
    %v2283 = vpop.f32.mrb[0].mxu0
    %v2284 = vadd.f32 %v2020, %v2283
    %v2285 = vpop.f32.mrb[0].mxu0
    %v2286 = vpop.f32.mrb[0].mxu0
    %v2287 = vadd.f32 %v2020, %v2286
    %v2288 = vpop.f32.mrb[0].mxu0
    %2289 = vmatprep.mubr.bf16.mxu0 0
    %2290 = vmatmul.mubr.bf16.gmra.mrb[0].mxu0 %v2072
    %v2291 = vpop.f32.mrb[0].mxu0
    %v2292 = vadd.f32 %v2020, %v2291
    %v2293 = vpop.f32.mrb[0].mxu0
    %v2294 = vpop.f32.mrb[0].mxu0
    %v2295 = vadd.f32 %v2020, %v2294
    %v2296 = vpop.f32.mrb[0].mxu0
    %2297 = vmatprep.mubr.bf16.mxu0 0
    %2298 = vmatmul.mubr.bf16.gmra.mrb[0].mxu0 %v2074
    %v2299 = vpop.f32.mrb[0].mxu0
    %v2300 = vadd.f32 %v2020, %v2299
    %v2301 = vpop.f32.mrb[0].mxu0
    %v2302 = vpop.f32.mrb[0].mxu0
    %v2303 = vadd.f32 %v2020, %v2302
    %v2304 = vpop.f32.mrb[0].mxu0
    %2305 = vmatprep.mubr.bf16.mxu0 0
    %2306 = vmatmul.mubr.bf16.gmra.mrb[0].mxu0 %v2076
    %v2307 = vpop.f32.mrb[0].mxu0
    %v2308 = vadd.f32 %v2020, %v2307
    %v2309 = vpop.f32.mrb[0].mxu0
    %v2310 = vpop.f32.mrb[0].mxu0
    %v2311 = vadd.f32 %v2020, %v2310
    %v2312 = vpop.f32.mrb[0].mxu0
    %2313 = vmatprep.mubr.bf16.mxu0 0
    %2314 = vmatmul.mubr.bf16.gmra.mrb[0].mxu0 %v2078
    %v2315 = vpop.f32.mrb[0].mxu0
    %v2316 = vadd.f32 %v2020, %v2315
    %v2317 = vpop.f32.mrb[0].mxu0
    %v2318 = vpop.f32.mrb[0].mxu0
    %v2319 = vadd.f32 %v2020, %v2318
    %v2320 = vpop.f32.mrb[0].mxu0
    %2321 = vmatprep.mubr.bf16.mxu0 0
    %2322 = vmatmul.mubr.bf16.gmra.mrb[0].mxu0 %v2080
    %v2323 = vpop.f32.mrb[0].mxu0
    %v2324 = vadd.f32 %v2020, %v2323
    %v2325 = vpop.f32.mrb[0].mxu0
    %v2326 = vpop.f32.mrb[0].mxu0
    %v2327 = vadd.f32 %v2020, %v2326
    %v2328 = vpop.f32.mrb[0].mxu0
    %2329 = vmatprep.mubr.bf16.mxu0 0
    %2330 = vmatmul.mubr.bf16.gmra.mrb[0].mxu0 %v2082
    %v2331 = vpop.f32.mrb[0].mxu0
    %v2332 = vadd.f32 %v2020, %v2331
    %v2333 = vpop.f32.mrb[0].mxu0
    %v2334 = vpop.f32.mrb[0].mxu0
    %v2335 = vadd.f32 %v2020, %v2334
    %v2336 = vpop.f32.mrb[0].mxu0
    %2337 = vmatprep.mubr.bf16.mxu0 0
    %2338 = vmatmul.mubr.bf16.gmra.mrb[0].mxu0 %v2084
    %v2339 = vpop.f32.mrb[0].mxu0
    %v2340 = vadd.f32 %v2020, %v2339
    %v2341 = vpop.f32.mrb[0].mxu0
    %v2342 = vpop.f32.mrb[0].mxu0
    %v2343 = vadd.f32 %v2020, %v2342
    %v2344 = vpop.f32.mrb[0].mxu0
    %2345 = vmatprep.mubr.bf16.mxu0 0
    %2346 = vmatmul.mubr.bf16.gmra.mrb[0].mxu0 %v2086
    %v2347 = vpop.f32.mrb[0].mxu0
    %v2348 = vadd.f32 %v2020, %v2347
    %v2349 = vpop.f32.mrb[0].mxu0
    %v2350 = vpop.f32.mrb[0].mxu0
    %v2351 = vadd.f32 %v2020, %v2350
    %v2352 = vpop.f32.mrb[0].mxu0
    %2353 = vmatprep.mubr.bf16.mxu0 0
    %2354 = vmatmul.mubr.bf16.gmra.mrb[0].mxu0 %v2088
    %v2355 = vpop.f32.mrb[0].mxu0
    %v2356 = vadd.f32 %v2020, %v2355
    %v2357 = vpop.f32.mrb[0].mxu0
    %v2358 = vpop.f32.mrb[0].mxu0
    %v2359 = vadd.f32 %v2020, %v2358
    %v2360 = vpop.f32.mrb[0].mxu0
    %2361 = vmatprep.mubr.bf16.mxu0 0
    %2362 = vmatmul.mubr.bf16.gmra.mrb[0].mxu0 %v2090
    %v2363 = vpop.f32.mrb[0].mxu0
    %v2364 = vadd.f32 %v2020, %v2363
    %v2365 = vpop.f32.mrb[0].mxu0
    %v2366 = vpop.f32.mrb[0].mxu0
    %v2367 = vadd.f32 %v2020, %v2366
    %v2368 = vpop.f32.mrb[0].mxu0
    %2369 = vmatprep.mubr.bf16.mxu0 0
    %2370 = vmatmul.mubr.bf16.gmra.mrb[0].mxu0 %v2092
    %v2371 = vpop.f32.mrb[0].mxu0
    %v2372 = vadd.f32 %v2020, %v2371
    %v2373 = vpop.f32.mrb[0].mxu0
    %v2374 = vpop.f32.mrb[0].mxu0
    %v2375 = vadd.f32 %v2020, %v2374
    %v2376 = vpop.f32.mrb[0].mxu0
    %2377 = vmatprep.mubr.bf16.mxu0 0
    %2378 = vmatmul.mubr.bf16.gmra.mrb[0].mxu0 %v2094
    %v2379 = vpop.f32.mrb[0].mxu0
    %v2380 = vadd.f32 %v2020, %v2379
    %v2381 = vpop.f32.mrb[0].mxu0
    %v2382 = vpop.f32.mrb[0].mxu0
    %v2383 = vadd.f32 %v2020, %v2382
    %v2384 = vpop.f32.mrb[0].mxu0
    %2385 = vmatprep.mubr.bf16.mxu0 0
    %2386 = vmatmul.mubr.bf16.gmra.mrb[0].mxu0 %v2096
    %v2387 = vpop.f32.mrb[0].mxu0
    %v2388 = vadd.f32 %v2020, %v2387
    %v2389 = vpop.f32.mrb[0].mxu0
    %v2390 = vpop.f32.mrb[0].mxu0
    %v2391 = vadd.f32 %v2020, %v2390
    %v2392 = vpop.f32.mrb[0].mxu0
    %2393 = vdwg.mxu0
    %v2394 = vmax.f32 %v2140, 0.0
    %v2395 = vmax.f32 %v2143, 0.0
    %v2396 = vmax.f32 %v2148, 0.0
    %v2397 = vmax.f32 %v2151, 0.0
    %v2398 = vmax.f32 %v2156, 0.0
    %v2399 = vmax.f32 %v2159, 0.0
    %v2400 = vmax.f32 %v2164, 0.0
    %v2401 = vmax.f32 %v2167, 0.0
    %v2402 = vmax.f32 %v2172, 0.0
    %v2403 = vmax.f32 %v2175, 0.0
    %v2404 = vmax.f32 %v2180, 0.0
    %v2405 = vmax.f32 %v2183, 0.0
    %v2406 = vmax.f32 %v2188, 0.0
    %v2407 = vmax.f32 %v2191, 0.0
    %v2408 = vmax.f32 %v2196, 0.0
    %v2409 = vmax.f32 %v2199, 0.0
    %v2410 = vmax.f32 %v2204, 0.0
    %v2411 = vmax.f32 %v2207, 0.0
    %v2412 = vmax.f32 %v2212, 0.0
    %v2413 = vmax.f32 %v2215, 0.0
    %v2414 = vmax.f32 %v2220, 0.0
    %v2415 = vmax.f32 %v2223, 0.0
    %v2416 = vmax.f32 %v2228, 0.0
    %v2417 = vmax.f32 %v2231, 0.0
    %v2418 = vmax.f32 %v2236, 0.0
    %v2419 = vmax.f32 %v2239, 0.0
    %v2420 = vmax.f32 %v2244, 0.0
    %v2421 = vmax.f32 %v2247, 0.0
    %v2422 = vmax.f32 %v2252, 0.0
    %v2423 = vmax.f32 %v2255, 0.0
    %v2424 = vmax.f32 %v2260, 0.0
    %v2425 = vmax.f32 %v2263, 0.0
    %v2426 = vmax.f32 %v2268, 0.0
    %v2427 = vmax.f32 %v2271, 0.0
    %v2428 = vmax.f32 %v2276, 0.0
    %v2429 = vmax.f32 %v2279, 0.0
    %v2430 = vmax.f32 %v2284, 0.0
    %v2431 = vmax.f32 %v2287, 0.0
    %v2432 = vmax.f32 %v2292, 0.0
    %v2433 = vmax.f32 %v2295, 0.0
    %v2434 = vmax.f32 %v2300, 0.0
    %v2435 = vmax.f32 %v2303, 0.0
    %v2436 = vmax.f32 %v2308, 0.0
    %v2437 = vmax.f32 %v2311, 0.0
    %v2438 = vmax.f32 %v2316, 0.0
    %v2439 = vmax.f32 %v2319, 0.0
    %v2440 = vmax.f32 %v2324, 0.0
    %v2441 = vmax.f32 %v2327, 0.0
    %v2442 = vmax.f32 %v2332, 0.0
    %v2443 = vmax.f32 %v2335, 0.0
    %v2444 = vmax.f32 %v2340, 0.0
    %v2445 = vmax.f32 %v2343, 0.0
    %v2446 = vmax.f32 %v2348, 0.0
    %v2447 = vmax.f32 %v2351, 0.0
    %v2448 = vmax.f32 %v2356, 0.0
    %v2449 = vmax.f32 %v2359, 0.0
    %v2450 = vmax.f32 %v2364, 0.0
    %v2451 = vmax.f32 %v2367, 0.0
    %v2452 = vmax.f32 %v2372, 0.0
    %v2453 = vmax.f32 %v2375, 0.0
    %v2454 = vmax.f32 %v2380, 0.0
    %v2455 = vmax.f32 %v2383, 0.0
    %v2456 = vmax.f32 %v2388, 0.0
    %v2457 = vmax.f32 %v2391, 0.0
    %v2522 = vcombine.high %v2394, %v2394
    %v2524 = vunpack.c.l.s4 1983009808
    %v2525 = vunpack.c.0.s8 %v2524
    %v2526 = vlaneseq
    %v2527 = vshrl.u32 %v2526, 7
    %v2528 = vsub.s32 %v2525, %v2527
    %v2529 = vrot.slane %v2394, %v2528
    %v2531 = vunpack.c.l.s4 1983009808
    %v2532 = vunpack.c.0.s8 %v2531
    %v2533 = vlaneseq
    %v2534 = vshrl.u32 %v2533, 7
    %v2535 = vsub.s32 %v2532, %v2534
    %v2536 = vrot.slane %v2522, %v2535
    %v2537 = vcombine.high %v2529, %v2529
    %v2538 = vcombine.high %v2536, %v2536
    %v2539 = vcombine.high %v2395, %v2395
    %v2541 = vunpack.c.l.s4 1983009808
    %v2542 = vunpack.c.0.s8 %v2541
    %v2543 = vlaneseq
    %v2544 = vshrl.u32 %v2543, 7
    %v2545 = vsub.s32 %v2542, %v2544
    %v2546 = vrot.slane %v2395, %v2545
    %v2548 = vunpack.c.l.s4 1983009808
    %v2549 = vunpack.c.0.s8 %v2548
    %v2550 = vlaneseq
    %v2551 = vshrl.u32 %v2550, 7
    %v2552 = vsub.s32 %v2549, %v2551
    %v2553 = vrot.slane %v2539, %v2552
    %v2554 = vcombine.high %v2546, %v2546
    %v2555 = vcombine.high %v2553, %v2553
    %v2556 = vcombine.high %v2396, %v2396
    %v2558 = vunpack.c.l.s4 1983009808
    %v2559 = vunpack.c.0.s8 %v2558
    %v2560 = vlaneseq
    %v2561 = vshrl.u32 %v2560, 7
    %v2562 = vsub.s32 %v2559, %v2561
    %v2563 = vrot.slane %v2396, %v2562
    %v2565 = vunpack.c.l.s4 1983009808
    %v2566 = vunpack.c.0.s8 %v2565
    %v2567 = vlaneseq
    %v2568 = vshrl.u32 %v2567, 7
    %v2569 = vsub.s32 %v2566, %v2568
    %v2570 = vrot.slane %v2556, %v2569
    %v2571 = vcombine.high %v2563, %v2563
    %v2572 = vcombine.high %v2570, %v2570
    %v2573 = vcombine.high %v2397, %v2397
    %v2575 = vunpack.c.l.s4 1983009808
    %v2576 = vunpack.c.0.s8 %v2575
    %v2577 = vlaneseq
    %v2578 = vshrl.u32 %v2577, 7
    %v2579 = vsub.s32 %v2576, %v2578
    %v2580 = vrot.slane %v2397, %v2579
    %v2582 = vunpack.c.l.s4 1983009808
    %v2583 = vunpack.c.0.s8 %v2582
    %v2584 = vlaneseq
    %v2585 = vshrl.u32 %v2584, 7
    %v2586 = vsub.s32 %v2583, %v2585
    %v2587 = vrot.slane %v2573, %v2586
    %v2588 = vcombine.high %v2580, %v2580
    %v2589 = vcombine.high %v2587, %v2587
    %v2590 = vcombine.high %v2398, %v2398
    %v2592 = vunpack.c.l.s4 1983009808
    %v2593 = vunpack.c.0.s8 %v2592
    %v2594 = vlaneseq
    %v2595 = vshrl.u32 %v2594, 7
    %v2596 = vsub.s32 %v2593, %v2595
    %v2597 = vrot.slane %v2398, %v2596
    %v2599 = vunpack.c.l.s4 1983009808
    %v2600 = vunpack.c.0.s8 %v2599
    %v2601 = vlaneseq
    %v2602 = vshrl.u32 %v2601, 7
    %v2603 = vsub.s32 %v2600, %v2602
    %v2604 = vrot.slane %v2590, %v2603
    %v2605 = vcombine.high %v2597, %v2597
    %v2606 = vcombine.high %v2604, %v2604
    %v2607 = vcombine.high %v2399, %v2399
    %v2609 = vunpack.c.l.s4 1983009808
    %v2610 = vunpack.c.0.s8 %v2609
    %v2611 = vlaneseq
    %v2612 = vshrl.u32 %v2611, 7
    %v2613 = vsub.s32 %v2610, %v2612
    %v2614 = vrot.slane %v2399, %v2613
    %v2616 = vunpack.c.l.s4 1983009808
    %v2617 = vunpack.c.0.s8 %v2616
    %v2618 = vlaneseq
    %v2619 = vshrl.u32 %v2618, 7
    %v2620 = vsub.s32 %v2617, %v2619
    %v2621 = vrot.slane %v2607, %v2620
    %v2622 = vcombine.high %v2614, %v2614
    %v2623 = vcombine.high %v2621, %v2621
    %v2624 = vcombine.high %v2400, %v2400
    %v2626 = vunpack.c.l.s4 1983009808
    %v2627 = vunpack.c.0.s8 %v2626
    %v2628 = vlaneseq
    %v2629 = vshrl.u32 %v2628, 7
    %v2630 = vsub.s32 %v2627, %v2629
    %v2631 = vrot.slane %v2400, %v2630
    %v2633 = vunpack.c.l.s4 1983009808
    %v2634 = vunpack.c.0.s8 %v2633
    %v2635 = vlaneseq
    %v2636 = vshrl.u32 %v2635, 7
    %v2637 = vsub.s32 %v2634, %v2636
    %v2638 = vrot.slane %v2624, %v2637
    %v2639 = vcombine.high %v2631, %v2631
    %v2640 = vcombine.high %v2638, %v2638
    %v2641 = vcombine.high %v2401, %v2401
    %v2643 = vunpack.c.l.s4 1983009808
    %v2644 = vunpack.c.0.s8 %v2643
    %v2645 = vlaneseq
    %v2646 = vshrl.u32 %v2645, 7
    %v2647 = vsub.s32 %v2644, %v2646
    %v2648 = vrot.slane %v2401, %v2647
    %v2650 = vunpack.c.l.s4 1983009808
    %v2651 = vunpack.c.0.s8 %v2650
    %v2652 = vlaneseq
    %v2653 = vshrl.u32 %v2652, 7
    %v2654 = vsub.s32 %v2651, %v2653
    %v2655 = vrot.slane %v2641, %v2654
    %v2656 = vcombine.high %v2648, %v2648
    %v2657 = vcombine.high %v2655, %v2655
    %v2658 = vcombine.high %v2402, %v2402
    %v2660 = vunpack.c.l.s4 1983009808
    %v2661 = vunpack.c.0.s8 %v2660
    %v2662 = vlaneseq
    %v2663 = vshrl.u32 %v2662, 7
    %v2664 = vsub.s32 %v2661, %v2663
    %v2665 = vrot.slane %v2402, %v2664
    %v2667 = vunpack.c.l.s4 1983009808
    %v2668 = vunpack.c.0.s8 %v2667
    %v2669 = vlaneseq
    %v2670 = vshrl.u32 %v2669, 7
    %v2671 = vsub.s32 %v2668, %v2670
    %v2672 = vrot.slane %v2658, %v2671
    %v2673 = vcombine.high %v2665, %v2665
    %v2674 = vcombine.high %v2672, %v2672
    %v2675 = vcombine.high %v2403, %v2403
    %v2677 = vunpack.c.l.s4 1983009808
    %v2678 = vunpack.c.0.s8 %v2677
    %v2679 = vlaneseq
    %v2680 = vshrl.u32 %v2679, 7
    %v2681 = vsub.s32 %v2678, %v2680
    %v2682 = vrot.slane %v2403, %v2681
    %v2684 = vunpack.c.l.s4 1983009808
    %v2685 = vunpack.c.0.s8 %v2684
    %v2686 = vlaneseq
    %v2687 = vshrl.u32 %v2686, 7
    %v2688 = vsub.s32 %v2685, %v2687
    %v2689 = vrot.slane %v2675, %v2688
    %v2690 = vcombine.high %v2682, %v2682
    %v2691 = vcombine.high %v2689, %v2689
    %v2692 = vcombine.high %v2404, %v2404
    %v2694 = vunpack.c.l.s4 1983009808
    %v2695 = vunpack.c.0.s8 %v2694
    %v2696 = vlaneseq
    %v2697 = vshrl.u32 %v2696, 7
    %v2698 = vsub.s32 %v2695, %v2697
    %v2699 = vrot.slane %v2404, %v2698
    %v2701 = vunpack.c.l.s4 1983009808
    %v2702 = vunpack.c.0.s8 %v2701
    %v2703 = vlaneseq
    %v2704 = vshrl.u32 %v2703, 7
    %v2705 = vsub.s32 %v2702, %v2704
    %v2706 = vrot.slane %v2692, %v2705
    %v2707 = vcombine.high %v2699, %v2699
    %v2708 = vcombine.high %v2706, %v2706
    %v2709 = vcombine.high %v2405, %v2405
    %v2711 = vunpack.c.l.s4 1983009808
    %v2712 = vunpack.c.0.s8 %v2711
    %v2713 = vlaneseq
    %v2714 = vshrl.u32 %v2713, 7
    %v2715 = vsub.s32 %v2712, %v2714
    %v2716 = vrot.slane %v2405, %v2715
    %v2718 = vunpack.c.l.s4 1983009808
    %v2719 = vunpack.c.0.s8 %v2718
    %v2720 = vlaneseq
    %v2721 = vshrl.u32 %v2720, 7
    %v2722 = vsub.s32 %v2719, %v2721
    %v2723 = vrot.slane %v2709, %v2722
    %v2724 = vcombine.high %v2716, %v2716
    %v2725 = vcombine.high %v2723, %v2723
    %v2726 = vcombine.high %v2406, %v2406
    %v2728 = vunpack.c.l.s4 1983009808
    %v2729 = vunpack.c.0.s8 %v2728
    %v2730 = vlaneseq
    %v2731 = vshrl.u32 %v2730, 7
    %v2732 = vsub.s32 %v2729, %v2731
    %v2733 = vrot.slane %v2406, %v2732
    %v2735 = vunpack.c.l.s4 1983009808
    %v2736 = vunpack.c.0.s8 %v2735
    %v2737 = vlaneseq
    %v2738 = vshrl.u32 %v2737, 7
    %v2739 = vsub.s32 %v2736, %v2738
    %v2740 = vrot.slane %v2726, %v2739
    %v2741 = vcombine.high %v2733, %v2733
    %v2742 = vcombine.high %v2740, %v2740
    %v2743 = vcombine.high %v2407, %v2407
    %v2745 = vunpack.c.l.s4 1983009808
    %v2746 = vunpack.c.0.s8 %v2745
    %v2747 = vlaneseq
    %v2748 = vshrl.u32 %v2747, 7
    %v2749 = vsub.s32 %v2746, %v2748
    %v2750 = vrot.slane %v2407, %v2749
    %v2752 = vunpack.c.l.s4 1983009808
    %v2753 = vunpack.c.0.s8 %v2752
    %v2754 = vlaneseq
    %v2755 = vshrl.u32 %v2754, 7
    %v2756 = vsub.s32 %v2753, %v2755
    %v2757 = vrot.slane %v2743, %v2756
    %v2758 = vcombine.high %v2750, %v2750
    %v2759 = vcombine.high %v2757, %v2757
    %v2760 = vcombine.high %v2408, %v2408
    %v2762 = vunpack.c.l.s4 1983009808
    %v2763 = vunpack.c.0.s8 %v2762
    %v2764 = vlaneseq
    %v2765 = vshrl.u32 %v2764, 7
    %v2766 = vsub.s32 %v2763, %v2765
    %v2767 = vrot.slane %v2408, %v2766
    %v2769 = vunpack.c.l.s4 1983009808
    %v2770 = vunpack.c.0.s8 %v2769
    %v2771 = vlaneseq
    %v2772 = vshrl.u32 %v2771, 7
    %v2773 = vsub.s32 %v2770, %v2772
    %v2774 = vrot.slane %v2760, %v2773
    %v2775 = vcombine.high %v2767, %v2767
    %v2776 = vcombine.high %v2774, %v2774
    %v2777 = vcombine.high %v2409, %v2409
    %v2779 = vunpack.c.l.s4 1983009808
    %v2780 = vunpack.c.0.s8 %v2779
    %v2781 = vlaneseq
    %v2782 = vshrl.u32 %v2781, 7
    %v2783 = vsub.s32 %v2780, %v2782
    %v2784 = vrot.slane %v2409, %v2783
    %v2786 = vunpack.c.l.s4 1983009808
    %v2787 = vunpack.c.0.s8 %v2786
    %v2788 = vlaneseq
    %v2789 = vshrl.u32 %v2788, 7
    %v2790 = vsub.s32 %v2787, %v2789
    %v2791 = vrot.slane %v2777, %v2790
    %v2792 = vcombine.high %v2784, %v2784
    %v2793 = vcombine.high %v2791, %v2791
    %v2794 = vcombine.high %v2410, %v2410
    %v2796 = vunpack.c.l.s4 1983009808
    %v2797 = vunpack.c.0.s8 %v2796
    %v2798 = vlaneseq
    %v2799 = vshrl.u32 %v2798, 7
    %v2800 = vsub.s32 %v2797, %v2799
    %v2801 = vrot.slane %v2410, %v2800
    %v2803 = vunpack.c.l.s4 1983009808
    %v2804 = vunpack.c.0.s8 %v2803
    %v2805 = vlaneseq
    %v2806 = vshrl.u32 %v2805, 7
    %v2807 = vsub.s32 %v2804, %v2806
    %v2808 = vrot.slane %v2794, %v2807
    %v2809 = vcombine.high %v2801, %v2801
    %v2810 = vcombine.high %v2808, %v2808
    %v2811 = vcombine.high %v2411, %v2411
    %v2813 = vunpack.c.l.s4 1983009808
    %v2814 = vunpack.c.0.s8 %v2813
    %v2815 = vlaneseq
    %v2816 = vshrl.u32 %v2815, 7
    %v2817 = vsub.s32 %v2814, %v2816
    %v2818 = vrot.slane %v2411, %v2817
    %v2820 = vunpack.c.l.s4 1983009808
    %v2821 = vunpack.c.0.s8 %v2820
    %v2822 = vlaneseq
    %v2823 = vshrl.u32 %v2822, 7
    %v2824 = vsub.s32 %v2821, %v2823
    %v2825 = vrot.slane %v2811, %v2824
    %v2826 = vcombine.high %v2818, %v2818
    %v2827 = vcombine.high %v2825, %v2825
    %v2828 = vcombine.high %v2412, %v2412
    %v2830 = vunpack.c.l.s4 1983009808
    %v2831 = vunpack.c.0.s8 %v2830
    %v2832 = vlaneseq
    %v2833 = vshrl.u32 %v2832, 7
    %v2834 = vsub.s32 %v2831, %v2833
    %v2835 = vrot.slane %v2412, %v2834
    %v2837 = vunpack.c.l.s4 1983009808
    %v2838 = vunpack.c.0.s8 %v2837
    %v2839 = vlaneseq
    %v2840 = vshrl.u32 %v2839, 7
    %v2841 = vsub.s32 %v2838, %v2840
    %v2842 = vrot.slane %v2828, %v2841
    %v2843 = vcombine.high %v2835, %v2835
    %v2844 = vcombine.high %v2842, %v2842
    %v2845 = vcombine.high %v2413, %v2413
    %v2847 = vunpack.c.l.s4 1983009808
    %v2848 = vunpack.c.0.s8 %v2847
    %v2849 = vlaneseq
    %v2850 = vshrl.u32 %v2849, 7
    %v2851 = vsub.s32 %v2848, %v2850
    %v2852 = vrot.slane %v2413, %v2851
    %v2854 = vunpack.c.l.s4 1983009808
    %v2855 = vunpack.c.0.s8 %v2854
    %v2856 = vlaneseq
    %v2857 = vshrl.u32 %v2856, 7
    %v2858 = vsub.s32 %v2855, %v2857
    %v2859 = vrot.slane %v2845, %v2858
    %v2860 = vcombine.high %v2852, %v2852
    %v2861 = vcombine.high %v2859, %v2859
    %v2862 = vcombine.high %v2414, %v2414
    %v2864 = vunpack.c.l.s4 1983009808
    %v2865 = vunpack.c.0.s8 %v2864
    %v2866 = vlaneseq
    %v2867 = vshrl.u32 %v2866, 7
    %v2868 = vsub.s32 %v2865, %v2867
    %v2869 = vrot.slane %v2414, %v2868
    %v2871 = vunpack.c.l.s4 1983009808
    %v2872 = vunpack.c.0.s8 %v2871
    %v2873 = vlaneseq
    %v2874 = vshrl.u32 %v2873, 7
    %v2875 = vsub.s32 %v2872, %v2874
    %v2876 = vrot.slane %v2862, %v2875
    %v2877 = vcombine.high %v2869, %v2869
    %v2878 = vcombine.high %v2876, %v2876
    %v2879 = vcombine.high %v2415, %v2415
    %v2881 = vunpack.c.l.s4 1983009808
    %v2882 = vunpack.c.0.s8 %v2881
    %v2883 = vlaneseq
    %v2884 = vshrl.u32 %v2883, 7
    %v2885 = vsub.s32 %v2882, %v2884
    %v2886 = vrot.slane %v2415, %v2885
    %v2888 = vunpack.c.l.s4 1983009808
    %v2889 = vunpack.c.0.s8 %v2888
    %v2890 = vlaneseq
    %v2891 = vshrl.u32 %v2890, 7
    %v2892 = vsub.s32 %v2889, %v2891
    %v2893 = vrot.slane %v2879, %v2892
    %v2894 = vcombine.high %v2886, %v2886
    %v2895 = vcombine.high %v2893, %v2893
    %v2896 = vcombine.high %v2416, %v2416
    %v2898 = vunpack.c.l.s4 1983009808
    %v2899 = vunpack.c.0.s8 %v2898
    %v2900 = vlaneseq
    %v2901 = vshrl.u32 %v2900, 7
    %v2902 = vsub.s32 %v2899, %v2901
    %v2903 = vrot.slane %v2416, %v2902
    %v2905 = vunpack.c.l.s4 1983009808
    %v2906 = vunpack.c.0.s8 %v2905
    %v2907 = vlaneseq
    %v2908 = vshrl.u32 %v2907, 7
    %v2909 = vsub.s32 %v2906, %v2908
    %v2910 = vrot.slane %v2896, %v2909
    %v2911 = vcombine.high %v2903, %v2903
    %v2912 = vcombine.high %v2910, %v2910
    %v2913 = vcombine.high %v2417, %v2417
    %v2915 = vunpack.c.l.s4 1983009808
    %v2916 = vunpack.c.0.s8 %v2915
    %v2917 = vlaneseq
    %v2918 = vshrl.u32 %v2917, 7
    %v2919 = vsub.s32 %v2916, %v2918
    %v2920 = vrot.slane %v2417, %v2919
    %v2922 = vunpack.c.l.s4 1983009808
    %v2923 = vunpack.c.0.s8 %v2922
    %v2924 = vlaneseq
    %v2925 = vshrl.u32 %v2924, 7
    %v2926 = vsub.s32 %v2923, %v2925
    %v2927 = vrot.slane %v2913, %v2926
    %v2928 = vcombine.high %v2920, %v2920
    %v2929 = vcombine.high %v2927, %v2927
    %v2930 = vcombine.high %v2418, %v2418
    %v2932 = vunpack.c.l.s4 1983009808
    %v2933 = vunpack.c.0.s8 %v2932
    %v2934 = vlaneseq
    %v2935 = vshrl.u32 %v2934, 7
    %v2936 = vsub.s32 %v2933, %v2935
    %v2937 = vrot.slane %v2418, %v2936
    %v2939 = vunpack.c.l.s4 1983009808
    %v2940 = vunpack.c.0.s8 %v2939
    %v2941 = vlaneseq
    %v2942 = vshrl.u32 %v2941, 7
    %v2943 = vsub.s32 %v2940, %v2942
    %v2944 = vrot.slane %v2930, %v2943
    %v2945 = vcombine.high %v2937, %v2937
    %v2946 = vcombine.high %v2944, %v2944
    %v2947 = vcombine.high %v2419, %v2419
    %v2949 = vunpack.c.l.s4 1983009808
    %v2950 = vunpack.c.0.s8 %v2949
    %v2951 = vlaneseq
    %v2952 = vshrl.u32 %v2951, 7
    %v2953 = vsub.s32 %v2950, %v2952
    %v2954 = vrot.slane %v2419, %v2953
    %v2956 = vunpack.c.l.s4 1983009808
    %v2957 = vunpack.c.0.s8 %v2956
    %v2958 = vlaneseq
    %v2959 = vshrl.u32 %v2958, 7
    %v2960 = vsub.s32 %v2957, %v2959
    %v2961 = vrot.slane %v2947, %v2960
    %v2962 = vcombine.high %v2954, %v2954
    %v2963 = vcombine.high %v2961, %v2961
    %v2964 = vcombine.high %v2420, %v2420
    %v2966 = vunpack.c.l.s4 1983009808
    %v2967 = vunpack.c.0.s8 %v2966
    %v2968 = vlaneseq
    %v2969 = vshrl.u32 %v2968, 7
    %v2970 = vsub.s32 %v2967, %v2969
    %v2971 = vrot.slane %v2420, %v2970
    %v2973 = vunpack.c.l.s4 1983009808
    %v2974 = vunpack.c.0.s8 %v2973
    %v2975 = vlaneseq
    %v2976 = vshrl.u32 %v2975, 7
    %v2977 = vsub.s32 %v2974, %v2976
    %v2978 = vrot.slane %v2964, %v2977
    %v2979 = vcombine.high %v2971, %v2971
    %v2980 = vcombine.high %v2978, %v2978
    %v2981 = vcombine.high %v2421, %v2421
    %v2983 = vunpack.c.l.s4 1983009808
    %v2984 = vunpack.c.0.s8 %v2983
    %v2985 = vlaneseq
    %v2986 = vshrl.u32 %v2985, 7
    %v2987 = vsub.s32 %v2984, %v2986
    %v2988 = vrot.slane %v2421, %v2987
    %v2990 = vunpack.c.l.s4 1983009808
    %v2991 = vunpack.c.0.s8 %v2990
    %v2992 = vlaneseq
    %v2993 = vshrl.u32 %v2992, 7
    %v2994 = vsub.s32 %v2991, %v2993
    %v2995 = vrot.slane %v2981, %v2994
    %v2996 = vcombine.high %v2988, %v2988
    %v2997 = vcombine.high %v2995, %v2995
    %v2998 = vcombine.high %v2422, %v2422
    %v3000 = vunpack.c.l.s4 1983009808
    %v3001 = vunpack.c.0.s8 %v3000
    %v3002 = vlaneseq
    %v3003 = vshrl.u32 %v3002, 7
    %v3004 = vsub.s32 %v3001, %v3003
    %v3005 = vrot.slane %v2422, %v3004
    %v3007 = vunpack.c.l.s4 1983009808
    %v3008 = vunpack.c.0.s8 %v3007
    %v3009 = vlaneseq
    %v3010 = vshrl.u32 %v3009, 7
    %v3011 = vsub.s32 %v3008, %v3010
    %v3012 = vrot.slane %v2998, %v3011
    %v3013 = vcombine.high %v3005, %v3005
    %v3014 = vcombine.high %v3012, %v3012
    %v3015 = vcombine.high %v2423, %v2423
    %v3017 = vunpack.c.l.s4 1983009808
    %v3018 = vunpack.c.0.s8 %v3017
    %v3019 = vlaneseq
    %v3020 = vshrl.u32 %v3019, 7
    %v3021 = vsub.s32 %v3018, %v3020
    %v3022 = vrot.slane %v2423, %v3021
    %v3024 = vunpack.c.l.s4 1983009808
    %v3025 = vunpack.c.0.s8 %v3024
    %v3026 = vlaneseq
    %v3027 = vshrl.u32 %v3026, 7
    %v3028 = vsub.s32 %v3025, %v3027
    %v3029 = vrot.slane %v3015, %v3028
    %v3030 = vcombine.high %v3022, %v3022
    %v3031 = vcombine.high %v3029, %v3029
    %v3032 = vcombine.high %v2424, %v2424
    %v3034 = vunpack.c.l.s4 1983009808
    %v3035 = vunpack.c.0.s8 %v3034
    %v3036 = vlaneseq
    %v3037 = vshrl.u32 %v3036, 7
    %v3038 = vsub.s32 %v3035, %v3037
    %v3039 = vrot.slane %v2424, %v3038
    %v3041 = vunpack.c.l.s4 1983009808
    %v3042 = vunpack.c.0.s8 %v3041
    %v3043 = vlaneseq
    %v3044 = vshrl.u32 %v3043, 7
    %v3045 = vsub.s32 %v3042, %v3044
    %v3046 = vrot.slane %v3032, %v3045
    %v3047 = vcombine.high %v3039, %v3039
    %v3048 = vcombine.high %v3046, %v3046
    %v3049 = vcombine.high %v2425, %v2425
    %v3051 = vunpack.c.l.s4 1983009808
    %v3052 = vunpack.c.0.s8 %v3051
    %v3053 = vlaneseq
    %v3054 = vshrl.u32 %v3053, 7
    %v3055 = vsub.s32 %v3052, %v3054
    %v3056 = vrot.slane %v2425, %v3055
    %v3058 = vunpack.c.l.s4 1983009808
    %v3059 = vunpack.c.0.s8 %v3058
    %v3060 = vlaneseq
    %v3061 = vshrl.u32 %v3060, 7
    %v3062 = vsub.s32 %v3059, %v3061
    %v3063 = vrot.slane %v3049, %v3062
    %v3064 = vcombine.high %v3056, %v3056
    %v3065 = vcombine.high %v3063, %v3063
    %v3066 = vcombine.high %v2426, %v2426
    %v3068 = vunpack.c.l.s4 1983009808
    %v3069 = vunpack.c.0.s8 %v3068
    %v3070 = vlaneseq
    %v3071 = vshrl.u32 %v3070, 7
    %v3072 = vsub.s32 %v3069, %v3071
    %v3073 = vrot.slane %v2426, %v3072
    %v3075 = vunpack.c.l.s4 1983009808
    %v3076 = vunpack.c.0.s8 %v3075
    %v3077 = vlaneseq
    %v3078 = vshrl.u32 %v3077, 7
    %v3079 = vsub.s32 %v3076, %v3078
    %v3080 = vrot.slane %v3066, %v3079
    %v3081 = vcombine.high %v3073, %v3073
    %v3082 = vcombine.high %v3080, %v3080
    %v3083 = vcombine.high %v2427, %v2427
    %v3085 = vunpack.c.l.s4 1983009808
    %v3086 = vunpack.c.0.s8 %v3085
    %v3087 = vlaneseq
    %v3088 = vshrl.u32 %v3087, 7
    %v3089 = vsub.s32 %v3086, %v3088
    %v3090 = vrot.slane %v2427, %v3089
    %v3092 = vunpack.c.l.s4 1983009808
    %v3093 = vunpack.c.0.s8 %v3092
    %v3094 = vlaneseq
    %v3095 = vshrl.u32 %v3094, 7
    %v3096 = vsub.s32 %v3093, %v3095
    %v3097 = vrot.slane %v3083, %v3096
    %v3098 = vcombine.high %v3090, %v3090
    %v3099 = vcombine.high %v3097, %v3097
    %v3100 = vcombine.high %v2428, %v2428
    %v3102 = vunpack.c.l.s4 1983009808
    %v3103 = vunpack.c.0.s8 %v3102
    %v3104 = vlaneseq
    %v3105 = vshrl.u32 %v3104, 7
    %v3106 = vsub.s32 %v3103, %v3105
    %v3107 = vrot.slane %v2428, %v3106
    %v3109 = vunpack.c.l.s4 1983009808
    %v3110 = vunpack.c.0.s8 %v3109
    %v3111 = vlaneseq
    %v3112 = vshrl.u32 %v3111, 7
    %v3113 = vsub.s32 %v3110, %v3112
    %v3114 = vrot.slane %v3100, %v3113
    %v3115 = vcombine.high %v3107, %v3107
    %v3116 = vcombine.high %v3114, %v3114
    %v3117 = vcombine.high %v2429, %v2429
    %v3119 = vunpack.c.l.s4 1983009808
    %v3120 = vunpack.c.0.s8 %v3119
    %v3121 = vlaneseq
    %v3122 = vshrl.u32 %v3121, 7
    %v3123 = vsub.s32 %v3120, %v3122
    %v3124 = vrot.slane %v2429, %v3123
    %v3126 = vunpack.c.l.s4 1983009808
    %v3127 = vunpack.c.0.s8 %v3126
    %v3128 = vlaneseq
    %v3129 = vshrl.u32 %v3128, 7
    %v3130 = vsub.s32 %v3127, %v3129
    %v3131 = vrot.slane %v3117, %v3130
    %v3132 = vcombine.high %v3124, %v3124
    %v3133 = vcombine.high %v3131, %v3131
    %v3134 = vcombine.high %v2430, %v2430
    %v3136 = vunpack.c.l.s4 1983009808
    %v3137 = vunpack.c.0.s8 %v3136
    %v3138 = vlaneseq
    %v3139 = vshrl.u32 %v3138, 7
    %v3140 = vsub.s32 %v3137, %v3139
    %v3141 = vrot.slane %v2430, %v3140
    %v3143 = vunpack.c.l.s4 1983009808
    %v3144 = vunpack.c.0.s8 %v3143
    %v3145 = vlaneseq
    %v3146 = vshrl.u32 %v3145, 7
    %v3147 = vsub.s32 %v3144, %v3146
    %v3148 = vrot.slane %v3134, %v3147
    %v3149 = vcombine.high %v3141, %v3141
    %v3150 = vcombine.high %v3148, %v3148
    %v3151 = vcombine.high %v2431, %v2431
    %v3153 = vunpack.c.l.s4 1983009808
    %v3154 = vunpack.c.0.s8 %v3153
    %v3155 = vlaneseq
    %v3156 = vshrl.u32 %v3155, 7
    %v3157 = vsub.s32 %v3154, %v3156
    %v3158 = vrot.slane %v2431, %v3157
    %v3160 = vunpack.c.l.s4 1983009808
    %v3161 = vunpack.c.0.s8 %v3160
    %v3162 = vlaneseq
    %v3163 = vshrl.u32 %v3162, 7
    %v3164 = vsub.s32 %v3161, %v3163
    %v3165 = vrot.slane %v3151, %v3164
    %v3166 = vcombine.high %v3158, %v3158
    %v3167 = vcombine.high %v3165, %v3165
    %v3168 = vcombine.high %v2432, %v2432
    %v3170 = vunpack.c.l.s4 1983009808
    %v3171 = vunpack.c.0.s8 %v3170
    %v3172 = vlaneseq
    %v3173 = vshrl.u32 %v3172, 7
    %v3174 = vsub.s32 %v3171, %v3173
    %v3175 = vrot.slane %v2432, %v3174
    %v3177 = vunpack.c.l.s4 1983009808
    %v3178 = vunpack.c.0.s8 %v3177
    %v3179 = vlaneseq
    %v3180 = vshrl.u32 %v3179, 7
    %v3181 = vsub.s32 %v3178, %v3180
    %v3182 = vrot.slane %v3168, %v3181
    %v3183 = vcombine.high %v3175, %v3175
    %v3184 = vcombine.high %v3182, %v3182
    %v3185 = vcombine.high %v2433, %v2433
    %v3187 = vunpack.c.l.s4 1983009808
    %v3188 = vunpack.c.0.s8 %v3187
    %v3189 = vlaneseq
    %v3190 = vshrl.u32 %v3189, 7
    %v3191 = vsub.s32 %v3188, %v3190
    %v3192 = vrot.slane %v2433, %v3191
    %v3194 = vunpack.c.l.s4 1983009808
    %v3195 = vunpack.c.0.s8 %v3194
    %v3196 = vlaneseq
    %v3197 = vshrl.u32 %v3196, 7
    %v3198 = vsub.s32 %v3195, %v3197
    %v3199 = vrot.slane %v3185, %v3198
    %v3200 = vcombine.high %v3192, %v3192
    %v3201 = vcombine.high %v3199, %v3199
    %v3202 = vcombine.high %v2434, %v2434
    %v3204 = vunpack.c.l.s4 1983009808
    %v3205 = vunpack.c.0.s8 %v3204
    %v3206 = vlaneseq
    %v3207 = vshrl.u32 %v3206, 7
    %v3208 = vsub.s32 %v3205, %v3207
    %v3209 = vrot.slane %v2434, %v3208
    %v3211 = vunpack.c.l.s4 1983009808
    %v3212 = vunpack.c.0.s8 %v3211
    %v3213 = vlaneseq
    %v3214 = vshrl.u32 %v3213, 7
    %v3215 = vsub.s32 %v3212, %v3214
    %v3216 = vrot.slane %v3202, %v3215
    %v3217 = vcombine.high %v3209, %v3209
    %v3218 = vcombine.high %v3216, %v3216
    %v3219 = vcombine.high %v2435, %v2435
    %v3221 = vunpack.c.l.s4 1983009808
    %v3222 = vunpack.c.0.s8 %v3221
    %v3223 = vlaneseq
    %v3224 = vshrl.u32 %v3223, 7
    %v3225 = vsub.s32 %v3222, %v3224
    %v3226 = vrot.slane %v2435, %v3225
    %v3228 = vunpack.c.l.s4 1983009808
    %v3229 = vunpack.c.0.s8 %v3228
    %v3230 = vlaneseq
    %v3231 = vshrl.u32 %v3230, 7
    %v3232 = vsub.s32 %v3229, %v3231
    %v3233 = vrot.slane %v3219, %v3232
    %v3234 = vcombine.high %v3226, %v3226
    %v3235 = vcombine.high %v3233, %v3233
    %v3236 = vcombine.high %v2436, %v2436
    %v3238 = vunpack.c.l.s4 1983009808
    %v3239 = vunpack.c.0.s8 %v3238
    %v3240 = vlaneseq
    %v3241 = vshrl.u32 %v3240, 7
    %v3242 = vsub.s32 %v3239, %v3241
    %v3243 = vrot.slane %v2436, %v3242
    %v3245 = vunpack.c.l.s4 1983009808
    %v3246 = vunpack.c.0.s8 %v3245
    %v3247 = vlaneseq
    %v3248 = vshrl.u32 %v3247, 7
    %v3249 = vsub.s32 %v3246, %v3248
    %v3250 = vrot.slane %v3236, %v3249
    %v3251 = vcombine.high %v3243, %v3243
    %v3252 = vcombine.high %v3250, %v3250
    %v3253 = vcombine.high %v2437, %v2437
    %v3255 = vunpack.c.l.s4 1983009808
    %v3256 = vunpack.c.0.s8 %v3255
    %v3257 = vlaneseq
    %v3258 = vshrl.u32 %v3257, 7
    %v3259 = vsub.s32 %v3256, %v3258
    %v3260 = vrot.slane %v2437, %v3259
    %v3262 = vunpack.c.l.s4 1983009808
    %v3263 = vunpack.c.0.s8 %v3262
    %v3264 = vlaneseq
    %v3265 = vshrl.u32 %v3264, 7
    %v3266 = vsub.s32 %v3263, %v3265
    %v3267 = vrot.slane %v3253, %v3266
    %v3268 = vcombine.high %v3260, %v3260
    %v3269 = vcombine.high %v3267, %v3267
    %v3270 = vcombine.high %v2438, %v2438
    %v3272 = vunpack.c.l.s4 1983009808
    %v3273 = vunpack.c.0.s8 %v3272
    %v3274 = vlaneseq
    %v3275 = vshrl.u32 %v3274, 7
    %v3276 = vsub.s32 %v3273, %v3275
    %v3277 = vrot.slane %v2438, %v3276
    %v3279 = vunpack.c.l.s4 1983009808
    %v3280 = vunpack.c.0.s8 %v3279
    %v3281 = vlaneseq
    %v3282 = vshrl.u32 %v3281, 7
    %v3283 = vsub.s32 %v3280, %v3282
    %v3284 = vrot.slane %v3270, %v3283
    %v3285 = vcombine.high %v3277, %v3277
    %v3286 = vcombine.high %v3284, %v3284
    %v3287 = vcombine.high %v2439, %v2439
    %v3289 = vunpack.c.l.s4 1983009808
    %v3290 = vunpack.c.0.s8 %v3289
    %v3291 = vlaneseq
    %v3292 = vshrl.u32 %v3291, 7
    %v3293 = vsub.s32 %v3290, %v3292
    %v3294 = vrot.slane %v2439, %v3293
    %v3296 = vunpack.c.l.s4 1983009808
    %v3297 = vunpack.c.0.s8 %v3296
    %v3298 = vlaneseq
    %v3299 = vshrl.u32 %v3298, 7
    %v3300 = vsub.s32 %v3297, %v3299
    %v3301 = vrot.slane %v3287, %v3300
    %v3302 = vcombine.high %v3294, %v3294
    %v3303 = vcombine.high %v3301, %v3301
    %v3304 = vcombine.high %v2440, %v2440
    %v3306 = vunpack.c.l.s4 1983009808
    %v3307 = vunpack.c.0.s8 %v3306
    %v3308 = vlaneseq
    %v3309 = vshrl.u32 %v3308, 7
    %v3310 = vsub.s32 %v3307, %v3309
    %v3311 = vrot.slane %v2440, %v3310
    %v3313 = vunpack.c.l.s4 1983009808
    %v3314 = vunpack.c.0.s8 %v3313
    %v3315 = vlaneseq
    %v3316 = vshrl.u32 %v3315, 7
    %v3317 = vsub.s32 %v3314, %v3316
    %v3318 = vrot.slane %v3304, %v3317
    %v3319 = vcombine.high %v3311, %v3311
    %v3320 = vcombine.high %v3318, %v3318
    %v3321 = vcombine.high %v2441, %v2441
    %v3323 = vunpack.c.l.s4 1983009808
    %v3324 = vunpack.c.0.s8 %v3323
    %v3325 = vlaneseq
    %v3326 = vshrl.u32 %v3325, 7
    %v3327 = vsub.s32 %v3324, %v3326
    %v3328 = vrot.slane %v2441, %v3327
    %v3330 = vunpack.c.l.s4 1983009808
    %v3331 = vunpack.c.0.s8 %v3330
    %v3332 = vlaneseq
    %v3333 = vshrl.u32 %v3332, 7
    %v3334 = vsub.s32 %v3331, %v3333
    %v3335 = vrot.slane %v3321, %v3334
    %v3336 = vcombine.high %v3328, %v3328
    %v3337 = vcombine.high %v3335, %v3335
    %v3338 = vcombine.high %v2442, %v2442
    %v3340 = vunpack.c.l.s4 1983009808
    %v3341 = vunpack.c.0.s8 %v3340
    %v3342 = vlaneseq
    %v3343 = vshrl.u32 %v3342, 7
    %v3344 = vsub.s32 %v3341, %v3343
    %v3345 = vrot.slane %v2442, %v3344
    %v3347 = vunpack.c.l.s4 1983009808
    %v3348 = vunpack.c.0.s8 %v3347
    %v3349 = vlaneseq
    %v3350 = vshrl.u32 %v3349, 7
    %v3351 = vsub.s32 %v3348, %v3350
    %v3352 = vrot.slane %v3338, %v3351
    %v3353 = vcombine.high %v3345, %v3345
    %v3354 = vcombine.high %v3352, %v3352
    %v3355 = vcombine.high %v2443, %v2443
    %v3357 = vunpack.c.l.s4 1983009808
    %v3358 = vunpack.c.0.s8 %v3357
    %v3359 = vlaneseq
    %v3360 = vshrl.u32 %v3359, 7
    %v3361 = vsub.s32 %v3358, %v3360
    %v3362 = vrot.slane %v2443, %v3361
    %v3364 = vunpack.c.l.s4 1983009808
    %v3365 = vunpack.c.0.s8 %v3364
    %v3366 = vlaneseq
    %v3367 = vshrl.u32 %v3366, 7
    %v3368 = vsub.s32 %v3365, %v3367
    %v3369 = vrot.slane %v3355, %v3368
    %v3370 = vcombine.high %v3362, %v3362
    %v3371 = vcombine.high %v3369, %v3369
    %v3372 = vcombine.high %v2444, %v2444
    %v3374 = vunpack.c.l.s4 1983009808
    %v3375 = vunpack.c.0.s8 %v3374
    %v3376 = vlaneseq
    %v3377 = vshrl.u32 %v3376, 7
    %v3378 = vsub.s32 %v3375, %v3377
    %v3379 = vrot.slane %v2444, %v3378
    %v3381 = vunpack.c.l.s4 1983009808
    %v3382 = vunpack.c.0.s8 %v3381
    %v3383 = vlaneseq
    %v3384 = vshrl.u32 %v3383, 7
    %v3385 = vsub.s32 %v3382, %v3384
    %v3386 = vrot.slane %v3372, %v3385
    %v3387 = vcombine.high %v3379, %v3379
    %v3388 = vcombine.high %v3386, %v3386
    %v3389 = vcombine.high %v2445, %v2445
    %v3391 = vunpack.c.l.s4 1983009808
    %v3392 = vunpack.c.0.s8 %v3391
    %v3393 = vlaneseq
    %v3394 = vshrl.u32 %v3393, 7
    %v3395 = vsub.s32 %v3392, %v3394
    %v3396 = vrot.slane %v2445, %v3395
    %v3398 = vunpack.c.l.s4 1983009808
    %v3399 = vunpack.c.0.s8 %v3398
    %v3400 = vlaneseq
    %v3401 = vshrl.u32 %v3400, 7
    %v3402 = vsub.s32 %v3399, %v3401
    %v3403 = vrot.slane %v3389, %v3402
    %v3404 = vcombine.high %v3396, %v3396
    %v3405 = vcombine.high %v3403, %v3403
    %v3406 = vcombine.high %v2446, %v2446
    %v3408 = vunpack.c.l.s4 1983009808
    %v3409 = vunpack.c.0.s8 %v3408
    %v3410 = vlaneseq
    %v3411 = vshrl.u32 %v3410, 7
    %v3412 = vsub.s32 %v3409, %v3411
    %v3413 = vrot.slane %v2446, %v3412
    %v3415 = vunpack.c.l.s4 1983009808
    %v3416 = vunpack.c.0.s8 %v3415
    %v3417 = vlaneseq
    %v3418 = vshrl.u32 %v3417, 7
    %v3419 = vsub.s32 %v3416, %v3418
    %v3420 = vrot.slane %v3406, %v3419
    %v3421 = vcombine.high %v3413, %v3413
    %v3422 = vcombine.high %v3420, %v3420
    %v3423 = vcombine.high %v2447, %v2447
    %v3425 = vunpack.c.l.s4 1983009808
    %v3426 = vunpack.c.0.s8 %v3425
    %v3427 = vlaneseq
    %v3428 = vshrl.u32 %v3427, 7
    %v3429 = vsub.s32 %v3426, %v3428
    %v3430 = vrot.slane %v2447, %v3429
    %v3432 = vunpack.c.l.s4 1983009808
    %v3433 = vunpack.c.0.s8 %v3432
    %v3434 = vlaneseq
    %v3435 = vshrl.u32 %v3434, 7
    %v3436 = vsub.s32 %v3433, %v3435
    %v3437 = vrot.slane %v3423, %v3436
    %v3438 = vcombine.high %v3430, %v3430
    %v3439 = vcombine.high %v3437, %v3437
    %v3440 = vcombine.high %v2448, %v2448
    %v3442 = vunpack.c.l.s4 1983009808
    %v3443 = vunpack.c.0.s8 %v3442
    %v3444 = vlaneseq
    %v3445 = vshrl.u32 %v3444, 7
    %v3446 = vsub.s32 %v3443, %v3445
    %v3447 = vrot.slane %v2448, %v3446
    %v3449 = vunpack.c.l.s4 1983009808
    %v3450 = vunpack.c.0.s8 %v3449
    %v3451 = vlaneseq
    %v3452 = vshrl.u32 %v3451, 7
    %v3453 = vsub.s32 %v3450, %v3452
    %v3454 = vrot.slane %v3440, %v3453
    %v3455 = vcombine.high %v3447, %v3447
    %v3456 = vcombine.high %v3454, %v3454
    %v3457 = vcombine.high %v2449, %v2449
    %v3459 = vunpack.c.l.s4 1983009808
    %v3460 = vunpack.c.0.s8 %v3459
    %v3461 = vlaneseq
    %v3462 = vshrl.u32 %v3461, 7
    %v3463 = vsub.s32 %v3460, %v3462
    %v3464 = vrot.slane %v2449, %v3463
    %v3466 = vunpack.c.l.s4 1983009808
    %v3467 = vunpack.c.0.s8 %v3466
    %v3468 = vlaneseq
    %v3469 = vshrl.u32 %v3468, 7
    %v3470 = vsub.s32 %v3467, %v3469
    %v3471 = vrot.slane %v3457, %v3470
    %v3472 = vcombine.high %v3464, %v3464
    %v3473 = vcombine.high %v3471, %v3471
    %v3474 = vcombine.high %v2450, %v2450
    %v3476 = vunpack.c.l.s4 1983009808
    %v3477 = vunpack.c.0.s8 %v3476
    %v3478 = vlaneseq
    %v3479 = vshrl.u32 %v3478, 7
    %v3480 = vsub.s32 %v3477, %v3479
    %v3481 = vrot.slane %v2450, %v3480
    %v3483 = vunpack.c.l.s4 1983009808
    %v3484 = vunpack.c.0.s8 %v3483
    %v3485 = vlaneseq
    %v3486 = vshrl.u32 %v3485, 7
    %v3487 = vsub.s32 %v3484, %v3486
    %v3488 = vrot.slane %v3474, %v3487
    %v3489 = vcombine.high %v3481, %v3481
    %v3490 = vcombine.high %v3488, %v3488
    %v3491 = vcombine.high %v2451, %v2451
    %v3493 = vunpack.c.l.s4 1983009808
    %v3494 = vunpack.c.0.s8 %v3493
    %v3495 = vlaneseq
    %v3496 = vshrl.u32 %v3495, 7
    %v3497 = vsub.s32 %v3494, %v3496
    %v3498 = vrot.slane %v2451, %v3497
    %v3500 = vunpack.c.l.s4 1983009808
    %v3501 = vunpack.c.0.s8 %v3500
    %v3502 = vlaneseq
    %v3503 = vshrl.u32 %v3502, 7
    %v3504 = vsub.s32 %v3501, %v3503
    %v3505 = vrot.slane %v3491, %v3504
    %v3506 = vcombine.high %v3498, %v3498
    %v3507 = vcombine.high %v3505, %v3505
    %v3508 = vcombine.high %v2452, %v2452
    %v3510 = vunpack.c.l.s4 1983009808
    %v3511 = vunpack.c.0.s8 %v3510
    %v3512 = vlaneseq
    %v3513 = vshrl.u32 %v3512, 7
    %v3514 = vsub.s32 %v3511, %v3513
    %v3515 = vrot.slane %v2452, %v3514
    %v3517 = vunpack.c.l.s4 1983009808
    %v3518 = vunpack.c.0.s8 %v3517
    %v3519 = vlaneseq
    %v3520 = vshrl.u32 %v3519, 7
    %v3521 = vsub.s32 %v3518, %v3520
    %v3522 = vrot.slane %v3508, %v3521
    %v3523 = vcombine.high %v3515, %v3515
    %v3524 = vcombine.high %v3522, %v3522
    %v3525 = vcombine.high %v2453, %v2453
    %v3527 = vunpack.c.l.s4 1983009808
    %v3528 = vunpack.c.0.s8 %v3527
    %v3529 = vlaneseq
    %v3530 = vshrl.u32 %v3529, 7
    %v3531 = vsub.s32 %v3528, %v3530
    %v3532 = vrot.slane %v2453, %v3531
    %v3534 = vunpack.c.l.s4 1983009808
    %v3535 = vunpack.c.0.s8 %v3534
    %v3536 = vlaneseq
    %v3537 = vshrl.u32 %v3536, 7
    %v3538 = vsub.s32 %v3535, %v3537
    %v3539 = vrot.slane %v3525, %v3538
    %v3540 = vcombine.high %v3532, %v3532
    %v3541 = vcombine.high %v3539, %v3539
    %v3542 = vcombine.high %v2454, %v2454
    %v3544 = vunpack.c.l.s4 1983009808
    %v3545 = vunpack.c.0.s8 %v3544
    %v3546 = vlaneseq
    %v3547 = vshrl.u32 %v3546, 7
    %v3548 = vsub.s32 %v3545, %v3547
    %v3549 = vrot.slane %v2454, %v3548
    %v3551 = vunpack.c.l.s4 1983009808
    %v3552 = vunpack.c.0.s8 %v3551
    %v3553 = vlaneseq
    %v3554 = vshrl.u32 %v3553, 7
    %v3555 = vsub.s32 %v3552, %v3554
    %v3556 = vrot.slane %v3542, %v3555
    %v3557 = vcombine.high %v3549, %v3549
    %v3558 = vcombine.high %v3556, %v3556
    %v3559 = vcombine.high %v2455, %v2455
    %v3561 = vunpack.c.l.s4 1983009808
    %v3562 = vunpack.c.0.s8 %v3561
    %v3563 = vlaneseq
    %v3564 = vshrl.u32 %v3563, 7
    %v3565 = vsub.s32 %v3562, %v3564
    %v3566 = vrot.slane %v2455, %v3565
    %v3568 = vunpack.c.l.s4 1983009808
    %v3569 = vunpack.c.0.s8 %v3568
    %v3570 = vlaneseq
    %v3571 = vshrl.u32 %v3570, 7
    %v3572 = vsub.s32 %v3569, %v3571
    %v3573 = vrot.slane %v3559, %v3572
    %v3574 = vcombine.high %v3566, %v3566
    %v3575 = vcombine.high %v3573, %v3573
    %v3576 = vcombine.high %v2456, %v2456
    %v3578 = vunpack.c.l.s4 1983009808
    %v3579 = vunpack.c.0.s8 %v3578
    %v3580 = vlaneseq
    %v3581 = vshrl.u32 %v3580, 7
    %v3582 = vsub.s32 %v3579, %v3581
    %v3583 = vrot.slane %v2456, %v3582
    %v3585 = vunpack.c.l.s4 1983009808
    %v3586 = vunpack.c.0.s8 %v3585
    %v3587 = vlaneseq
    %v3588 = vshrl.u32 %v3587, 7
    %v3589 = vsub.s32 %v3586, %v3588
    %v3590 = vrot.slane %v3576, %v3589
    %v3591 = vcombine.high %v3583, %v3583
    %v3592 = vcombine.high %v3590, %v3590
    %v3593 = vcombine.high %v2457, %v2457
    %v3595 = vunpack.c.l.s4 1983009808
    %v3596 = vunpack.c.0.s8 %v3595
    %v3597 = vlaneseq
    %v3598 = vshrl.u32 %v3597, 7
    %v3599 = vsub.s32 %v3596, %v3598
    %v3600 = vrot.slane %v2457, %v3599
    %v3602 = vunpack.c.l.s4 1983009808
    %v3603 = vunpack.c.0.s8 %v3602
    %v3604 = vlaneseq
    %v3605 = vshrl.u32 %v3604, 7
    %v3606 = vsub.s32 %v3603, %v3605
    %v3607 = vrot.slane %v3593, %v3606
    %v3608 = vcombine.high %v3600, %v3600
    %v3609 = vcombine.high %v3607, %v3607
    %vm3866 = vcmask 1041408
    %v3867 = vsel %vm3866, %v2529, -inf
    %v3868 = vrot.slane %v3867, 4
    %v3869 = vmax.f32 %v3867, %v3868
    %v3870 = vrot.slane %v3869, 2
    %v3871 = vmax.f32 %v3869, %v3870
    %v3872 = vrot.slane %v3871, 1
    %v3873 = vmax.f32 %v3871, %v3872
    %v3874 = vsel %vm3866, %v2537, -inf
    %v3875 = vrot.slane %v3874, 4
    %v3876 = vmax.f32 %v3874, %v3875
    %v3877 = vrot.slane %v3876, 2
    %v3878 = vmax.f32 %v3876, %v3877
    %v3879 = vrot.slane %v3878, 1
    %v3880 = vmax.f32 %v3878, %v3879
    %v3881 = vsel %vm3866, %v2536, -inf
    %v3882 = vrot.slane %v3881, 4
    %v3883 = vmax.f32 %v3881, %v3882
    %v3884 = vrot.slane %v3883, 2
    %v3885 = vmax.f32 %v3883, %v3884
    %v3886 = vrot.slane %v3885, 1
    %v3887 = vmax.f32 %v3885, %v3886
    %v3888 = vsel %vm3866, %v2538, -inf
    %v3889 = vrot.slane %v3888, 4
    %v3890 = vmax.f32 %v3888, %v3889
    %v3891 = vrot.slane %v3890, 2
    %v3892 = vmax.f32 %v3890, %v3891
    %v3893 = vrot.slane %v3892, 1
    %v3894 = vmax.f32 %v3892, %v3893
    %v3895 = vsel %vm3866, %v2546, -inf
    %v3896 = vrot.slane %v3895, 4
    %v3897 = vmax.f32 %v3895, %v3896
    %v3898 = vrot.slane %v3897, 2
    %v3899 = vmax.f32 %v3897, %v3898
    %v3900 = vrot.slane %v3899, 1
    %v3901 = vmax.f32 %v3899, %v3900
    %v3902 = vsel %vm3866, %v2554, -inf
    %v3903 = vrot.slane %v3902, 4
    %v3904 = vmax.f32 %v3902, %v3903
    %v3905 = vrot.slane %v3904, 2
    %v3906 = vmax.f32 %v3904, %v3905
    %v3907 = vrot.slane %v3906, 1
    %v3908 = vmax.f32 %v3906, %v3907
    %v3909 = vsel %vm3866, %v2553, -inf
    %v3910 = vrot.slane %v3909, 4
    %v3911 = vmax.f32 %v3909, %v3910
    %v3912 = vrot.slane %v3911, 2
    %v3913 = vmax.f32 %v3911, %v3912
    %v3914 = vrot.slane %v3913, 1
    %v3915 = vmax.f32 %v3913, %v3914
    %v3916 = vsel %vm3866, %v2555, -inf
    %v3917 = vrot.slane %v3916, 4
    %v3918 = vmax.f32 %v3916, %v3917
    %v3919 = vrot.slane %v3918, 2
    %v3920 = vmax.f32 %v3918, %v3919
    %v3921 = vrot.slane %v3920, 1
    %v3922 = vmax.f32 %v3920, %v3921
    %v3923 = vsel %vm3866, %v2563, -inf
    %v3924 = vrot.slane %v3923, 4
    %v3925 = vmax.f32 %v3923, %v3924
    %v3926 = vrot.slane %v3925, 2
    %v3927 = vmax.f32 %v3925, %v3926
    %v3928 = vrot.slane %v3927, 1
    %v3929 = vmax.f32 %v3927, %v3928
    %v3930 = vsel %vm3866, %v2571, -inf
    %v3931 = vrot.slane %v3930, 4
    %v3932 = vmax.f32 %v3930, %v3931
    %v3933 = vrot.slane %v3932, 2
    %v3934 = vmax.f32 %v3932, %v3933
    %v3935 = vrot.slane %v3934, 1
    %v3936 = vmax.f32 %v3934, %v3935
    %v3937 = vsel %vm3866, %v2570, -inf
    %v3938 = vrot.slane %v3937, 4
    %v3939 = vmax.f32 %v3937, %v3938
    %v3940 = vrot.slane %v3939, 2
    %v3941 = vmax.f32 %v3939, %v3940
    %v3942 = vrot.slane %v3941, 1
    %v3943 = vmax.f32 %v3941, %v3942
    %v3944 = vsel %vm3866, %v2572, -inf
    %v3945 = vrot.slane %v3944, 4
    %v3946 = vmax.f32 %v3944, %v3945
    %v3947 = vrot.slane %v3946, 2
    %v3948 = vmax.f32 %v3946, %v3947
    %v3949 = vrot.slane %v3948, 1
    %v3950 = vmax.f32 %v3948, %v3949
    %v3951 = vsel %vm3866, %v2580, -inf
    %v3952 = vrot.slane %v3951, 4
    %v3953 = vmax.f32 %v3951, %v3952
    %v3954 = vrot.slane %v3953, 2
    %v3955 = vmax.f32 %v3953, %v3954
    %v3956 = vrot.slane %v3955, 1
    %v3957 = vmax.f32 %v3955, %v3956
    %v3958 = vsel %vm3866, %v2588, -inf
    %v3959 = vrot.slane %v3958, 4
    %v3960 = vmax.f32 %v3958, %v3959
    %v3961 = vrot.slane %v3960, 2
    %v3962 = vmax.f32 %v3960, %v3961
    %v3963 = vrot.slane %v3962, 1
    %v3964 = vmax.f32 %v3962, %v3963
    %v3965 = vsel %vm3866, %v2587, -inf
    %v3966 = vrot.slane %v3965, 4
    %v3967 = vmax.f32 %v3965, %v3966
    %v3968 = vrot.slane %v3967, 2
    %v3969 = vmax.f32 %v3967, %v3968
    %v3970 = vrot.slane %v3969, 1
    %v3971 = vmax.f32 %v3969, %v3970
    %v3972 = vsel %vm3866, %v2589, -inf
    %v3973 = vrot.slane %v3972, 4
    %v3974 = vmax.f32 %v3972, %v3973
    %v3975 = vrot.slane %v3974, 2
    %v3976 = vmax.f32 %v3974, %v3975
    %v3977 = vrot.slane %v3976, 1
    %v3978 = vmax.f32 %v3976, %v3977
    %v3979 = vsel %vm3866, %v2597, -inf
    %v3980 = vrot.slane %v3979, 4
    %v3981 = vmax.f32 %v3979, %v3980
    %v3982 = vrot.slane %v3981, 2
    %v3983 = vmax.f32 %v3981, %v3982
    %v3984 = vrot.slane %v3983, 1
    %v3985 = vmax.f32 %v3983, %v3984
    %v3986 = vsel %vm3866, %v2605, -inf
    %v3987 = vrot.slane %v3986, 4
    %v3988 = vmax.f32 %v3986, %v3987
    %v3989 = vrot.slane %v3988, 2
    %v3990 = vmax.f32 %v3988, %v3989
    %v3991 = vrot.slane %v3990, 1
    %v3992 = vmax.f32 %v3990, %v3991
    %v3993 = vsel %vm3866, %v2604, -inf
    %v3994 = vrot.slane %v3993, 4
    %v3995 = vmax.f32 %v3993, %v3994
    %v3996 = vrot.slane %v3995, 2
    %v3997 = vmax.f32 %v3995, %v3996
    %v3998 = vrot.slane %v3997, 1
    %v3999 = vmax.f32 %v3997, %v3998
    %v4000 = vsel %vm3866, %v2606, -inf
    %v4001 = vrot.slane %v4000, 4
    %v4002 = vmax.f32 %v4000, %v4001
    %v4003 = vrot.slane %v4002, 2
    %v4004 = vmax.f32 %v4002, %v4003
    %v4005 = vrot.slane %v4004, 1
    %v4006 = vmax.f32 %v4004, %v4005
    %v4007 = vsel %vm3866, %v2614, -inf
    %v4008 = vrot.slane %v4007, 4
    %v4009 = vmax.f32 %v4007, %v4008
    %v4010 = vrot.slane %v4009, 2
    %v4011 = vmax.f32 %v4009, %v4010
    %v4012 = vrot.slane %v4011, 1
    %v4013 = vmax.f32 %v4011, %v4012
    %v4014 = vsel %vm3866, %v2622, -inf
    %v4015 = vrot.slane %v4014, 4
    %v4016 = vmax.f32 %v4014, %v4015
    %v4017 = vrot.slane %v4016, 2
    %v4018 = vmax.f32 %v4016, %v4017
    %v4019 = vrot.slane %v4018, 1
    %v4020 = vmax.f32 %v4018, %v4019
    %v4021 = vsel %vm3866, %v2621, -inf
    %v4022 = vrot.slane %v4021, 4
    %v4023 = vmax.f32 %v4021, %v4022
    %v4024 = vrot.slane %v4023, 2
    %v4025 = vmax.f32 %v4023, %v4024
    %v4026 = vrot.slane %v4025, 1
    %v4027 = vmax.f32 %v4025, %v4026
    %v4028 = vsel %vm3866, %v2623, -inf
    %v4029 = vrot.slane %v4028, 4
    %v4030 = vmax.f32 %v4028, %v4029
    %v4031 = vrot.slane %v4030, 2
    %v4032 = vmax.f32 %v4030, %v4031
    %v4033 = vrot.slane %v4032, 1
    %v4034 = vmax.f32 %v4032, %v4033
    %v4035 = vsel %vm3866, %v2631, -inf
    %v4036 = vrot.slane %v4035, 4
    %v4037 = vmax.f32 %v4035, %v4036
    %v4038 = vrot.slane %v4037, 2
    %v4039 = vmax.f32 %v4037, %v4038
    %v4040 = vrot.slane %v4039, 1
    %v4041 = vmax.f32 %v4039, %v4040
    %v4042 = vsel %vm3866, %v2639, -inf
    %v4043 = vrot.slane %v4042, 4
    %v4044 = vmax.f32 %v4042, %v4043
    %v4045 = vrot.slane %v4044, 2
    %v4046 = vmax.f32 %v4044, %v4045
    %v4047 = vrot.slane %v4046, 1
    %v4048 = vmax.f32 %v4046, %v4047
    %v4049 = vsel %vm3866, %v2638, -inf
    %v4050 = vrot.slane %v4049, 4
    %v4051 = vmax.f32 %v4049, %v4050
    %v4052 = vrot.slane %v4051, 2
    %v4053 = vmax.f32 %v4051, %v4052
    %v4054 = vrot.slane %v4053, 1
    %v4055 = vmax.f32 %v4053, %v4054
    %v4056 = vsel %vm3866, %v2640, -inf
    %v4057 = vrot.slane %v4056, 4
    %v4058 = vmax.f32 %v4056, %v4057
    %v4059 = vrot.slane %v4058, 2
    %v4060 = vmax.f32 %v4058, %v4059
    %v4061 = vrot.slane %v4060, 1
    %v4062 = vmax.f32 %v4060, %v4061
    %v4063 = vsel %vm3866, %v2648, -inf
    %v4064 = vrot.slane %v4063, 4
    %v4065 = vmax.f32 %v4063, %v4064
    %v4066 = vrot.slane %v4065, 2
    %v4067 = vmax.f32 %v4065, %v4066
    %v4068 = vrot.slane %v4067, 1
    %v4069 = vmax.f32 %v4067, %v4068
    %v4070 = vsel %vm3866, %v2656, -inf
    %v4071 = vrot.slane %v4070, 4
    %v4072 = vmax.f32 %v4070, %v4071
    %v4073 = vrot.slane %v4072, 2
    %v4074 = vmax.f32 %v4072, %v4073
    %v4075 = vrot.slane %v4074, 1
    %v4076 = vmax.f32 %v4074, %v4075
    %v4077 = vsel %vm3866, %v2655, -inf
    %v4078 = vrot.slane %v4077, 4
    %v4079 = vmax.f32 %v4077, %v4078
    %v4080 = vrot.slane %v4079, 2
    %v4081 = vmax.f32 %v4079, %v4080
    %v4082 = vrot.slane %v4081, 1
    %v4083 = vmax.f32 %v4081, %v4082
    %v4084 = vsel %vm3866, %v2657, -inf
    %v4085 = vrot.slane %v4084, 4
    %v4086 = vmax.f32 %v4084, %v4085
    %v4087 = vrot.slane %v4086, 2
    %v4088 = vmax.f32 %v4086, %v4087
    %v4089 = vrot.slane %v4088, 1
    %v4090 = vmax.f32 %v4088, %v4089
    %v4091 = vsel %vm3866, %v2665, -inf
    %v4092 = vrot.slane %v4091, 4
    %v4093 = vmax.f32 %v4091, %v4092
    %v4094 = vrot.slane %v4093, 2
    %v4095 = vmax.f32 %v4093, %v4094
    %v4096 = vrot.slane %v4095, 1
    %v4097 = vmax.f32 %v4095, %v4096
    %v4098 = vsel %vm3866, %v2673, -inf
    %v4099 = vrot.slane %v4098, 4
    %v4100 = vmax.f32 %v4098, %v4099
    %v4101 = vrot.slane %v4100, 2
    %v4102 = vmax.f32 %v4100, %v4101
    %v4103 = vrot.slane %v4102, 1
    %v4104 = vmax.f32 %v4102, %v4103
    %v4105 = vsel %vm3866, %v2672, -inf
    %v4106 = vrot.slane %v4105, 4
    %v4107 = vmax.f32 %v4105, %v4106
    %v4108 = vrot.slane %v4107, 2
    %v4109 = vmax.f32 %v4107, %v4108
    %v4110 = vrot.slane %v4109, 1
    %v4111 = vmax.f32 %v4109, %v4110
    %v4112 = vsel %vm3866, %v2674, -inf
    %v4113 = vrot.slane %v4112, 4
    %v4114 = vmax.f32 %v4112, %v4113
    %v4115 = vrot.slane %v4114, 2
    %v4116 = vmax.f32 %v4114, %v4115
    %v4117 = vrot.slane %v4116, 1
    %v4118 = vmax.f32 %v4116, %v4117
    %v4119 = vsel %vm3866, %v2682, -inf
    %v4120 = vrot.slane %v4119, 4
    %v4121 = vmax.f32 %v4119, %v4120
    %v4122 = vrot.slane %v4121, 2
    %v4123 = vmax.f32 %v4121, %v4122
    %v4124 = vrot.slane %v4123, 1
    %v4125 = vmax.f32 %v4123, %v4124
    %v4126 = vsel %vm3866, %v2690, -inf
    %v4127 = vrot.slane %v4126, 4
    %v4128 = vmax.f32 %v4126, %v4127
    %v4129 = vrot.slane %v4128, 2
    %v4130 = vmax.f32 %v4128, %v4129
    %v4131 = vrot.slane %v4130, 1
    %v4132 = vmax.f32 %v4130, %v4131
    %v4133 = vsel %vm3866, %v2689, -inf
    %v4134 = vrot.slane %v4133, 4
    %v4135 = vmax.f32 %v4133, %v4134
    %v4136 = vrot.slane %v4135, 2
    %v4137 = vmax.f32 %v4135, %v4136
    %v4138 = vrot.slane %v4137, 1
    %v4139 = vmax.f32 %v4137, %v4138
    %v4140 = vsel %vm3866, %v2691, -inf
    %v4141 = vrot.slane %v4140, 4
    %v4142 = vmax.f32 %v4140, %v4141
    %v4143 = vrot.slane %v4142, 2
    %v4144 = vmax.f32 %v4142, %v4143
    %v4145 = vrot.slane %v4144, 1
    %v4146 = vmax.f32 %v4144, %v4145
    %v4147 = vsel %vm3866, %v2699, -inf
    %v4148 = vrot.slane %v4147, 4
    %v4149 = vmax.f32 %v4147, %v4148
    %v4150 = vrot.slane %v4149, 2
    %v4151 = vmax.f32 %v4149, %v4150
    %v4152 = vrot.slane %v4151, 1
    %v4153 = vmax.f32 %v4151, %v4152
    %v4154 = vsel %vm3866, %v2707, -inf
    %v4155 = vrot.slane %v4154, 4
    %v4156 = vmax.f32 %v4154, %v4155
    %v4157 = vrot.slane %v4156, 2
    %v4158 = vmax.f32 %v4156, %v4157
    %v4159 = vrot.slane %v4158, 1
    %v4160 = vmax.f32 %v4158, %v4159
    %v4161 = vsel %vm3866, %v2706, -inf
    %v4162 = vrot.slane %v4161, 4
    %v4163 = vmax.f32 %v4161, %v4162
    %v4164 = vrot.slane %v4163, 2
    %v4165 = vmax.f32 %v4163, %v4164
    %v4166 = vrot.slane %v4165, 1
    %v4167 = vmax.f32 %v4165, %v4166
    %v4168 = vsel %vm3866, %v2708, -inf
    %v4169 = vrot.slane %v4168, 4
    %v4170 = vmax.f32 %v4168, %v4169
    %v4171 = vrot.slane %v4170, 2
    %v4172 = vmax.f32 %v4170, %v4171
    %v4173 = vrot.slane %v4172, 1
    %v4174 = vmax.f32 %v4172, %v4173
    %v4175 = vsel %vm3866, %v2716, -inf
    %v4176 = vrot.slane %v4175, 4
    %v4177 = vmax.f32 %v4175, %v4176
    %v4178 = vrot.slane %v4177, 2
    %v4179 = vmax.f32 %v4177, %v4178
    %v4180 = vrot.slane %v4179, 1
    %v4181 = vmax.f32 %v4179, %v4180
    %v4182 = vsel %vm3866, %v2724, -inf
    %v4183 = vrot.slane %v4182, 4
    %v4184 = vmax.f32 %v4182, %v4183
    %v4185 = vrot.slane %v4184, 2
    %v4186 = vmax.f32 %v4184, %v4185
    %v4187 = vrot.slane %v4186, 1
    %v4188 = vmax.f32 %v4186, %v4187
    %v4189 = vsel %vm3866, %v2723, -inf
    %v4190 = vrot.slane %v4189, 4
    %v4191 = vmax.f32 %v4189, %v4190
    %v4192 = vrot.slane %v4191, 2
    %v4193 = vmax.f32 %v4191, %v4192
    %v4194 = vrot.slane %v4193, 1
    %v4195 = vmax.f32 %v4193, %v4194
    %v4196 = vsel %vm3866, %v2725, -inf
    %v4197 = vrot.slane %v4196, 4
    %v4198 = vmax.f32 %v4196, %v4197
    %v4199 = vrot.slane %v4198, 2
    %v4200 = vmax.f32 %v4198, %v4199
    %v4201 = vrot.slane %v4200, 1
    %v4202 = vmax.f32 %v4200, %v4201
    %v4203 = vsel %vm3866, %v2733, -inf
    %v4204 = vrot.slane %v4203, 4
    %v4205 = vmax.f32 %v4203, %v4204
    %v4206 = vrot.slane %v4205, 2
    %v4207 = vmax.f32 %v4205, %v4206
    %v4208 = vrot.slane %v4207, 1
    %v4209 = vmax.f32 %v4207, %v4208
    %v4210 = vsel %vm3866, %v2741, -inf
    %v4211 = vrot.slane %v4210, 4
    %v4212 = vmax.f32 %v4210, %v4211
    %v4213 = vrot.slane %v4212, 2
    %v4214 = vmax.f32 %v4212, %v4213
    %v4215 = vrot.slane %v4214, 1
    %v4216 = vmax.f32 %v4214, %v4215
    %v4217 = vsel %vm3866, %v2740, -inf
    %v4218 = vrot.slane %v4217, 4
    %v4219 = vmax.f32 %v4217, %v4218
    %v4220 = vrot.slane %v4219, 2
    %v4221 = vmax.f32 %v4219, %v4220
    %v4222 = vrot.slane %v4221, 1
    %v4223 = vmax.f32 %v4221, %v4222
    %v4224 = vsel %vm3866, %v2742, -inf
    %v4225 = vrot.slane %v4224, 4
    %v4226 = vmax.f32 %v4224, %v4225
    %v4227 = vrot.slane %v4226, 2
    %v4228 = vmax.f32 %v4226, %v4227
    %v4229 = vrot.slane %v4228, 1
    %v4230 = vmax.f32 %v4228, %v4229
    %v4231 = vsel %vm3866, %v2750, -inf
    %v4232 = vrot.slane %v4231, 4
    %v4233 = vmax.f32 %v4231, %v4232
    %v4234 = vrot.slane %v4233, 2
    %v4235 = vmax.f32 %v4233, %v4234
    %v4236 = vrot.slane %v4235, 1
    %v4237 = vmax.f32 %v4235, %v4236
    %v4238 = vsel %vm3866, %v2758, -inf
    %v4239 = vrot.slane %v4238, 4
    %v4240 = vmax.f32 %v4238, %v4239
    %v4241 = vrot.slane %v4240, 2
    %v4242 = vmax.f32 %v4240, %v4241
    %v4243 = vrot.slane %v4242, 1
    %v4244 = vmax.f32 %v4242, %v4243
    %v4245 = vsel %vm3866, %v2757, -inf
    %v4246 = vrot.slane %v4245, 4
    %v4247 = vmax.f32 %v4245, %v4246
    %v4248 = vrot.slane %v4247, 2
    %v4249 = vmax.f32 %v4247, %v4248
    %v4250 = vrot.slane %v4249, 1
    %v4251 = vmax.f32 %v4249, %v4250
    %v4252 = vsel %vm3866, %v2759, -inf
    %v4253 = vrot.slane %v4252, 4
    %v4254 = vmax.f32 %v4252, %v4253
    %v4255 = vrot.slane %v4254, 2
    %v4256 = vmax.f32 %v4254, %v4255
    %v4257 = vrot.slane %v4256, 1
    %v4258 = vmax.f32 %v4256, %v4257
    %v4259 = vsel %vm3866, %v2767, -inf
    %v4260 = vrot.slane %v4259, 4
    %v4261 = vmax.f32 %v4259, %v4260
    %v4262 = vrot.slane %v4261, 2
    %v4263 = vmax.f32 %v4261, %v4262
    %v4264 = vrot.slane %v4263, 1
    %v4265 = vmax.f32 %v4263, %v4264
    %v4266 = vsel %vm3866, %v2775, -inf
    %v4267 = vrot.slane %v4266, 4
    %v4268 = vmax.f32 %v4266, %v4267
    %v4269 = vrot.slane %v4268, 2
    %v4270 = vmax.f32 %v4268, %v4269
    %v4271 = vrot.slane %v4270, 1
    %v4272 = vmax.f32 %v4270, %v4271
    %v4273 = vsel %vm3866, %v2774, -inf
    %v4274 = vrot.slane %v4273, 4
    %v4275 = vmax.f32 %v4273, %v4274
    %v4276 = vrot.slane %v4275, 2
    %v4277 = vmax.f32 %v4275, %v4276
    %v4278 = vrot.slane %v4277, 1
    %v4279 = vmax.f32 %v4277, %v4278
    %v4280 = vsel %vm3866, %v2776, -inf
    %v4281 = vrot.slane %v4280, 4
    %v4282 = vmax.f32 %v4280, %v4281
    %v4283 = vrot.slane %v4282, 2
    %v4284 = vmax.f32 %v4282, %v4283
    %v4285 = vrot.slane %v4284, 1
    %v4286 = vmax.f32 %v4284, %v4285
    %v4287 = vsel %vm3866, %v2784, -inf
    %v4288 = vrot.slane %v4287, 4
    %v4289 = vmax.f32 %v4287, %v4288
    %v4290 = vrot.slane %v4289, 2
    %v4291 = vmax.f32 %v4289, %v4290
    %v4292 = vrot.slane %v4291, 1
    %v4293 = vmax.f32 %v4291, %v4292
    %v4294 = vsel %vm3866, %v2792, -inf
    %v4295 = vrot.slane %v4294, 4
    %v4296 = vmax.f32 %v4294, %v4295
    %v4297 = vrot.slane %v4296, 2
    %v4298 = vmax.f32 %v4296, %v4297
    %v4299 = vrot.slane %v4298, 1
    %v4300 = vmax.f32 %v4298, %v4299
    %v4301 = vsel %vm3866, %v2791, -inf
    %v4302 = vrot.slane %v4301, 4
    %v4303 = vmax.f32 %v4301, %v4302
    %v4304 = vrot.slane %v4303, 2
    %v4305 = vmax.f32 %v4303, %v4304
    %v4306 = vrot.slane %v4305, 1
    %v4307 = vmax.f32 %v4305, %v4306
    %v4308 = vsel %vm3866, %v2793, -inf
    %v4309 = vrot.slane %v4308, 4
    %v4310 = vmax.f32 %v4308, %v4309
    %v4311 = vrot.slane %v4310, 2
    %v4312 = vmax.f32 %v4310, %v4311
    %v4313 = vrot.slane %v4312, 1
    %v4314 = vmax.f32 %v4312, %v4313
    %v4315 = vsel %vm3866, %v2801, -inf
    %v4316 = vrot.slane %v4315, 4
    %v4317 = vmax.f32 %v4315, %v4316
    %v4318 = vrot.slane %v4317, 2
    %v4319 = vmax.f32 %v4317, %v4318
    %v4320 = vrot.slane %v4319, 1
    %v4321 = vmax.f32 %v4319, %v4320
    %v4322 = vsel %vm3866, %v2809, -inf
    %v4323 = vrot.slane %v4322, 4
    %v4324 = vmax.f32 %v4322, %v4323
    %v4325 = vrot.slane %v4324, 2
    %v4326 = vmax.f32 %v4324, %v4325
    %v4327 = vrot.slane %v4326, 1
    %v4328 = vmax.f32 %v4326, %v4327
    %v4329 = vsel %vm3866, %v2808, -inf
    %v4330 = vrot.slane %v4329, 4
    %v4331 = vmax.f32 %v4329, %v4330
    %v4332 = vrot.slane %v4331, 2
    %v4333 = vmax.f32 %v4331, %v4332
    %v4334 = vrot.slane %v4333, 1
    %v4335 = vmax.f32 %v4333, %v4334
    %v4336 = vsel %vm3866, %v2810, -inf
    %v4337 = vrot.slane %v4336, 4
    %v4338 = vmax.f32 %v4336, %v4337
    %v4339 = vrot.slane %v4338, 2
    %v4340 = vmax.f32 %v4338, %v4339
    %v4341 = vrot.slane %v4340, 1
    %v4342 = vmax.f32 %v4340, %v4341
    %v4343 = vsel %vm3866, %v2818, -inf
    %v4344 = vrot.slane %v4343, 4
    %v4345 = vmax.f32 %v4343, %v4344
    %v4346 = vrot.slane %v4345, 2
    %v4347 = vmax.f32 %v4345, %v4346
    %v4348 = vrot.slane %v4347, 1
    %v4349 = vmax.f32 %v4347, %v4348
    %v4350 = vsel %vm3866, %v2826, -inf
    %v4351 = vrot.slane %v4350, 4
    %v4352 = vmax.f32 %v4350, %v4351
    %v4353 = vrot.slane %v4352, 2
    %v4354 = vmax.f32 %v4352, %v4353
    %v4355 = vrot.slane %v4354, 1
    %v4356 = vmax.f32 %v4354, %v4355
    %v4357 = vsel %vm3866, %v2825, -inf
    %v4358 = vrot.slane %v4357, 4
    %v4359 = vmax.f32 %v4357, %v4358
    %v4360 = vrot.slane %v4359, 2
    %v4361 = vmax.f32 %v4359, %v4360
    %v4362 = vrot.slane %v4361, 1
    %v4363 = vmax.f32 %v4361, %v4362
    %v4364 = vsel %vm3866, %v2827, -inf
    %v4365 = vrot.slane %v4364, 4
    %v4366 = vmax.f32 %v4364, %v4365
    %v4367 = vrot.slane %v4366, 2
    %v4368 = vmax.f32 %v4366, %v4367
    %v4369 = vrot.slane %v4368, 1
    %v4370 = vmax.f32 %v4368, %v4369
    %v4371 = vsel %vm3866, %v2835, -inf
    %v4372 = vrot.slane %v4371, 4
    %v4373 = vmax.f32 %v4371, %v4372
    %v4374 = vrot.slane %v4373, 2
    %v4375 = vmax.f32 %v4373, %v4374
    %v4376 = vrot.slane %v4375, 1
    %v4377 = vmax.f32 %v4375, %v4376
    %v4378 = vsel %vm3866, %v2843, -inf
    %v4379 = vrot.slane %v4378, 4
    %v4380 = vmax.f32 %v4378, %v4379
    %v4381 = vrot.slane %v4380, 2
    %v4382 = vmax.f32 %v4380, %v4381
    %v4383 = vrot.slane %v4382, 1
    %v4384 = vmax.f32 %v4382, %v4383
    %v4385 = vsel %vm3866, %v2842, -inf
    %v4386 = vrot.slane %v4385, 4
    %v4387 = vmax.f32 %v4385, %v4386
    %v4388 = vrot.slane %v4387, 2
    %v4389 = vmax.f32 %v4387, %v4388
    %v4390 = vrot.slane %v4389, 1
    %v4391 = vmax.f32 %v4389, %v4390
    %v4392 = vsel %vm3866, %v2844, -inf
    %v4393 = vrot.slane %v4392, 4
    %v4394 = vmax.f32 %v4392, %v4393
    %v4395 = vrot.slane %v4394, 2
    %v4396 = vmax.f32 %v4394, %v4395
    %v4397 = vrot.slane %v4396, 1
    %v4398 = vmax.f32 %v4396, %v4397
    %v4399 = vsel %vm3866, %v2852, -inf
    %v4400 = vrot.slane %v4399, 4
    %v4401 = vmax.f32 %v4399, %v4400
    %v4402 = vrot.slane %v4401, 2
    %v4403 = vmax.f32 %v4401, %v4402
    %v4404 = vrot.slane %v4403, 1
    %v4405 = vmax.f32 %v4403, %v4404
    %v4406 = vsel %vm3866, %v2860, -inf
    %v4407 = vrot.slane %v4406, 4
    %v4408 = vmax.f32 %v4406, %v4407
    %v4409 = vrot.slane %v4408, 2
    %v4410 = vmax.f32 %v4408, %v4409
    %v4411 = vrot.slane %v4410, 1
    %v4412 = vmax.f32 %v4410, %v4411
    %v4413 = vsel %vm3866, %v2859, -inf
    %v4414 = vrot.slane %v4413, 4
    %v4415 = vmax.f32 %v4413, %v4414
    %v4416 = vrot.slane %v4415, 2
    %v4417 = vmax.f32 %v4415, %v4416
    %v4418 = vrot.slane %v4417, 1
    %v4419 = vmax.f32 %v4417, %v4418
    %v4420 = vsel %vm3866, %v2861, -inf
    %v4421 = vrot.slane %v4420, 4
    %v4422 = vmax.f32 %v4420, %v4421
    %v4423 = vrot.slane %v4422, 2
    %v4424 = vmax.f32 %v4422, %v4423
    %v4425 = vrot.slane %v4424, 1
    %v4426 = vmax.f32 %v4424, %v4425
    %v4427 = vsel %vm3866, %v2869, -inf
    %v4428 = vrot.slane %v4427, 4
    %v4429 = vmax.f32 %v4427, %v4428
    %v4430 = vrot.slane %v4429, 2
    %v4431 = vmax.f32 %v4429, %v4430
    %v4432 = vrot.slane %v4431, 1
    %v4433 = vmax.f32 %v4431, %v4432
    %v4434 = vsel %vm3866, %v2877, -inf
    %v4435 = vrot.slane %v4434, 4
    %v4436 = vmax.f32 %v4434, %v4435
    %v4437 = vrot.slane %v4436, 2
    %v4438 = vmax.f32 %v4436, %v4437
    %v4439 = vrot.slane %v4438, 1
    %v4440 = vmax.f32 %v4438, %v4439
    %v4441 = vsel %vm3866, %v2876, -inf
    %v4442 = vrot.slane %v4441, 4
    %v4443 = vmax.f32 %v4441, %v4442
    %v4444 = vrot.slane %v4443, 2
    %v4445 = vmax.f32 %v4443, %v4444
    %v4446 = vrot.slane %v4445, 1
    %v4447 = vmax.f32 %v4445, %v4446
    %v4448 = vsel %vm3866, %v2878, -inf
    %v4449 = vrot.slane %v4448, 4
    %v4450 = vmax.f32 %v4448, %v4449
    %v4451 = vrot.slane %v4450, 2
    %v4452 = vmax.f32 %v4450, %v4451
    %v4453 = vrot.slane %v4452, 1
    %v4454 = vmax.f32 %v4452, %v4453
    %v4455 = vsel %vm3866, %v2886, -inf
    %v4456 = vrot.slane %v4455, 4
    %v4457 = vmax.f32 %v4455, %v4456
    %v4458 = vrot.slane %v4457, 2
    %v4459 = vmax.f32 %v4457, %v4458
    %v4460 = vrot.slane %v4459, 1
    %v4461 = vmax.f32 %v4459, %v4460
    %v4462 = vsel %vm3866, %v2894, -inf
    %v4463 = vrot.slane %v4462, 4
    %v4464 = vmax.f32 %v4462, %v4463
    %v4465 = vrot.slane %v4464, 2
    %v4466 = vmax.f32 %v4464, %v4465
    %v4467 = vrot.slane %v4466, 1
    %v4468 = vmax.f32 %v4466, %v4467
    %v4469 = vsel %vm3866, %v2893, -inf
    %v4470 = vrot.slane %v4469, 4
    %v4471 = vmax.f32 %v4469, %v4470
    %v4472 = vrot.slane %v4471, 2
    %v4473 = vmax.f32 %v4471, %v4472
    %v4474 = vrot.slane %v4473, 1
    %v4475 = vmax.f32 %v4473, %v4474
    %v4476 = vsel %vm3866, %v2895, -inf
    %v4477 = vrot.slane %v4476, 4
    %v4478 = vmax.f32 %v4476, %v4477
    %v4479 = vrot.slane %v4478, 2
    %v4480 = vmax.f32 %v4478, %v4479
    %v4481 = vrot.slane %v4480, 1
    %v4482 = vmax.f32 %v4480, %v4481
    %v4483 = vsel %vm3866, %v2903, -inf
    %v4484 = vrot.slane %v4483, 4
    %v4485 = vmax.f32 %v4483, %v4484
    %v4486 = vrot.slane %v4485, 2
    %v4487 = vmax.f32 %v4485, %v4486
    %v4488 = vrot.slane %v4487, 1
    %v4489 = vmax.f32 %v4487, %v4488
    %v4490 = vsel %vm3866, %v2911, -inf
    %v4491 = vrot.slane %v4490, 4
    %v4492 = vmax.f32 %v4490, %v4491
    %v4493 = vrot.slane %v4492, 2
    %v4494 = vmax.f32 %v4492, %v4493
    %v4495 = vrot.slane %v4494, 1
    %v4496 = vmax.f32 %v4494, %v4495
    %v4497 = vsel %vm3866, %v2910, -inf
    %v4498 = vrot.slane %v4497, 4
    %v4499 = vmax.f32 %v4497, %v4498
    %v4500 = vrot.slane %v4499, 2
    %v4501 = vmax.f32 %v4499, %v4500
    %v4502 = vrot.slane %v4501, 1
    %v4503 = vmax.f32 %v4501, %v4502
    %v4504 = vsel %vm3866, %v2912, -inf
    %v4505 = vrot.slane %v4504, 4
    %v4506 = vmax.f32 %v4504, %v4505
    %v4507 = vrot.slane %v4506, 2
    %v4508 = vmax.f32 %v4506, %v4507
    %v4509 = vrot.slane %v4508, 1
    %v4510 = vmax.f32 %v4508, %v4509
    %v4511 = vsel %vm3866, %v2920, -inf
    %v4512 = vrot.slane %v4511, 4
    %v4513 = vmax.f32 %v4511, %v4512
    %v4514 = vrot.slane %v4513, 2
    %v4515 = vmax.f32 %v4513, %v4514
    %v4516 = vrot.slane %v4515, 1
    %v4517 = vmax.f32 %v4515, %v4516
    %v4518 = vsel %vm3866, %v2928, -inf
    %v4519 = vrot.slane %v4518, 4
    %v4520 = vmax.f32 %v4518, %v4519
    %v4521 = vrot.slane %v4520, 2
    %v4522 = vmax.f32 %v4520, %v4521
    %v4523 = vrot.slane %v4522, 1
    %v4524 = vmax.f32 %v4522, %v4523
    %v4525 = vsel %vm3866, %v2927, -inf
    %v4526 = vrot.slane %v4525, 4
    %v4527 = vmax.f32 %v4525, %v4526
    %v4528 = vrot.slane %v4527, 2
    %v4529 = vmax.f32 %v4527, %v4528
    %v4530 = vrot.slane %v4529, 1
    %v4531 = vmax.f32 %v4529, %v4530
    %v4532 = vsel %vm3866, %v2929, -inf
    %v4533 = vrot.slane %v4532, 4
    %v4534 = vmax.f32 %v4532, %v4533
    %v4535 = vrot.slane %v4534, 2
    %v4536 = vmax.f32 %v4534, %v4535
    %v4537 = vrot.slane %v4536, 1
    %v4538 = vmax.f32 %v4536, %v4537
    %v4539 = vsel %vm3866, %v2937, -inf
    %v4540 = vrot.slane %v4539, 4
    %v4541 = vmax.f32 %v4539, %v4540
    %v4542 = vrot.slane %v4541, 2
    %v4543 = vmax.f32 %v4541, %v4542
    %v4544 = vrot.slane %v4543, 1
    %v4545 = vmax.f32 %v4543, %v4544
    %v4546 = vsel %vm3866, %v2945, -inf
    %v4547 = vrot.slane %v4546, 4
    %v4548 = vmax.f32 %v4546, %v4547
    %v4549 = vrot.slane %v4548, 2
    %v4550 = vmax.f32 %v4548, %v4549
    %v4551 = vrot.slane %v4550, 1
    %v4552 = vmax.f32 %v4550, %v4551
    %v4553 = vsel %vm3866, %v2944, -inf
    %v4554 = vrot.slane %v4553, 4
    %v4555 = vmax.f32 %v4553, %v4554
    %v4556 = vrot.slane %v4555, 2
    %v4557 = vmax.f32 %v4555, %v4556
    %v4558 = vrot.slane %v4557, 1
    %v4559 = vmax.f32 %v4557, %v4558
    %v4560 = vsel %vm3866, %v2946, -inf
    %v4561 = vrot.slane %v4560, 4
    %v4562 = vmax.f32 %v4560, %v4561
    %v4563 = vrot.slane %v4562, 2
    %v4564 = vmax.f32 %v4562, %v4563
    %v4565 = vrot.slane %v4564, 1
    %v4566 = vmax.f32 %v4564, %v4565
    %v4567 = vsel %vm3866, %v2954, -inf
    %v4568 = vrot.slane %v4567, 4
    %v4569 = vmax.f32 %v4567, %v4568
    %v4570 = vrot.slane %v4569, 2
    %v4571 = vmax.f32 %v4569, %v4570
    %v4572 = vrot.slane %v4571, 1
    %v4573 = vmax.f32 %v4571, %v4572
    %v4574 = vsel %vm3866, %v2962, -inf
    %v4575 = vrot.slane %v4574, 4
    %v4576 = vmax.f32 %v4574, %v4575
    %v4577 = vrot.slane %v4576, 2
    %v4578 = vmax.f32 %v4576, %v4577
    %v4579 = vrot.slane %v4578, 1
    %v4580 = vmax.f32 %v4578, %v4579
    %v4581 = vsel %vm3866, %v2961, -inf
    %v4582 = vrot.slane %v4581, 4
    %v4583 = vmax.f32 %v4581, %v4582
    %v4584 = vrot.slane %v4583, 2
    %v4585 = vmax.f32 %v4583, %v4584
    %v4586 = vrot.slane %v4585, 1
    %v4587 = vmax.f32 %v4585, %v4586
    %v4588 = vsel %vm3866, %v2963, -inf
    %v4589 = vrot.slane %v4588, 4
    %v4590 = vmax.f32 %v4588, %v4589
    %v4591 = vrot.slane %v4590, 2
    %v4592 = vmax.f32 %v4590, %v4591
    %v4593 = vrot.slane %v4592, 1
    %v4594 = vmax.f32 %v4592, %v4593
    %v4595 = vsel %vm3866, %v2971, -inf
    %v4596 = vrot.slane %v4595, 4
    %v4597 = vmax.f32 %v4595, %v4596
    %v4598 = vrot.slane %v4597, 2
    %v4599 = vmax.f32 %v4597, %v4598
    %v4600 = vrot.slane %v4599, 1
    %v4601 = vmax.f32 %v4599, %v4600
    %v4602 = vsel %vm3866, %v2979, -inf
    %v4603 = vrot.slane %v4602, 4
    %v4604 = vmax.f32 %v4602, %v4603
    %v4605 = vrot.slane %v4604, 2
    %v4606 = vmax.f32 %v4604, %v4605
    %v4607 = vrot.slane %v4606, 1
    %v4608 = vmax.f32 %v4606, %v4607
    %v4609 = vsel %vm3866, %v2978, -inf
    %v4610 = vrot.slane %v4609, 4
    %v4611 = vmax.f32 %v4609, %v4610
    %v4612 = vrot.slane %v4611, 2
    %v4613 = vmax.f32 %v4611, %v4612
    %v4614 = vrot.slane %v4613, 1
    %v4615 = vmax.f32 %v4613, %v4614
    %v4616 = vsel %vm3866, %v2980, -inf
    %v4617 = vrot.slane %v4616, 4
    %v4618 = vmax.f32 %v4616, %v4617
    %v4619 = vrot.slane %v4618, 2
    %v4620 = vmax.f32 %v4618, %v4619
    %v4621 = vrot.slane %v4620, 1
    %v4622 = vmax.f32 %v4620, %v4621
    %v4623 = vsel %vm3866, %v2988, -inf
    %v4624 = vrot.slane %v4623, 4
    %v4625 = vmax.f32 %v4623, %v4624
    %v4626 = vrot.slane %v4625, 2
    %v4627 = vmax.f32 %v4625, %v4626
    %v4628 = vrot.slane %v4627, 1
    %v4629 = vmax.f32 %v4627, %v4628
    %v4630 = vsel %vm3866, %v2996, -inf
    %v4631 = vrot.slane %v4630, 4
    %v4632 = vmax.f32 %v4630, %v4631
    %v4633 = vrot.slane %v4632, 2
    %v4634 = vmax.f32 %v4632, %v4633
    %v4635 = vrot.slane %v4634, 1
    %v4636 = vmax.f32 %v4634, %v4635
    %v4637 = vsel %vm3866, %v2995, -inf
    %v4638 = vrot.slane %v4637, 4
    %v4639 = vmax.f32 %v4637, %v4638
    %v4640 = vrot.slane %v4639, 2
    %v4641 = vmax.f32 %v4639, %v4640
    %v4642 = vrot.slane %v4641, 1
    %v4643 = vmax.f32 %v4641, %v4642
    %v4644 = vsel %vm3866, %v2997, -inf
    %v4645 = vrot.slane %v4644, 4
    %v4646 = vmax.f32 %v4644, %v4645
    %v4647 = vrot.slane %v4646, 2
    %v4648 = vmax.f32 %v4646, %v4647
    %v4649 = vrot.slane %v4648, 1
    %v4650 = vmax.f32 %v4648, %v4649
    %v4651 = vsel %vm3866, %v3005, -inf
    %v4652 = vrot.slane %v4651, 4
    %v4653 = vmax.f32 %v4651, %v4652
    %v4654 = vrot.slane %v4653, 2
    %v4655 = vmax.f32 %v4653, %v4654
    %v4656 = vrot.slane %v4655, 1
    %v4657 = vmax.f32 %v4655, %v4656
    %v4658 = vsel %vm3866, %v3013, -inf
    %v4659 = vrot.slane %v4658, 4
    %v4660 = vmax.f32 %v4658, %v4659
    %v4661 = vrot.slane %v4660, 2
    %v4662 = vmax.f32 %v4660, %v4661
    %v4663 = vrot.slane %v4662, 1
    %v4664 = vmax.f32 %v4662, %v4663
    %v4665 = vsel %vm3866, %v3012, -inf
    %v4666 = vrot.slane %v4665, 4
    %v4667 = vmax.f32 %v4665, %v4666
    %v4668 = vrot.slane %v4667, 2
    %v4669 = vmax.f32 %v4667, %v4668
    %v4670 = vrot.slane %v4669, 1
    %v4671 = vmax.f32 %v4669, %v4670
    %v4672 = vsel %vm3866, %v3014, -inf
    %v4673 = vrot.slane %v4672, 4
    %v4674 = vmax.f32 %v4672, %v4673
    %v4675 = vrot.slane %v4674, 2
    %v4676 = vmax.f32 %v4674, %v4675
    %v4677 = vrot.slane %v4676, 1
    %v4678 = vmax.f32 %v4676, %v4677
    %v4679 = vsel %vm3866, %v3022, -inf
    %v4680 = vrot.slane %v4679, 4
    %v4681 = vmax.f32 %v4679, %v4680
    %v4682 = vrot.slane %v4681, 2
    %v4683 = vmax.f32 %v4681, %v4682
    %v4684 = vrot.slane %v4683, 1
    %v4685 = vmax.f32 %v4683, %v4684
    %v4686 = vsel %vm3866, %v3030, -inf
    %v4687 = vrot.slane %v4686, 4
    %v4688 = vmax.f32 %v4686, %v4687
    %v4689 = vrot.slane %v4688, 2
    %v4690 = vmax.f32 %v4688, %v4689
    %v4691 = vrot.slane %v4690, 1
    %v4692 = vmax.f32 %v4690, %v4691
    %v4693 = vsel %vm3866, %v3029, -inf
    %v4694 = vrot.slane %v4693, 4
    %v4695 = vmax.f32 %v4693, %v4694
    %v4696 = vrot.slane %v4695, 2
    %v4697 = vmax.f32 %v4695, %v4696
    %v4698 = vrot.slane %v4697, 1
    %v4699 = vmax.f32 %v4697, %v4698
    %v4700 = vsel %vm3866, %v3031, -inf
    %v4701 = vrot.slane %v4700, 4
    %v4702 = vmax.f32 %v4700, %v4701
    %v4703 = vrot.slane %v4702, 2
    %v4704 = vmax.f32 %v4702, %v4703
    %v4705 = vrot.slane %v4704, 1
    %v4706 = vmax.f32 %v4704, %v4705
    %v4707 = vsel %vm3866, %v3039, -inf
    %v4708 = vrot.slane %v4707, 4
    %v4709 = vmax.f32 %v4707, %v4708
    %v4710 = vrot.slane %v4709, 2
    %v4711 = vmax.f32 %v4709, %v4710
    %v4712 = vrot.slane %v4711, 1
    %v4713 = vmax.f32 %v4711, %v4712
    %v4714 = vsel %vm3866, %v3047, -inf
    %v4715 = vrot.slane %v4714, 4
    %v4716 = vmax.f32 %v4714, %v4715
    %v4717 = vrot.slane %v4716, 2
    %v4718 = vmax.f32 %v4716, %v4717
    %v4719 = vrot.slane %v4718, 1
    %v4720 = vmax.f32 %v4718, %v4719
    %v4721 = vsel %vm3866, %v3046, -inf
    %v4722 = vrot.slane %v4721, 4
    %v4723 = vmax.f32 %v4721, %v4722
    %v4724 = vrot.slane %v4723, 2
    %v4725 = vmax.f32 %v4723, %v4724
    %v4726 = vrot.slane %v4725, 1
    %v4727 = vmax.f32 %v4725, %v4726
    %v4728 = vsel %vm3866, %v3048, -inf
    %v4729 = vrot.slane %v4728, 4
    %v4730 = vmax.f32 %v4728, %v4729
    %v4731 = vrot.slane %v4730, 2
    %v4732 = vmax.f32 %v4730, %v4731
    %v4733 = vrot.slane %v4732, 1
    %v4734 = vmax.f32 %v4732, %v4733
    %v4735 = vsel %vm3866, %v3056, -inf
    %v4736 = vrot.slane %v4735, 4
    %v4737 = vmax.f32 %v4735, %v4736
    %v4738 = vrot.slane %v4737, 2
    %v4739 = vmax.f32 %v4737, %v4738
    %v4740 = vrot.slane %v4739, 1
    %v4741 = vmax.f32 %v4739, %v4740
    %v4742 = vsel %vm3866, %v3064, -inf
    %v4743 = vrot.slane %v4742, 4
    %v4744 = vmax.f32 %v4742, %v4743
    %v4745 = vrot.slane %v4744, 2
    %v4746 = vmax.f32 %v4744, %v4745
    %v4747 = vrot.slane %v4746, 1
    %v4748 = vmax.f32 %v4746, %v4747
    %v4749 = vsel %vm3866, %v3063, -inf
    %v4750 = vrot.slane %v4749, 4
    %v4751 = vmax.f32 %v4749, %v4750
    %v4752 = vrot.slane %v4751, 2
    %v4753 = vmax.f32 %v4751, %v4752
    %v4754 = vrot.slane %v4753, 1
    %v4755 = vmax.f32 %v4753, %v4754
    %v4756 = vsel %vm3866, %v3065, -inf
    %v4757 = vrot.slane %v4756, 4
    %v4758 = vmax.f32 %v4756, %v4757
    %v4759 = vrot.slane %v4758, 2
    %v4760 = vmax.f32 %v4758, %v4759
    %v4761 = vrot.slane %v4760, 1
    %v4762 = vmax.f32 %v4760, %v4761
    %v4763 = vsel %vm3866, %v3073, -inf
    %v4764 = vrot.slane %v4763, 4
    %v4765 = vmax.f32 %v4763, %v4764
    %v4766 = vrot.slane %v4765, 2
    %v4767 = vmax.f32 %v4765, %v4766
    %v4768 = vrot.slane %v4767, 1
    %v4769 = vmax.f32 %v4767, %v4768
    %v4770 = vsel %vm3866, %v3081, -inf
    %v4771 = vrot.slane %v4770, 4
    %v4772 = vmax.f32 %v4770, %v4771
    %v4773 = vrot.slane %v4772, 2
    %v4774 = vmax.f32 %v4772, %v4773
    %v4775 = vrot.slane %v4774, 1
    %v4776 = vmax.f32 %v4774, %v4775
    %v4777 = vsel %vm3866, %v3080, -inf
    %v4778 = vrot.slane %v4777, 4
    %v4779 = vmax.f32 %v4777, %v4778
    %v4780 = vrot.slane %v4779, 2
    %v4781 = vmax.f32 %v4779, %v4780
    %v4782 = vrot.slane %v4781, 1
    %v4783 = vmax.f32 %v4781, %v4782
    %v4784 = vsel %vm3866, %v3082, -inf
    %v4785 = vrot.slane %v4784, 4
    %v4786 = vmax.f32 %v4784, %v4785
    %v4787 = vrot.slane %v4786, 2
    %v4788 = vmax.f32 %v4786, %v4787
    %v4789 = vrot.slane %v4788, 1
    %v4790 = vmax.f32 %v4788, %v4789
    %v4791 = vsel %vm3866, %v3090, -inf
    %v4792 = vrot.slane %v4791, 4
    %v4793 = vmax.f32 %v4791, %v4792
    %v4794 = vrot.slane %v4793, 2
    %v4795 = vmax.f32 %v4793, %v4794
    %v4796 = vrot.slane %v4795, 1
    %v4797 = vmax.f32 %v4795, %v4796
    %v4798 = vsel %vm3866, %v3098, -inf
    %v4799 = vrot.slane %v4798, 4
    %v4800 = vmax.f32 %v4798, %v4799
    %v4801 = vrot.slane %v4800, 2
    %v4802 = vmax.f32 %v4800, %v4801
    %v4803 = vrot.slane %v4802, 1
    %v4804 = vmax.f32 %v4802, %v4803
    %v4805 = vsel %vm3866, %v3097, -inf
    %v4806 = vrot.slane %v4805, 4
    %v4807 = vmax.f32 %v4805, %v4806
    %v4808 = vrot.slane %v4807, 2
    %v4809 = vmax.f32 %v4807, %v4808
    %v4810 = vrot.slane %v4809, 1
    %v4811 = vmax.f32 %v4809, %v4810
    %v4812 = vsel %vm3866, %v3099, -inf
    %v4813 = vrot.slane %v4812, 4
    %v4814 = vmax.f32 %v4812, %v4813
    %v4815 = vrot.slane %v4814, 2
    %v4816 = vmax.f32 %v4814, %v4815
    %v4817 = vrot.slane %v4816, 1
    %v4818 = vmax.f32 %v4816, %v4817
    %v4819 = vsel %vm3866, %v3107, -inf
    %v4820 = vrot.slane %v4819, 4
    %v4821 = vmax.f32 %v4819, %v4820
    %v4822 = vrot.slane %v4821, 2
    %v4823 = vmax.f32 %v4821, %v4822
    %v4824 = vrot.slane %v4823, 1
    %v4825 = vmax.f32 %v4823, %v4824
    %v4826 = vsel %vm3866, %v3115, -inf
    %v4827 = vrot.slane %v4826, 4
    %v4828 = vmax.f32 %v4826, %v4827
    %v4829 = vrot.slane %v4828, 2
    %v4830 = vmax.f32 %v4828, %v4829
    %v4831 = vrot.slane %v4830, 1
    %v4832 = vmax.f32 %v4830, %v4831
    %v4833 = vsel %vm3866, %v3114, -inf
    %v4834 = vrot.slane %v4833, 4
    %v4835 = vmax.f32 %v4833, %v4834
    %v4836 = vrot.slane %v4835, 2
    %v4837 = vmax.f32 %v4835, %v4836
    %v4838 = vrot.slane %v4837, 1
    %v4839 = vmax.f32 %v4837, %v4838
    %v4840 = vsel %vm3866, %v3116, -inf
    %v4841 = vrot.slane %v4840, 4
    %v4842 = vmax.f32 %v4840, %v4841
    %v4843 = vrot.slane %v4842, 2
    %v4844 = vmax.f32 %v4842, %v4843
    %v4845 = vrot.slane %v4844, 1
    %v4846 = vmax.f32 %v4844, %v4845
    %v4847 = vsel %vm3866, %v3124, -inf
    %v4848 = vrot.slane %v4847, 4
    %v4849 = vmax.f32 %v4847, %v4848
    %v4850 = vrot.slane %v4849, 2
    %v4851 = vmax.f32 %v4849, %v4850
    %v4852 = vrot.slane %v4851, 1
    %v4853 = vmax.f32 %v4851, %v4852
    %v4854 = vsel %vm3866, %v3132, -inf
    %v4855 = vrot.slane %v4854, 4
    %v4856 = vmax.f32 %v4854, %v4855
    %v4857 = vrot.slane %v4856, 2
    %v4858 = vmax.f32 %v4856, %v4857
    %v4859 = vrot.slane %v4858, 1
    %v4860 = vmax.f32 %v4858, %v4859
    %v4861 = vsel %vm3866, %v3131, -inf
    %v4862 = vrot.slane %v4861, 4
    %v4863 = vmax.f32 %v4861, %v4862
    %v4864 = vrot.slane %v4863, 2
    %v4865 = vmax.f32 %v4863, %v4864
    %v4866 = vrot.slane %v4865, 1
    %v4867 = vmax.f32 %v4865, %v4866
    %v4868 = vsel %vm3866, %v3133, -inf
    %v4869 = vrot.slane %v4868, 4
    %v4870 = vmax.f32 %v4868, %v4869
    %v4871 = vrot.slane %v4870, 2
    %v4872 = vmax.f32 %v4870, %v4871
    %v4873 = vrot.slane %v4872, 1
    %v4874 = vmax.f32 %v4872, %v4873
    %v4875 = vsel %vm3866, %v3141, -inf
    %v4876 = vrot.slane %v4875, 4
    %v4877 = vmax.f32 %v4875, %v4876
    %v4878 = vrot.slane %v4877, 2
    %v4879 = vmax.f32 %v4877, %v4878
    %v4880 = vrot.slane %v4879, 1
    %v4881 = vmax.f32 %v4879, %v4880
    %v4882 = vsel %vm3866, %v3149, -inf
    %v4883 = vrot.slane %v4882, 4
    %v4884 = vmax.f32 %v4882, %v4883
    %v4885 = vrot.slane %v4884, 2
    %v4886 = vmax.f32 %v4884, %v4885
    %v4887 = vrot.slane %v4886, 1
    %v4888 = vmax.f32 %v4886, %v4887
    %v4889 = vsel %vm3866, %v3148, -inf
    %v4890 = vrot.slane %v4889, 4
    %v4891 = vmax.f32 %v4889, %v4890
    %v4892 = vrot.slane %v4891, 2
    %v4893 = vmax.f32 %v4891, %v4892
    %v4894 = vrot.slane %v4893, 1
    %v4895 = vmax.f32 %v4893, %v4894
    %v4896 = vsel %vm3866, %v3150, -inf
    %v4897 = vrot.slane %v4896, 4
    %v4898 = vmax.f32 %v4896, %v4897
    %v4899 = vrot.slane %v4898, 2
    %v4900 = vmax.f32 %v4898, %v4899
    %v4901 = vrot.slane %v4900, 1
    %v4902 = vmax.f32 %v4900, %v4901
    %v4903 = vsel %vm3866, %v3158, -inf
    %v4904 = vrot.slane %v4903, 4
    %v4905 = vmax.f32 %v4903, %v4904
    %v4906 = vrot.slane %v4905, 2
    %v4907 = vmax.f32 %v4905, %v4906
    %v4908 = vrot.slane %v4907, 1
    %v4909 = vmax.f32 %v4907, %v4908
    %v4910 = vsel %vm3866, %v3166, -inf
    %v4911 = vrot.slane %v4910, 4
    %v4912 = vmax.f32 %v4910, %v4911
    %v4913 = vrot.slane %v4912, 2
    %v4914 = vmax.f32 %v4912, %v4913
    %v4915 = vrot.slane %v4914, 1
    %v4916 = vmax.f32 %v4914, %v4915
    %v4917 = vsel %vm3866, %v3165, -inf
    %v4918 = vrot.slane %v4917, 4
    %v4919 = vmax.f32 %v4917, %v4918
    %v4920 = vrot.slane %v4919, 2
    %v4921 = vmax.f32 %v4919, %v4920
    %v4922 = vrot.slane %v4921, 1
    %v4923 = vmax.f32 %v4921, %v4922
    %v4924 = vsel %vm3866, %v3167, -inf
    %v4925 = vrot.slane %v4924, 4
    %v4926 = vmax.f32 %v4924, %v4925
    %v4927 = vrot.slane %v4926, 2
    %v4928 = vmax.f32 %v4926, %v4927
    %v4929 = vrot.slane %v4928, 1
    %v4930 = vmax.f32 %v4928, %v4929
    %v4931 = vsel %vm3866, %v3175, -inf
    %v4932 = vrot.slane %v4931, 4
    %v4933 = vmax.f32 %v4931, %v4932
    %v4934 = vrot.slane %v4933, 2
    %v4935 = vmax.f32 %v4933, %v4934
    %v4936 = vrot.slane %v4935, 1
    %v4937 = vmax.f32 %v4935, %v4936
    %v4938 = vsel %vm3866, %v3183, -inf
    %v4939 = vrot.slane %v4938, 4
    %v4940 = vmax.f32 %v4938, %v4939
    %v4941 = vrot.slane %v4940, 2
    %v4942 = vmax.f32 %v4940, %v4941
    %v4943 = vrot.slane %v4942, 1
    %v4944 = vmax.f32 %v4942, %v4943
    %v4945 = vsel %vm3866, %v3182, -inf
    %v4946 = vrot.slane %v4945, 4
    %v4947 = vmax.f32 %v4945, %v4946
    %v4948 = vrot.slane %v4947, 2
    %v4949 = vmax.f32 %v4947, %v4948
    %v4950 = vrot.slane %v4949, 1
    %v4951 = vmax.f32 %v4949, %v4950
    %v4952 = vsel %vm3866, %v3184, -inf
    %v4953 = vrot.slane %v4952, 4
    %v4954 = vmax.f32 %v4952, %v4953
    %v4955 = vrot.slane %v4954, 2
    %v4956 = vmax.f32 %v4954, %v4955
    %v4957 = vrot.slane %v4956, 1
    %v4958 = vmax.f32 %v4956, %v4957
    %v4959 = vsel %vm3866, %v3192, -inf
    %v4960 = vrot.slane %v4959, 4
    %v4961 = vmax.f32 %v4959, %v4960
    %v4962 = vrot.slane %v4961, 2
    %v4963 = vmax.f32 %v4961, %v4962
    %v4964 = vrot.slane %v4963, 1
    %v4965 = vmax.f32 %v4963, %v4964
    %v4966 = vsel %vm3866, %v3200, -inf
    %v4967 = vrot.slane %v4966, 4
    %v4968 = vmax.f32 %v4966, %v4967
    %v4969 = vrot.slane %v4968, 2
    %v4970 = vmax.f32 %v4968, %v4969
    %v4971 = vrot.slane %v4970, 1
    %v4972 = vmax.f32 %v4970, %v4971
    %v4973 = vsel %vm3866, %v3199, -inf
    %v4974 = vrot.slane %v4973, 4
    %v4975 = vmax.f32 %v4973, %v4974
    %v4976 = vrot.slane %v4975, 2
    %v4977 = vmax.f32 %v4975, %v4976
    %v4978 = vrot.slane %v4977, 1
    %v4979 = vmax.f32 %v4977, %v4978
    %v4980 = vsel %vm3866, %v3201, -inf
    %v4981 = vrot.slane %v4980, 4
    %v4982 = vmax.f32 %v4980, %v4981
    %v4983 = vrot.slane %v4982, 2
    %v4984 = vmax.f32 %v4982, %v4983
    %v4985 = vrot.slane %v4984, 1
    %v4986 = vmax.f32 %v4984, %v4985
    %v4987 = vsel %vm3866, %v3209, -inf
    %v4988 = vrot.slane %v4987, 4
    %v4989 = vmax.f32 %v4987, %v4988
    %v4990 = vrot.slane %v4989, 2
    %v4991 = vmax.f32 %v4989, %v4990
    %v4992 = vrot.slane %v4991, 1
    %v4993 = vmax.f32 %v4991, %v4992
    %v4994 = vsel %vm3866, %v3217, -inf
    %v4995 = vrot.slane %v4994, 4
    %v4996 = vmax.f32 %v4994, %v4995
    %v4997 = vrot.slane %v4996, 2
    %v4998 = vmax.f32 %v4996, %v4997
    %v4999 = vrot.slane %v4998, 1
    %v5000 = vmax.f32 %v4998, %v4999
    %v5001 = vsel %vm3866, %v3216, -inf
    %v5002 = vrot.slane %v5001, 4
    %v5003 = vmax.f32 %v5001, %v5002
    %v5004 = vrot.slane %v5003, 2
    %v5005 = vmax.f32 %v5003, %v5004
    %v5006 = vrot.slane %v5005, 1
    %v5007 = vmax.f32 %v5005, %v5006
    %v5008 = vsel %vm3866, %v3218, -inf
    %v5009 = vrot.slane %v5008, 4
    %v5010 = vmax.f32 %v5008, %v5009
    %v5011 = vrot.slane %v5010, 2
    %v5012 = vmax.f32 %v5010, %v5011
    %v5013 = vrot.slane %v5012, 1
    %v5014 = vmax.f32 %v5012, %v5013
    %v5015 = vsel %vm3866, %v3226, -inf
    %v5016 = vrot.slane %v5015, 4
    %v5017 = vmax.f32 %v5015, %v5016
    %v5018 = vrot.slane %v5017, 2
    %v5019 = vmax.f32 %v5017, %v5018
    %v5020 = vrot.slane %v5019, 1
    %v5021 = vmax.f32 %v5019, %v5020
    %v5022 = vsel %vm3866, %v3234, -inf
    %v5023 = vrot.slane %v5022, 4
    %v5024 = vmax.f32 %v5022, %v5023
    %v5025 = vrot.slane %v5024, 2
    %v5026 = vmax.f32 %v5024, %v5025
    %v5027 = vrot.slane %v5026, 1
    %v5028 = vmax.f32 %v5026, %v5027
    %v5029 = vsel %vm3866, %v3233, -inf
    %v5030 = vrot.slane %v5029, 4
    %v5031 = vmax.f32 %v5029, %v5030
    %v5032 = vrot.slane %v5031, 2
    %v5033 = vmax.f32 %v5031, %v5032
    %v5034 = vrot.slane %v5033, 1
    %v5035 = vmax.f32 %v5033, %v5034
    %v5036 = vsel %vm3866, %v3235, -inf
    %v5037 = vrot.slane %v5036, 4
    %v5038 = vmax.f32 %v5036, %v5037
    %v5039 = vrot.slane %v5038, 2
    %v5040 = vmax.f32 %v5038, %v5039
    %v5041 = vrot.slane %v5040, 1
    %v5042 = vmax.f32 %v5040, %v5041
    %v5043 = vsel %vm3866, %v3243, -inf
    %v5044 = vrot.slane %v5043, 4
    %v5045 = vmax.f32 %v5043, %v5044
    %v5046 = vrot.slane %v5045, 2
    %v5047 = vmax.f32 %v5045, %v5046
    %v5048 = vrot.slane %v5047, 1
    %v5049 = vmax.f32 %v5047, %v5048
    %v5050 = vsel %vm3866, %v3251, -inf
    %v5051 = vrot.slane %v5050, 4
    %v5052 = vmax.f32 %v5050, %v5051
    %v5053 = vrot.slane %v5052, 2
    %v5054 = vmax.f32 %v5052, %v5053
    %v5055 = vrot.slane %v5054, 1
    %v5056 = vmax.f32 %v5054, %v5055
    %v5057 = vsel %vm3866, %v3250, -inf
    %v5058 = vrot.slane %v5057, 4
    %v5059 = vmax.f32 %v5057, %v5058
    %v5060 = vrot.slane %v5059, 2
    %v5061 = vmax.f32 %v5059, %v5060
    %v5062 = vrot.slane %v5061, 1
    %v5063 = vmax.f32 %v5061, %v5062
    %v5064 = vsel %vm3866, %v3252, -inf
    %v5065 = vrot.slane %v5064, 4
    %v5066 = vmax.f32 %v5064, %v5065
    %v5067 = vrot.slane %v5066, 2
    %v5068 = vmax.f32 %v5066, %v5067
    %v5069 = vrot.slane %v5068, 1
    %v5070 = vmax.f32 %v5068, %v5069
    %v5071 = vsel %vm3866, %v3260, -inf
    %v5072 = vrot.slane %v5071, 4
    %v5073 = vmax.f32 %v5071, %v5072
    %v5074 = vrot.slane %v5073, 2
    %v5075 = vmax.f32 %v5073, %v5074
    %v5076 = vrot.slane %v5075, 1
    %v5077 = vmax.f32 %v5075, %v5076
    %v5078 = vsel %vm3866, %v3268, -inf
    %v5079 = vrot.slane %v5078, 4
    %v5080 = vmax.f32 %v5078, %v5079
    %v5081 = vrot.slane %v5080, 2
    %v5082 = vmax.f32 %v5080, %v5081
    %v5083 = vrot.slane %v5082, 1
    %v5084 = vmax.f32 %v5082, %v5083
    %v5085 = vsel %vm3866, %v3267, -inf
    %v5086 = vrot.slane %v5085, 4
    %v5087 = vmax.f32 %v5085, %v5086
    %v5088 = vrot.slane %v5087, 2
    %v5089 = vmax.f32 %v5087, %v5088
    %v5090 = vrot.slane %v5089, 1
    %v5091 = vmax.f32 %v5089, %v5090
    %v5092 = vsel %vm3866, %v3269, -inf
    %v5093 = vrot.slane %v5092, 4
    %v5094 = vmax.f32 %v5092, %v5093
    %v5095 = vrot.slane %v5094, 2
    %v5096 = vmax.f32 %v5094, %v5095
    %v5097 = vrot.slane %v5096, 1
    %v5098 = vmax.f32 %v5096, %v5097
    %v5099 = vsel %vm3866, %v3277, -inf
    %v5100 = vrot.slane %v5099, 4
    %v5101 = vmax.f32 %v5099, %v5100
    %v5102 = vrot.slane %v5101, 2
    %v5103 = vmax.f32 %v5101, %v5102
    %v5104 = vrot.slane %v5103, 1
    %v5105 = vmax.f32 %v5103, %v5104
    %v5106 = vsel %vm3866, %v3285, -inf
    %v5107 = vrot.slane %v5106, 4
    %v5108 = vmax.f32 %v5106, %v5107
    %v5109 = vrot.slane %v5108, 2
    %v5110 = vmax.f32 %v5108, %v5109
    %v5111 = vrot.slane %v5110, 1
    %v5112 = vmax.f32 %v5110, %v5111
    %v5113 = vsel %vm3866, %v3284, -inf
    %v5114 = vrot.slane %v5113, 4
    %v5115 = vmax.f32 %v5113, %v5114
    %v5116 = vrot.slane %v5115, 2
    %v5117 = vmax.f32 %v5115, %v5116
    %v5118 = vrot.slane %v5117, 1
    %v5119 = vmax.f32 %v5117, %v5118
    %v5120 = vsel %vm3866, %v3286, -inf
    %v5121 = vrot.slane %v5120, 4
    %v5122 = vmax.f32 %v5120, %v5121
    %v5123 = vrot.slane %v5122, 2
    %v5124 = vmax.f32 %v5122, %v5123
    %v5125 = vrot.slane %v5124, 1
    %v5126 = vmax.f32 %v5124, %v5125
    %v5127 = vsel %vm3866, %v3294, -inf
    %v5128 = vrot.slane %v5127, 4
    %v5129 = vmax.f32 %v5127, %v5128
    %v5130 = vrot.slane %v5129, 2
    %v5131 = vmax.f32 %v5129, %v5130
    %v5132 = vrot.slane %v5131, 1
    %v5133 = vmax.f32 %v5131, %v5132
    %v5134 = vsel %vm3866, %v3302, -inf
    %v5135 = vrot.slane %v5134, 4
    %v5136 = vmax.f32 %v5134, %v5135
    %v5137 = vrot.slane %v5136, 2
    %v5138 = vmax.f32 %v5136, %v5137
    %v5139 = vrot.slane %v5138, 1
    %v5140 = vmax.f32 %v5138, %v5139
    %v5141 = vsel %vm3866, %v3301, -inf
    %v5142 = vrot.slane %v5141, 4
    %v5143 = vmax.f32 %v5141, %v5142
    %v5144 = vrot.slane %v5143, 2
    %v5145 = vmax.f32 %v5143, %v5144
    %v5146 = vrot.slane %v5145, 1
    %v5147 = vmax.f32 %v5145, %v5146
    %v5148 = vsel %vm3866, %v3303, -inf
    %v5149 = vrot.slane %v5148, 4
    %v5150 = vmax.f32 %v5148, %v5149
    %v5151 = vrot.slane %v5150, 2
    %v5152 = vmax.f32 %v5150, %v5151
    %v5153 = vrot.slane %v5152, 1
    %v5154 = vmax.f32 %v5152, %v5153
    %v5155 = vsel %vm3866, %v3311, -inf
    %v5156 = vrot.slane %v5155, 4
    %v5157 = vmax.f32 %v5155, %v5156
    %v5158 = vrot.slane %v5157, 2
    %v5159 = vmax.f32 %v5157, %v5158
    %v5160 = vrot.slane %v5159, 1
    %v5161 = vmax.f32 %v5159, %v5160
    %v5162 = vsel %vm3866, %v3319, -inf
    %v5163 = vrot.slane %v5162, 4
    %v5164 = vmax.f32 %v5162, %v5163
    %v5165 = vrot.slane %v5164, 2
    %v5166 = vmax.f32 %v5164, %v5165
    %v5167 = vrot.slane %v5166, 1
    %v5168 = vmax.f32 %v5166, %v5167
    %v5169 = vsel %vm3866, %v3318, -inf
    %v5170 = vrot.slane %v5169, 4
    %v5171 = vmax.f32 %v5169, %v5170
    %v5172 = vrot.slane %v5171, 2
    %v5173 = vmax.f32 %v5171, %v5172
    %v5174 = vrot.slane %v5173, 1
    %v5175 = vmax.f32 %v5173, %v5174
    %v5176 = vsel %vm3866, %v3320, -inf
    %v5177 = vrot.slane %v5176, 4
    %v5178 = vmax.f32 %v5176, %v5177
    %v5179 = vrot.slane %v5178, 2
    %v5180 = vmax.f32 %v5178, %v5179
    %v5181 = vrot.slane %v5180, 1
    %v5182 = vmax.f32 %v5180, %v5181
    %v5183 = vsel %vm3866, %v3328, -inf
    %v5184 = vrot.slane %v5183, 4
    %v5185 = vmax.f32 %v5183, %v5184
    %v5186 = vrot.slane %v5185, 2
    %v5187 = vmax.f32 %v5185, %v5186
    %v5188 = vrot.slane %v5187, 1
    %v5189 = vmax.f32 %v5187, %v5188
    %v5190 = vsel %vm3866, %v3336, -inf
    %v5191 = vrot.slane %v5190, 4
    %v5192 = vmax.f32 %v5190, %v5191
    %v5193 = vrot.slane %v5192, 2
    %v5194 = vmax.f32 %v5192, %v5193
    %v5195 = vrot.slane %v5194, 1
    %v5196 = vmax.f32 %v5194, %v5195
    %v5197 = vsel %vm3866, %v3335, -inf
    %v5198 = vrot.slane %v5197, 4
    %v5199 = vmax.f32 %v5197, %v5198
    %v5200 = vrot.slane %v5199, 2
    %v5201 = vmax.f32 %v5199, %v5200
    %v5202 = vrot.slane %v5201, 1
    %v5203 = vmax.f32 %v5201, %v5202
    %v5204 = vsel %vm3866, %v3337, -inf
    %v5205 = vrot.slane %v5204, 4
    %v5206 = vmax.f32 %v5204, %v5205
    %v5207 = vrot.slane %v5206, 2
    %v5208 = vmax.f32 %v5206, %v5207
    %v5209 = vrot.slane %v5208, 1
    %v5210 = vmax.f32 %v5208, %v5209
    %v5211 = vsel %vm3866, %v3345, -inf
    %v5212 = vrot.slane %v5211, 4
    %v5213 = vmax.f32 %v5211, %v5212
    %v5214 = vrot.slane %v5213, 2
    %v5215 = vmax.f32 %v5213, %v5214
    %v5216 = vrot.slane %v5215, 1
    %v5217 = vmax.f32 %v5215, %v5216
    %v5218 = vsel %vm3866, %v3353, -inf
    %v5219 = vrot.slane %v5218, 4
    %v5220 = vmax.f32 %v5218, %v5219
    %v5221 = vrot.slane %v5220, 2
    %v5222 = vmax.f32 %v5220, %v5221
    %v5223 = vrot.slane %v5222, 1
    %v5224 = vmax.f32 %v5222, %v5223
    %v5225 = vsel %vm3866, %v3352, -inf
    %v5226 = vrot.slane %v5225, 4
    %v5227 = vmax.f32 %v5225, %v5226
    %v5228 = vrot.slane %v5227, 2
    %v5229 = vmax.f32 %v5227, %v5228
    %v5230 = vrot.slane %v5229, 1
    %v5231 = vmax.f32 %v5229, %v5230
    %v5232 = vsel %vm3866, %v3354, -inf
    %v5233 = vrot.slane %v5232, 4
    %v5234 = vmax.f32 %v5232, %v5233
    %v5235 = vrot.slane %v5234, 2
    %v5236 = vmax.f32 %v5234, %v5235
    %v5237 = vrot.slane %v5236, 1
    %v5238 = vmax.f32 %v5236, %v5237
    %v5239 = vsel %vm3866, %v3362, -inf
    %v5240 = vrot.slane %v5239, 4
    %v5241 = vmax.f32 %v5239, %v5240
    %v5242 = vrot.slane %v5241, 2
    %v5243 = vmax.f32 %v5241, %v5242
    %v5244 = vrot.slane %v5243, 1
    %v5245 = vmax.f32 %v5243, %v5244
    %v5246 = vsel %vm3866, %v3370, -inf
    %v5247 = vrot.slane %v5246, 4
    %v5248 = vmax.f32 %v5246, %v5247
    %v5249 = vrot.slane %v5248, 2
    %v5250 = vmax.f32 %v5248, %v5249
    %v5251 = vrot.slane %v5250, 1
    %v5252 = vmax.f32 %v5250, %v5251
    %v5253 = vsel %vm3866, %v3369, -inf
    %v5254 = vrot.slane %v5253, 4
    %v5255 = vmax.f32 %v5253, %v5254
    %v5256 = vrot.slane %v5255, 2
    %v5257 = vmax.f32 %v5255, %v5256
    %v5258 = vrot.slane %v5257, 1
    %v5259 = vmax.f32 %v5257, %v5258
    %v5260 = vsel %vm3866, %v3371, -inf
    %v5261 = vrot.slane %v5260, 4
    %v5262 = vmax.f32 %v5260, %v5261
    %v5263 = vrot.slane %v5262, 2
    %v5264 = vmax.f32 %v5262, %v5263
    %v5265 = vrot.slane %v5264, 1
    %v5266 = vmax.f32 %v5264, %v5265
    %v5267 = vsel %vm3866, %v3379, -inf
    %v5268 = vrot.slane %v5267, 4
    %v5269 = vmax.f32 %v5267, %v5268
    %v5270 = vrot.slane %v5269, 2
    %v5271 = vmax.f32 %v5269, %v5270
    %v5272 = vrot.slane %v5271, 1
    %v5273 = vmax.f32 %v5271, %v5272
    %v5274 = vsel %vm3866, %v3387, -inf
    %v5275 = vrot.slane %v5274, 4
    %v5276 = vmax.f32 %v5274, %v5275
    %v5277 = vrot.slane %v5276, 2
    %v5278 = vmax.f32 %v5276, %v5277
    %v5279 = vrot.slane %v5278, 1
    %v5280 = vmax.f32 %v5278, %v5279
    %v5281 = vsel %vm3866, %v3386, -inf
    %v5282 = vrot.slane %v5281, 4
    %v5283 = vmax.f32 %v5281, %v5282
    %v5284 = vrot.slane %v5283, 2
    %v5285 = vmax.f32 %v5283, %v5284
    %v5286 = vrot.slane %v5285, 1
    %v5287 = vmax.f32 %v5285, %v5286
    %v5288 = vsel %vm3866, %v3388, -inf
    %v5289 = vrot.slane %v5288, 4
    %v5290 = vmax.f32 %v5288, %v5289
    %v5291 = vrot.slane %v5290, 2
    %v5292 = vmax.f32 %v5290, %v5291
    %v5293 = vrot.slane %v5292, 1
    %v5294 = vmax.f32 %v5292, %v5293
    %v5295 = vsel %vm3866, %v3396, -inf
    %v5296 = vrot.slane %v5295, 4
    %v5297 = vmax.f32 %v5295, %v5296
    %v5298 = vrot.slane %v5297, 2
    %v5299 = vmax.f32 %v5297, %v5298
    %v5300 = vrot.slane %v5299, 1
    %v5301 = vmax.f32 %v5299, %v5300
    %v5302 = vsel %vm3866, %v3404, -inf
    %v5303 = vrot.slane %v5302, 4
    %v5304 = vmax.f32 %v5302, %v5303
    %v5305 = vrot.slane %v5304, 2
    %v5306 = vmax.f32 %v5304, %v5305
    %v5307 = vrot.slane %v5306, 1
    %v5308 = vmax.f32 %v5306, %v5307
    %v5309 = vsel %vm3866, %v3403, -inf
    %v5310 = vrot.slane %v5309, 4
    %v5311 = vmax.f32 %v5309, %v5310
    %v5312 = vrot.slane %v5311, 2
    %v5313 = vmax.f32 %v5311, %v5312
    %v5314 = vrot.slane %v5313, 1
    %v5315 = vmax.f32 %v5313, %v5314
    %v5316 = vsel %vm3866, %v3405, -inf
    %v5317 = vrot.slane %v5316, 4
    %v5318 = vmax.f32 %v5316, %v5317
    %v5319 = vrot.slane %v5318, 2
    %v5320 = vmax.f32 %v5318, %v5319
    %v5321 = vrot.slane %v5320, 1
    %v5322 = vmax.f32 %v5320, %v5321
    %v5323 = vsel %vm3866, %v3413, -inf
    %v5324 = vrot.slane %v5323, 4
    %v5325 = vmax.f32 %v5323, %v5324
    %v5326 = vrot.slane %v5325, 2
    %v5327 = vmax.f32 %v5325, %v5326
    %v5328 = vrot.slane %v5327, 1
    %v5329 = vmax.f32 %v5327, %v5328
    %v5330 = vsel %vm3866, %v3421, -inf
    %v5331 = vrot.slane %v5330, 4
    %v5332 = vmax.f32 %v5330, %v5331
    %v5333 = vrot.slane %v5332, 2
    %v5334 = vmax.f32 %v5332, %v5333
    %v5335 = vrot.slane %v5334, 1
    %v5336 = vmax.f32 %v5334, %v5335
    %v5337 = vsel %vm3866, %v3420, -inf
    %v5338 = vrot.slane %v5337, 4
    %v5339 = vmax.f32 %v5337, %v5338
    %v5340 = vrot.slane %v5339, 2
    %v5341 = vmax.f32 %v5339, %v5340
    %v5342 = vrot.slane %v5341, 1
    %v5343 = vmax.f32 %v5341, %v5342
    %v5344 = vsel %vm3866, %v3422, -inf
    %v5345 = vrot.slane %v5344, 4
    %v5346 = vmax.f32 %v5344, %v5345
    %v5347 = vrot.slane %v5346, 2
    %v5348 = vmax.f32 %v5346, %v5347
    %v5349 = vrot.slane %v5348, 1
    %v5350 = vmax.f32 %v5348, %v5349
    %v5351 = vsel %vm3866, %v3430, -inf
    %v5352 = vrot.slane %v5351, 4
    %v5353 = vmax.f32 %v5351, %v5352
    %v5354 = vrot.slane %v5353, 2
    %v5355 = vmax.f32 %v5353, %v5354
    %v5356 = vrot.slane %v5355, 1
    %v5357 = vmax.f32 %v5355, %v5356
    %v5358 = vsel %vm3866, %v3438, -inf
    %v5359 = vrot.slane %v5358, 4
    %v5360 = vmax.f32 %v5358, %v5359
    %v5361 = vrot.slane %v5360, 2
    %v5362 = vmax.f32 %v5360, %v5361
    %v5363 = vrot.slane %v5362, 1
    %v5364 = vmax.f32 %v5362, %v5363
    %v5365 = vsel %vm3866, %v3437, -inf
    %v5366 = vrot.slane %v5365, 4
    %v5367 = vmax.f32 %v5365, %v5366
    %v5368 = vrot.slane %v5367, 2
    %v5369 = vmax.f32 %v5367, %v5368
    %v5370 = vrot.slane %v5369, 1
    %v5371 = vmax.f32 %v5369, %v5370
    %v5372 = vsel %vm3866, %v3439, -inf
    %v5373 = vrot.slane %v5372, 4
    %v5374 = vmax.f32 %v5372, %v5373
    %v5375 = vrot.slane %v5374, 2
    %v5376 = vmax.f32 %v5374, %v5375
    %v5377 = vrot.slane %v5376, 1
    %v5378 = vmax.f32 %v5376, %v5377
    %v5379 = vsel %vm3866, %v3447, -inf
    %v5380 = vrot.slane %v5379, 4
    %v5381 = vmax.f32 %v5379, %v5380
    %v5382 = vrot.slane %v5381, 2
    %v5383 = vmax.f32 %v5381, %v5382
    %v5384 = vrot.slane %v5383, 1
    %v5385 = vmax.f32 %v5383, %v5384
    %v5386 = vsel %vm3866, %v3455, -inf
    %v5387 = vrot.slane %v5386, 4
    %v5388 = vmax.f32 %v5386, %v5387
    %v5389 = vrot.slane %v5388, 2
    %v5390 = vmax.f32 %v5388, %v5389
    %v5391 = vrot.slane %v5390, 1
    %v5392 = vmax.f32 %v5390, %v5391
    %v5393 = vsel %vm3866, %v3454, -inf
    %v5394 = vrot.slane %v5393, 4
    %v5395 = vmax.f32 %v5393, %v5394
    %v5396 = vrot.slane %v5395, 2
    %v5397 = vmax.f32 %v5395, %v5396
    %v5398 = vrot.slane %v5397, 1
    %v5399 = vmax.f32 %v5397, %v5398
    %v5400 = vsel %vm3866, %v3456, -inf
    %v5401 = vrot.slane %v5400, 4
    %v5402 = vmax.f32 %v5400, %v5401
    %v5403 = vrot.slane %v5402, 2
    %v5404 = vmax.f32 %v5402, %v5403
    %v5405 = vrot.slane %v5404, 1
    %v5406 = vmax.f32 %v5404, %v5405
    %v5407 = vsel %vm3866, %v3464, -inf
    %v5408 = vrot.slane %v5407, 4
    %v5409 = vmax.f32 %v5407, %v5408
    %v5410 = vrot.slane %v5409, 2
    %v5411 = vmax.f32 %v5409, %v5410
    %v5412 = vrot.slane %v5411, 1
    %v5413 = vmax.f32 %v5411, %v5412
    %v5414 = vsel %vm3866, %v3472, -inf
    %v5415 = vrot.slane %v5414, 4
    %v5416 = vmax.f32 %v5414, %v5415
    %v5417 = vrot.slane %v5416, 2
    %v5418 = vmax.f32 %v5416, %v5417
    %v5419 = vrot.slane %v5418, 1
    %v5420 = vmax.f32 %v5418, %v5419
    %v5421 = vsel %vm3866, %v3471, -inf
    %v5422 = vrot.slane %v5421, 4
    %v5423 = vmax.f32 %v5421, %v5422
    %v5424 = vrot.slane %v5423, 2
    %v5425 = vmax.f32 %v5423, %v5424
    %v5426 = vrot.slane %v5425, 1
    %v5427 = vmax.f32 %v5425, %v5426
    %v5428 = vsel %vm3866, %v3473, -inf
    %v5429 = vrot.slane %v5428, 4
    %v5430 = vmax.f32 %v5428, %v5429
    %v5431 = vrot.slane %v5430, 2
    %v5432 = vmax.f32 %v5430, %v5431
    %v5433 = vrot.slane %v5432, 1
    %v5434 = vmax.f32 %v5432, %v5433
    %v5435 = vsel %vm3866, %v3481, -inf
    %v5436 = vrot.slane %v5435, 4
    %v5437 = vmax.f32 %v5435, %v5436
    %v5438 = vrot.slane %v5437, 2
    %v5439 = vmax.f32 %v5437, %v5438
    %v5440 = vrot.slane %v5439, 1
    %v5441 = vmax.f32 %v5439, %v5440
    %v5442 = vsel %vm3866, %v3489, -inf
    %v5443 = vrot.slane %v5442, 4
    %v5444 = vmax.f32 %v5442, %v5443
    %v5445 = vrot.slane %v5444, 2
    %v5446 = vmax.f32 %v5444, %v5445
    %v5447 = vrot.slane %v5446, 1
    %v5448 = vmax.f32 %v5446, %v5447
    %v5449 = vsel %vm3866, %v3488, -inf
    %v5450 = vrot.slane %v5449, 4
    %v5451 = vmax.f32 %v5449, %v5450
    %v5452 = vrot.slane %v5451, 2
    %v5453 = vmax.f32 %v5451, %v5452
    %v5454 = vrot.slane %v5453, 1
    %v5455 = vmax.f32 %v5453, %v5454
    %v5456 = vsel %vm3866, %v3490, -inf
    %v5457 = vrot.slane %v5456, 4
    %v5458 = vmax.f32 %v5456, %v5457
    %v5459 = vrot.slane %v5458, 2
    %v5460 = vmax.f32 %v5458, %v5459
    %v5461 = vrot.slane %v5460, 1
    %v5462 = vmax.f32 %v5460, %v5461
    %v5463 = vsel %vm3866, %v3498, -inf
    %v5464 = vrot.slane %v5463, 4
    %v5465 = vmax.f32 %v5463, %v5464
    %v5466 = vrot.slane %v5465, 2
    %v5467 = vmax.f32 %v5465, %v5466
    %v5468 = vrot.slane %v5467, 1
    %v5469 = vmax.f32 %v5467, %v5468
    %v5470 = vsel %vm3866, %v3506, -inf
    %v5471 = vrot.slane %v5470, 4
    %v5472 = vmax.f32 %v5470, %v5471
    %v5473 = vrot.slane %v5472, 2
    %v5474 = vmax.f32 %v5472, %v5473
    %v5475 = vrot.slane %v5474, 1
    %v5476 = vmax.f32 %v5474, %v5475
    %v5477 = vsel %vm3866, %v3505, -inf
    %v5478 = vrot.slane %v5477, 4
    %v5479 = vmax.f32 %v5477, %v5478
    %v5480 = vrot.slane %v5479, 2
    %v5481 = vmax.f32 %v5479, %v5480
    %v5482 = vrot.slane %v5481, 1
    %v5483 = vmax.f32 %v5481, %v5482
    %v5484 = vsel %vm3866, %v3507, -inf
    %v5485 = vrot.slane %v5484, 4
    %v5486 = vmax.f32 %v5484, %v5485
    %v5487 = vrot.slane %v5486, 2
    %v5488 = vmax.f32 %v5486, %v5487
    %v5489 = vrot.slane %v5488, 1
    %v5490 = vmax.f32 %v5488, %v5489
    %v5491 = vsel %vm3866, %v3515, -inf
    %v5492 = vrot.slane %v5491, 4
    %v5493 = vmax.f32 %v5491, %v5492
    %v5494 = vrot.slane %v5493, 2
    %v5495 = vmax.f32 %v5493, %v5494
    %v5496 = vrot.slane %v5495, 1
    %v5497 = vmax.f32 %v5495, %v5496
    %v5498 = vsel %vm3866, %v3523, -inf
    %v5499 = vrot.slane %v5498, 4
    %v5500 = vmax.f32 %v5498, %v5499
    %v5501 = vrot.slane %v5500, 2
    %v5502 = vmax.f32 %v5500, %v5501
    %v5503 = vrot.slane %v5502, 1
    %v5504 = vmax.f32 %v5502, %v5503
    %v5505 = vsel %vm3866, %v3522, -inf
    %v5506 = vrot.slane %v5505, 4
    %v5507 = vmax.f32 %v5505, %v5506
    %v5508 = vrot.slane %v5507, 2
    %v5509 = vmax.f32 %v5507, %v5508
    %v5510 = vrot.slane %v5509, 1
    %v5511 = vmax.f32 %v5509, %v5510
    %v5512 = vsel %vm3866, %v3524, -inf
    %v5513 = vrot.slane %v5512, 4
    %v5514 = vmax.f32 %v5512, %v5513
    %v5515 = vrot.slane %v5514, 2
    %v5516 = vmax.f32 %v5514, %v5515
    %v5517 = vrot.slane %v5516, 1
    %v5518 = vmax.f32 %v5516, %v5517
    %v5519 = vsel %vm3866, %v3532, -inf
    %v5520 = vrot.slane %v5519, 4
    %v5521 = vmax.f32 %v5519, %v5520
    %v5522 = vrot.slane %v5521, 2
    %v5523 = vmax.f32 %v5521, %v5522
    %v5524 = vrot.slane %v5523, 1
    %v5525 = vmax.f32 %v5523, %v5524
    %v5526 = vsel %vm3866, %v3540, -inf
    %v5527 = vrot.slane %v5526, 4
    %v5528 = vmax.f32 %v5526, %v5527
    %v5529 = vrot.slane %v5528, 2
    %v5530 = vmax.f32 %v5528, %v5529
    %v5531 = vrot.slane %v5530, 1
    %v5532 = vmax.f32 %v5530, %v5531
    %v5533 = vsel %vm3866, %v3539, -inf
    %v5534 = vrot.slane %v5533, 4
    %v5535 = vmax.f32 %v5533, %v5534
    %v5536 = vrot.slane %v5535, 2
    %v5537 = vmax.f32 %v5535, %v5536
    %v5538 = vrot.slane %v5537, 1
    %v5539 = vmax.f32 %v5537, %v5538
    %v5540 = vsel %vm3866, %v3541, -inf
    %v5541 = vrot.slane %v5540, 4
    %v5542 = vmax.f32 %v5540, %v5541
    %v5543 = vrot.slane %v5542, 2
    %v5544 = vmax.f32 %v5542, %v5543
    %v5545 = vrot.slane %v5544, 1
    %v5546 = vmax.f32 %v5544, %v5545
    %v5547 = vsel %vm3866, %v3549, -inf
    %v5548 = vrot.slane %v5547, 4
    %v5549 = vmax.f32 %v5547, %v5548
    %v5550 = vrot.slane %v5549, 2
    %v5551 = vmax.f32 %v5549, %v5550
    %v5552 = vrot.slane %v5551, 1
    %v5553 = vmax.f32 %v5551, %v5552
    %v5554 = vsel %vm3866, %v3557, -inf
    %v5555 = vrot.slane %v5554, 4
    %v5556 = vmax.f32 %v5554, %v5555
    %v5557 = vrot.slane %v5556, 2
    %v5558 = vmax.f32 %v5556, %v5557
    %v5559 = vrot.slane %v5558, 1
    %v5560 = vmax.f32 %v5558, %v5559
    %v5561 = vsel %vm3866, %v3556, -inf
    %v5562 = vrot.slane %v5561, 4
    %v5563 = vmax.f32 %v5561, %v5562
    %v5564 = vrot.slane %v5563, 2
    %v5565 = vmax.f32 %v5563, %v5564
    %v5566 = vrot.slane %v5565, 1
    %v5567 = vmax.f32 %v5565, %v5566
    %v5568 = vsel %vm3866, %v3558, -inf
    %v5569 = vrot.slane %v5568, 4
    %v5570 = vmax.f32 %v5568, %v5569
    %v5571 = vrot.slane %v5570, 2
    %v5572 = vmax.f32 %v5570, %v5571
    %v5573 = vrot.slane %v5572, 1
    %v5574 = vmax.f32 %v5572, %v5573
    %v5575 = vsel %vm3866, %v3566, -inf
    %v5576 = vrot.slane %v5575, 4
    %v5577 = vmax.f32 %v5575, %v5576
    %v5578 = vrot.slane %v5577, 2
    %v5579 = vmax.f32 %v5577, %v5578
    %v5580 = vrot.slane %v5579, 1
    %v5581 = vmax.f32 %v5579, %v5580
    %v5582 = vsel %vm3866, %v3574, -inf
    %v5583 = vrot.slane %v5582, 4
    %v5584 = vmax.f32 %v5582, %v5583
    %v5585 = vrot.slane %v5584, 2
    %v5586 = vmax.f32 %v5584, %v5585
    %v5587 = vrot.slane %v5586, 1
    %v5588 = vmax.f32 %v5586, %v5587
    %v5589 = vsel %vm3866, %v3573, -inf
    %v5590 = vrot.slane %v5589, 4
    %v5591 = vmax.f32 %v5589, %v5590
    %v5592 = vrot.slane %v5591, 2
    %v5593 = vmax.f32 %v5591, %v5592
    %v5594 = vrot.slane %v5593, 1
    %v5595 = vmax.f32 %v5593, %v5594
    %v5596 = vsel %vm3866, %v3575, -inf
    %v5597 = vrot.slane %v5596, 4
    %v5598 = vmax.f32 %v5596, %v5597
    %v5599 = vrot.slane %v5598, 2
    %v5600 = vmax.f32 %v5598, %v5599
    %v5601 = vrot.slane %v5600, 1
    %v5602 = vmax.f32 %v5600, %v5601
    %v5603 = vsel %vm3866, %v3583, -inf
    %v5604 = vrot.slane %v5603, 4
    %v5605 = vmax.f32 %v5603, %v5604
    %v5606 = vrot.slane %v5605, 2
    %v5607 = vmax.f32 %v5605, %v5606
    %v5608 = vrot.slane %v5607, 1
    %v5609 = vmax.f32 %v5607, %v5608
    %v5610 = vsel %vm3866, %v3591, -inf
    %v5611 = vrot.slane %v5610, 4
    %v5612 = vmax.f32 %v5610, %v5611
    %v5613 = vrot.slane %v5612, 2
    %v5614 = vmax.f32 %v5612, %v5613
    %v5615 = vrot.slane %v5614, 1
    %v5616 = vmax.f32 %v5614, %v5615
    %v5617 = vsel %vm3866, %v3590, -inf
    %v5618 = vrot.slane %v5617, 4
    %v5619 = vmax.f32 %v5617, %v5618
    %v5620 = vrot.slane %v5619, 2
    %v5621 = vmax.f32 %v5619, %v5620
    %v5622 = vrot.slane %v5621, 1
    %v5623 = vmax.f32 %v5621, %v5622
    %v5624 = vsel %vm3866, %v3592, -inf
    %v5625 = vrot.slane %v5624, 4
    %v5626 = vmax.f32 %v5624, %v5625
    %v5627 = vrot.slane %v5626, 2
    %v5628 = vmax.f32 %v5626, %v5627
    %v5629 = vrot.slane %v5628, 1
    %v5630 = vmax.f32 %v5628, %v5629
    %v5631 = vsel %vm3866, %v3600, -inf
    %v5632 = vrot.slane %v5631, 4
    %v5633 = vmax.f32 %v5631, %v5632
    %v5634 = vrot.slane %v5633, 2
    %v5635 = vmax.f32 %v5633, %v5634
    %v5636 = vrot.slane %v5635, 1
    %v5637 = vmax.f32 %v5635, %v5636
    %v5638 = vsel %vm3866, %v3608, -inf
    %v5639 = vrot.slane %v5638, 4
    %v5640 = vmax.f32 %v5638, %v5639
    %v5641 = vrot.slane %v5640, 2
    %v5642 = vmax.f32 %v5640, %v5641
    %v5643 = vrot.slane %v5642, 1
    %v5644 = vmax.f32 %v5642, %v5643
    %v5645 = vsel %vm3866, %v3607, -inf
    %v5646 = vrot.slane %v5645, 4
    %v5647 = vmax.f32 %v5645, %v5646
    %v5648 = vrot.slane %v5647, 2
    %v5649 = vmax.f32 %v5647, %v5648
    %v5650 = vrot.slane %v5649, 1
    %v5651 = vmax.f32 %v5649, %v5650
    %v5652 = vsel %vm3866, %v3609, -inf
    %v5653 = vrot.slane %v5652, 4
    %v5654 = vmax.f32 %v5652, %v5653
    %v5655 = vrot.slane %v5654, 2
    %v5656 = vmax.f32 %v5654, %v5655
    %v5657 = vrot.slane %v5656, 1
    %v5658 = vmax.f32 %v5656, %v5657
    %v5659 = vmax.f32 %v3873, %v3929
    %v5660 = vmax.f32 %v3880, %v3936
    %v5661 = vmax.f32 %v3887, %v3943
    %v5662 = vmax.f32 %v3894, %v3950
    %v5663 = vmax.f32 %v3901, %v3957
    %v5664 = vmax.f32 %v3908, %v3964
    %v5665 = vmax.f32 %v3915, %v3971
    %v5666 = vmax.f32 %v3922, %v3978
    %v5667 = vmax.f32 %v3985, %v4041
    %v5668 = vmax.f32 %v3992, %v4048
    %v5669 = vmax.f32 %v3999, %v4055
    %v5670 = vmax.f32 %v4006, %v4062
    %v5671 = vmax.f32 %v4013, %v4069
    %v5672 = vmax.f32 %v4020, %v4076
    %v5673 = vmax.f32 %v4027, %v4083
    %v5674 = vmax.f32 %v4034, %v4090
    %v5675 = vmax.f32 %v4097, %v4153
    %v5676 = vmax.f32 %v4104, %v4160
    %v5677 = vmax.f32 %v4111, %v4167
    %v5678 = vmax.f32 %v4118, %v4174
    %v5679 = vmax.f32 %v4125, %v4181
    %v5680 = vmax.f32 %v4132, %v4188
    %v5681 = vmax.f32 %v4139, %v4195
    %v5682 = vmax.f32 %v4146, %v4202
    %v5683 = vmax.f32 %v4209, %v4265
    %v5684 = vmax.f32 %v4216, %v4272
    %v5685 = vmax.f32 %v4223, %v4279
    %v5686 = vmax.f32 %v4230, %v4286
    %v5687 = vmax.f32 %v4237, %v4293
    %v5688 = vmax.f32 %v4244, %v4300
    %v5689 = vmax.f32 %v4251, %v4307
    %v5690 = vmax.f32 %v4258, %v4314
    %v5691 = vmax.f32 %v4321, %v4377
    %v5692 = vmax.f32 %v4328, %v4384
    %v5693 = vmax.f32 %v4335, %v4391
    %v5694 = vmax.f32 %v4342, %v4398
    %v5695 = vmax.f32 %v4349, %v4405
    %v5696 = vmax.f32 %v4356, %v4412
    %v5697 = vmax.f32 %v4363, %v4419
    %v5698 = vmax.f32 %v4370, %v4426
    %v5699 = vmax.f32 %v4433, %v4489
    %v5700 = vmax.f32 %v4440, %v4496
    %v5701 = vmax.f32 %v4447, %v4503
    %v5702 = vmax.f32 %v4454, %v4510
    %v5703 = vmax.f32 %v4461, %v4517
    %v5704 = vmax.f32 %v4468, %v4524
    %v5705 = vmax.f32 %v4475, %v4531
    %v5706 = vmax.f32 %v4482, %v4538
    %v5707 = vmax.f32 %v4545, %v4601
    %v5708 = vmax.f32 %v4552, %v4608
    %v5709 = vmax.f32 %v4559, %v4615
    %v5710 = vmax.f32 %v4566, %v4622
    %v5711 = vmax.f32 %v4573, %v4629
    %v5712 = vmax.f32 %v4580, %v4636
    %v5713 = vmax.f32 %v4587, %v4643
    %v5714 = vmax.f32 %v4594, %v4650
    %v5715 = vmax.f32 %v4657, %v4713
    %v5716 = vmax.f32 %v4664, %v4720
    %v5717 = vmax.f32 %v4671, %v4727
    %v5718 = vmax.f32 %v4678, %v4734
    %v5719 = vmax.f32 %v4685, %v4741
    %v5720 = vmax.f32 %v4692, %v4748
    %v5721 = vmax.f32 %v4699, %v4755
    %v5722 = vmax.f32 %v4706, %v4762
    %v5723 = vmax.f32 %v4769, %v4825
    %v5724 = vmax.f32 %v4776, %v4832
    %v5725 = vmax.f32 %v4783, %v4839
    %v5726 = vmax.f32 %v4790, %v4846
    %v5727 = vmax.f32 %v4797, %v4853
    %v5728 = vmax.f32 %v4804, %v4860
    %v5729 = vmax.f32 %v4811, %v4867
    %v5730 = vmax.f32 %v4818, %v4874
    %v5731 = vmax.f32 %v4881, %v4937
    %v5732 = vmax.f32 %v4888, %v4944
    %v5733 = vmax.f32 %v4895, %v4951
    %v5734 = vmax.f32 %v4902, %v4958
    %v5735 = vmax.f32 %v4909, %v4965
    %v5736 = vmax.f32 %v4916, %v4972
    %v5737 = vmax.f32 %v4923, %v4979
    %v5738 = vmax.f32 %v4930, %v4986
    %v5739 = vmax.f32 %v4993, %v5049
    %v5740 = vmax.f32 %v5000, %v5056
    %v5741 = vmax.f32 %v5007, %v5063
    %v5742 = vmax.f32 %v5014, %v5070
    %v5743 = vmax.f32 %v5021, %v5077
    %v5744 = vmax.f32 %v5028, %v5084
    %v5745 = vmax.f32 %v5035, %v5091
    %v5746 = vmax.f32 %v5042, %v5098
    %v5747 = vmax.f32 %v5105, %v5161
    %v5748 = vmax.f32 %v5112, %v5168
    %v5749 = vmax.f32 %v5119, %v5175
    %v5750 = vmax.f32 %v5126, %v5182
    %v5751 = vmax.f32 %v5133, %v5189
    %v5752 = vmax.f32 %v5140, %v5196
    %v5753 = vmax.f32 %v5147, %v5203
    %v5754 = vmax.f32 %v5154, %v5210
    %v5755 = vmax.f32 %v5217, %v5273
    %v5756 = vmax.f32 %v5224, %v5280
    %v5757 = vmax.f32 %v5231, %v5287
    %v5758 = vmax.f32 %v5238, %v5294
    %v5759 = vmax.f32 %v5245, %v5301
    %v5760 = vmax.f32 %v5252, %v5308
    %v5761 = vmax.f32 %v5259, %v5315
    %v5762 = vmax.f32 %v5266, %v5322
    %v5763 = vmax.f32 %v5329, %v5385
    %v5764 = vmax.f32 %v5336, %v5392
    %v5765 = vmax.f32 %v5343, %v5399
    %v5766 = vmax.f32 %v5350, %v5406
    %v5767 = vmax.f32 %v5357, %v5413
    %v5768 = vmax.f32 %v5364, %v5420
    %v5769 = vmax.f32 %v5371, %v5427
    %v5770 = vmax.f32 %v5378, %v5434
    %v5771 = vmax.f32 %v5441, %v5497
    %v5772 = vmax.f32 %v5448, %v5504
    %v5773 = vmax.f32 %v5455, %v5511
    %v5774 = vmax.f32 %v5462, %v5518
    %v5775 = vmax.f32 %v5469, %v5525
    %v5776 = vmax.f32 %v5476, %v5532
    %v5777 = vmax.f32 %v5483, %v5539
    %v5778 = vmax.f32 %v5490, %v5546
    %v5779 = vmax.f32 %v5553, %v5609
    %v5780 = vmax.f32 %v5560, %v5616
    %v5781 = vmax.f32 %v5567, %v5623
    %v5782 = vmax.f32 %v5574, %v5630
    %v5783 = vmax.f32 %v5581, %v5637
    %v5784 = vmax.f32 %v5588, %v5644
    %v5785 = vmax.f32 %v5595, %v5651
    %v5786 = vmax.f32 %v5602, %v5658
    %v5787 = vpack.c.bf16 %v5659, %v5659
    %v5788 = vpack.c.bf16 %v5660, %v5660
    %v5789 = vpack.c.bf16 %v5661, %v5661
    %v5790 = vpack.c.bf16 %v5662, %v5662
    %v5791 = vpack.c.bf16 %v5663, %v5663
    %v5792 = vpack.c.bf16 %v5664, %v5664
    %v5793 = vpack.c.bf16 %v5665, %v5665
    %v5794 = vpack.c.bf16 %v5666, %v5666
    %v5795 = vpack.c.bf16 %v5667, %v5667
    %v5796 = vpack.c.bf16 %v5668, %v5668
    %v5797 = vpack.c.bf16 %v5669, %v5669
    %v5798 = vpack.c.bf16 %v5670, %v5670
    %v5799 = vpack.c.bf16 %v5671, %v5671
    %v5800 = vpack.c.bf16 %v5672, %v5672
    %v5801 = vpack.c.bf16 %v5673, %v5673
    %v5802 = vpack.c.bf16 %v5674, %v5674
    %v5803 = vpack.c.bf16 %v5675, %v5675
    %v5804 = vpack.c.bf16 %v5676, %v5676
    %v5805 = vpack.c.bf16 %v5677, %v5677
    %v5806 = vpack.c.bf16 %v5678, %v5678
    %v5807 = vpack.c.bf16 %v5679, %v5679
    %v5808 = vpack.c.bf16 %v5680, %v5680
    %v5809 = vpack.c.bf16 %v5681, %v5681
    %v5810 = vpack.c.bf16 %v5682, %v5682
    %v5811 = vpack.c.bf16 %v5683, %v5683
    %v5812 = vpack.c.bf16 %v5684, %v5684
    %v5813 = vpack.c.bf16 %v5685, %v5685
    %v5814 = vpack.c.bf16 %v5686, %v5686
    %v5815 = vpack.c.bf16 %v5687, %v5687
    %v5816 = vpack.c.bf16 %v5688, %v5688
    %v5817 = vpack.c.bf16 %v5689, %v5689
    %v5818 = vpack.c.bf16 %v5690, %v5690
    %v5819 = vpack.c.bf16 %v5691, %v5691
    %v5820 = vpack.c.bf16 %v5692, %v5692
    %v5821 = vpack.c.bf16 %v5693, %v5693
    %v5822 = vpack.c.bf16 %v5694, %v5694
    %v5823 = vpack.c.bf16 %v5695, %v5695
    %v5824 = vpack.c.bf16 %v5696, %v5696
    %v5825 = vpack.c.bf16 %v5697, %v5697
    %v5826 = vpack.c.bf16 %v5698, %v5698
    %v5827 = vpack.c.bf16 %v5699, %v5699
    %v5828 = vpack.c.bf16 %v5700, %v5700
    %v5829 = vpack.c.bf16 %v5701, %v5701
    %v5830 = vpack.c.bf16 %v5702, %v5702
    %v5831 = vpack.c.bf16 %v5703, %v5703
    %v5832 = vpack.c.bf16 %v5704, %v5704
    %v5833 = vpack.c.bf16 %v5705, %v5705
    %v5834 = vpack.c.bf16 %v5706, %v5706
    %v5835 = vpack.c.bf16 %v5707, %v5707
    %v5836 = vpack.c.bf16 %v5708, %v5708
    %v5837 = vpack.c.bf16 %v5709, %v5709
    %v5838 = vpack.c.bf16 %v5710, %v5710
    %v5839 = vpack.c.bf16 %v5711, %v5711
    %v5840 = vpack.c.bf16 %v5712, %v5712
    %v5841 = vpack.c.bf16 %v5713, %v5713
    %v5842 = vpack.c.bf16 %v5714, %v5714
    %v5843 = vpack.c.bf16 %v5715, %v5715
    %v5844 = vpack.c.bf16 %v5716, %v5716
    %v5845 = vpack.c.bf16 %v5717, %v5717
    %v5846 = vpack.c.bf16 %v5718, %v5718
    %v5847 = vpack.c.bf16 %v5719, %v5719
    %v5848 = vpack.c.bf16 %v5720, %v5720
    %v5849 = vpack.c.bf16 %v5721, %v5721
    %v5850 = vpack.c.bf16 %v5722, %v5722
    %v5851 = vpack.c.bf16 %v5723, %v5723
    %v5852 = vpack.c.bf16 %v5724, %v5724
    %v5853 = vpack.c.bf16 %v5725, %v5725
    %v5854 = vpack.c.bf16 %v5726, %v5726
    %v5855 = vpack.c.bf16 %v5727, %v5727
    %v5856 = vpack.c.bf16 %v5728, %v5728
    %v5857 = vpack.c.bf16 %v5729, %v5729
    %v5858 = vpack.c.bf16 %v5730, %v5730
    %v5859 = vpack.c.bf16 %v5731, %v5731
    %v5860 = vpack.c.bf16 %v5732, %v5732
    %v5861 = vpack.c.bf16 %v5733, %v5733
    %v5862 = vpack.c.bf16 %v5734, %v5734
    %v5863 = vpack.c.bf16 %v5735, %v5735
    %v5864 = vpack.c.bf16 %v5736, %v5736
    %v5865 = vpack.c.bf16 %v5737, %v5737
    %v5866 = vpack.c.bf16 %v5738, %v5738
    %v5867 = vpack.c.bf16 %v5739, %v5739
    %v5868 = vpack.c.bf16 %v5740, %v5740
    %v5869 = vpack.c.bf16 %v5741, %v5741
    %v5870 = vpack.c.bf16 %v5742, %v5742
    %v5871 = vpack.c.bf16 %v5743, %v5743
    %v5872 = vpack.c.bf16 %v5744, %v5744
    %v5873 = vpack.c.bf16 %v5745, %v5745
    %v5874 = vpack.c.bf16 %v5746, %v5746
    %v5875 = vpack.c.bf16 %v5747, %v5747
    %v5876 = vpack.c.bf16 %v5748, %v5748
    %v5877 = vpack.c.bf16 %v5749, %v5749
    %v5878 = vpack.c.bf16 %v5750, %v5750
    %v5879 = vpack.c.bf16 %v5751, %v5751
    %v5880 = vpack.c.bf16 %v5752, %v5752
    %v5881 = vpack.c.bf16 %v5753, %v5753
    %v5882 = vpack.c.bf16 %v5754, %v5754
    %v5883 = vpack.c.bf16 %v5755, %v5755
    %v5884 = vpack.c.bf16 %v5756, %v5756
    %v5885 = vpack.c.bf16 %v5757, %v5757
    %v5886 = vpack.c.bf16 %v5758, %v5758
    %v5887 = vpack.c.bf16 %v5759, %v5759
    %v5888 = vpack.c.bf16 %v5760, %v5760
    %v5889 = vpack.c.bf16 %v5761, %v5761
    %v5890 = vpack.c.bf16 %v5762, %v5762
    %v5891 = vpack.c.bf16 %v5763, %v5763
    %v5892 = vpack.c.bf16 %v5764, %v5764
    %v5893 = vpack.c.bf16 %v5765, %v5765
    %v5894 = vpack.c.bf16 %v5766, %v5766
    %v5895 = vpack.c.bf16 %v5767, %v5767
    %v5896 = vpack.c.bf16 %v5768, %v5768
    %v5897 = vpack.c.bf16 %v5769, %v5769
    %v5898 = vpack.c.bf16 %v5770, %v5770
    %v5899 = vpack.c.bf16 %v5771, %v5771
    %v5900 = vpack.c.bf16 %v5772, %v5772
    %v5901 = vpack.c.bf16 %v5773, %v5773
    %v5902 = vpack.c.bf16 %v5774, %v5774
    %v5903 = vpack.c.bf16 %v5775, %v5775
    %v5904 = vpack.c.bf16 %v5776, %v5776
    %v5905 = vpack.c.bf16 %v5777, %v5777
    %v5906 = vpack.c.bf16 %v5778, %v5778
    %v5907 = vpack.c.bf16 %v5779, %v5779
    %v5908 = vpack.c.bf16 %v5780, %v5780
    %v5909 = vpack.c.bf16 %v5781, %v5781
    %v5910 = vpack.c.bf16 %v5782, %v5782
    %v5911 = vpack.c.bf16 %v5783, %v5783
    %v5912 = vpack.c.bf16 %v5784, %v5784
    %v5913 = vpack.c.bf16 %v5785, %v5785
    %v5914 = vpack.c.bf16 %v5786, %v5786
    %v6043 = vunpack.c.l.b16 %v5787
    %v6044 = vunpack.c.l.b16 %v5788
    %v6045 = vunpack.c.l.b16 %v5789
    %v6046 = vunpack.c.l.b16 %v5790
    %v6047 = vunpack.c.l.b16 %v5791
    %v6048 = vunpack.c.l.b16 %v5792
    %v6049 = vunpack.c.l.b16 %v5793
    %v6050 = vunpack.c.l.b16 %v5794
    %v6051 = vunpack.c.l.b16 %v5795
    %v6052 = vunpack.c.l.b16 %v5796
    %v6053 = vunpack.c.l.b16 %v5797
    %v6054 = vunpack.c.l.b16 %v5798
    %v6055 = vunpack.c.l.b16 %v5799
    %v6056 = vunpack.c.l.b16 %v5800
    %v6057 = vunpack.c.l.b16 %v5801
    %v6058 = vunpack.c.l.b16 %v5802
    %v6059 = vunpack.c.l.b16 %v5803
    %v6060 = vunpack.c.l.b16 %v5804
    %v6061 = vunpack.c.l.b16 %v5805
    %v6062 = vunpack.c.l.b16 %v5806
    %v6063 = vunpack.c.l.b16 %v5807
    %v6064 = vunpack.c.l.b16 %v5808
    %v6065 = vunpack.c.l.b16 %v5809
    %v6066 = vunpack.c.l.b16 %v5810
    %v6067 = vunpack.c.l.b16 %v5811
    %v6068 = vunpack.c.l.b16 %v5812
    %v6069 = vunpack.c.l.b16 %v5813
    %v6070 = vunpack.c.l.b16 %v5814
    %v6071 = vunpack.c.l.b16 %v5815
    %v6072 = vunpack.c.l.b16 %v5816
    %v6073 = vunpack.c.l.b16 %v5817
    %v6074 = vunpack.c.l.b16 %v5818
    %v6075 = vunpack.c.l.b16 %v5819
    %v6076 = vunpack.c.l.b16 %v5820
    %v6077 = vunpack.c.l.b16 %v5821
    %v6078 = vunpack.c.l.b16 %v5822
    %v6079 = vunpack.c.l.b16 %v5823
    %v6080 = vunpack.c.l.b16 %v5824
    %v6081 = vunpack.c.l.b16 %v5825
    %v6082 = vunpack.c.l.b16 %v5826
    %v6083 = vunpack.c.l.b16 %v5827
    %v6084 = vunpack.c.l.b16 %v5828
    %v6085 = vunpack.c.l.b16 %v5829
    %v6086 = vunpack.c.l.b16 %v5830
    %v6087 = vunpack.c.l.b16 %v5831
    %v6088 = vunpack.c.l.b16 %v5832
    %v6089 = vunpack.c.l.b16 %v5833
    %v6090 = vunpack.c.l.b16 %v5834
    %v6091 = vunpack.c.l.b16 %v5835
    %v6092 = vunpack.c.l.b16 %v5836
    %v6093 = vunpack.c.l.b16 %v5837
    %v6094 = vunpack.c.l.b16 %v5838
    %v6095 = vunpack.c.l.b16 %v5839
    %v6096 = vunpack.c.l.b16 %v5840
    %v6097 = vunpack.c.l.b16 %v5841
    %v6098 = vunpack.c.l.b16 %v5842
    %v6099 = vunpack.c.l.b16 %v5843
    %v6100 = vunpack.c.l.b16 %v5844
    %v6101 = vunpack.c.l.b16 %v5845
    %v6102 = vunpack.c.l.b16 %v5846
    %v6103 = vunpack.c.l.b16 %v5847
    %v6104 = vunpack.c.l.b16 %v5848
    %v6105 = vunpack.c.l.b16 %v5849
    %v6106 = vunpack.c.l.b16 %v5850
    %v6107 = vunpack.c.l.b16 %v5851
    %v6108 = vunpack.c.l.b16 %v5852
    %v6109 = vunpack.c.l.b16 %v5853
    %v6110 = vunpack.c.l.b16 %v5854
    %v6111 = vunpack.c.l.b16 %v5855
    %v6112 = vunpack.c.l.b16 %v5856
    %v6113 = vunpack.c.l.b16 %v5857
    %v6114 = vunpack.c.l.b16 %v5858
    %v6115 = vunpack.c.l.b16 %v5859
    %v6116 = vunpack.c.l.b16 %v5860
    %v6117 = vunpack.c.l.b16 %v5861
    %v6118 = vunpack.c.l.b16 %v5862
    %v6119 = vunpack.c.l.b16 %v5863
    %v6120 = vunpack.c.l.b16 %v5864
    %v6121 = vunpack.c.l.b16 %v5865
    %v6122 = vunpack.c.l.b16 %v5866
    %v6123 = vunpack.c.l.b16 %v5867
    %v6124 = vunpack.c.l.b16 %v5868
    %v6125 = vunpack.c.l.b16 %v5869
    %v6126 = vunpack.c.l.b16 %v5870
    %v6127 = vunpack.c.l.b16 %v5871
    %v6128 = vunpack.c.l.b16 %v5872
    %v6129 = vunpack.c.l.b16 %v5873
    %v6130 = vunpack.c.l.b16 %v5874
    %v6131 = vunpack.c.l.b16 %v5875
    %v6132 = vunpack.c.l.b16 %v5876
    %v6133 = vunpack.c.l.b16 %v5877
    %v6134 = vunpack.c.l.b16 %v5878
    %v6135 = vunpack.c.l.b16 %v5879
    %v6136 = vunpack.c.l.b16 %v5880
    %v6137 = vunpack.c.l.b16 %v5881
    %v6138 = vunpack.c.l.b16 %v5882
    %v6139 = vunpack.c.l.b16 %v5883
    %v6140 = vunpack.c.l.b16 %v5884
    %v6141 = vunpack.c.l.b16 %v5885
    %v6142 = vunpack.c.l.b16 %v5886
    %v6143 = vunpack.c.l.b16 %v5887
    %v6144 = vunpack.c.l.b16 %v5888
    %v6145 = vunpack.c.l.b16 %v5889
    %v6146 = vunpack.c.l.b16 %v5890
    %v6147 = vunpack.c.l.b16 %v5891
    %v6148 = vunpack.c.l.b16 %v5892
    %v6149 = vunpack.c.l.b16 %v5893
    %v6150 = vunpack.c.l.b16 %v5894
    %v6151 = vunpack.c.l.b16 %v5895
    %v6152 = vunpack.c.l.b16 %v5896
    %v6153 = vunpack.c.l.b16 %v5897
    %v6154 = vunpack.c.l.b16 %v5898
    %v6155 = vunpack.c.l.b16 %v5899
    %v6156 = vunpack.c.l.b16 %v5900
    %v6157 = vunpack.c.l.b16 %v5901
    %v6158 = vunpack.c.l.b16 %v5902
    %v6159 = vunpack.c.l.b16 %v5903
    %v6160 = vunpack.c.l.b16 %v5904
    %v6161 = vunpack.c.l.b16 %v5905
    %v6162 = vunpack.c.l.b16 %v5906
    %v6163 = vunpack.c.l.b16 %v5907
    %v6164 = vunpack.c.l.b16 %v5908
    %v6165 = vunpack.c.l.b16 %v5909
    %v6166 = vunpack.c.l.b16 %v5910
    %v6167 = vunpack.c.l.b16 %v5911
    %v6168 = vunpack.c.l.b16 %v5912
    %v6169 = vunpack.c.l.b16 %v5913
    %v6170 = vunpack.c.l.b16 %v5914
    %v6171 = vpack.c.b16 %v6043, %v6043
    %v6172 = vpack.c.b16 %v6044, %v6044
    %v6173 = vpack.c.b16 %v6045, %v6045
    %v6174 = vpack.c.b16 %v6046, %v6046
    %v6175 = vpack.c.b16 %v6047, %v6047
    %v6176 = vpack.c.b16 %v6048, %v6048
    %v6177 = vpack.c.b16 %v6049, %v6049
    %v6178 = vpack.c.b16 %v6050, %v6050
    %v6179 = vpack.c.b16 %v6051, %v6051
    %v6180 = vpack.c.b16 %v6052, %v6052
    %v6181 = vpack.c.b16 %v6053, %v6053
    %v6182 = vpack.c.b16 %v6054, %v6054
    %v6183 = vpack.c.b16 %v6055, %v6055
    %v6184 = vpack.c.b16 %v6056, %v6056
    %v6185 = vpack.c.b16 %v6057, %v6057
    %v6186 = vpack.c.b16 %v6058, %v6058
    %v6187 = vpack.c.b16 %v6059, %v6059
    %v6188 = vpack.c.b16 %v6060, %v6060
    %v6189 = vpack.c.b16 %v6061, %v6061
    %v6190 = vpack.c.b16 %v6062, %v6062
    %v6191 = vpack.c.b16 %v6063, %v6063
    %v6192 = vpack.c.b16 %v6064, %v6064
    %v6193 = vpack.c.b16 %v6065, %v6065
    %v6194 = vpack.c.b16 %v6066, %v6066
    %v6195 = vpack.c.b16 %v6067, %v6067
    %v6196 = vpack.c.b16 %v6068, %v6068
    %v6197 = vpack.c.b16 %v6069, %v6069
    %v6198 = vpack.c.b16 %v6070, %v6070
    %v6199 = vpack.c.b16 %v6071, %v6071
    %v6200 = vpack.c.b16 %v6072, %v6072
    %v6201 = vpack.c.b16 %v6073, %v6073
    %v6202 = vpack.c.b16 %v6074, %v6074
    %v6203 = vpack.c.b16 %v6075, %v6075
    %v6204 = vpack.c.b16 %v6076, %v6076
    %v6205 = vpack.c.b16 %v6077, %v6077
    %v6206 = vpack.c.b16 %v6078, %v6078
    %v6207 = vpack.c.b16 %v6079, %v6079
    %v6208 = vpack.c.b16 %v6080, %v6080
    %v6209 = vpack.c.b16 %v6081, %v6081
    %v6210 = vpack.c.b16 %v6082, %v6082
    %v6211 = vpack.c.b16 %v6083, %v6083
    %v6212 = vpack.c.b16 %v6084, %v6084
    %v6213 = vpack.c.b16 %v6085, %v6085
    %v6214 = vpack.c.b16 %v6086, %v6086
    %v6215 = vpack.c.b16 %v6087, %v6087
    %v6216 = vpack.c.b16 %v6088, %v6088
    %v6217 = vpack.c.b16 %v6089, %v6089
    %v6218 = vpack.c.b16 %v6090, %v6090
    %v6219 = vpack.c.b16 %v6091, %v6091
    %v6220 = vpack.c.b16 %v6092, %v6092
    %v6221 = vpack.c.b16 %v6093, %v6093
    %v6222 = vpack.c.b16 %v6094, %v6094
    %v6223 = vpack.c.b16 %v6095, %v6095
    %v6224 = vpack.c.b16 %v6096, %v6096
    %v6225 = vpack.c.b16 %v6097, %v6097
    %v6226 = vpack.c.b16 %v6098, %v6098
    %v6227 = vpack.c.b16 %v6099, %v6099
    %v6228 = vpack.c.b16 %v6100, %v6100
    %v6229 = vpack.c.b16 %v6101, %v6101
    %v6230 = vpack.c.b16 %v6102, %v6102
    %v6231 = vpack.c.b16 %v6103, %v6103
    %v6232 = vpack.c.b16 %v6104, %v6104
    %v6233 = vpack.c.b16 %v6105, %v6105
    %v6234 = vpack.c.b16 %v6106, %v6106
    %v6235 = vpack.c.b16 %v6107, %v6107
    %v6236 = vpack.c.b16 %v6108, %v6108
    %v6237 = vpack.c.b16 %v6109, %v6109
    %v6238 = vpack.c.b16 %v6110, %v6110
    %v6239 = vpack.c.b16 %v6111, %v6111
    %v6240 = vpack.c.b16 %v6112, %v6112
    %v6241 = vpack.c.b16 %v6113, %v6113
    %v6242 = vpack.c.b16 %v6114, %v6114
    %v6243 = vpack.c.b16 %v6115, %v6115
    %v6244 = vpack.c.b16 %v6116, %v6116
    %v6245 = vpack.c.b16 %v6117, %v6117
    %v6246 = vpack.c.b16 %v6118, %v6118
    %v6247 = vpack.c.b16 %v6119, %v6119
    %v6248 = vpack.c.b16 %v6120, %v6120
    %v6249 = vpack.c.b16 %v6121, %v6121
    %v6250 = vpack.c.b16 %v6122, %v6122
    %v6251 = vpack.c.b16 %v6123, %v6123
    %v6252 = vpack.c.b16 %v6124, %v6124
    %v6253 = vpack.c.b16 %v6125, %v6125
    %v6254 = vpack.c.b16 %v6126, %v6126
    %v6255 = vpack.c.b16 %v6127, %v6127
    %v6256 = vpack.c.b16 %v6128, %v6128
    %v6257 = vpack.c.b16 %v6129, %v6129
    %v6258 = vpack.c.b16 %v6130, %v6130
    %v6259 = vpack.c.b16 %v6131, %v6131
    %v6260 = vpack.c.b16 %v6132, %v6132
    %v6261 = vpack.c.b16 %v6133, %v6133
    %v6262 = vpack.c.b16 %v6134, %v6134
    %v6263 = vpack.c.b16 %v6135, %v6135
    %v6264 = vpack.c.b16 %v6136, %v6136
    %v6265 = vpack.c.b16 %v6137, %v6137
    %v6266 = vpack.c.b16 %v6138, %v6138
    %v6267 = vpack.c.b16 %v6139, %v6139
    %v6268 = vpack.c.b16 %v6140, %v6140
    %v6269 = vpack.c.b16 %v6141, %v6141
    %v6270 = vpack.c.b16 %v6142, %v6142
    %v6271 = vpack.c.b16 %v6143, %v6143
    %v6272 = vpack.c.b16 %v6144, %v6144
    %v6273 = vpack.c.b16 %v6145, %v6145
    %v6274 = vpack.c.b16 %v6146, %v6146
    %v6275 = vpack.c.b16 %v6147, %v6147
    %v6276 = vpack.c.b16 %v6148, %v6148
    %v6277 = vpack.c.b16 %v6149, %v6149
    %v6278 = vpack.c.b16 %v6150, %v6150
    %v6279 = vpack.c.b16 %v6151, %v6151
    %v6280 = vpack.c.b16 %v6152, %v6152
    %v6281 = vpack.c.b16 %v6153, %v6153
    %v6282 = vpack.c.b16 %v6154, %v6154
    %v6283 = vpack.c.b16 %v6155, %v6155
    %v6284 = vpack.c.b16 %v6156, %v6156
    %v6285 = vpack.c.b16 %v6157, %v6157
    %v6286 = vpack.c.b16 %v6158, %v6158
    %v6287 = vpack.c.b16 %v6159, %v6159
    %v6288 = vpack.c.b16 %v6160, %v6160
    %v6289 = vpack.c.b16 %v6161, %v6161
    %v6290 = vpack.c.b16 %v6162, %v6162
    %v6291 = vpack.c.b16 %v6163, %v6163
    %v6292 = vpack.c.b16 %v6164, %v6164
    %v6293 = vpack.c.b16 %v6165, %v6165
    %v6294 = vpack.c.b16 %v6166, %v6166
    %v6295 = vpack.c.b16 %v6167, %v6167
    %v6296 = vpack.c.b16 %v6168, %v6168
    %v6297 = vpack.c.b16 %v6169, %v6169
    %v6298 = vpack.c.b16 %v6170, %v6170
    %v6299 = vunpack.c.l.b16 %v6171
    %v6300 = vunpack.c.l.b16 %v6172
    %v6301 = vunpack.c.l.b16 %v6173
    %v6302 = vunpack.c.l.b16 %v6174
    %v6303 = vunpack.c.l.b16 %v6175
    %v6304 = vunpack.c.l.b16 %v6176
    %v6305 = vunpack.c.l.b16 %v6177
    %v6306 = vunpack.c.l.b16 %v6178
    %v6307 = vunpack.c.l.b16 %v6179
    %v6308 = vunpack.c.l.b16 %v6180
    %v6309 = vunpack.c.l.b16 %v6181
    %v6310 = vunpack.c.l.b16 %v6182
    %v6311 = vunpack.c.l.b16 %v6183
    %v6312 = vunpack.c.l.b16 %v6184
    %v6313 = vunpack.c.l.b16 %v6185
    %v6314 = vunpack.c.l.b16 %v6186
    %v6315 = vunpack.c.l.b16 %v6187
    %v6316 = vunpack.c.l.b16 %v6188
    %v6317 = vunpack.c.l.b16 %v6189
    %v6318 = vunpack.c.l.b16 %v6190
    %v6319 = vunpack.c.l.b16 %v6191
    %v6320 = vunpack.c.l.b16 %v6192
    %v6321 = vunpack.c.l.b16 %v6193
    %v6322 = vunpack.c.l.b16 %v6194
    %v6323 = vunpack.c.l.b16 %v6195
    %v6324 = vunpack.c.l.b16 %v6196
    %v6325 = vunpack.c.l.b16 %v6197
    %v6326 = vunpack.c.l.b16 %v6198
    %v6327 = vunpack.c.l.b16 %v6199
    %v6328 = vunpack.c.l.b16 %v6200
    %v6329 = vunpack.c.l.b16 %v6201
    %v6330 = vunpack.c.l.b16 %v6202
    %v6331 = vunpack.c.l.b16 %v6203
    %v6332 = vunpack.c.l.b16 %v6204
    %v6333 = vunpack.c.l.b16 %v6205
    %v6334 = vunpack.c.l.b16 %v6206
    %v6335 = vunpack.c.l.b16 %v6207
    %v6336 = vunpack.c.l.b16 %v6208
    %v6337 = vunpack.c.l.b16 %v6209
    %v6338 = vunpack.c.l.b16 %v6210
    %v6339 = vunpack.c.l.b16 %v6211
    %v6340 = vunpack.c.l.b16 %v6212
    %v6341 = vunpack.c.l.b16 %v6213
    %v6342 = vunpack.c.l.b16 %v6214
    %v6343 = vunpack.c.l.b16 %v6215
    %v6344 = vunpack.c.l.b16 %v6216
    %v6345 = vunpack.c.l.b16 %v6217
    %v6346 = vunpack.c.l.b16 %v6218
    %v6347 = vunpack.c.l.b16 %v6219
    %v6348 = vunpack.c.l.b16 %v6220
    %v6349 = vunpack.c.l.b16 %v6221
    %v6350 = vunpack.c.l.b16 %v6222
    %v6351 = vunpack.c.l.b16 %v6223
    %v6352 = vunpack.c.l.b16 %v6224
    %v6353 = vunpack.c.l.b16 %v6225
    %v6354 = vunpack.c.l.b16 %v6226
    %v6355 = vunpack.c.l.b16 %v6227
    %v6356 = vunpack.c.l.b16 %v6228
    %v6357 = vunpack.c.l.b16 %v6229
    %v6358 = vunpack.c.l.b16 %v6230
    %v6359 = vunpack.c.l.b16 %v6231
    %v6360 = vunpack.c.l.b16 %v6232
    %v6361 = vunpack.c.l.b16 %v6233
    %v6362 = vunpack.c.l.b16 %v6234
    %v6363 = vunpack.c.l.b16 %v6235
    %v6364 = vunpack.c.l.b16 %v6236
    %v6365 = vunpack.c.l.b16 %v6237
    %v6366 = vunpack.c.l.b16 %v6238
    %v6367 = vunpack.c.l.b16 %v6239
    %v6368 = vunpack.c.l.b16 %v6240
    %v6369 = vunpack.c.l.b16 %v6241
    %v6370 = vunpack.c.l.b16 %v6242
    %v6371 = vunpack.c.l.b16 %v6243
    %v6372 = vunpack.c.l.b16 %v6244
    %v6373 = vunpack.c.l.b16 %v6245
    %v6374 = vunpack.c.l.b16 %v6246
    %v6375 = vunpack.c.l.b16 %v6247
    %v6376 = vunpack.c.l.b16 %v6248
    %v6377 = vunpack.c.l.b16 %v6249
    %v6378 = vunpack.c.l.b16 %v6250
    %v6379 = vunpack.c.l.b16 %v6251
    %v6380 = vunpack.c.l.b16 %v6252
    %v6381 = vunpack.c.l.b16 %v6253
    %v6382 = vunpack.c.l.b16 %v6254
    %v6383 = vunpack.c.l.b16 %v6255
    %v6384 = vunpack.c.l.b16 %v6256
    %v6385 = vunpack.c.l.b16 %v6257
    %v6386 = vunpack.c.l.b16 %v6258
    %v6387 = vunpack.c.l.b16 %v6259
    %v6388 = vunpack.c.l.b16 %v6260
    %v6389 = vunpack.c.l.b16 %v6261
    %v6390 = vunpack.c.l.b16 %v6262
    %v6391 = vunpack.c.l.b16 %v6263
    %v6392 = vunpack.c.l.b16 %v6264
    %v6393 = vunpack.c.l.b16 %v6265
    %v6394 = vunpack.c.l.b16 %v6266
    %v6395 = vunpack.c.l.b16 %v6267
    %v6396 = vunpack.c.l.b16 %v6268
    %v6397 = vunpack.c.l.b16 %v6269
    %v6398 = vunpack.c.l.b16 %v6270
    %v6399 = vunpack.c.l.b16 %v6271
    %v6400 = vunpack.c.l.b16 %v6272
    %v6401 = vunpack.c.l.b16 %v6273
    %v6402 = vunpack.c.l.b16 %v6274
    %v6403 = vunpack.c.l.b16 %v6275
    %v6404 = vunpack.c.l.b16 %v6276
    %v6405 = vunpack.c.l.b16 %v6277
    %v6406 = vunpack.c.l.b16 %v6278
    %v6407 = vunpack.c.l.b16 %v6279
    %v6408 = vunpack.c.l.b16 %v6280
    %v6409 = vunpack.c.l.b16 %v6281
    %v6410 = vunpack.c.l.b16 %v6282
    %v6411 = vunpack.c.l.b16 %v6283
    %v6412 = vunpack.c.l.b16 %v6284
    %v6413 = vunpack.c.l.b16 %v6285
    %v6414 = vunpack.c.l.b16 %v6286
    %v6415 = vunpack.c.l.b16 %v6287
    %v6416 = vunpack.c.l.b16 %v6288
    %v6417 = vunpack.c.l.b16 %v6289
    %v6418 = vunpack.c.l.b16 %v6290
    %v6419 = vunpack.c.l.b16 %v6291
    %v6420 = vunpack.c.l.b16 %v6292
    %v6421 = vunpack.c.l.b16 %v6293
    %v6422 = vunpack.c.l.b16 %v6294
    %v6423 = vunpack.c.l.b16 %v6295
    %v6424 = vunpack.c.l.b16 %v6296
    %v6425 = vunpack.c.l.b16 %v6297
    %v6426 = vunpack.c.l.b16 %v6298
    %vm6427 = vcmask 1041409
    %v6428 = vsel %vm6427, %v6300, %v6299
    %vm6429 = vcmask 1042434
    %v6430 = vsel %vm6429, %v6301, %v6428
    %vm6431 = vcmask 1043459
    %v6432 = vsel %vm6431, %v6302, %v6430
    %vm6433 = vcmask 1044484
    %v6434 = vsel %vm6433, %v6303, %v6432
    %vm6435 = vcmask 1045509
    %v6436 = vsel %vm6435, %v6304, %v6434
    %vm6437 = vcmask 1046534
    %v6438 = vsel %vm6437, %v6305, %v6436
    %vm6439 = vcmask 1047559
    %v6440 = vsel %vm6439, %v6306, %v6438
    %v6441 = vsel %vm6427, %v6308, %v6307
    %v6442 = vsel %vm6429, %v6309, %v6441
    %v6443 = vsel %vm6431, %v6310, %v6442
    %v6444 = vsel %vm6433, %v6311, %v6443
    %v6445 = vsel %vm6435, %v6312, %v6444
    %v6446 = vsel %vm6437, %v6313, %v6445
    %v6447 = vsel %vm6439, %v6314, %v6446
    %v6448 = vsel %vm6427, %v6316, %v6315
    %v6449 = vsel %vm6429, %v6317, %v6448
    %v6450 = vsel %vm6431, %v6318, %v6449
    %v6451 = vsel %vm6433, %v6319, %v6450
    %v6452 = vsel %vm6435, %v6320, %v6451
    %v6453 = vsel %vm6437, %v6321, %v6452
    %v6454 = vsel %vm6439, %v6322, %v6453
    %v6455 = vsel %vm6427, %v6324, %v6323
    %v6456 = vsel %vm6429, %v6325, %v6455
    %v6457 = vsel %vm6431, %v6326, %v6456
    %v6458 = vsel %vm6433, %v6327, %v6457
    %v6459 = vsel %vm6435, %v6328, %v6458
    %v6460 = vsel %vm6437, %v6329, %v6459
    %v6461 = vsel %vm6439, %v6330, %v6460
    %v6462 = vsel %vm6427, %v6332, %v6331
    %v6463 = vsel %vm6429, %v6333, %v6462
    %v6464 = vsel %vm6431, %v6334, %v6463
    %v6465 = vsel %vm6433, %v6335, %v6464
    %v6466 = vsel %vm6435, %v6336, %v6465
    %v6467 = vsel %vm6437, %v6337, %v6466
    %v6468 = vsel %vm6439, %v6338, %v6467
    %v6469 = vsel %vm6427, %v6340, %v6339
    %v6470 = vsel %vm6429, %v6341, %v6469
    %v6471 = vsel %vm6431, %v6342, %v6470
    %v6472 = vsel %vm6433, %v6343, %v6471
    %v6473 = vsel %vm6435, %v6344, %v6472
    %v6474 = vsel %vm6437, %v6345, %v6473
    %v6475 = vsel %vm6439, %v6346, %v6474
    %v6476 = vsel %vm6427, %v6348, %v6347
    %v6477 = vsel %vm6429, %v6349, %v6476
    %v6478 = vsel %vm6431, %v6350, %v6477
    %v6479 = vsel %vm6433, %v6351, %v6478
    %v6480 = vsel %vm6435, %v6352, %v6479
    %v6481 = vsel %vm6437, %v6353, %v6480
    %v6482 = vsel %vm6439, %v6354, %v6481
    %v6483 = vsel %vm6427, %v6356, %v6355
    %v6484 = vsel %vm6429, %v6357, %v6483
    %v6485 = vsel %vm6431, %v6358, %v6484
    %v6486 = vsel %vm6433, %v6359, %v6485
    %v6487 = vsel %vm6435, %v6360, %v6486
    %v6488 = vsel %vm6437, %v6361, %v6487
    %v6489 = vsel %vm6439, %v6362, %v6488
    %v6490 = vsel %vm6427, %v6364, %v6363
    %v6491 = vsel %vm6429, %v6365, %v6490
    %v6492 = vsel %vm6431, %v6366, %v6491
    %v6493 = vsel %vm6433, %v6367, %v6492
    %v6494 = vsel %vm6435, %v6368, %v6493
    %v6495 = vsel %vm6437, %v6369, %v6494
    %v6496 = vsel %vm6439, %v6370, %v6495
    %v6497 = vsel %vm6427, %v6372, %v6371
    %v6498 = vsel %vm6429, %v6373, %v6497
    %v6499 = vsel %vm6431, %v6374, %v6498
    %v6500 = vsel %vm6433, %v6375, %v6499
    %v6501 = vsel %vm6435, %v6376, %v6500
    %v6502 = vsel %vm6437, %v6377, %v6501
    %v6503 = vsel %vm6439, %v6378, %v6502
    %v6504 = vsel %vm6427, %v6380, %v6379
    %v6505 = vsel %vm6429, %v6381, %v6504
    %v6506 = vsel %vm6431, %v6382, %v6505
    %v6507 = vsel %vm6433, %v6383, %v6506
    %v6508 = vsel %vm6435, %v6384, %v6507
    %v6509 = vsel %vm6437, %v6385, %v6508
    %v6510 = vsel %vm6439, %v6386, %v6509
    %v6511 = vsel %vm6427, %v6388, %v6387
    %v6512 = vsel %vm6429, %v6389, %v6511
    %v6513 = vsel %vm6431, %v6390, %v6512
    %v6514 = vsel %vm6433, %v6391, %v6513
    %v6515 = vsel %vm6435, %v6392, %v6514
    %v6516 = vsel %vm6437, %v6393, %v6515
    %v6517 = vsel %vm6439, %v6394, %v6516
    %v6518 = vsel %vm6427, %v6396, %v6395
    %v6519 = vsel %vm6429, %v6397, %v6518
    %v6520 = vsel %vm6431, %v6398, %v6519
    %v6521 = vsel %vm6433, %v6399, %v6520
    %v6522 = vsel %vm6435, %v6400, %v6521
    %v6523 = vsel %vm6437, %v6401, %v6522
    %v6524 = vsel %vm6439, %v6402, %v6523
    %v6525 = vsel %vm6427, %v6404, %v6403
    %v6526 = vsel %vm6429, %v6405, %v6525
    %v6527 = vsel %vm6431, %v6406, %v6526
    %v6528 = vsel %vm6433, %v6407, %v6527
    %v6529 = vsel %vm6435, %v6408, %v6528
    %v6530 = vsel %vm6437, %v6409, %v6529
    %v6531 = vsel %vm6439, %v6410, %v6530
    %v6532 = vsel %vm6427, %v6412, %v6411
    %v6533 = vsel %vm6429, %v6413, %v6532
    %v6534 = vsel %vm6431, %v6414, %v6533
    %v6535 = vsel %vm6433, %v6415, %v6534
    %v6536 = vsel %vm6435, %v6416, %v6535
    %v6537 = vsel %vm6437, %v6417, %v6536
    %v6538 = vsel %vm6439, %v6418, %v6537
    %v6539 = vsel %vm6427, %v6420, %v6419
    %v6540 = vsel %vm6429, %v6421, %v6539
    %v6541 = vsel %vm6431, %v6422, %v6540
    %v6542 = vsel %vm6433, %v6423, %v6541
    %v6543 = vsel %vm6435, %v6424, %v6542
    %v6544 = vsel %vm6437, %v6425, %v6543
    %v6545 = vsel %vm6439, %v6426, %v6544
    %v6546 = vpack.c.b16 %v6440, %v6440
    %v6547 = vpack.c.b16 %v6447, %v6447
    %v6548 = vpack.c.b16 %v6454, %v6454
    %v6549 = vpack.c.b16 %v6461, %v6461
    %v6550 = vpack.c.b16 %v6468, %v6468
    %v6551 = vpack.c.b16 %v6475, %v6475
    %v6552 = vpack.c.b16 %v6482, %v6482
    %v6553 = vpack.c.b16 %v6489, %v6489
    %v6554 = vpack.c.b16 %v6496, %v6496
    %v6555 = vpack.c.b16 %v6503, %v6503
    %v6556 = vpack.c.b16 %v6510, %v6510
    %v6557 = vpack.c.b16 %v6517, %v6517
    %v6558 = vpack.c.b16 %v6524, %v6524
    %v6559 = vpack.c.b16 %v6531, %v6531
    %v6560 = vpack.c.b16 %v6538, %v6538
    %v6561 = vpack.c.b16 %v6545, %v6545
    %6578 = vst [vmem:[%s3] sm:$0xf] %v6546
    %6579 = vst [vmem:[%s3 + $0x4] sm:$0xf] %v6547
    %6580 = vst [vmem:[%s3 + $0x8] sm:$0xf] %v6548
    %6581 = vst [vmem:[%s3 + $0xc] sm:$0xf] %v6549
    %6582 = vst [vmem:[%s3 + $0x10] sm:$0xf] %v6550
    %6583 = vst [vmem:[%s3 + $0x14] sm:$0xf] %v6551
    %6584 = vst [vmem:[%s3 + $0x18] sm:$0xf] %v6552
    %6585 = vst [vmem:[%s3 + $0x1c] sm:$0xf] %v6553
    %6586 = vst [vmem:[%s3 + $0x20] sm:$0xf] %v6554
    %6587 = vst [vmem:[%s3 + $0x24] sm:$0xf] %v6555
    %6588 = vst [vmem:[%s3 + $0x28] sm:$0xf] %v6556
    %6589 = vst [vmem:[%s3 + $0x2c] sm:$0xf] %v6557
    %6590 = vst [vmem:[%s3 + $0x30] sm:$0xf] %v6558
    %6591 = vst [vmem:[%s3 + $0x34] sm:$0xf] %v6559
    %6592 = vst [vmem:[%s3 + $0x38] sm:$0xf] %v6560
    %6593 = vst [vmem:[%s3 + $0x3c] sm:$0xf] %v6561
    // Predicated region
    $region22: #{simple_cnn_forward.4} parent=1 // pred_check
      _
    $region23: #{simple_cnn_forward.4} parent=1 // pred_check_branch
      %6595 = sbr.rel (0) target = $region25
    $region24: #{simple_cnn_forward.4} parent=1 // pred_region
      _
    $region25: #{simple_cnn_forward.4} parent=1 // pred_fallthru
      _
    // Predicated region
    $region26: #{simple_cnn_forward.4} parent=1 // pred_check
      _
    $region27: #{simple_cnn_forward.4} parent=1 // pred_check_branch
      %6597 = sbr.rel (0) target = $region29
    $region28: #{simple_cnn_forward.4} parent=1 // pred_region
      _
    $region29: #{simple_cnn_forward.4} parent=1 // pred_fallthru
      _
    %6598 = vsyncpa [#allocation3], 1
    %6599 = vsyncpa [#allocation5], 1

</llo_original>
